<compile_context>
chip_gen: v6e
topology: v6e:2x2x1
jax: 0.10.0
libtpu: 0.0.40
codegen_flags: <defaults>
</compile_context>

<pallas_src>
import functools

import numpy as np
import jax
import jax.numpy as jnp
from jax.experimental import pallas as pl
from jax.experimental.pallas import tpu as pltpu


_KS = 5            # conv kernel size
_HALO = _KS // 2   # 'same' padding = 2
_CMID = 32         # hidden width (and padded layer-1 Cin / patch slot width)


# ----------------------------------------------------------------------------
# Fused Pallas kernel: one batch element per grid step.
# ----------------------------------------------------------------------------
def _dualnet_kernel(x_ref, d_ref,
                    w1_ref, b1_ref, w2_ref, b2_ref, w3_ref, b3_ref,
                    m_ref, a_ref, o_ref, pat_ref, *, H, W):
    """conv5x5+PReLU -> conv5x5+PReLU -> conv5x5, out = dual + block(x)."""
    HW = H * W
    C = _CMID

    def im2col(x):
        # x: (32, H*W).  For tap t = ky*5+kx with (dy, dx) = (ky-2, kx-2):
        #   pat[t*32 + ci, p] = x[ci, p + dy*W + dx]   if the source pixel is
        #                                              inside the image,
        #                     = 0                      otherwise ('same' pad).
        # The shift is an XLU lane-rotate; the border zeroing is a multiply by
        # a precomputed static per-tap mask.  Sublane offsets t*32 are aligned.
        for ky in range(_KS):
            for kx in range(_KS):
                t = ky * _KS + kx
                s = (ky - _HALO) * W + (kx - _HALO)
                shifted = x if s == 0 else pltpu.roll(x, shift=(-s) % HW, axis=1)
                pat_ref[t * C:(t + 1) * C, :] = shifted * m_ref[t:t + 1, :]

    def conv(w_ref, b_ref):
        # Single K=800 MXU matmul per layer: (Cout, 800) x (800, HW).
        y = jnp.dot(w_ref[...], pat_ref[...],
                    preferred_element_type=jnp.float32)
        return y + b_ref[...]                       # (Cout, HW) + (Cout, 1)

    # Layer 1: conv(3*Ca -> 32) + PReLU (alpha from SMEM).
    im2col(x_ref[0])
    y = conv(w1_ref, b1_ref)
    y = jnp.where(y > 0, y, a_ref[0, 0] * y)

    # Layer 2: conv(32 -> 32) + PReLU.
    im2col(y)
    y = conv(w2_ref, b2_ref)
    y = jnp.where(y > 0, y, a_ref[0, 1] * y)

    # Layer 3: conv(32 -> Ca) + residual (dual + block(x)).
    im2col(y)
    y = conv(w3_ref, b3_ref)                        # (Ca, HW)
    o_ref[0] = (d_ref[0] + y).astype(o_ref.dtype)


# ----------------------------------------------------------------------------
# Wrapper: layout plumbing + pallas_call
# ----------------------------------------------------------------------------
def dualnet_forward(params, dual, primal_projected, projections):
    """Inputs are NCHW (PyTorch convention); output is NCHW as well."""
    N, Ca, H, W = dual.shape
    C0 = 3 * Ca
    assert C0 <= _CMID, "layer-1 channel padding assumes 3*n_angles <= 32"
    HW = H * W
    K = _KS * _KS * _CMID                           # 800: im2col depth

    # NCHW -> (N, C, H*W); channel concat; zero-pad channels 12 -> 32.
    x = jnp.concatenate([dual, primal_projected, projections], axis=1)
    x = x.reshape(N, C0, HW)
    x = jnp.pad(x, ((0, 0), (0, _CMID - C0), (0, 0)))
    d = dual.reshape(N, Ca, HW)

    def to_mat(w_hwio):
        # (ky, kx, cin, cout) -> zero-pad cin to 32 -> (cout, 25*32),
        # flattened as (ky*5 + kx)*32 + cin, matching the patch-row order.
        cin = w_hwio.shape[2]
        w = jnp.pad(w_hwio, ((0, 0), (0, 0), (0, _CMID - cin), (0, 0)))
        cout = w.shape[3]
        return jnp.transpose(w, (3, 0, 1, 2)).reshape(cout, K)

    w1m, w2m, w3m = to_mat(params["w1"]), to_mat(params["w2"]), to_mat(params["w3"])
    b1 = params["b1"].reshape(_CMID, 1)
    b2 = params["b2"].reshape(_CMID, 1)
    b3 = params["b3"].reshape(Ca, 1)
    alphas = jnp.asarray([[params["a1"], params["a2"]]], dtype=jnp.float32)

    # Static per-tap validity masks (zero = 'same' zero-padding position).
    masks = np.zeros((_KS * _KS, HW), np.float32)
    for ky in range(_KS):
        for kx in range(_KS):
            dy, dx = ky - _HALO, kx - _HALO
            m2 = np.zeros((H, W), np.float32)
            m2[max(0, -dy):min(H, H - dy), max(0, -dx):min(W, W - dx)] = 1.0
            masks[ky * _KS + kx] = m2.reshape(HW)
    masks = jnp.asarray(masks)

    kernel = functools.partial(_dualnet_kernel, H=H, W=W)
    out = pl.pallas_call(
        kernel,
        out_shape=jax.ShapeDtypeStruct((N, Ca, HW), dual.dtype),
        grid=(N,),
        in_specs=[
            pl.BlockSpec((1, _CMID, HW), lambda n: (n, 0, 0)),   # x (cat+pad)
            pl.BlockSpec((1, Ca, HW), lambda n: (n, 0, 0)),      # dual (resid.)
            pl.BlockSpec((_CMID, K), lambda n: (0, 0)),          # w1
            pl.BlockSpec((_CMID, 1), lambda n: (0, 0)),          # b1
            pl.BlockSpec((_CMID, K), lambda n: (0, 0)),          # w2
            pl.BlockSpec((_CMID, 1), lambda n: (0, 0)),          # b2
            pl.BlockSpec((Ca, K), lambda n: (0, 0)),             # w3
            pl.BlockSpec((Ca, 1), lambda n: (0, 0)),             # b3
            pl.BlockSpec((_KS * _KS, HW), lambda n: (0, 0)),     # tap masks
            pl.BlockSpec(memory_space=pltpu.MemorySpace.SMEM),   # PReLU alphas
        ],
        out_specs=pl.BlockSpec((1, Ca, HW), lambda n: (n, 0, 0)),
        scratch_shapes=[pltpu.VMEM((K, HW), jnp.float32)],       # im2col buffer
        compiler_params=pltpu.CompilerParams(
            dimension_semantics=("parallel",)),
    )(x, d, w1m, b1, w2m, b2, w3m, b3, masks, alphas)
    return out.reshape(N, Ca, H, W)


# ----------------------------------------------------------------------------
# Parameters + pure-JAX reference
# ----------------------------------------------------------------------------
def init_dualnet_params(key, n_angles):
    """Deterministic, PyTorch-shaped parameters (weights stored HWIO)."""
    n_ch = 3 * n_angles

    def conv_init(k, cin, cout, ksize=5):
        wk, bk = jax.random.split(k)
        bound = 1.0 / np.sqrt(cin * ksize * ksize)
        w = jax.random.uniform(wk, (ksize, ksize, cin, cout), jnp.float32,
                               -bound, bound)
        b = jax.random.uniform(bk, (cout,), jnp.float32, -bound, bound)
        return w, b

    k1, k2, k3 = jax.random.split(key, 3)
    w1, b1 = conv_init(k1, n_ch, 32)
    w2, b2 = conv_init(k2, 32, 32)
    w3, b3 = conv_init(k3, 32, n_angles)
    # nn.PReLU() default: single parameter initialized to 0.25
    return dict(w1=w1, b1=b1, w2=w2, b2=b2, w3=w3, b3=b3, a1=0.25, a2=0.25)


def dualnet_reference(params, dual, primal_projected, projections):
    """Same math via lax.conv (NCHW), used as a correctness check."""
    x = jnp.concatenate([dual, primal_projected, projections], axis=1)

    def conv(x, w, b):
        y = jax.lax.conv_general_dilated(
            x, w, (1, 1), "SAME",
            dimension_numbers=("NCHW", "HWIO", "NCHW"),
            precision=jax.lax.Precision.HIGHEST)
        return y + b[None, :, None, None]

    prelu = lambda v, a: jnp.where(v > 0, v, a * v)
    h = prelu(conv(x, params["w1"], params["b1"]), params["a1"])
    h = prelu(conv(h, params["w2"], params["b2"]), params["a2"])
    return dual + conv(h, params["w3"], params["b3"])


if __name__ == "__main__":
    n_angles, N, H, W = 4, 2, 16, 16
    key = jax.random.PRNGKey(0)
    kp, kd, kpp, kpr = jax.random.split(key, 4)

    params = init_dualnet_params(kp, n_angles)
    dual = jax.random.normal(kd, (N, n_angles, H, W), jnp.float32)
    primal_projected = jax.random.normal(kpp, (N, n_angles, H, W), jnp.float32)
    projections = jax.random.normal(kpr, (N, n_angles, H, W), jnp.float32)

    out = dualnet_forward(params, dual, primal_projected, projections)
    out = jax.block_until_ready(out)
    assert out.shape == (N, n_angles, H, W)

    ref = dualnet_reference(params, dual, primal_projected, projections)
    np.testing.assert_allclose(np.asarray(out), np.asarray(ref),
                               rtol=5e-3, atol=5e-3)
    print("KERNEL_OK")
</pallas_src>

<mosaic_0001>
module attributes {stable_mosaic.version = 11 : i64} {
  func.func @_dualnet_kernel(%arg0: i32, %arg1: memref<1x32x256xf32, #tpu.memory_space<vmem>>, %arg2: memref<1x4x256xf32, #tpu.memory_space<vmem>>, %arg3: memref<32x800xf32, #tpu.memory_space<vmem>>, %arg4: memref<32x1xf32, #tpu.memory_space<vmem>>, %arg5: memref<32x800xf32, #tpu.memory_space<vmem>>, %arg6: memref<32x1xf32, #tpu.memory_space<vmem>>, %arg7: memref<4x800xf32, #tpu.memory_space<vmem>>, %arg8: memref<4x1xf32, #tpu.memory_space<vmem>>, %arg9: memref<25x256xf32, #tpu.memory_space<vmem>>, %arg10: memref<1x2xf32, #tpu.memory_space<smem>>, %arg11: memref<1x4x256xf32, #tpu.memory_space<vmem>>, %arg12: memref<800x256xf32, #tpu.memory_space<vmem>>) attributes {dimension_semantics = [#tpu.dimension_semantics<parallel>], iteration_bounds = array<i64: 2>, scalar_prefetch = 0 : i64, scratch_operands = 1 : i64, tpu.core_type = #tpu.core_type<tc>, window_params = [{transform_indices = @transform_0, window_bounds = array<i64: 1, 32, 256>}, {transform_indices = @transform_1, window_bounds = array<i64: 1, 4, 256>}, {pipeline_mode = #tpu.pipeline_mode<synchronous>, transform_indices = @transform_2, window_bounds = array<i64: 32, 800>}, {pipeline_mode = #tpu.pipeline_mode<synchronous>, transform_indices = @transform_3, window_bounds = array<i64: 32, 1>}, {pipeline_mode = #tpu.pipeline_mode<synchronous>, transform_indices = @transform_4, window_bounds = array<i64: 32, 800>}, {pipeline_mode = #tpu.pipeline_mode<synchronous>, transform_indices = @transform_5, window_bounds = array<i64: 32, 1>}, {pipeline_mode = #tpu.pipeline_mode<synchronous>, transform_indices = @transform_6, window_bounds = array<i64: 4, 800>}, {pipeline_mode = #tpu.pipeline_mode<synchronous>, transform_indices = @transform_7, window_bounds = array<i64: 4, 1>}, {pipeline_mode = #tpu.pipeline_mode<synchronous>, transform_indices = @transform_8, window_bounds = array<i64: 25, 256>}, {transform_indices = @transform_9, window_bounds = array<i64: 1, 2>}, {transform_indices = @transform_10, window_bounds = array<i64: 1, 4, 256>}]} {
    %c0 = arith.constant 0 : index
    %c0_0 = arith.constant 0 : index
    %c0_1 = arith.constant 0 : index
    %0 = vector.load %arg1[%c0, %c0_0, %c0_1] : memref<1x32x256xf32, #tpu.memory_space<vmem>>, vector<1x32x256xf32>
    %1 = vector.shape_cast %0 : vector<1x32x256xf32> to vector<32x256xf32>
    %c34_i32 = arith.constant 34 : i32
    %2 = tpu.dynamic_rotate %1 by %c34_i32 dim 1 : vector<32x256xf32>, i32 -> vector<32x256xf32>
    %c0_2 = arith.constant 0 : index
    %c0_3 = arith.constant 0 : index
    %3 = vector.load %arg9[%c0_2, %c0_3] : memref<25x256xf32, #tpu.memory_space<vmem>>, vector<1x256xf32>
    %4 = vector.broadcast %3 : vector<1x256xf32> to vector<32x256xf32>
    %5 = arith.mulf %2, %4 : vector<32x256xf32>
    %c0_4 = arith.constant 0 : index
    %c0_5 = arith.constant 0 : index
    %6 = vector.load %arg12[%c0_4, %c0_5] : memref<800x256xf32, #tpu.memory_space<vmem>>, vector<32x256xf32>
    tpu.vector_store %arg12[%c0_4, %c0_5], %5 {strides = array<i32>} : memref<800x256xf32, #tpu.memory_space<vmem>>, vector<32x256xf32>,
    %c33_i32 = arith.constant 33 : i32
    %7 = tpu.dynamic_rotate %1 by %c33_i32 dim 1 : vector<32x256xf32>, i32 -> vector<32x256xf32>
    %c1 = arith.constant 1 : index
    %c0_6 = arith.constant 0 : index
    %8 = vector.load %arg9[%c1, %c0_6] : memref<25x256xf32, #tpu.memory_space<vmem>>, vector<1x256xf32>
    %9 = vector.broadcast %8 : vector<1x256xf32> to vector<32x256xf32>
    %10 = arith.mulf %7, %9 : vector<32x256xf32>
    %c32 = arith.constant 32 : index
    %c0_7 = arith.constant 0 : index
    %11 = vector.load %arg12[%c32, %c0_7] : memref<800x256xf32, #tpu.memory_space<vmem>>, vector<32x256xf32>
    tpu.vector_store %arg12[%c32, %c0_7], %10 {strides = array<i32>} : memref<800x256xf32, #tpu.memory_space<vmem>>, vector<32x256xf32>,
    %c32_i32 = arith.constant 32 : i32
    %12 = tpu.dynamic_rotate %1 by %c32_i32 dim 1 : vector<32x256xf32>, i32 -> vector<32x256xf32>
    %c2 = arith.constant 2 : index
    %c0_8 = arith.constant 0 : index
    %13 = vector.load %arg9[%c2, %c0_8] : memref<25x256xf32, #tpu.memory_space<vmem>>, vector<1x256xf32>
    %14 = vector.broadcast %13 : vector<1x256xf32> to vector<32x256xf32>
    %15 = arith.mulf %12, %14 : vector<32x256xf32>
    %c64 = arith.constant 64 : index
    %c0_9 = arith.constant 0 : index
    %16 = vector.load %arg12[%c64, %c0_9] : memref<800x256xf32, #tpu.memory_space<vmem>>, vector<32x256xf32>
    tpu.vector_store %arg12[%c64, %c0_9], %15 {strides = array<i32>} : memref<800x256xf32, #tpu.memory_space<vmem>>, vector<32x256xf32>,
    %c31_i32 = arith.constant 31 : i32
    %17 = tpu.dynamic_rotate %1 by %c31_i32 dim 1 : vector<32x256xf32>, i32 -> vector<32x256xf32>
    %c3 = arith.constant 3 : index
    %c0_10 = arith.constant 0 : index
    %18 = vector.load %arg9[%c3, %c0_10] : memref<25x256xf32, #tpu.memory_space<vmem>>, vector<1x256xf32>
    %19 = vector.broadcast %18 : vector<1x256xf32> to vector<32x256xf32>
    %20 = arith.mulf %17, %19 : vector<32x256xf32>
    %c96 = arith.constant 96 : index
    %c0_11 = arith.constant 0 : index
    %21 = vector.load %arg12[%c96, %c0_11] : memref<800x256xf32, #tpu.memory_space<vmem>>, vector<32x256xf32>
    tpu.vector_store %arg12[%c96, %c0_11], %20 {strides = array<i32>} : memref<800x256xf32, #tpu.memory_space<vmem>>, vector<32x256xf32>,
    %c30_i32 = arith.constant 30 : i32
    %22 = tpu.dynamic_rotate %1 by %c30_i32 dim 1 : vector<32x256xf32>, i32 -> vector<32x256xf32>
    %c4 = arith.constant 4 : index
    %c0_12 = arith.constant 0 : index
    %23 = vector.load %arg9[%c4, %c0_12] : memref<25x256xf32, #tpu.memory_space<vmem>>, vector<1x256xf32>
    %24 = vector.broadcast %23 : vector<1x256xf32> to vector<32x256xf32>
    %25 = arith.mulf %22, %24 : vector<32x256xf32>
    %c128 = arith.constant 128 : index
    %c0_13 = arith.constant 0 : index
    %26 = vector.load %arg12[%c128, %c0_13] : memref<800x256xf32, #tpu.memory_space<vmem>>, vector<32x256xf32>
    tpu.vector_store %arg12[%c128, %c0_13], %25 {strides = array<i32>} : memref<800x256xf32, #tpu.memory_space<vmem>>, vector<32x256xf32>,
    %c18_i32 = arith.constant 18 : i32
    %27 = tpu.dynamic_rotate %1 by %c18_i32 dim 1 : vector<32x256xf32>, i32 -> vector<32x256xf32>
    %c5 = arith.constant 5 : index
    %c0_14 = arith.constant 0 : index
    %28 = vector.load %arg9[%c5, %c0_14] : memref<25x256xf32, #tpu.memory_space<vmem>>, vector<1x256xf32>
    %29 = vector.broadcast %28 : vector<1x256xf32> to vector<32x256xf32>
    %30 = arith.mulf %27, %29 : vector<32x256xf32>
    %c160 = arith.constant 160 : index
    %c0_15 = arith.constant 0 : index
    %31 = vector.load %arg12[%c160, %c0_15] : memref<800x256xf32, #tpu.memory_space<vmem>>, vector<32x256xf32>
    tpu.vector_store %arg12[%c160, %c0_15], %30 {strides = array<i32>} : memref<800x256xf32, #tpu.memory_space<vmem>>, vector<32x256xf32>,
    %c17_i32 = arith.constant 17 : i32
    %32 = tpu.dynamic_rotate %1 by %c17_i32 dim 1 : vector<32x256xf32>, i32 -> vector<32x256xf32>
    %c6 = arith.constant 6 : index
    %c0_16 = arith.constant 0 : index
    %33 = vector.load %arg9[%c6, %c0_16] : memref<25x256xf32, #tpu.memory_space<vmem>>, vector<1x256xf32>
    %34 = vector.broadcast %33 : vector<1x256xf32> to vector<32x256xf32>
    %35 = arith.mulf %32, %34 : vector<32x256xf32>
    %c192 = arith.constant 192 : index
    %c0_17 = arith.constant 0 : index
    %36 = vector.load %arg12[%c192, %c0_17] : memref<800x256xf32, #tpu.memory_space<vmem>>, vector<32x256xf32>
    tpu.vector_store %arg12[%c192, %c0_17], %35 {strides = array<i32>} : memref<800x256xf32, #tpu.memory_space<vmem>>, vector<32x256xf32>,
    %c16_i32 = arith.constant 16 : i32
    %37 = tpu.dynamic_rotate %1 by %c16_i32 dim 1 : vector<32x256xf32>, i32 -> vector<32x256xf32>
    %c7 = arith.constant 7 : index
    %c0_18 = arith.constant 0 : index
    %38 = vector.load %arg9[%c7, %c0_18] : memref<25x256xf32, #tpu.memory_space<vmem>>, vector<1x256xf32>
    %39 = vector.broadcast %38 : vector<1x256xf32> to vector<32x256xf32>
    %40 = arith.mulf %37, %39 : vector<32x256xf32>
    %c224 = arith.constant 224 : index
    %c0_19 = arith.constant 0 : index
    %41 = vector.load %arg12[%c224, %c0_19] : memref<800x256xf32, #tpu.memory_space<vmem>>, vector<32x256xf32>
    tpu.vector_store %arg12[%c224, %c0_19], %40 {strides = array<i32>} : memref<800x256xf32, #tpu.memory_space<vmem>>, vector<32x256xf32>,
    %c15_i32 = arith.constant 15 : i32
    %42 = tpu.dynamic_rotate %1 by %c15_i32 dim 1 : vector<32x256xf32>, i32 -> vector<32x256xf32>
    %c8 = arith.constant 8 : index
    %c0_20 = arith.constant 0 : index
    %43 = vector.load %arg9[%c8, %c0_20] : memref<25x256xf32, #tpu.memory_space<vmem>>, vector<1x256xf32>
    %44 = vector.broadcast %43 : vector<1x256xf32> to vector<32x256xf32>
    %45 = arith.mulf %42, %44 : vector<32x256xf32>
    %c256 = arith.constant 256 : index
    %c0_21 = arith.constant 0 : index
    %46 = vector.load %arg12[%c256, %c0_21] : memref<800x256xf32, #tpu.memory_space<vmem>>, vector<32x256xf32>
    tpu.vector_store %arg12[%c256, %c0_21], %45 {strides = array<i32>} : memref<800x256xf32, #tpu.memory_space<vmem>>, vector<32x256xf32>,
    %c14_i32 = arith.constant 14 : i32
    %47 = tpu.dynamic_rotate %1 by %c14_i32 dim 1 : vector<32x256xf32>, i32 -> vector<32x256xf32>
    %c9 = arith.constant 9 : index
    %c0_22 = arith.constant 0 : index
    %48 = vector.load %arg9[%c9, %c0_22] : memref<25x256xf32, #tpu.memory_space<vmem>>, vector<1x256xf32>
    %49 = vector.broadcast %48 : vector<1x256xf32> to vector<32x256xf32>
    %50 = arith.mulf %47, %49 : vector<32x256xf32>
    %c288 = arith.constant 288 : index
    %c0_23 = arith.constant 0 : index
    %51 = vector.load %arg12[%c288, %c0_23] : memref<800x256xf32, #tpu.memory_space<vmem>>, vector<32x256xf32>
    tpu.vector_store %arg12[%c288, %c0_23], %50 {strides = array<i32>} : memref<800x256xf32, #tpu.memory_space<vmem>>, vector<32x256xf32>,
    %c2_i32 = arith.constant 2 : i32
    %52 = tpu.dynamic_rotate %1 by %c2_i32 dim 1 : vector<32x256xf32>, i32 -> vector<32x256xf32>
    %c10 = arith.constant 10 : index
    %c0_24 = arith.constant 0 : index
    %53 = vector.load %arg9[%c10, %c0_24] : memref<25x256xf32, #tpu.memory_space<vmem>>, vector<1x256xf32>
    %54 = vector.broadcast %53 : vector<1x256xf32> to vector<32x256xf32>
    %55 = arith.mulf %52, %54 : vector<32x256xf32>
    %c320 = arith.constant 320 : index
    %c0_25 = arith.constant 0 : index
    %56 = vector.load %arg12[%c320, %c0_25] : memref<800x256xf32, #tpu.memory_space<vmem>>, vector<32x256xf32>
    tpu.vector_store %arg12[%c320, %c0_25], %55 {strides = array<i32>} : memref<800x256xf32, #tpu.memory_space<vmem>>, vector<32x256xf32>,
    %c1_i32 = arith.constant 1 : i32
    %57 = tpu.dynamic_rotate %1 by %c1_i32 dim 1 : vector<32x256xf32>, i32 -> vector<32x256xf32>
    %c11 = arith.constant 11 : index
    %c0_26 = arith.constant 0 : index
    %58 = vector.load %arg9[%c11, %c0_26] : memref<25x256xf32, #tpu.memory_space<vmem>>, vector<1x256xf32>
    %59 = vector.broadcast %58 : vector<1x256xf32> to vector<32x256xf32>
    %60 = arith.mulf %57, %59 : vector<32x256xf32>
    %c352 = arith.constant 352 : index
    %c0_27 = arith.constant 0 : index
    %61 = vector.load %arg12[%c352, %c0_27] : memref<800x256xf32, #tpu.memory_space<vmem>>, vector<32x256xf32>
    tpu.vector_store %arg12[%c352, %c0_27], %60 {strides = array<i32>} : memref<800x256xf32, #tpu.memory_space<vmem>>, vector<32x256xf32>,
    %c12 = arith.constant 12 : index
    %c0_28 = arith.constant 0 : index
    %62 = vector.load %arg9[%c12, %c0_28] : memref<25x256xf32, #tpu.memory_space<vmem>>, vector<1x256xf32>
    %63 = vector.broadcast %62 : vector<1x256xf32> to vector<32x256xf32>
    %64 = arith.mulf %1, %63 : vector<32x256xf32>
    %c384 = arith.constant 384 : index
    %c0_29 = arith.constant 0 : index
    %65 = vector.load %arg12[%c384, %c0_29] : memref<800x256xf32, #tpu.memory_space<vmem>>, vector<32x256xf32>
    tpu.vector_store %arg12[%c384, %c0_29], %64 {strides = array<i32>} : memref<800x256xf32, #tpu.memory_space<vmem>>, vector<32x256xf32>,
    %c255_i32 = arith.constant 255 : i32
    %66 = tpu.dynamic_rotate %1 by %c255_i32 dim 1 : vector<32x256xf32>, i32 -> vector<32x256xf32>
    %c13 = arith.constant 13 : index
    %c0_30 = arith.constant 0 : index
    %67 = vector.load %arg9[%c13, %c0_30] : memref<25x256xf32, #tpu.memory_space<vmem>>, vector<1x256xf32>
    %68 = vector.broadcast %67 : vector<1x256xf32> to vector<32x256xf32>
    %69 = arith.mulf %66, %68 : vector<32x256xf32>
    %c416 = arith.constant 416 : index
    %c0_31 = arith.constant 0 : index
    %70 = vector.load %arg12[%c416, %c0_31] : memref<800x256xf32, #tpu.memory_space<vmem>>, vector<32x256xf32>
    tpu.vector_store %arg12[%c416, %c0_31], %69 {strides = array<i32>} : memref<800x256xf32, #tpu.memory_space<vmem>>, vector<32x256xf32>,
    %c254_i32 = arith.constant 254 : i32
    %71 = tpu.dynamic_rotate %1 by %c254_i32 dim 1 : vector<32x256xf32>, i32 -> vector<32x256xf32>
    %c14 = arith.constant 14 : index
    %c0_32 = arith.constant 0 : index
    %72 = vector.load %arg9[%c14, %c0_32] : memref<25x256xf32, #tpu.memory_space<vmem>>, vector<1x256xf32>
    %73 = vector.broadcast %72 : vector<1x256xf32> to vector<32x256xf32>
    %74 = arith.mulf %71, %73 : vector<32x256xf32>
    %c448 = arith.constant 448 : index
    %c0_33 = arith.constant 0 : index
    %75 = vector.load %arg12[%c448, %c0_33] : memref<800x256xf32, #tpu.memory_space<vmem>>, vector<32x256xf32>
    tpu.vector_store %arg12[%c448, %c0_33], %74 {strides = array<i32>} : memref<800x256xf32, #tpu.memory_space<vmem>>, vector<32x256xf32>,
    %c242_i32 = arith.constant 242 : i32
    %76 = tpu.dynamic_rotate %1 by %c242_i32 dim 1 : vector<32x256xf32>, i32 -> vector<32x256xf32>
    %c15 = arith.constant 15 : index
    %c0_34 = arith.constant 0 : index
    %77 = vector.load %arg9[%c15, %c0_34] : memref<25x256xf32, #tpu.memory_space<vmem>>, vector<1x256xf32>
    %78 = vector.broadcast %77 : vector<1x256xf32> to vector<32x256xf32>
    %79 = arith.mulf %76, %78 : vector<32x256xf32>
    %c480 = arith.constant 480 : index
    %c0_35 = arith.constant 0 : index
    %80 = vector.load %arg12[%c480, %c0_35] : memref<800x256xf32, #tpu.memory_space<vmem>>, vector<32x256xf32>
    tpu.vector_store %arg12[%c480, %c0_35], %79 {strides = array<i32>} : memref<800x256xf32, #tpu.memory_space<vmem>>, vector<32x256xf32>,
    %c241_i32 = arith.constant 241 : i32
    %81 = tpu.dynamic_rotate %1 by %c241_i32 dim 1 : vector<32x256xf32>, i32 -> vector<32x256xf32>
    %c16 = arith.constant 16 : index
    %c0_36 = arith.constant 0 : index
    %82 = vector.load %arg9[%c16, %c0_36] : memref<25x256xf32, #tpu.memory_space<vmem>>, vector<1x256xf32>
    %83 = vector.broadcast %82 : vector<1x256xf32> to vector<32x256xf32>
    %84 = arith.mulf %81, %83 : vector<32x256xf32>
    %c512 = arith.constant 512 : index
    %c0_37 = arith.constant 0 : index
    %85 = vector.load %arg12[%c512, %c0_37] : memref<800x256xf32, #tpu.memory_space<vmem>>, vector<32x256xf32>
    tpu.vector_store %arg12[%c512, %c0_37], %84 {strides = array<i32>} : memref<800x256xf32, #tpu.memory_space<vmem>>, vector<32x256xf32>,
    %c240_i32 = arith.constant 240 : i32
    %86 = tpu.dynamic_rotate %1 by %c240_i32 dim 1 : vector<32x256xf32>, i32 -> vector<32x256xf32>
    %c17 = arith.constant 17 : index
    %c0_38 = arith.constant 0 : index
    %87 = vector.load %arg9[%c17, %c0_38] : memref<25x256xf32, #tpu.memory_space<vmem>>, vector<1x256xf32>
    %88 = vector.broadcast %87 : vector<1x256xf32> to vector<32x256xf32>
    %89 = arith.mulf %86, %88 : vector<32x256xf32>
    %c544 = arith.constant 544 : index
    %c0_39 = arith.constant 0 : index
    %90 = vector.load %arg12[%c544, %c0_39] : memref<800x256xf32, #tpu.memory_space<vmem>>, vector<32x256xf32>
    tpu.vector_store %arg12[%c544, %c0_39], %89 {strides = array<i32>} : memref<800x256xf32, #tpu.memory_space<vmem>>, vector<32x256xf32>,
    %c239_i32 = arith.constant 239 : i32
    %91 = tpu.dynamic_rotate %1 by %c239_i32 dim 1 : vector<32x256xf32>, i32 -> vector<32x256xf32>
    %c18 = arith.constant 18 : index
    %c0_40 = arith.constant 0 : index
    %92 = vector.load %arg9[%c18, %c0_40] : memref<25x256xf32, #tpu.memory_space<vmem>>, vector<1x256xf32>
    %93 = vector.broadcast %92 : vector<1x256xf32> to vector<32x256xf32>
    %94 = arith.mulf %91, %93 : vector<32x256xf32>
    %c576 = arith.constant 576 : index
    %c0_41 = arith.constant 0 : index
    %95 = vector.load %arg12[%c576, %c0_41] : memref<800x256xf32, #tpu.memory_space<vmem>>, vector<32x256xf32>
    tpu.vector_store %arg12[%c576, %c0_41], %94 {strides = array<i32>} : memref<800x256xf32, #tpu.memory_space<vmem>>, vector<32x256xf32>,
    %c238_i32 = arith.constant 238 : i32
    %96 = tpu.dynamic_rotate %1 by %c238_i32 dim 1 : vector<32x256xf32>, i32 -> vector<32x256xf32>
    %c19 = arith.constant 19 : index
    %c0_42 = arith.constant 0 : index
    %97 = vector.load %arg9[%c19, %c0_42] : memref<25x256xf32, #tpu.memory_space<vmem>>, vector<1x256xf32>
    %98 = vector.broadcast %97 : vector<1x256xf32> to vector<32x256xf32>
    %99 = arith.mulf %96, %98 : vector<32x256xf32>
    %c608 = arith.constant 608 : index
    %c0_43 = arith.constant 0 : index
    %100 = vector.load %arg12[%c608, %c0_43] : memref<800x256xf32, #tpu.memory_space<vmem>>, vector<32x256xf32>
    tpu.vector_store %arg12[%c608, %c0_43], %99 {strides = array<i32>} : memref<800x256xf32, #tpu.memory_space<vmem>>, vector<32x256xf32>,
    %c226_i32 = arith.constant 226 : i32
    %101 = tpu.dynamic_rotate %1 by %c226_i32 dim 1 : vector<32x256xf32>, i32 -> vector<32x256xf32>
    %c20 = arith.constant 20 : index
    %c0_44 = arith.constant 0 : index
    %102 = vector.load %arg9[%c20, %c0_44] : memref<25x256xf32, #tpu.memory_space<vmem>>, vector<1x256xf32>
    %103 = vector.broadcast %102 : vector<1x256xf32> to vector<32x256xf32>
    %104 = arith.mulf %101, %103 : vector<32x256xf32>
    %c640 = arith.constant 640 : index
    %c0_45 = arith.constant 0 : index
    %105 = vector.load %arg12[%c640, %c0_45] : memref<800x256xf32, #tpu.memory_space<vmem>>, vector<32x256xf32>
    tpu.vector_store %arg12[%c640, %c0_45], %104 {strides = array<i32>} : memref<800x256xf32, #tpu.memory_space<vmem>>, vector<32x256xf32>,
    %c225_i32 = arith.constant 225 : i32
    %106 = tpu.dynamic_rotate %1 by %c225_i32 dim 1 : vector<32x256xf32>, i32 -> vector<32x256xf32>
    %c21 = arith.constant 21 : index
    %c0_46 = arith.constant 0 : index
    %107 = vector.load %arg9[%c21, %c0_46] : memref<25x256xf32, #tpu.memory_space<vmem>>, vector<1x256xf32>
    %108 = vector.broadcast %107 : vector<1x256xf32> to vector<32x256xf32>
    %109 = arith.mulf %106, %108 : vector<32x256xf32>
    %c672 = arith.constant 672 : index
    %c0_47 = arith.constant 0 : index
    %110 = vector.load %arg12[%c672, %c0_47] : memref<800x256xf32, #tpu.memory_space<vmem>>, vector<32x256xf32>
    tpu.vector_store %arg12[%c672, %c0_47], %109 {strides = array<i32>} : memref<800x256xf32, #tpu.memory_space<vmem>>, vector<32x256xf32>,
    %c224_i32 = arith.constant 224 : i32
    %111 = tpu.dynamic_rotate %1 by %c224_i32 dim 1 : vector<32x256xf32>, i32 -> vector<32x256xf32>
    %c22 = arith.constant 22 : index
    %c0_48 = arith.constant 0 : index
    %112 = vector.load %arg9[%c22, %c0_48] : memref<25x256xf32, #tpu.memory_space<vmem>>, vector<1x256xf32>
    %113 = vector.broadcast %112 : vector<1x256xf32> to vector<32x256xf32>
    %114 = arith.mulf %111, %113 : vector<32x256xf32>
    %c704 = arith.constant 704 : index
    %c0_49 = arith.constant 0 : index
    %115 = vector.load %arg12[%c704, %c0_49] : memref<800x256xf32, #tpu.memory_space<vmem>>, vector<32x256xf32>
    tpu.vector_store %arg12[%c704, %c0_49], %114 {strides = array<i32>} : memref<800x256xf32, #tpu.memory_space<vmem>>, vector<32x256xf32>,
    %c223_i32 = arith.constant 223 : i32
    %116 = tpu.dynamic_rotate %1 by %c223_i32 dim 1 : vector<32x256xf32>, i32 -> vector<32x256xf32>
    %c23 = arith.constant 23 : index
    %c0_50 = arith.constant 0 : index
    %117 = vector.load %arg9[%c23, %c0_50] : memref<25x256xf32, #tpu.memory_space<vmem>>, vector<1x256xf32>
    %118 = vector.broadcast %117 : vector<1x256xf32> to vector<32x256xf32>
    %119 = arith.mulf %116, %118 : vector<32x256xf32>
    %c736 = arith.constant 736 : index
    %c0_51 = arith.constant 0 : index
    %120 = vector.load %arg12[%c736, %c0_51] : memref<800x256xf32, #tpu.memory_space<vmem>>, vector<32x256xf32>
    tpu.vector_store %arg12[%c736, %c0_51], %119 {strides = array<i32>} : memref<800x256xf32, #tpu.memory_space<vmem>>, vector<32x256xf32>,
    %c222_i32 = arith.constant 222 : i32
    %121 = tpu.dynamic_rotate %1 by %c222_i32 dim 1 : vector<32x256xf32>, i32 -> vector<32x256xf32>
    %c24 = arith.constant 24 : index
    %c0_52 = arith.constant 0 : index
    %122 = vector.load %arg9[%c24, %c0_52] : memref<25x256xf32, #tpu.memory_space<vmem>>, vector<1x256xf32>
    %123 = vector.broadcast %122 : vector<1x256xf32> to vector<32x256xf32>
    %124 = arith.mulf %121, %123 : vector<32x256xf32>
    %c768 = arith.constant 768 : index
    %c0_53 = arith.constant 0 : index
    %125 = vector.load %arg12[%c768, %c0_53] : memref<800x256xf32, #tpu.memory_space<vmem>>, vector<32x256xf32>
    tpu.vector_store %arg12[%c768, %c0_53], %124 {strides = array<i32>} : memref<800x256xf32, #tpu.memory_space<vmem>>, vector<32x256xf32>,
    %c0_54 = arith.constant 0 : index
    %c0_55 = arith.constant 0 : index
    %126 = vector.load %arg3[%c0_54, %c0_55] : memref<32x800xf32, #tpu.memory_space<vmem>>, vector<32x800xf32>
    %c0_56 = arith.constant 0 : index
    %c0_57 = arith.constant 0 : index
    %127 = vector.load %arg12[%c0_56, %c0_57] : memref<800x256xf32, #tpu.memory_space<vmem>>, vector<800x256xf32>
    %cst = arith.constant dense<0.000000e+00> : vector<32x256xf32>
    %128 = tpu.matmul %126, %127, %cst {dimension_numbers = #tpu.dot_dimension_numbers<[1], [0], [0], [1], [0, 0, 1, 1], [], []>} : vector<32x800xf32>, vector<800x256xf32>, vector<32x256xf32> -> vector<32x256xf32>
    %c0_58 = arith.constant 0 : index
    %c0_59 = arith.constant 0 : index
    %129 = vector.load %arg4[%c0_58, %c0_59] : memref<32x1xf32, #tpu.memory_space<vmem>>, vector<32x1xf32>
    %130 = vector.broadcast %129 : vector<32x1xf32> to vector<32x256xf32>
    %131 = arith.addf %128, %130 : vector<32x256xf32>
    %cst_60 = arith.constant 0.000000e+00 : f32
    %132 = vector.broadcast %cst_60 : f32 to vector<32x256xf32>
    %133 = arith.cmpf ogt, %131, %132 : vector<32x256xf32>
    %c0_61 = arith.constant 0 : index
    %c0_62 = arith.constant 0 : index
    %134 = memref.load %arg10[%c0_61, %c0_62] : memref<1x2xf32, #tpu.memory_space<smem>>
    %135 = vector.broadcast %134 : f32 to vector<32x256xf32>
    %136 = arith.mulf %135, %131 : vector<32x256xf32>
    %137 = arith.select %133, %131, %136 : vector<32x256xi1>, vector<32x256xf32>
    %c34_i32_63 = arith.constant 34 : i32
    %138 = tpu.dynamic_rotate %137 by %c34_i32_63 dim 1 : vector<32x256xf32>, i32 -> vector<32x256xf32>
    %c0_64 = arith.constant 0 : index
    %c0_65 = arith.constant 0 : index
    %139 = vector.load %arg9[%c0_64, %c0_65] : memref<25x256xf32, #tpu.memory_space<vmem>>, vector<1x256xf32>
    %140 = vector.broadcast %139 : vector<1x256xf32> to vector<32x256xf32>
    %141 = arith.mulf %138, %140 : vector<32x256xf32>
    %c0_66 = arith.constant 0 : index
    %c0_67 = arith.constant 0 : index
    %142 = vector.load %arg12[%c0_66, %c0_67] : memref<800x256xf32, #tpu.memory_space<vmem>>, vector<32x256xf32>
    tpu.vector_store %arg12[%c0_66, %c0_67], %141 {strides = array<i32>} : memref<800x256xf32, #tpu.memory_space<vmem>>, vector<32x256xf32>,
    %c33_i32_68 = arith.constant 33 : i32
    %143 = tpu.dynamic_rotate %137 by %c33_i32_68 dim 1 : vector<32x256xf32>, i32 -> vector<32x256xf32>
    %c1_69 = arith.constant 1 : index
    %c0_70 = arith.constant 0 : index
    %144 = vector.load %arg9[%c1_69, %c0_70] : memref<25x256xf32, #tpu.memory_space<vmem>>, vector<1x256xf32>
    %145 = vector.broadcast %144 : vector<1x256xf32> to vector<32x256xf32>
    %146 = arith.mulf %143, %145 : vector<32x256xf32>
    %c32_71 = arith.constant 32 : index
    %c0_72 = arith.constant 0 : index
    %147 = vector.load %arg12[%c32_71, %c0_72] : memref<800x256xf32, #tpu.memory_space<vmem>>, vector<32x256xf32>
    tpu.vector_store %arg12[%c32_71, %c0_72], %146 {strides = array<i32>} : memref<800x256xf32, #tpu.memory_space<vmem>>, vector<32x256xf32>,
    %c32_i32_73 = arith.constant 32 : i32
    %148 = tpu.dynamic_rotate %137 by %c32_i32_73 dim 1 : vector<32x256xf32>, i32 -> vector<32x256xf32>
    %c2_74 = arith.constant 2 : index
    %c0_75 = arith.constant 0 : index
    %149 = vector.load %arg9[%c2_74, %c0_75] : memref<25x256xf32, #tpu.memory_space<vmem>>, vector<1x256xf32>
    %150 = vector.broadcast %149 : vector<1x256xf32> to vector<32x256xf32>
    %151 = arith.mulf %148, %150 : vector<32x256xf32>
    %c64_76 = arith.constant 64 : index
    %c0_77 = arith.constant 0 : index
    %152 = vector.load %arg12[%c64_76, %c0_77] : memref<800x256xf32, #tpu.memory_space<vmem>>, vector<32x256xf32>
    tpu.vector_store %arg12[%c64_76, %c0_77], %151 {strides = array<i32>} : memref<800x256xf32, #tpu.memory_space<vmem>>, vector<32x256xf32>,
    %c31_i32_78 = arith.constant 31 : i32
    %153 = tpu.dynamic_rotate %137 by %c31_i32_78 dim 1 : vector<32x256xf32>, i32 -> vector<32x256xf32>
    %c3_79 = arith.constant 3 : index
    %c0_80 = arith.constant 0 : index
    %154 = vector.load %arg9[%c3_79, %c0_80] : memref<25x256xf32, #tpu.memory_space<vmem>>, vector<1x256xf32>
    %155 = vector.broadcast %154 : vector<1x256xf32> to vector<32x256xf32>
    %156 = arith.mulf %153, %155 : vector<32x256xf32>
    %c96_81 = arith.constant 96 : index
    %c0_82 = arith.constant 0 : index
    %157 = vector.load %arg12[%c96_81, %c0_82] : memref<800x256xf32, #tpu.memory_space<vmem>>, vector<32x256xf32>
    tpu.vector_store %arg12[%c96_81, %c0_82], %156 {strides = array<i32>} : memref<800x256xf32, #tpu.memory_space<vmem>>, vector<32x256xf32>,
    %c30_i32_83 = arith.constant 30 : i32
    %158 = tpu.dynamic_rotate %137 by %c30_i32_83 dim 1 : vector<32x256xf32>, i32 -> vector<32x256xf32>
    %c4_84 = arith.constant 4 : index
    %c0_85 = arith.constant 0 : index
    %159 = vector.load %arg9[%c4_84, %c0_85] : memref<25x256xf32, #tpu.memory_space<vmem>>, vector<1x256xf32>
    %160 = vector.broadcast %159 : vector<1x256xf32> to vector<32x256xf32>
    %161 = arith.mulf %158, %160 : vector<32x256xf32>
    %c128_86 = arith.constant 128 : index
    %c0_87 = arith.constant 0 : index
    %162 = vector.load %arg12[%c128_86, %c0_87] : memref<800x256xf32, #tpu.memory_space<vmem>>, vector<32x256xf32>
    tpu.vector_store %arg12[%c128_86, %c0_87], %161 {strides = array<i32>} : memref<800x256xf32, #tpu.memory_space<vmem>>, vector<32x256xf32>,
    %c18_i32_88 = arith.constant 18 : i32
    %163 = tpu.dynamic_rotate %137 by %c18_i32_88 dim 1 : vector<32x256xf32>, i32 -> vector<32x256xf32>
    %c5_89 = arith.constant 5 : index
    %c0_90 = arith.constant 0 : index
    %164 = vector.load %arg9[%c5_89, %c0_90] : memref<25x256xf32, #tpu.memory_space<vmem>>, vector<1x256xf32>
    %165 = vector.broadcast %164 : vector<1x256xf32> to vector<32x256xf32>
    %166 = arith.mulf %163, %165 : vector<32x256xf32>
    %c160_91 = arith.constant 160 : index
    %c0_92 = arith.constant 0 : index
    %167 = vector.load %arg12[%c160_91, %c0_92] : memref<800x256xf32, #tpu.memory_space<vmem>>, vector<32x256xf32>
    tpu.vector_store %arg12[%c160_91, %c0_92], %166 {strides = array<i32>} : memref<800x256xf32, #tpu.memory_space<vmem>>, vector<32x256xf32>,
    %c17_i32_93 = arith.constant 17 : i32
    %168 = tpu.dynamic_rotate %137 by %c17_i32_93 dim 1 : vector<32x256xf32>, i32 -> vector<32x256xf32>
    %c6_94 = arith.constant 6 : index
    %c0_95 = arith.constant 0 : index
    %169 = vector.load %arg9[%c6_94, %c0_95] : memref<25x256xf32, #tpu.memory_space<vmem>>, vector<1x256xf32>
    %170 = vector.broadcast %169 : vector<1x256xf32> to vector<32x256xf32>
    %171 = arith.mulf %168, %170 : vector<32x256xf32>
    %c192_96 = arith.constant 192 : index
    %c0_97 = arith.constant 0 : index
    %172 = vector.load %arg12[%c192_96, %c0_97] : memref<800x256xf32, #tpu.memory_space<vmem>>, vector<32x256xf32>
    tpu.vector_store %arg12[%c192_96, %c0_97], %171 {strides = array<i32>} : memref<800x256xf32, #tpu.memory_space<vmem>>, vector<32x256xf32>,
    %c16_i32_98 = arith.constant 16 : i32
    %173 = tpu.dynamic_rotate %137 by %c16_i32_98 dim 1 : vector<32x256xf32>, i32 -> vector<32x256xf32>
    %c7_99 = arith.constant 7 : index
    %c0_100 = arith.constant 0 : index
    %174 = vector.load %arg9[%c7_99, %c0_100] : memref<25x256xf32, #tpu.memory_space<vmem>>, vector<1x256xf32>
    %175 = vector.broadcast %174 : vector<1x256xf32> to vector<32x256xf32>
    %176 = arith.mulf %173, %175 : vector<32x256xf32>
    %c224_101 = arith.constant 224 : index
    %c0_102 = arith.constant 0 : index
    %177 = vector.load %arg12[%c224_101, %c0_102] : memref<800x256xf32, #tpu.memory_space<vmem>>, vector<32x256xf32>
    tpu.vector_store %arg12[%c224_101, %c0_102], %176 {strides = array<i32>} : memref<800x256xf32, #tpu.memory_space<vmem>>, vector<32x256xf32>,
    %c15_i32_103 = arith.constant 15 : i32
    %178 = tpu.dynamic_rotate %137 by %c15_i32_103 dim 1 : vector<32x256xf32>, i32 -> vector<32x256xf32>
    %c8_104 = arith.constant 8 : index
    %c0_105 = arith.constant 0 : index
    %179 = vector.load %arg9[%c8_104, %c0_105] : memref<25x256xf32, #tpu.memory_space<vmem>>, vector<1x256xf32>
    %180 = vector.broadcast %179 : vector<1x256xf32> to vector<32x256xf32>
    %181 = arith.mulf %178, %180 : vector<32x256xf32>
    %c256_106 = arith.constant 256 : index
    %c0_107 = arith.constant 0 : index
    %182 = vector.load %arg12[%c256_106, %c0_107] : memref<800x256xf32, #tpu.memory_space<vmem>>, vector<32x256xf32>
    tpu.vector_store %arg12[%c256_106, %c0_107], %181 {strides = array<i32>} : memref<800x256xf32, #tpu.memory_space<vmem>>, vector<32x256xf32>,
    %c14_i32_108 = arith.constant 14 : i32
    %183 = tpu.dynamic_rotate %137 by %c14_i32_108 dim 1 : vector<32x256xf32>, i32 -> vector<32x256xf32>
    %c9_109 = arith.constant 9 : index
    %c0_110 = arith.constant 0 : index
    %184 = vector.load %arg9[%c9_109, %c0_110] : memref<25x256xf32, #tpu.memory_space<vmem>>, vector<1x256xf32>
    %185 = vector.broadcast %184 : vector<1x256xf32> to vector<32x256xf32>
    %186 = arith.mulf %183, %185 : vector<32x256xf32>
    %c288_111 = arith.constant 288 : index
    %c0_112 = arith.constant 0 : index
    %187 = vector.load %arg12[%c288_111, %c0_112] : memref<800x256xf32, #tpu.memory_space<vmem>>, vector<32x256xf32>
    tpu.vector_store %arg12[%c288_111, %c0_112], %186 {strides = array<i32>} : memref<800x256xf32, #tpu.memory_space<vmem>>, vector<32x256xf32>,
    %c2_i32_113 = arith.constant 2 : i32
    %188 = tpu.dynamic_rotate %137 by %c2_i32_113 dim 1 : vector<32x256xf32>, i32 -> vector<32x256xf32>
    %c10_114 = arith.constant 10 : index
    %c0_115 = arith.constant 0 : index
    %189 = vector.load %arg9[%c10_114, %c0_115] : memref<25x256xf32, #tpu.memory_space<vmem>>, vector<1x256xf32>
    %190 = vector.broadcast %189 : vector<1x256xf32> to vector<32x256xf32>
    %191 = arith.mulf %188, %190 : vector<32x256xf32>
    %c320_116 = arith.constant 320 : index
    %c0_117 = arith.constant 0 : index
    %192 = vector.load %arg12[%c320_116, %c0_117] : memref<800x256xf32, #tpu.memory_space<vmem>>, vector<32x256xf32>
    tpu.vector_store %arg12[%c320_116, %c0_117], %191 {strides = array<i32>} : memref<800x256xf32, #tpu.memory_space<vmem>>, vector<32x256xf32>,
    %c1_i32_118 = arith.constant 1 : i32
    %193 = tpu.dynamic_rotate %137 by %c1_i32_118 dim 1 : vector<32x256xf32>, i32 -> vector<32x256xf32>
    %c11_119 = arith.constant 11 : index
    %c0_120 = arith.constant 0 : index
    %194 = vector.load %arg9[%c11_119, %c0_120] : memref<25x256xf32, #tpu.memory_space<vmem>>, vector<1x256xf32>
    %195 = vector.broadcast %194 : vector<1x256xf32> to vector<32x256xf32>
    %196 = arith.mulf %193, %195 : vector<32x256xf32>
    %c352_121 = arith.constant 352 : index
    %c0_122 = arith.constant 0 : index
    %197 = vector.load %arg12[%c352_121, %c0_122] : memref<800x256xf32, #tpu.memory_space<vmem>>, vector<32x256xf32>
    tpu.vector_store %arg12[%c352_121, %c0_122], %196 {strides = array<i32>} : memref<800x256xf32, #tpu.memory_space<vmem>>, vector<32x256xf32>,
    %c12_123 = arith.constant 12 : index
    %c0_124 = arith.constant 0 : index
    %198 = vector.load %arg9[%c12_123, %c0_124] : memref<25x256xf32, #tpu.memory_space<vmem>>, vector<1x256xf32>
    %199 = vector.broadcast %198 : vector<1x256xf32> to vector<32x256xf32>
    %200 = arith.mulf %137, %199 : vector<32x256xf32>
    %c384_125 = arith.constant 384 : index
    %c0_126 = arith.constant 0 : index
    %201 = vector.load %arg12[%c384_125, %c0_126] : memref<800x256xf32, #tpu.memory_space<vmem>>, vector<32x256xf32>
    tpu.vector_store %arg12[%c384_125, %c0_126], %200 {strides = array<i32>} : memref<800x256xf32, #tpu.memory_space<vmem>>, vector<32x256xf32>,
    %c255_i32_127 = arith.constant 255 : i32
    %202 = tpu.dynamic_rotate %137 by %c255_i32_127 dim 1 : vector<32x256xf32>, i32 -> vector<32x256xf32>
    %c13_128 = arith.constant 13 : index
    %c0_129 = arith.constant 0 : index
    %203 = vector.load %arg9[%c13_128, %c0_129] : memref<25x256xf32, #tpu.memory_space<vmem>>, vector<1x256xf32>
    %204 = vector.broadcast %203 : vector<1x256xf32> to vector<32x256xf32>
    %205 = arith.mulf %202, %204 : vector<32x256xf32>
    %c416_130 = arith.constant 416 : index
    %c0_131 = arith.constant 0 : index
    %206 = vector.load %arg12[%c416_130, %c0_131] : memref<800x256xf32, #tpu.memory_space<vmem>>, vector<32x256xf32>
    tpu.vector_store %arg12[%c416_130, %c0_131], %205 {strides = array<i32>} : memref<800x256xf32, #tpu.memory_space<vmem>>, vector<32x256xf32>,
    %c254_i32_132 = arith.constant 254 : i32
    %207 = tpu.dynamic_rotate %137 by %c254_i32_132 dim 1 : vector<32x256xf32>, i32 -> vector<32x256xf32>
    %c14_133 = arith.constant 14 : index
    %c0_134 = arith.constant 0 : index
    %208 = vector.load %arg9[%c14_133, %c0_134] : memref<25x256xf32, #tpu.memory_space<vmem>>, vector<1x256xf32>
    %209 = vector.broadcast %208 : vector<1x256xf32> to vector<32x256xf32>
    %210 = arith.mulf %207, %209 : vector<32x256xf32>
    %c448_135 = arith.constant 448 : index
    %c0_136 = arith.constant 0 : index
    %211 = vector.load %arg12[%c448_135, %c0_136] : memref<800x256xf32, #tpu.memory_space<vmem>>, vector<32x256xf32>
    tpu.vector_store %arg12[%c448_135, %c0_136], %210 {strides = array<i32>} : memref<800x256xf32, #tpu.memory_space<vmem>>, vector<32x256xf32>,
    %c242_i32_137 = arith.constant 242 : i32
    %212 = tpu.dynamic_rotate %137 by %c242_i32_137 dim 1 : vector<32x256xf32>, i32 -> vector<32x256xf32>
    %c15_138 = arith.constant 15 : index
    %c0_139 = arith.constant 0 : index
    %213 = vector.load %arg9[%c15_138, %c0_139] : memref<25x256xf32, #tpu.memory_space<vmem>>, vector<1x256xf32>
    %214 = vector.broadcast %213 : vector<1x256xf32> to vector<32x256xf32>
    %215 = arith.mulf %212, %214 : vector<32x256xf32>
    %c480_140 = arith.constant 480 : index
    %c0_141 = arith.constant 0 : index
    %216 = vector.load %arg12[%c480_140, %c0_141] : memref<800x256xf32, #tpu.memory_space<vmem>>, vector<32x256xf32>
    tpu.vector_store %arg12[%c480_140, %c0_141], %215 {strides = array<i32>} : memref<800x256xf32, #tpu.memory_space<vmem>>, vector<32x256xf32>,
    %c241_i32_142 = arith.constant 241 : i32
    %217 = tpu.dynamic_rotate %137 by %c241_i32_142 dim 1 : vector<32x256xf32>, i32 -> vector<32x256xf32>
    %c16_143 = arith.constant 16 : index
    %c0_144 = arith.constant 0 : index
    %218 = vector.load %arg9[%c16_143, %c0_144] : memref<25x256xf32, #tpu.memory_space<vmem>>, vector<1x256xf32>
    %219 = vector.broadcast %218 : vector<1x256xf32> to vector<32x256xf32>
    %220 = arith.mulf %217, %219 : vector<32x256xf32>
    %c512_145 = arith.constant 512 : index
    %c0_146 = arith.constant 0 : index
    %221 = vector.load %arg12[%c512_145, %c0_146] : memref<800x256xf32, #tpu.memory_space<vmem>>, vector<32x256xf32>
    tpu.vector_store %arg12[%c512_145, %c0_146], %220 {strides = array<i32>} : memref<800x256xf32, #tpu.memory_space<vmem>>, vector<32x256xf32>,
    %c240_i32_147 = arith.constant 240 : i32
    %222 = tpu.dynamic_rotate %137 by %c240_i32_147 dim 1 : vector<32x256xf32>, i32 -> vector<32x256xf32>
    %c17_148 = arith.constant 17 : index
    %c0_149 = arith.constant 0 : index
    %223 = vector.load %arg9[%c17_148, %c0_149] : memref<25x256xf32, #tpu.memory_space<vmem>>, vector<1x256xf32>
    %224 = vector.broadcast %223 : vector<1x256xf32> to vector<32x256xf32>
    %225 = arith.mulf %222, %224 : vector<32x256xf32>
    %c544_150 = arith.constant 544 : index
    %c0_151 = arith.constant 0 : index
    %226 = vector.load %arg12[%c544_150, %c0_151] : memref<800x256xf32, #tpu.memory_space<vmem>>, vector<32x256xf32>
    tpu.vector_store %arg12[%c544_150, %c0_151], %225 {strides = array<i32>} : memref<800x256xf32, #tpu.memory_space<vmem>>, vector<32x256xf32>,
    %c239_i32_152 = arith.constant 239 : i32
    %227 = tpu.dynamic_rotate %137 by %c239_i32_152 dim 1 : vector<32x256xf32>, i32 -> vector<32x256xf32>
    %c18_153 = arith.constant 18 : index
    %c0_154 = arith.constant 0 : index
    %228 = vector.load %arg9[%c18_153, %c0_154] : memref<25x256xf32, #tpu.memory_space<vmem>>, vector<1x256xf32>
    %229 = vector.broadcast %228 : vector<1x256xf32> to vector<32x256xf32>
    %230 = arith.mulf %227, %229 : vector<32x256xf32>
    %c576_155 = arith.constant 576 : index
    %c0_156 = arith.constant 0 : index
    %231 = vector.load %arg12[%c576_155, %c0_156] : memref<800x256xf32, #tpu.memory_space<vmem>>, vector<32x256xf32>
    tpu.vector_store %arg12[%c576_155, %c0_156], %230 {strides = array<i32>} : memref<800x256xf32, #tpu.memory_space<vmem>>, vector<32x256xf32>,
    %c238_i32_157 = arith.constant 238 : i32
    %232 = tpu.dynamic_rotate %137 by %c238_i32_157 dim 1 : vector<32x256xf32>, i32 -> vector<32x256xf32>
    %c19_158 = arith.constant 19 : index
    %c0_159 = arith.constant 0 : index
    %233 = vector.load %arg9[%c19_158, %c0_159] : memref<25x256xf32, #tpu.memory_space<vmem>>, vector<1x256xf32>
    %234 = vector.broadcast %233 : vector<1x256xf32> to vector<32x256xf32>
    %235 = arith.mulf %232, %234 : vector<32x256xf32>
    %c608_160 = arith.constant 608 : index
    %c0_161 = arith.constant 0 : index
    %236 = vector.load %arg12[%c608_160, %c0_161] : memref<800x256xf32, #tpu.memory_space<vmem>>, vector<32x256xf32>
    tpu.vector_store %arg12[%c608_160, %c0_161], %235 {strides = array<i32>} : memref<800x256xf32, #tpu.memory_space<vmem>>, vector<32x256xf32>,
    %c226_i32_162 = arith.constant 226 : i32
    %237 = tpu.dynamic_rotate %137 by %c226_i32_162 dim 1 : vector<32x256xf32>, i32 -> vector<32x256xf32>
    %c20_163 = arith.constant 20 : index
    %c0_164 = arith.constant 0 : index
    %238 = vector.load %arg9[%c20_163, %c0_164] : memref<25x256xf32, #tpu.memory_space<vmem>>, vector<1x256xf32>
    %239 = vector.broadcast %238 : vector<1x256xf32> to vector<32x256xf32>
    %240 = arith.mulf %237, %239 : vector<32x256xf32>
    %c640_165 = arith.constant 640 : index
    %c0_166 = arith.constant 0 : index
    %241 = vector.load %arg12[%c640_165, %c0_166] : memref<800x256xf32, #tpu.memory_space<vmem>>, vector<32x256xf32>
    tpu.vector_store %arg12[%c640_165, %c0_166], %240 {strides = array<i32>} : memref<800x256xf32, #tpu.memory_space<vmem>>, vector<32x256xf32>,
    %c225_i32_167 = arith.constant 225 : i32
    %242 = tpu.dynamic_rotate %137 by %c225_i32_167 dim 1 : vector<32x256xf32>, i32 -> vector<32x256xf32>
    %c21_168 = arith.constant 21 : index
    %c0_169 = arith.constant 0 : index
    %243 = vector.load %arg9[%c21_168, %c0_169] : memref<25x256xf32, #tpu.memory_space<vmem>>, vector<1x256xf32>
    %244 = vector.broadcast %243 : vector<1x256xf32> to vector<32x256xf32>
    %245 = arith.mulf %242, %244 : vector<32x256xf32>
    %c672_170 = arith.constant 672 : index
    %c0_171 = arith.constant 0 : index
    %246 = vector.load %arg12[%c672_170, %c0_171] : memref<800x256xf32, #tpu.memory_space<vmem>>, vector<32x256xf32>
    tpu.vector_store %arg12[%c672_170, %c0_171], %245 {strides = array<i32>} : memref<800x256xf32, #tpu.memory_space<vmem>>, vector<32x256xf32>,
    %c224_i32_172 = arith.constant 224 : i32
    %247 = tpu.dynamic_rotate %137 by %c224_i32_172 dim 1 : vector<32x256xf32>, i32 -> vector<32x256xf32>
    %c22_173 = arith.constant 22 : index
    %c0_174 = arith.constant 0 : index
    %248 = vector.load %arg9[%c22_173, %c0_174] : memref<25x256xf32, #tpu.memory_space<vmem>>, vector<1x256xf32>
    %249 = vector.broadcast %248 : vector<1x256xf32> to vector<32x256xf32>
    %250 = arith.mulf %247, %249 : vector<32x256xf32>
    %c704_175 = arith.constant 704 : index
    %c0_176 = arith.constant 0 : index
    %251 = vector.load %arg12[%c704_175, %c0_176] : memref<800x256xf32, #tpu.memory_space<vmem>>, vector<32x256xf32>
    tpu.vector_store %arg12[%c704_175, %c0_176], %250 {strides = array<i32>} : memref<800x256xf32, #tpu.memory_space<vmem>>, vector<32x256xf32>,
    %c223_i32_177 = arith.constant 223 : i32
    %252 = tpu.dynamic_rotate %137 by %c223_i32_177 dim 1 : vector<32x256xf32>, i32 -> vector<32x256xf32>
    %c23_178 = arith.constant 23 : index
    %c0_179 = arith.constant 0 : index
    %253 = vector.load %arg9[%c23_178, %c0_179] : memref<25x256xf32, #tpu.memory_space<vmem>>, vector<1x256xf32>
    %254 = vector.broadcast %253 : vector<1x256xf32> to vector<32x256xf32>
    %255 = arith.mulf %252, %254 : vector<32x256xf32>
    %c736_180 = arith.constant 736 : index
    %c0_181 = arith.constant 0 : index
    %256 = vector.load %arg12[%c736_180, %c0_181] : memref<800x256xf32, #tpu.memory_space<vmem>>, vector<32x256xf32>
    tpu.vector_store %arg12[%c736_180, %c0_181], %255 {strides = array<i32>} : memref<800x256xf32, #tpu.memory_space<vmem>>, vector<32x256xf32>,
    %c222_i32_182 = arith.constant 222 : i32
    %257 = tpu.dynamic_rotate %137 by %c222_i32_182 dim 1 : vector<32x256xf32>, i32 -> vector<32x256xf32>
    %c24_183 = arith.constant 24 : index
    %c0_184 = arith.constant 0 : index
    %258 = vector.load %arg9[%c24_183, %c0_184] : memref<25x256xf32, #tpu.memory_space<vmem>>, vector<1x256xf32>
    %259 = vector.broadcast %258 : vector<1x256xf32> to vector<32x256xf32>
    %260 = arith.mulf %257, %259 : vector<32x256xf32>
    %c768_185 = arith.constant 768 : index
    %c0_186 = arith.constant 0 : index
    %261 = vector.load %arg12[%c768_185, %c0_186] : memref<800x256xf32, #tpu.memory_space<vmem>>, vector<32x256xf32>
    tpu.vector_store %arg12[%c768_185, %c0_186], %260 {strides = array<i32>} : memref<800x256xf32, #tpu.memory_space<vmem>>, vector<32x256xf32>,
    %c0_187 = arith.constant 0 : index
    %c0_188 = arith.constant 0 : index
    %262 = vector.load %arg5[%c0_187, %c0_188] : memref<32x800xf32, #tpu.memory_space<vmem>>, vector<32x800xf32>
    %c0_189 = arith.constant 0 : index
    %c0_190 = arith.constant 0 : index
    %263 = vector.load %arg12[%c0_189, %c0_190] : memref<800x256xf32, #tpu.memory_space<vmem>>, vector<800x256xf32>
    %cst_191 = arith.constant dense<0.000000e+00> : vector<32x256xf32>
    %264 = tpu.matmul %262, %263, %cst_191 {dimension_numbers = #tpu.dot_dimension_numbers<[1], [0], [0], [1], [0, 0, 1, 1], [], []>} : vector<32x800xf32>, vector<800x256xf32>, vector<32x256xf32> -> vector<32x256xf32>
    %c0_192 = arith.constant 0 : index
    %c0_193 = arith.constant 0 : index
    %265 = vector.load %arg6[%c0_192, %c0_193] : memref<32x1xf32, #tpu.memory_space<vmem>>, vector<32x1xf32>
    %266 = vector.broadcast %265 : vector<32x1xf32> to vector<32x256xf32>
    %267 = arith.addf %264, %266 : vector<32x256xf32>
    %cst_194 = arith.constant 0.000000e+00 : f32
    %268 = vector.broadcast %cst_194 : f32 to vector<32x256xf32>
    %269 = arith.cmpf ogt, %267, %268 : vector<32x256xf32>
    %c0_195 = arith.constant 0 : index
    %c1_196 = arith.constant 1 : index
    %270 = memref.load %arg10[%c0_195, %c1_196] : memref<1x2xf32, #tpu.memory_space<smem>>
    %271 = vector.broadcast %270 : f32 to vector<32x256xf32>
    %272 = arith.mulf %271, %267 : vector<32x256xf32>
    %273 = arith.select %269, %267, %272 : vector<32x256xi1>, vector<32x256xf32>
    %c34_i32_197 = arith.constant 34 : i32
    %274 = tpu.dynamic_rotate %273 by %c34_i32_197 dim 1 : vector<32x256xf32>, i32 -> vector<32x256xf32>
    %c0_198 = arith.constant 0 : index
    %c0_199 = arith.constant 0 : index
    %275 = vector.load %arg9[%c0_198, %c0_199] : memref<25x256xf32, #tpu.memory_space<vmem>>, vector<1x256xf32>
    %276 = vector.broadcast %275 : vector<1x256xf32> to vector<32x256xf32>
    %277 = arith.mulf %274, %276 : vector<32x256xf32>
    %c0_200 = arith.constant 0 : index
    %c0_201 = arith.constant 0 : index
    %278 = vector.load %arg12[%c0_200, %c0_201] : memref<800x256xf32, #tpu.memory_space<vmem>>, vector<32x256xf32>
    tpu.vector_store %arg12[%c0_200, %c0_201], %277 {strides = array<i32>} : memref<800x256xf32, #tpu.memory_space<vmem>>, vector<32x256xf32>,
    %c33_i32_202 = arith.constant 33 : i32
    %279 = tpu.dynamic_rotate %273 by %c33_i32_202 dim 1 : vector<32x256xf32>, i32 -> vector<32x256xf32>
    %c1_203 = arith.constant 1 : index
    %c0_204 = arith.constant 0 : index
    %280 = vector.load %arg9[%c1_203, %c0_204] : memref<25x256xf32, #tpu.memory_space<vmem>>, vector<1x256xf32>
    %281 = vector.broadcast %280 : vector<1x256xf32> to vector<32x256xf32>
    %282 = arith.mulf %279, %281 : vector<32x256xf32>
    %c32_205 = arith.constant 32 : index
    %c0_206 = arith.constant 0 : index
    %283 = vector.load %arg12[%c32_205, %c0_206] : memref<800x256xf32, #tpu.memory_space<vmem>>, vector<32x256xf32>
    tpu.vector_store %arg12[%c32_205, %c0_206], %282 {strides = array<i32>} : memref<800x256xf32, #tpu.memory_space<vmem>>, vector<32x256xf32>,
    %c32_i32_207 = arith.constant 32 : i32
    %284 = tpu.dynamic_rotate %273 by %c32_i32_207 dim 1 : vector<32x256xf32>, i32 -> vector<32x256xf32>
    %c2_208 = arith.constant 2 : index
    %c0_209 = arith.constant 0 : index
    %285 = vector.load %arg9[%c2_208, %c0_209] : memref<25x256xf32, #tpu.memory_space<vmem>>, vector<1x256xf32>
    %286 = vector.broadcast %285 : vector<1x256xf32> to vector<32x256xf32>
    %287 = arith.mulf %284, %286 : vector<32x256xf32>
    %c64_210 = arith.constant 64 : index
    %c0_211 = arith.constant 0 : index
    %288 = vector.load %arg12[%c64_210, %c0_211] : memref<800x256xf32, #tpu.memory_space<vmem>>, vector<32x256xf32>
    tpu.vector_store %arg12[%c64_210, %c0_211], %287 {strides = array<i32>} : memref<800x256xf32, #tpu.memory_space<vmem>>, vector<32x256xf32>,
    %c31_i32_212 = arith.constant 31 : i32
    %289 = tpu.dynamic_rotate %273 by %c31_i32_212 dim 1 : vector<32x256xf32>, i32 -> vector<32x256xf32>
    %c3_213 = arith.constant 3 : index
    %c0_214 = arith.constant 0 : index
    %290 = vector.load %arg9[%c3_213, %c0_214] : memref<25x256xf32, #tpu.memory_space<vmem>>, vector<1x256xf32>
    %291 = vector.broadcast %290 : vector<1x256xf32> to vector<32x256xf32>
    %292 = arith.mulf %289, %291 : vector<32x256xf32>
    %c96_215 = arith.constant 96 : index
    %c0_216 = arith.constant 0 : index
    %293 = vector.load %arg12[%c96_215, %c0_216] : memref<800x256xf32, #tpu.memory_space<vmem>>, vector<32x256xf32>
    tpu.vector_store %arg12[%c96_215, %c0_216], %292 {strides = array<i32>} : memref<800x256xf32, #tpu.memory_space<vmem>>, vector<32x256xf32>,
    %c30_i32_217 = arith.constant 30 : i32
    %294 = tpu.dynamic_rotate %273 by %c30_i32_217 dim 1 : vector<32x256xf32>, i32 -> vector<32x256xf32>
    %c4_218 = arith.constant 4 : index
    %c0_219 = arith.constant 0 : index
    %295 = vector.load %arg9[%c4_218, %c0_219] : memref<25x256xf32, #tpu.memory_space<vmem>>, vector<1x256xf32>
    %296 = vector.broadcast %295 : vector<1x256xf32> to vector<32x256xf32>
    %297 = arith.mulf %294, %296 : vector<32x256xf32>
    %c128_220 = arith.constant 128 : index
    %c0_221 = arith.constant 0 : index
    %298 = vector.load %arg12[%c128_220, %c0_221] : memref<800x256xf32, #tpu.memory_space<vmem>>, vector<32x256xf32>
    tpu.vector_store %arg12[%c128_220, %c0_221], %297 {strides = array<i32>} : memref<800x256xf32, #tpu.memory_space<vmem>>, vector<32x256xf32>,
    %c18_i32_222 = arith.constant 18 : i32
    %299 = tpu.dynamic_rotate %273 by %c18_i32_222 dim 1 : vector<32x256xf32>, i32 -> vector<32x256xf32>
    %c5_223 = arith.constant 5 : index
    %c0_224 = arith.constant 0 : index
    %300 = vector.load %arg9[%c5_223, %c0_224] : memref<25x256xf32, #tpu.memory_space<vmem>>, vector<1x256xf32>
    %301 = vector.broadcast %300 : vector<1x256xf32> to vector<32x256xf32>
    %302 = arith.mulf %299, %301 : vector<32x256xf32>
    %c160_225 = arith.constant 160 : index
    %c0_226 = arith.constant 0 : index
    %303 = vector.load %arg12[%c160_225, %c0_226] : memref<800x256xf32, #tpu.memory_space<vmem>>, vector<32x256xf32>
    tpu.vector_store %arg12[%c160_225, %c0_226], %302 {strides = array<i32>} : memref<800x256xf32, #tpu.memory_space<vmem>>, vector<32x256xf32>,
    %c17_i32_227 = arith.constant 17 : i32
    %304 = tpu.dynamic_rotate %273 by %c17_i32_227 dim 1 : vector<32x256xf32>, i32 -> vector<32x256xf32>
    %c6_228 = arith.constant 6 : index
    %c0_229 = arith.constant 0 : index
    %305 = vector.load %arg9[%c6_228, %c0_229] : memref<25x256xf32, #tpu.memory_space<vmem>>, vector<1x256xf32>
    %306 = vector.broadcast %305 : vector<1x256xf32> to vector<32x256xf32>
    %307 = arith.mulf %304, %306 : vector<32x256xf32>
    %c192_230 = arith.constant 192 : index
    %c0_231 = arith.constant 0 : index
    %308 = vector.load %arg12[%c192_230, %c0_231] : memref<800x256xf32, #tpu.memory_space<vmem>>, vector<32x256xf32>
    tpu.vector_store %arg12[%c192_230, %c0_231], %307 {strides = array<i32>} : memref<800x256xf32, #tpu.memory_space<vmem>>, vector<32x256xf32>,
    %c16_i32_232 = arith.constant 16 : i32
    %309 = tpu.dynamic_rotate %273 by %c16_i32_232 dim 1 : vector<32x256xf32>, i32 -> vector<32x256xf32>
    %c7_233 = arith.constant 7 : index
    %c0_234 = arith.constant 0 : index
    %310 = vector.load %arg9[%c7_233, %c0_234] : memref<25x256xf32, #tpu.memory_space<vmem>>, vector<1x256xf32>
    %311 = vector.broadcast %310 : vector<1x256xf32> to vector<32x256xf32>
    %312 = arith.mulf %309, %311 : vector<32x256xf32>
    %c224_235 = arith.constant 224 : index
    %c0_236 = arith.constant 0 : index
    %313 = vector.load %arg12[%c224_235, %c0_236] : memref<800x256xf32, #tpu.memory_space<vmem>>, vector<32x256xf32>
    tpu.vector_store %arg12[%c224_235, %c0_236], %312 {strides = array<i32>} : memref<800x256xf32, #tpu.memory_space<vmem>>, vector<32x256xf32>,
    %c15_i32_237 = arith.constant 15 : i32
    %314 = tpu.dynamic_rotate %273 by %c15_i32_237 dim 1 : vector<32x256xf32>, i32 -> vector<32x256xf32>
    %c8_238 = arith.constant 8 : index
    %c0_239 = arith.constant 0 : index
    %315 = vector.load %arg9[%c8_238, %c0_239] : memref<25x256xf32, #tpu.memory_space<vmem>>, vector<1x256xf32>
    %316 = vector.broadcast %315 : vector<1x256xf32> to vector<32x256xf32>
    %317 = arith.mulf %314, %316 : vector<32x256xf32>
    %c256_240 = arith.constant 256 : index
    %c0_241 = arith.constant 0 : index
    %318 = vector.load %arg12[%c256_240, %c0_241] : memref<800x256xf32, #tpu.memory_space<vmem>>, vector<32x256xf32>
    tpu.vector_store %arg12[%c256_240, %c0_241], %317 {strides = array<i32>} : memref<800x256xf32, #tpu.memory_space<vmem>>, vector<32x256xf32>,
    %c14_i32_242 = arith.constant 14 : i32
    %319 = tpu.dynamic_rotate %273 by %c14_i32_242 dim 1 : vector<32x256xf32>, i32 -> vector<32x256xf32>
    %c9_243 = arith.constant 9 : index
    %c0_244 = arith.constant 0 : index
    %320 = vector.load %arg9[%c9_243, %c0_244] : memref<25x256xf32, #tpu.memory_space<vmem>>, vector<1x256xf32>
    %321 = vector.broadcast %320 : vector<1x256xf32> to vector<32x256xf32>
    %322 = arith.mulf %319, %321 : vector<32x256xf32>
    %c288_245 = arith.constant 288 : index
    %c0_246 = arith.constant 0 : index
    %323 = vector.load %arg12[%c288_245, %c0_246] : memref<800x256xf32, #tpu.memory_space<vmem>>, vector<32x256xf32>
    tpu.vector_store %arg12[%c288_245, %c0_246], %322 {strides = array<i32>} : memref<800x256xf32, #tpu.memory_space<vmem>>, vector<32x256xf32>,
    %c2_i32_247 = arith.constant 2 : i32
    %324 = tpu.dynamic_rotate %273 by %c2_i32_247 dim 1 : vector<32x256xf32>, i32 -> vector<32x256xf32>
    %c10_248 = arith.constant 10 : index
    %c0_249 = arith.constant 0 : index
    %325 = vector.load %arg9[%c10_248, %c0_249] : memref<25x256xf32, #tpu.memory_space<vmem>>, vector<1x256xf32>
    %326 = vector.broadcast %325 : vector<1x256xf32> to vector<32x256xf32>
    %327 = arith.mulf %324, %326 : vector<32x256xf32>
    %c320_250 = arith.constant 320 : index
    %c0_251 = arith.constant 0 : index
    %328 = vector.load %arg12[%c320_250, %c0_251] : memref<800x256xf32, #tpu.memory_space<vmem>>, vector<32x256xf32>
    tpu.vector_store %arg12[%c320_250, %c0_251], %327 {strides = array<i32>} : memref<800x256xf32, #tpu.memory_space<vmem>>, vector<32x256xf32>,
    %c1_i32_252 = arith.constant 1 : i32
    %329 = tpu.dynamic_rotate %273 by %c1_i32_252 dim 1 : vector<32x256xf32>, i32 -> vector<32x256xf32>
    %c11_253 = arith.constant 11 : index
    %c0_254 = arith.constant 0 : index
    %330 = vector.load %arg9[%c11_253, %c0_254] : memref<25x256xf32, #tpu.memory_space<vmem>>, vector<1x256xf32>
    %331 = vector.broadcast %330 : vector<1x256xf32> to vector<32x256xf32>
    %332 = arith.mulf %329, %331 : vector<32x256xf32>
    %c352_255 = arith.constant 352 : index
    %c0_256 = arith.constant 0 : index
    %333 = vector.load %arg12[%c352_255, %c0_256] : memref<800x256xf32, #tpu.memory_space<vmem>>, vector<32x256xf32>
    tpu.vector_store %arg12[%c352_255, %c0_256], %332 {strides = array<i32>} : memref<800x256xf32, #tpu.memory_space<vmem>>, vector<32x256xf32>,
    %c12_257 = arith.constant 12 : index
    %c0_258 = arith.constant 0 : index
    %334 = vector.load %arg9[%c12_257, %c0_258] : memref<25x256xf32, #tpu.memory_space<vmem>>, vector<1x256xf32>
    %335 = vector.broadcast %334 : vector<1x256xf32> to vector<32x256xf32>
    %336 = arith.mulf %273, %335 : vector<32x256xf32>
    %c384_259 = arith.constant 384 : index
    %c0_260 = arith.constant 0 : index
    %337 = vector.load %arg12[%c384_259, %c0_260] : memref<800x256xf32, #tpu.memory_space<vmem>>, vector<32x256xf32>
    tpu.vector_store %arg12[%c384_259, %c0_260], %336 {strides = array<i32>} : memref<800x256xf32, #tpu.memory_space<vmem>>, vector<32x256xf32>,
    %c255_i32_261 = arith.constant 255 : i32
    %338 = tpu.dynamic_rotate %273 by %c255_i32_261 dim 1 : vector<32x256xf32>, i32 -> vector<32x256xf32>
    %c13_262 = arith.constant 13 : index
    %c0_263 = arith.constant 0 : index
    %339 = vector.load %arg9[%c13_262, %c0_263] : memref<25x256xf32, #tpu.memory_space<vmem>>, vector<1x256xf32>
    %340 = vector.broadcast %339 : vector<1x256xf32> to vector<32x256xf32>
    %341 = arith.mulf %338, %340 : vector<32x256xf32>
    %c416_264 = arith.constant 416 : index
    %c0_265 = arith.constant 0 : index
    %342 = vector.load %arg12[%c416_264, %c0_265] : memref<800x256xf32, #tpu.memory_space<vmem>>, vector<32x256xf32>
    tpu.vector_store %arg12[%c416_264, %c0_265], %341 {strides = array<i32>} : memref<800x256xf32, #tpu.memory_space<vmem>>, vector<32x256xf32>,
    %c254_i32_266 = arith.constant 254 : i32
    %343 = tpu.dynamic_rotate %273 by %c254_i32_266 dim 1 : vector<32x256xf32>, i32 -> vector<32x256xf32>
    %c14_267 = arith.constant 14 : index
    %c0_268 = arith.constant 0 : index
    %344 = vector.load %arg9[%c14_267, %c0_268] : memref<25x256xf32, #tpu.memory_space<vmem>>, vector<1x256xf32>
    %345 = vector.broadcast %344 : vector<1x256xf32> to vector<32x256xf32>
    %346 = arith.mulf %343, %345 : vector<32x256xf32>
    %c448_269 = arith.constant 448 : index
    %c0_270 = arith.constant 0 : index
    %347 = vector.load %arg12[%c448_269, %c0_270] : memref<800x256xf32, #tpu.memory_space<vmem>>, vector<32x256xf32>
    tpu.vector_store %arg12[%c448_269, %c0_270], %346 {strides = array<i32>} : memref<800x256xf32, #tpu.memory_space<vmem>>, vector<32x256xf32>,
    %c242_i32_271 = arith.constant 242 : i32
    %348 = tpu.dynamic_rotate %273 by %c242_i32_271 dim 1 : vector<32x256xf32>, i32 -> vector<32x256xf32>
    %c15_272 = arith.constant 15 : index
    %c0_273 = arith.constant 0 : index
    %349 = vector.load %arg9[%c15_272, %c0_273] : memref<25x256xf32, #tpu.memory_space<vmem>>, vector<1x256xf32>
    %350 = vector.broadcast %349 : vector<1x256xf32> to vector<32x256xf32>
    %351 = arith.mulf %348, %350 : vector<32x256xf32>
    %c480_274 = arith.constant 480 : index
    %c0_275 = arith.constant 0 : index
    %352 = vector.load %arg12[%c480_274, %c0_275] : memref<800x256xf32, #tpu.memory_space<vmem>>, vector<32x256xf32>
    tpu.vector_store %arg12[%c480_274, %c0_275], %351 {strides = array<i32>} : memref<800x256xf32, #tpu.memory_space<vmem>>, vector<32x256xf32>,
    %c241_i32_276 = arith.constant 241 : i32
    %353 = tpu.dynamic_rotate %273 by %c241_i32_276 dim 1 : vector<32x256xf32>, i32 -> vector<32x256xf32>
    %c16_277 = arith.constant 16 : index
    %c0_278 = arith.constant 0 : index
    %354 = vector.load %arg9[%c16_277, %c0_278] : memref<25x256xf32, #tpu.memory_space<vmem>>, vector<1x256xf32>
    %355 = vector.broadcast %354 : vector<1x256xf32> to vector<32x256xf32>
    %356 = arith.mulf %353, %355 : vector<32x256xf32>
    %c512_279 = arith.constant 512 : index
    %c0_280 = arith.constant 0 : index
    %357 = vector.load %arg12[%c512_279, %c0_280] : memref<800x256xf32, #tpu.memory_space<vmem>>, vector<32x256xf32>
    tpu.vector_store %arg12[%c512_279, %c0_280], %356 {strides = array<i32>} : memref<800x256xf32, #tpu.memory_space<vmem>>, vector<32x256xf32>,
    %c240_i32_281 = arith.constant 240 : i32
    %358 = tpu.dynamic_rotate %273 by %c240_i32_281 dim 1 : vector<32x256xf32>, i32 -> vector<32x256xf32>
    %c17_282 = arith.constant 17 : index
    %c0_283 = arith.constant 0 : index
    %359 = vector.load %arg9[%c17_282, %c0_283] : memref<25x256xf32, #tpu.memory_space<vmem>>, vector<1x256xf32>
    %360 = vector.broadcast %359 : vector<1x256xf32> to vector<32x256xf32>
    %361 = arith.mulf %358, %360 : vector<32x256xf32>
    %c544_284 = arith.constant 544 : index
    %c0_285 = arith.constant 0 : index
    %362 = vector.load %arg12[%c544_284, %c0_285] : memref<800x256xf32, #tpu.memory_space<vmem>>, vector<32x256xf32>
    tpu.vector_store %arg12[%c544_284, %c0_285], %361 {strides = array<i32>} : memref<800x256xf32, #tpu.memory_space<vmem>>, vector<32x256xf32>,
    %c239_i32_286 = arith.constant 239 : i32
    %363 = tpu.dynamic_rotate %273 by %c239_i32_286 dim 1 : vector<32x256xf32>, i32 -> vector<32x256xf32>
    %c18_287 = arith.constant 18 : index
    %c0_288 = arith.constant 0 : index
    %364 = vector.load %arg9[%c18_287, %c0_288] : memref<25x256xf32, #tpu.memory_space<vmem>>, vector<1x256xf32>
    %365 = vector.broadcast %364 : vector<1x256xf32> to vector<32x256xf32>
    %366 = arith.mulf %363, %365 : vector<32x256xf32>
    %c576_289 = arith.constant 576 : index
    %c0_290 = arith.constant 0 : index
    %367 = vector.load %arg12[%c576_289, %c0_290] : memref<800x256xf32, #tpu.memory_space<vmem>>, vector<32x256xf32>
    tpu.vector_store %arg12[%c576_289, %c0_290], %366 {strides = array<i32>} : memref<800x256xf32, #tpu.memory_space<vmem>>, vector<32x256xf32>,
    %c238_i32_291 = arith.constant 238 : i32
    %368 = tpu.dynamic_rotate %273 by %c238_i32_291 dim 1 : vector<32x256xf32>, i32 -> vector<32x256xf32>
    %c19_292 = arith.constant 19 : index
    %c0_293 = arith.constant 0 : index
    %369 = vector.load %arg9[%c19_292, %c0_293] : memref<25x256xf32, #tpu.memory_space<vmem>>, vector<1x256xf32>
    %370 = vector.broadcast %369 : vector<1x256xf32> to vector<32x256xf32>
    %371 = arith.mulf %368, %370 : vector<32x256xf32>
    %c608_294 = arith.constant 608 : index
    %c0_295 = arith.constant 0 : index
    %372 = vector.load %arg12[%c608_294, %c0_295] : memref<800x256xf32, #tpu.memory_space<vmem>>, vector<32x256xf32>
    tpu.vector_store %arg12[%c608_294, %c0_295], %371 {strides = array<i32>} : memref<800x256xf32, #tpu.memory_space<vmem>>, vector<32x256xf32>,
    %c226_i32_296 = arith.constant 226 : i32
    %373 = tpu.dynamic_rotate %273 by %c226_i32_296 dim 1 : vector<32x256xf32>, i32 -> vector<32x256xf32>
    %c20_297 = arith.constant 20 : index
    %c0_298 = arith.constant 0 : index
    %374 = vector.load %arg9[%c20_297, %c0_298] : memref<25x256xf32, #tpu.memory_space<vmem>>, vector<1x256xf32>
    %375 = vector.broadcast %374 : vector<1x256xf32> to vector<32x256xf32>
    %376 = arith.mulf %373, %375 : vector<32x256xf32>
    %c640_299 = arith.constant 640 : index
    %c0_300 = arith.constant 0 : index
    %377 = vector.load %arg12[%c640_299, %c0_300] : memref<800x256xf32, #tpu.memory_space<vmem>>, vector<32x256xf32>
    tpu.vector_store %arg12[%c640_299, %c0_300], %376 {strides = array<i32>} : memref<800x256xf32, #tpu.memory_space<vmem>>, vector<32x256xf32>,
    %c225_i32_301 = arith.constant 225 : i32
    %378 = tpu.dynamic_rotate %273 by %c225_i32_301 dim 1 : vector<32x256xf32>, i32 -> vector<32x256xf32>
    %c21_302 = arith.constant 21 : index
    %c0_303 = arith.constant 0 : index
    %379 = vector.load %arg9[%c21_302, %c0_303] : memref<25x256xf32, #tpu.memory_space<vmem>>, vector<1x256xf32>
    %380 = vector.broadcast %379 : vector<1x256xf32> to vector<32x256xf32>
    %381 = arith.mulf %378, %380 : vector<32x256xf32>
    %c672_304 = arith.constant 672 : index
    %c0_305 = arith.constant 0 : index
    %382 = vector.load %arg12[%c672_304, %c0_305] : memref<800x256xf32, #tpu.memory_space<vmem>>, vector<32x256xf32>
    tpu.vector_store %arg12[%c672_304, %c0_305], %381 {strides = array<i32>} : memref<800x256xf32, #tpu.memory_space<vmem>>, vector<32x256xf32>,
    %c224_i32_306 = arith.constant 224 : i32
    %383 = tpu.dynamic_rotate %273 by %c224_i32_306 dim 1 : vector<32x256xf32>, i32 -> vector<32x256xf32>
    %c22_307 = arith.constant 22 : index
    %c0_308 = arith.constant 0 : index
    %384 = vector.load %arg9[%c22_307, %c0_308] : memref<25x256xf32, #tpu.memory_space<vmem>>, vector<1x256xf32>
    %385 = vector.broadcast %384 : vector<1x256xf32> to vector<32x256xf32>
    %386 = arith.mulf %383, %385 : vector<32x256xf32>
    %c704_309 = arith.constant 704 : index
    %c0_310 = arith.constant 0 : index
    %387 = vector.load %arg12[%c704_309, %c0_310] : memref<800x256xf32, #tpu.memory_space<vmem>>, vector<32x256xf32>
    tpu.vector_store %arg12[%c704_309, %c0_310], %386 {strides = array<i32>} : memref<800x256xf32, #tpu.memory_space<vmem>>, vector<32x256xf32>,
    %c223_i32_311 = arith.constant 223 : i32
    %388 = tpu.dynamic_rotate %273 by %c223_i32_311 dim 1 : vector<32x256xf32>, i32 -> vector<32x256xf32>
    %c23_312 = arith.constant 23 : index
    %c0_313 = arith.constant 0 : index
    %389 = vector.load %arg9[%c23_312, %c0_313] : memref<25x256xf32, #tpu.memory_space<vmem>>, vector<1x256xf32>
    %390 = vector.broadcast %389 : vector<1x256xf32> to vector<32x256xf32>
    %391 = arith.mulf %388, %390 : vector<32x256xf32>
    %c736_314 = arith.constant 736 : index
    %c0_315 = arith.constant 0 : index
    %392 = vector.load %arg12[%c736_314, %c0_315] : memref<800x256xf32, #tpu.memory_space<vmem>>, vector<32x256xf32>
    tpu.vector_store %arg12[%c736_314, %c0_315], %391 {strides = array<i32>} : memref<800x256xf32, #tpu.memory_space<vmem>>, vector<32x256xf32>,
    %c222_i32_316 = arith.constant 222 : i32
    %393 = tpu.dynamic_rotate %273 by %c222_i32_316 dim 1 : vector<32x256xf32>, i32 -> vector<32x256xf32>
    %c24_317 = arith.constant 24 : index
    %c0_318 = arith.constant 0 : index
    %394 = vector.load %arg9[%c24_317, %c0_318] : memref<25x256xf32, #tpu.memory_space<vmem>>, vector<1x256xf32>
    %395 = vector.broadcast %394 : vector<1x256xf32> to vector<32x256xf32>
    %396 = arith.mulf %393, %395 : vector<32x256xf32>
    %c768_319 = arith.constant 768 : index
    %c0_320 = arith.constant 0 : index
    %397 = vector.load %arg12[%c768_319, %c0_320] : memref<800x256xf32, #tpu.memory_space<vmem>>, vector<32x256xf32>
    tpu.vector_store %arg12[%c768_319, %c0_320], %396 {strides = array<i32>} : memref<800x256xf32, #tpu.memory_space<vmem>>, vector<32x256xf32>,
    %c0_321 = arith.constant 0 : index
    %c0_322 = arith.constant 0 : index
    %398 = vector.load %arg7[%c0_321, %c0_322] : memref<4x800xf32, #tpu.memory_space<vmem>>, vector<4x800xf32>
    %c0_323 = arith.constant 0 : index
    %c0_324 = arith.constant 0 : index
    %399 = vector.load %arg12[%c0_323, %c0_324] : memref<800x256xf32, #tpu.memory_space<vmem>>, vector<800x256xf32>
    %cst_325 = arith.constant dense<0.000000e+00> : vector<4x256xf32>
    %400 = tpu.matmul %398, %399, %cst_325 {dimension_numbers = #tpu.dot_dimension_numbers<[1], [0], [0], [1], [0, 0, 1, 1], [], []>} : vector<4x800xf32>, vector<800x256xf32>, vector<4x256xf32> -> vector<4x256xf32>
    %c0_326 = arith.constant 0 : index
    %c0_327 = arith.constant 0 : index
    %401 = vector.load %arg8[%c0_326, %c0_327] : memref<4x1xf32, #tpu.memory_space<vmem>>, vector<4x1xf32>
    %402 = vector.broadcast %401 : vector<4x1xf32> to vector<4x256xf32>
    %403 = arith.addf %400, %402 : vector<4x256xf32>
    %c0_328 = arith.constant 0 : index
    %c0_329 = arith.constant 0 : index
    %c0_330 = arith.constant 0 : index
    %404 = vector.load %arg2[%c0_328, %c0_329, %c0_330] : memref<1x4x256xf32, #tpu.memory_space<vmem>>, vector<1x4x256xf32>
    %405 = vector.shape_cast %404 : vector<1x4x256xf32> to vector<4x256xf32>
    %406 = arith.addf %405, %403 : vector<4x256xf32>
    %c0_331 = arith.constant 0 : index
    %c0_332 = arith.constant 0 : index
    %c0_333 = arith.constant 0 : index
    %407 = vector.load %arg11[%c0_331, %c0_332, %c0_333] : memref<1x4x256xf32, #tpu.memory_space<vmem>>, vector<1x4x256xf32>
    %408 = vector.shape_cast %407 : vector<1x4x256xf32> to vector<4x256xf32>
    %409 = vector.shape_cast %406 : vector<4x256xf32> to vector<1x4x256xf32>
    tpu.vector_store %arg11[%c0_331, %c0_332, %c0_333], %409 {strides = array<i32>} : memref<1x4x256xf32, #tpu.memory_space<vmem>>, vector<1x4x256xf32>,
    return
  }
  func.func @transform_0(%arg0: i32) -> (i32, i32, i32) {
    %c0_i32 = arith.constant 0 : i32
    %c0_i32_0 = arith.constant 0 : i32
    %c0_i32_1 = arith.constant 0 : i32
    return %arg0, %c0_i32, %c0_i32_0 : i32, i32, i32
  }
  func.func @transform_1(%arg0: i32) -> (i32, i32, i32) {
    %c0_i32 = arith.constant 0 : i32
    %c0_i32_0 = arith.constant 0 : i32
    %c0_i32_1 = arith.constant 0 : i32
    return %arg0, %c0_i32, %c0_i32_0 : i32, i32, i32
  }
  func.func @transform_2(%arg0: i32) -> (i32, i32) {
    %c0_i32 = arith.constant 0 : i32
    %c0_i32_0 = arith.constant 0 : i32
    %c0_i32_1 = arith.constant 0 : i32
    return %c0_i32, %c0_i32_0 : i32, i32
  }
  func.func @transform_3(%arg0: i32) -> (i32, i32) {
    %c0_i32 = arith.constant 0 : i32
    %c0_i32_0 = arith.constant 0 : i32
    %c0_i32_1 = arith.constant 0 : i32
    return %c0_i32, %c0_i32_0 : i32, i32
  }
  func.func @transform_4(%arg0: i32) -> (i32, i32) {
    %c0_i32 = arith.constant 0 : i32
    %c0_i32_0 = arith.constant 0 : i32
    %c0_i32_1 = arith.constant 0 : i32
    return %c0_i32, %c0_i32_0 : i32, i32
  }
  func.func @transform_5(%arg0: i32) -> (i32, i32) {
    %c0_i32 = arith.constant 0 : i32
    %c0_i32_0 = arith.constant 0 : i32
    %c0_i32_1 = arith.constant 0 : i32
    return %c0_i32, %c0_i32_0 : i32, i32
  }
  func.func @transform_6(%arg0: i32) -> (i32, i32) {
    %c0_i32 = arith.constant 0 : i32
    %c0_i32_0 = arith.constant 0 : i32
    %c0_i32_1 = arith.constant 0 : i32
    return %c0_i32, %c0_i32_0 : i32, i32
  }
  func.func @transform_7(%arg0: i32) -> (i32, i32) {
    %c0_i32 = arith.constant 0 : i32
    %c0_i32_0 = arith.constant 0 : i32
    %c0_i32_1 = arith.constant 0 : i32
    return %c0_i32, %c0_i32_0 : i32, i32
  }
  func.func @transform_8(%arg0: i32) -> (i32, i32) {
    %c0_i32 = arith.constant 0 : i32
    %c0_i32_0 = arith.constant 0 : i32
    %c0_i32_1 = arith.constant 0 : i32
    return %c0_i32, %c0_i32_0 : i32, i32
  }
  func.func @transform_9(%arg0: i32) -> (i32, i32) {
    %c0_i32 = arith.constant 0 : i32
    %c0_i32_0 = arith.constant 0 : i32
    %c0_i32_1 = arith.constant 0 : i32
    return %c0_i32, %c0_i32_0 : i32, i32
  }
  func.func @transform_10(%arg0: i32) -> (i32, i32, i32) {
    %c0_i32 = arith.constant 0 : i32
    %c0_i32_0 = arith.constant 0 : i32
    %c0_i32_1 = arith.constant 0 : i32
    return %arg0, %c0_i32, %c0_i32_0 : i32, i32, i32
  }
}

</mosaic_0001>

<llo_original>
// kernel: tpu_custom_call.1
$region0: #{tpu_custom_call.1}
  #allocation0 [shape = 'u32[]', space=smem, size = 0x4, offset = 0x4, fixed_abs, tag = 'smem constant byte address 0x4 - core index']
  #allocation1 [shape = 'u32[144,128]{1,0:T(1,128)}', space=vmem, size = 0x12000, scoped, tag = 'internal scratch']
  #allocation2 [shape = 'f32[800,256]{1,0:T(8,128)}', space=vmem, size = 0xc8000, scoped, tag = 'scratch operand']
  %s0 = inlined_call_operand.hbm [shape: f32[2,32,256], index: 0, kind: input, shape index: {}]
  %s1 = inlined_call_operand.vmem [shape: f32[2,4,256], index: 1, kind: input, shape index: {}]
  %s2 = inlined_call_operand.hbm [shape: f32[32,800], index: 2, kind: input, shape index: {}]
  %s3 = inlined_call_operand.vmem [shape: f32[32,1], index: 3, kind: input, shape index: {}]
  %s4 = inlined_call_operand.hbm [shape: f32[32,800], index: 4, kind: input, shape index: {}]
  %s5 = inlined_call_operand.vmem [shape: f32[32,1], index: 5, kind: input, shape index: {}]
  %s6 = inlined_call_operand.hbm [shape: f32[4,800], index: 6, kind: input, shape index: {}]
  %s7 = inlined_call_operand.vmem [shape: f32[4,1], index: 7, kind: input, shape index: {}]
  %s8 = inlined_call_operand.vmem [shape: f32[25,256], index: 8, kind: input, shape index: {}]
  %s9 = inlined_call_operand.vmem [shape: f32[1,2], index: 9, kind: input, shape index: {}]
  %s10 = inlined_call_operand.hbm [shape: f32[2,4,256], index: 10, kind: output, shape index: {}]
  %s11 = sld [smem:[#allocation0]]
  $region93: #{tpu_custom_call.1} parent=0
    _
  %s13 = ssub.s32 1, %s11
  %s14 = scalar_select 0, %s13, %s11
  $region1: #{tpu_custom_call.1} parent=0
    #allocation3 [shape = 'u8[65536]{0}', space=vmem, size = 0x10000, scoped, tag = 'input window, operand 0']
    #allocation4 [shape = 's32[2]{0}', space=sflag, size = 0x8, scoped, tag = 'scoped memory for tpu_custom_call.1']
    #allocation5 [shape = 's32[2]{0}', space=sflag, size = 0x8, scoped, tag = 'scoped memory for tpu_custom_call.1']
    #allocation6 [shape = 's32[2]{0}', space=sflag, size = 0x8, scoped, tag = 'scoped memory for tpu_custom_call.1']
    #allocation7 [shape = 'u8[114688]{0}', space=vmem, size = 0x1c000, scoped, tag = 'input window, operand 2, single buffered']
    #allocation8 [shape = 's32[1]{0}', space=sflag, size = 0x4, scoped, tag = 'scoped memory for tpu_custom_call.1']
    #allocation9 [shape = 'u8[114688]{0}', space=vmem, size = 0x1c000, scoped, tag = 'input window, operand 4, single buffered']
    #allocation10 [shape = 'u8[14336]{0}', space=vmem, size = 0x3800, scoped, tag = 'input window, operand 6, single buffered']
    #allocation11 [shape = 's32[1]{0}', space=sflag, size = 0x4, scoped, tag = 'scoped memory for tpu_custom_call.1']
    #allocation12 [shape = 'u8[512]{0}', space=smem, size = 0x200, scoped, tag = 'input window, operand 9, single buffered']
    #allocation13 [shape = 'u8[8192]{0}', space=vmem, size = 0x2000, scoped, tag = 'output window, operand 0']
    %15 = vsyncpa [#allocation4], 0
    %s16 = scalar_lea.sflag [#allocation4], 1
    %17 = vsyncpa %s16, 0
    %18 = vsyncpa [#allocation8], 0
    %19 = vsyncpa [#allocation11], 0
    %20 = vsyncpa [#allocation6], 0
    %21 = vsyncpa [#allocation5], 0
    %s22 = scalar_lea.sflag [#allocation5], 1
    %23 = vsyncpa %s22, 0
    loop: start=0, step=1, limit=4
    $region2: #{tpu_custom_call.1} parent=1 // loop_pre_header
      _
    $region3: #{tpu_custom_call.1} parent=1 // loop_header
      %s25 = sphi 0, %s29
      %p26 = scmp.ge.s32.totalorder %s25, 4
      %s35 = sphi 0, %s37
      %s38 = sphi 0, %s35
      %s39 = sphi 0, %s38
      %s55 = sphi 0, %s39
      %s61 = sphi 0, %s63
      %s64 = sphi 0, %s61
      %s65 = sphi 0, %s64
      %s81 = sphi 0, %s65
      %s85 = sphi 0, %s85
      %s87 = sphi 0, %s85
      %s88 = sphi 0, %s87
      %s102 = sphi 0, %s88
      %s106 = sphi 0, %s106
      %s108 = sphi 0, %s106
      %s109 = sphi 0, %s108
      %s123 = sphi 0, %s109
      %s127 = sphi 0, %s127
      %s129 = sphi 0, %s127
      %s130 = sphi 0, %s129
      %s144 = sphi 0, %s130
      %s148 = sphi 0, %s148
      %s150 = sphi 0, %s148
      %s151 = sphi 0, %s150
      %s165 = sphi 0, %s151
      %s169 = sphi 0, %s169
      %s171 = sphi 0, %s169
      %s172 = sphi 0, %s171
      %s186 = sphi 0, %s172
      %s190 = sphi 0, %s190
      %s192 = sphi 0, %s190
      %s193 = sphi 0, %s192
      %s207 = sphi 0, %s193
      %s211 = sphi 0, %s211
      %s213 = sphi 0, %s211
      %s214 = sphi 0, %s213
      %s228 = sphi 0, %s214
      %s232 = sphi 0, %s232
      %s234 = sphi 0, %s232
      %s235 = sphi 0, %s234
      %s249 = sphi 0, %s235
      %s255 = sphi 0, %s257
      %s258 = sphi 0, %s255
      %s259 = sphi 0, %s258
      %s275 = sphi 0, %s259
    $region4: #{tpu_custom_call.1} parent=1 // loop_header_branch
      %28 = sbr.rel (%p26) target = $region8
    $region5: #{tpu_custom_call.1} parent=1 // loop_body
      %s30 = ssub.s32 %s25, 1
      %s31 = ssub.s32 %s25, 2
      %s32 = sadd.s32 %s25, 1
      %s33 = ssub.s32 %s25, %s32
      %p34 = scmp.eq.s32.totalorder %s33, 0
      %s36 = sadd.s32 %s35, 1
      %s37 = scalar_select %p34, %s35, %s36
      %p40 = pneg %p34
      %p41 = scmp.eq.s32.totalorder %s25, 1
      %p42 = por %p40, %p41
      %p43 = scmp.ne.s32.totalorder %s35, %s38
      %p44 = scmp.eq.s32.totalorder %s25, 0
      %p45 = por %p43, %p44
      %p46 = scmp.ne.s32.totalorder %s35, %s38
      %p47 = scmp.eq.s32.totalorder %s30, 1
      %p48 = por %p46, %p47
      %p49 = scmp.ne.s32.totalorder %s38, %s39
      %p50 = scmp.eq.s32.totalorder %s30, 0
      %p51 = por %p49, %p50
      %p52 = scmp.ne.s32.totalorder %s38, %s39
      %p53 = scmp.eq.s32.totalorder %s31, 1
      %p54 = por %p52, %p53
      %p56 = scmp.ne.s32.totalorder %s39, %s55
      %p57 = scmp.eq.s32.totalorder %s31, 0
      %p58 = por %p56, %p57
      %s59 = ssub.s32 %s25, %s32
      %p60 = scmp.eq.s32.totalorder %s59, 0
      %s62 = sadd.s32 %s61, 1
      %s63 = scalar_select %p60, %s61, %s62
      %p66 = pneg %p60
      %p67 = scmp.eq.s32.totalorder %s25, 1
      %p68 = por %p66, %p67
      %p69 = scmp.ne.s32.totalorder %s61, %s64
      %p70 = scmp.eq.s32.totalorder %s25, 0
      %p71 = por %p69, %p70
      %p72 = scmp.ne.s32.totalorder %s61, %s64
      %p73 = scmp.eq.s32.totalorder %s30, 1
      %p74 = por %p72, %p73
      %p75 = scmp.ne.s32.totalorder %s64, %s65
      %p76 = scmp.eq.s32.totalorder %s30, 0
      %p77 = por %p75, %p76
      %p78 = scmp.ne.s32.totalorder %s64, %s65
      %p79 = scmp.eq.s32.totalorder %s31, 1
      %p80 = por %p78, %p79
      %p82 = scmp.ne.s32.totalorder %s65, %s81
      %p83 = scmp.eq.s32.totalorder %s31, 0
      %p84 = por %p82, %p83
      %s86 = sadd.s32 %s85, 1
      %p89 = scmp.eq.s32.totalorder %s25, 1
      %p90 = scmp.ne.s32.totalorder %s85, %s87
      %p91 = scmp.eq.s32.totalorder %s25, 0
      %p92 = por %p90, %p91
      %p93 = scmp.ne.s32.totalorder %s85, %s87
      %p94 = scmp.eq.s32.totalorder %s30, 1
      %p95 = por %p93, %p94
      %p96 = scmp.ne.s32.totalorder %s87, %s88
      %p97 = scmp.eq.s32.totalorder %s30, 0
      %p98 = por %p96, %p97
      %p99 = scmp.ne.s32.totalorder %s87, %s88
      %p100 = scmp.eq.s32.totalorder %s31, 1
      %p101 = por %p99, %p100
      %p103 = scmp.ne.s32.totalorder %s88, %s102
      %p104 = scmp.eq.s32.totalorder %s31, 0
      %p105 = por %p103, %p104
      %s107 = sadd.s32 %s106, 1
      %p110 = scmp.eq.s32.totalorder %s25, 1
      %p111 = scmp.ne.s32.totalorder %s106, %s108
      %p112 = scmp.eq.s32.totalorder %s25, 0
      %p113 = por %p111, %p112
      %p114 = scmp.ne.s32.totalorder %s106, %s108
      %p115 = scmp.eq.s32.totalorder %s30, 1
      %p116 = por %p114, %p115
      %p117 = scmp.ne.s32.totalorder %s108, %s109
      %p118 = scmp.eq.s32.totalorder %s30, 0
      %p119 = por %p117, %p118
      %p120 = scmp.ne.s32.totalorder %s108, %s109
      %p121 = scmp.eq.s32.totalorder %s31, 1
      %p122 = por %p120, %p121
      %p124 = scmp.ne.s32.totalorder %s109, %s123
      %p125 = scmp.eq.s32.totalorder %s31, 0
      %p126 = por %p124, %p125
      %s128 = sadd.s32 %s127, 1
      %p131 = scmp.eq.s32.totalorder %s25, 1
      %p132 = scmp.ne.s32.totalorder %s127, %s129
      %p133 = scmp.eq.s32.totalorder %s25, 0
      %p134 = por %p132, %p133
      %p135 = scmp.ne.s32.totalorder %s127, %s129
      %p136 = scmp.eq.s32.totalorder %s30, 1
      %p137 = por %p135, %p136
      %p138 = scmp.ne.s32.totalorder %s129, %s130
      %p139 = scmp.eq.s32.totalorder %s30, 0
      %p140 = por %p138, %p139
      %p141 = scmp.ne.s32.totalorder %s129, %s130
      %p142 = scmp.eq.s32.totalorder %s31, 1
      %p143 = por %p141, %p142
      %p145 = scmp.ne.s32.totalorder %s130, %s144
      %p146 = scmp.eq.s32.totalorder %s31, 0
      %p147 = por %p145, %p146
      %s149 = sadd.s32 %s148, 1
      %p152 = scmp.eq.s32.totalorder %s25, 1
      %p153 = scmp.ne.s32.totalorder %s148, %s150
      %p154 = scmp.eq.s32.totalorder %s25, 0
      %p155 = por %p153, %p154
      %p156 = scmp.ne.s32.totalorder %s148, %s150
      %p157 = scmp.eq.s32.totalorder %s30, 1
      %p158 = por %p156, %p157
      %p159 = scmp.ne.s32.totalorder %s150, %s151
      %p160 = scmp.eq.s32.totalorder %s30, 0
      %p161 = por %p159, %p160
      %p162 = scmp.ne.s32.totalorder %s150, %s151
      %p163 = scmp.eq.s32.totalorder %s31, 1
      %p164 = por %p162, %p163
      %p166 = scmp.ne.s32.totalorder %s151, %s165
      %p167 = scmp.eq.s32.totalorder %s31, 0
      %p168 = por %p166, %p167
      %s170 = sadd.s32 %s169, 1
      %p173 = scmp.eq.s32.totalorder %s25, 1
      %p174 = scmp.ne.s32.totalorder %s169, %s171
      %p175 = scmp.eq.s32.totalorder %s25, 0
      %p176 = por %p174, %p175
      %p177 = scmp.ne.s32.totalorder %s169, %s171
      %p178 = scmp.eq.s32.totalorder %s30, 1
      %p179 = por %p177, %p178
      %p180 = scmp.ne.s32.totalorder %s171, %s172
      %p181 = scmp.eq.s32.totalorder %s30, 0
      %p182 = por %p180, %p181
      %p183 = scmp.ne.s32.totalorder %s171, %s172
      %p184 = scmp.eq.s32.totalorder %s31, 1
      %p185 = por %p183, %p184
      %p187 = scmp.ne.s32.totalorder %s172, %s186
      %p188 = scmp.eq.s32.totalorder %s31, 0
      %p189 = por %p187, %p188
      %s191 = sadd.s32 %s190, 1
      %p194 = scmp.eq.s32.totalorder %s25, 1
      %p195 = scmp.ne.s32.totalorder %s190, %s192
      %p196 = scmp.eq.s32.totalorder %s25, 0
      %p197 = por %p195, %p196
      %p198 = scmp.ne.s32.totalorder %s190, %s192
      %p199 = scmp.eq.s32.totalorder %s30, 1
      %p200 = por %p198, %p199
      %p201 = scmp.ne.s32.totalorder %s192, %s193
      %p202 = scmp.eq.s32.totalorder %s30, 0
      %p203 = por %p201, %p202
      %p204 = scmp.ne.s32.totalorder %s192, %s193
      %p205 = scmp.eq.s32.totalorder %s31, 1
      %p206 = por %p204, %p205
      %p208 = scmp.ne.s32.totalorder %s193, %s207
      %p209 = scmp.eq.s32.totalorder %s31, 0
      %p210 = por %p208, %p209
      %s212 = sadd.s32 %s211, 1
      %p215 = scmp.eq.s32.totalorder %s25, 1
      %p216 = scmp.ne.s32.totalorder %s211, %s213
      %p217 = scmp.eq.s32.totalorder %s25, 0
      %p218 = por %p216, %p217
      %p219 = scmp.ne.s32.totalorder %s211, %s213
      %p220 = scmp.eq.s32.totalorder %s30, 1
      %p221 = por %p219, %p220
      %p222 = scmp.ne.s32.totalorder %s213, %s214
      %p223 = scmp.eq.s32.totalorder %s30, 0
      %p224 = por %p222, %p223
      %p225 = scmp.ne.s32.totalorder %s213, %s214
      %p226 = scmp.eq.s32.totalorder %s31, 1
      %p227 = por %p225, %p226
      %p229 = scmp.ne.s32.totalorder %s214, %s228
      %p230 = scmp.eq.s32.totalorder %s31, 0
      %p231 = por %p229, %p230
      %s233 = sadd.s32 %s232, 1
      %p236 = scmp.eq.s32.totalorder %s25, 1
      %p237 = scmp.ne.s32.totalorder %s232, %s234
      %p238 = scmp.eq.s32.totalorder %s25, 0
      %p239 = por %p237, %p238
      %p240 = scmp.ne.s32.totalorder %s232, %s234
      %p241 = scmp.eq.s32.totalorder %s30, 1
      %p242 = por %p240, %p241
      %p243 = scmp.ne.s32.totalorder %s234, %s235
      %p244 = scmp.eq.s32.totalorder %s30, 0
      %p245 = por %p243, %p244
      %p246 = scmp.ne.s32.totalorder %s234, %s235
      %p247 = scmp.eq.s32.totalorder %s31, 1
      %p248 = por %p246, %p247
      %p250 = scmp.ne.s32.totalorder %s235, %s249
      %p251 = scmp.eq.s32.totalorder %s31, 0
      %p252 = por %p250, %p251
      %s253 = ssub.s32 %s25, %s32
      %p254 = scmp.eq.s32.totalorder %s253, 0
      %s256 = sadd.s32 %s255, 1
      %s257 = scalar_select %p254, %s255, %s256
      %p260 = pneg %p254
      %p261 = scmp.eq.s32.totalorder %s25, 1
      %p262 = por %p260, %p261
      %p263 = scmp.ne.s32.totalorder %s255, %s258
      %p264 = scmp.eq.s32.totalorder %s25, 0
      %p265 = por %p263, %p264
      %p266 = scmp.ne.s32.totalorder %s255, %s258
      %p267 = scmp.eq.s32.totalorder %s30, 1
      %p268 = por %p266, %p267
      %p269 = scmp.ne.s32.totalorder %s258, %s259
      %p270 = scmp.eq.s32.totalorder %s30, 0
      %p271 = por %p269, %p270
      %p272 = scmp.ne.s32.totalorder %s258, %s259
      %p273 = scmp.eq.s32.totalorder %s31, 1
      %p274 = por %p272, %p273
      %p276 = scmp.ne.s32.totalorder %s259, %s275
      %p277 = scmp.eq.s32.totalorder %s31, 0
      %p278 = por %p276, %p277
      %p279 = scmp.le.s32.totalorder 1, %s25
      %p280 = scmp.lt.s32.totalorder %s25, 3
      %p281 = pnand %p279, %p280
      %p282 = pneg %p281
      // Predicated region
      $region9: #{tpu_custom_call.1} parent=5 // pred_check
        _
      $region10: #{tpu_custom_call.1} parent=5 // pred_check_branch
        %284 = sbr.rel (%p281) target = $region12
      $region11: #{tpu_custom_call.1} parent=5 // pred_region
        %s285 = ssub.s32 %s25, 1
        // Predicated region
        $region13: #{tpu_custom_call.1} parent=11 // pred_check
          %p286 = pneg %p98
        $region14: #{tpu_custom_call.1} parent=11 // pred_check_branch
          %288 = sbr.rel (%p286) target = $region16
        $region15: #{tpu_custom_call.1} parent=11 // pred_region
          %s290 = ssub.s32 3584, 3584
          %291 = vsyncadd [#allocation8], %s290
          %s292 = sshll.u32 [#allocation7], 4
          %s293 = int_to_ptr.vmem [resolvable:$true] %s292
          %298 = dma.hbm_to_vmem [thread:$0]  %s2, 3584, %s293, [#allocation8], 896, 896, 56
        $region16: #{tpu_custom_call.1} parent=11 // pred_fallthru
          _
        // Predicated region
        $region17: #{tpu_custom_call.1} parent=11 // pred_check
          %p299 = pneg %p119
        $region18: #{tpu_custom_call.1} parent=11 // pred_check_branch
          %301 = sbr.rel (%p299) target = $region20
        $region19: #{tpu_custom_call.1} parent=11 // pred_region
          _
        $region20: #{tpu_custom_call.1} parent=11 // pred_fallthru
          _
        // Predicated region
        $region21: #{tpu_custom_call.1} parent=11 // pred_check
          %p302 = pneg %p140
        $region22: #{tpu_custom_call.1} parent=11 // pred_check_branch
          %304 = sbr.rel (%p302) target = $region24
        $region23: #{tpu_custom_call.1} parent=11 // pred_region
          %s306 = ssub.s32 3584, 3584
          %307 = vsyncadd [#allocation8], %s306
          %s308 = sshll.u32 [#allocation9], 4
          %s309 = int_to_ptr.vmem [resolvable:$true] %s308
          %314 = dma.hbm_to_vmem [thread:$0]  %s4, 3584, %s309, [#allocation8], 896, 896, 56
        $region24: #{tpu_custom_call.1} parent=11 // pred_fallthru
          _
        // Predicated region
        $region25: #{tpu_custom_call.1} parent=11 // pred_check
          %p315 = pneg %p161
        $region26: #{tpu_custom_call.1} parent=11 // pred_check_branch
          %317 = sbr.rel (%p315) target = $region28
        $region27: #{tpu_custom_call.1} parent=11 // pred_region
          _
        $region28: #{tpu_custom_call.1} parent=11 // pred_fallthru
          _
        // Predicated region
        $region29: #{tpu_custom_call.1} parent=11 // pred_check
          %p318 = pneg %p182
        $region30: #{tpu_custom_call.1} parent=11 // pred_check_branch
          %320 = sbr.rel (%p318) target = $region32
        $region31: #{tpu_custom_call.1} parent=11 // pred_region
          %s322 = ssub.s32 448, 448
          %323 = vsyncadd [#allocation11], %s322
          %s325 = sshll.u32 [#allocation10], 4
          %s326 = int_to_ptr.vmem [resolvable:$true] %s325
          %328 = dma.hbm_to_vmem [thread:$0]  %s6, 448, %s326, [#allocation11]
        $region32: #{tpu_custom_call.1} parent=11 // pred_fallthru
          _
        // Predicated region
        $region33: #{tpu_custom_call.1} parent=11 // pred_check
          %p329 = pneg %p203
        $region34: #{tpu_custom_call.1} parent=11 // pred_check_branch
          %331 = sbr.rel (%p329) target = $region36
        $region35: #{tpu_custom_call.1} parent=11 // pred_region
          _
        $region36: #{tpu_custom_call.1} parent=11 // pred_fallthru
          _
        // Predicated region
        $region37: #{tpu_custom_call.1} parent=11 // pred_check
          %p332 = pneg %p224
        $region38: #{tpu_custom_call.1} parent=11 // pred_check_branch
          %334 = sbr.rel (%p332) target = $region40
        $region39: #{tpu_custom_call.1} parent=11 // pred_region
          _
        $region40: #{tpu_custom_call.1} parent=11 // pred_fallthru
          _
        // Predicated region
        $region41: #{tpu_custom_call.1} parent=11 // pred_check
          %p335 = pneg %p245
        $region42: #{tpu_custom_call.1} parent=11 // pred_check_branch
          %337 = sbr.rel (%p335) target = $region44
        $region43: #{tpu_custom_call.1} parent=11 // pred_region
          %s339 = ssub.s32 16, 16
          %340 = vsyncadd [#allocation6], %s339
          %s342 = sshll.u32 %s9, 4
          %s343 = int_to_ptr.vmem [resolvable:$true] %s342
          %345 = dma.vmem_to_smem %s343, 16, [#allocation12], [#allocation6]
        $region44: #{tpu_custom_call.1} parent=11 // pred_fallthru
          _
      $region12: #{tpu_custom_call.1} parent=5 // pred_fallthru
        _
      %p346 = scmp.lt.s32.totalorder %s25, 2
      // Predicated region
      $region45: #{tpu_custom_call.1} parent=5 // pred_check
        %p347 = pneg %p346
      $region46: #{tpu_custom_call.1} parent=5 // pred_check_branch
        %349 = sbr.rel (%p347) target = $region48
      $region47: #{tpu_custom_call.1} parent=5 // pred_region
        // Predicated region
        $region49: #{tpu_custom_call.1} parent=47 // pred_check
          %p350 = pneg %p45
        $region50: #{tpu_custom_call.1} parent=47 // pred_check_branch
          %352 = sbr.rel (%p350) target = $region52
        $region51: #{tpu_custom_call.1} parent=47 // pred_region
          %s353 = sand.u32 %s35, 1
          %s354 = scalar_lea.sflag [#allocation4], %s353
          %s355 = sand.u32 %s35, 1
          %s356 = smul.addr %s355, 64
          %s357 = scalar_lea.vmem [#allocation3], %s356
          %s359 = ssub.s32 1024, 1024
          %360 = vsyncadd %s354, %s359
          %s361 = smul.addr %s25, 8
          %s362 = smul.addr %s361, 128
          %s363 = scalar_lea.hbm %s0, %s362
          %s364 = sshll.u32 %s357, 4
          %s365 = int_to_ptr.vmem [resolvable:$true] %s364
          %370 = dma.hbm_to_vmem [thread:$0]  %s363, 1024, %s365, %s354, 256, 256, 16
        $region52: #{tpu_custom_call.1} parent=47 // pred_fallthru
          _
        // Predicated region
        $region53: #{tpu_custom_call.1} parent=47 // pred_check
          %p371 = pneg %p71
        $region54: #{tpu_custom_call.1} parent=47 // pred_check_branch
          %373 = sbr.rel (%p371) target = $region56
        $region55: #{tpu_custom_call.1} parent=47 // pred_region
          %p374 = scmp.lt.s32.totalorder %s25, 1
          %s375 = scalar_select %p374, %s25, 1
          %s376 = smul.addr %s375, 2
          %s377 = smul.addr %s376, 4
          %s378 = scalar_lea.vmem %s1, %s377
        $region56: #{tpu_custom_call.1} parent=47 // pred_fallthru
          _
      $region48: #{tpu_custom_call.1} parent=5 // pred_fallthru
        _
      %p379 = scmp.le.s32.totalorder 1, %s25
      %p380 = scmp.lt.s32.totalorder %s25, 3
      %p381 = pnand %p379, %p380
      %p382 = pneg %p381
      // Predicated region
      $region57: #{tpu_custom_call.1} parent=5 // pred_check
        _
      $region58: #{tpu_custom_call.1} parent=5 // pred_check_branch
        %384 = sbr.rel (%p381) target = $region60
      $region59: #{tpu_custom_call.1} parent=5 // pred_region
        %s385 = ssub.s32 %s25, 1
        %s386 = sand.u32 %s38, 1
        %s387 = scalar_lea.sflag [#allocation4], %s386
        %s388 = sand.u32 %s38, 1
        %s389 = smul.addr %s388, 64
        %s390 = scalar_lea.vmem [#allocation3], %s389
        // Predicated region
        $region61: #{tpu_custom_call.1} parent=59 // pred_check
          %p391 = pneg %p51
        $region62: #{tpu_custom_call.1} parent=59 // pred_check_branch
          %393 = sbr.rel (%p391) target = $region64
        $region63: #{tpu_custom_call.1} parent=59 // pred_region
          %394 = dma.done %s387, 1024
        $region64: #{tpu_custom_call.1} parent=59 // pred_fallthru
          _
        // Predicated region
        $region65: #{tpu_custom_call.1} parent=59 // pred_check
          %p395 = pneg %p98
        $region66: #{tpu_custom_call.1} parent=59 // pred_check_branch
          %397 = sbr.rel (%p395) target = $region68
        $region67: #{tpu_custom_call.1} parent=59 // pred_region
          %398 = dma.done [#allocation8], 3584
        $region68: #{tpu_custom_call.1} parent=59 // pred_fallthru
          _
        // Predicated region
        $region69: #{tpu_custom_call.1} parent=59 // pred_check
          %p399 = pneg %p140
        $region70: #{tpu_custom_call.1} parent=59 // pred_check_branch
          %401 = sbr.rel (%p399) target = $region72
        $region71: #{tpu_custom_call.1} parent=59 // pred_region
          %402 = dma.done [#allocation8], 3584
        $region72: #{tpu_custom_call.1} parent=59 // pred_fallthru
          _
        // Predicated region
        $region73: #{tpu_custom_call.1} parent=59 // pred_check
          %p403 = pneg %p182
        $region74: #{tpu_custom_call.1} parent=59 // pred_check_branch
          %405 = sbr.rel (%p403) target = $region76
        $region75: #{tpu_custom_call.1} parent=59 // pred_region
          %406 = dma.done [#allocation11], 448
        $region76: #{tpu_custom_call.1} parent=59 // pred_fallthru
          _
        // Predicated region
        $region77: #{tpu_custom_call.1} parent=59 // pred_check
          %p407 = pneg %p245
        $region78: #{tpu_custom_call.1} parent=59 // pred_check_branch
          %409 = sbr.rel (%p407) target = $region80
        $region79: #{tpu_custom_call.1} parent=59 // pred_region
          %410 = dma.done [#allocation6], 16
        $region80: #{tpu_custom_call.1} parent=59 // pred_fallthru
          _
        %411 = sfence
        %s412 = sand.u32 %s38, 1
        %s413 = scalar_lea.sflag [#allocation4], %s412
        %s414 = sand.u32 %s38, 1
        %s415 = smul.addr %s414, 64
        %s416 = scalar_lea.vmem [#allocation3], %s415
        %p417 = pneg %p51
        %p418 = pneg %p48
        %p419 = scmp.lt.s32.totalorder %s30, 1
        %s420 = scalar_select %p419, %s30, 1
        %s421 = smul.addr %s420, 2
        %s422 = smul.addr %s421, 4
        %s423 = scalar_lea.vmem %s1, %s422
        %p424 = pneg %p77
        %p425 = pneg %p74
        %p426 = pneg %p98
        %p427 = pneg %p95
        %p428 = pneg %p119
        %p429 = pneg %p116
        %p430 = pneg %p140
        %p431 = pneg %p137
        %p432 = pneg %p161
        %p433 = pneg %p158
        %p434 = pneg %p182
        %p435 = pneg %p179
        %p436 = pneg %p203
        %p437 = pneg %p200
        %p438 = pneg %p224
        %p439 = pneg %p221
        %p440 = pneg %p245
        %p441 = pneg %p242
        %p442 = pneg %p271
        %p443 = pneg %p268
        %s444 = sand.u32 %s258, 1
        %s445 = scalar_lea.sflag [#allocation5], %s444
        %s446 = sand.u32 %s258, 1
        %s447 = smul.addr %s446, 8
        %s448 = scalar_lea.vmem [#allocation13], %s447
        %p449 = scmp.lt.s32.totalorder %s30, 1
        %s450 = scalar_select %p449, %s30, 1
        %s451 = smul.addr %s450, 2
        %s452 = smul.addr %s451, 4
        %s453 = scalar_lea.vmem %s1, %s452
        %v454 = vld [vmem:[%s390] sm:$0xff]
        %v455 = vld [vmem:[%s390 + $0x8] sm:$0xff]
        %v456 = vld [vmem:[%s390 + $0x10] sm:$0xff]
        %v457 = vld [vmem:[%s390 + $0x18] sm:$0xff]
        %v458 = vld [vmem:[%s390 + $0x20] sm:$0xff]
        %v459 = vld [vmem:[%s390 + $0x28] sm:$0xff]
        %v460 = vld [vmem:[%s390 + $0x30] sm:$0xff]
        %v461 = vld [vmem:[%s390 + $0x38] sm:$0xff]
        %462 = vrot.lane.b32.xlu0 %v454, 34
        %v463 = vpop.permute.xlu0 %462
        %464 = vrot.lane.b32.xlu0 %v456, 34
        %v465 = vpop.permute.xlu0 %464
        %466 = vrot.lane.b32.xlu0 %v458, 34
        %v467 = vpop.permute.xlu0 %466
        %468 = vrot.lane.b32.xlu0 %v460, 34
        %v469 = vpop.permute.xlu0 %468
        %470 = vrot.lane.b32.xlu0 %v455, 34
        %v471 = vpop.permute.xlu0 %470
        %472 = vrot.lane.b32.xlu0 %v457, 34
        %v473 = vpop.permute.xlu0 %472
        %474 = vrot.lane.b32.xlu0 %v459, 34
        %v475 = vpop.permute.xlu0 %474
        %476 = vrot.lane.b32.xlu0 %v461, 34
        %v477 = vpop.permute.xlu0 %476
        %v478 = vlaneseq
        %v479 = vand.u32 %v478, 127
        %vm480 = vcmp.lt.s32.totalorder %v479, 34
        %v481 = vsel %vm480, %v463, %v471
        %v482 = vsel %vm480, %v465, %v473
        %v483 = vsel %vm480, %v467, %v475
        %v484 = vsel %vm480, %v469, %v477
        %v485 = vsel %vm480, %v471, %v463
        %v486 = vsel %vm480, %v473, %v465
        %v487 = vsel %vm480, %v475, %v467
        %v488 = vsel %vm480, %v477, %v469
        %v489 = vld [vmem:[%s8] ss:$8 sm:$0x3]
        %v491 = vlaneseq
        %v492 = vshrl.u32 %v491, 7
        %v493 = vsub.s32 0, %v492
        %v494 = vrot.slane %v489, %v493
        %v495 = vlaneseq
        %v496 = vshrl.u32 %v495, 7
        %v497 = vsub.s32 1, %v496
        %v498 = vrot.slane %v489, %v497
        %v501 = vmul.f32 %v485, %v494
        %v502 = vmul.f32 %v481, %v498
        %v503 = vmul.f32 %v486, %v494
        %v504 = vmul.f32 %v482, %v498
        %v505 = vmul.f32 %v487, %v494
        %v506 = vmul.f32 %v483, %v498
        %v507 = vmul.f32 %v488, %v494
        %v508 = vmul.f32 %v484, %v498
        %509 = vst [vmem:[#allocation2] sm:$0xff] %v501
        %510 = vst [vmem:[#allocation2 + $0x8] sm:$0xff] %v502
        %511 = vst [vmem:[#allocation2 + $0x10] sm:$0xff] %v503
        %512 = vst [vmem:[#allocation2 + $0x18] sm:$0xff] %v504
        %513 = vst [vmem:[#allocation2 + $0x20] sm:$0xff] %v505
        %514 = vst [vmem:[#allocation2 + $0x28] sm:$0xff] %v506
        %515 = vst [vmem:[#allocation2 + $0x30] sm:$0xff] %v507
        %516 = vst [vmem:[#allocation2 + $0x38] sm:$0xff] %v508
        %517 = vrot.lane.b32.xlu0 %v454, 33
        %v518 = vpop.permute.xlu0 %517
        %519 = vrot.lane.b32.xlu0 %v456, 33
        %v520 = vpop.permute.xlu0 %519
        %521 = vrot.lane.b32.xlu0 %v458, 33
        %v522 = vpop.permute.xlu0 %521
        %523 = vrot.lane.b32.xlu0 %v460, 33
        %v524 = vpop.permute.xlu0 %523
        %525 = vrot.lane.b32.xlu0 %v455, 33
        %v526 = vpop.permute.xlu0 %525
        %527 = vrot.lane.b32.xlu0 %v457, 33
        %v528 = vpop.permute.xlu0 %527
        %529 = vrot.lane.b32.xlu0 %v459, 33
        %v530 = vpop.permute.xlu0 %529
        %531 = vrot.lane.b32.xlu0 %v461, 33
        %v532 = vpop.permute.xlu0 %531
        %vm533 = vcmp.lt.s32.totalorder %v479, 33
        %v534 = vsel %vm533, %v518, %v526
        %v535 = vsel %vm533, %v520, %v528
        %v536 = vsel %vm533, %v522, %v530
        %v537 = vsel %vm533, %v524, %v532
        %v538 = vsel %vm533, %v526, %v518
        %v539 = vsel %vm533, %v528, %v520
        %v540 = vsel %vm533, %v530, %v522
        %v541 = vsel %vm533, %v532, %v524
        %s542 = scalar_lea.vmem %s8, 1
        %v543 = vld [vmem:[%s542] ss:$8 sm:$0x3]
        %v545 = vlaneseq
        %v546 = vshrl.u32 %v545, 7
        %v547 = vsub.s32 0, %v546
        %v548 = vrot.slane %v543, %v547
        %v549 = vlaneseq
        %v550 = vshrl.u32 %v549, 7
        %v551 = vsub.s32 1, %v550
        %v552 = vrot.slane %v543, %v551
        %v555 = vmul.f32 %v538, %v548
        %v556 = vmul.f32 %v534, %v552
        %v557 = vmul.f32 %v539, %v548
        %v558 = vmul.f32 %v535, %v552
        %v559 = vmul.f32 %v540, %v548
        %v560 = vmul.f32 %v536, %v552
        %v561 = vmul.f32 %v541, %v548
        %v562 = vmul.f32 %v537, %v552
        %563 = vst [vmem:[#allocation2 + $0x40] sm:$0xff] %v555
        %564 = vst [vmem:[#allocation2 + $0x48] sm:$0xff] %v556
        %565 = vst [vmem:[#allocation2 + $0x50] sm:$0xff] %v557
        %566 = vst [vmem:[#allocation2 + $0x58] sm:$0xff] %v558
        %567 = vst [vmem:[#allocation2 + $0x60] sm:$0xff] %v559
        %568 = vst [vmem:[#allocation2 + $0x68] sm:$0xff] %v560
        %569 = vst [vmem:[#allocation2 + $0x70] sm:$0xff] %v561
        %570 = vst [vmem:[#allocation2 + $0x78] sm:$0xff] %v562
        %571 = vrot.lane.b32.xlu0 %v454, 32
        %v572 = vpop.permute.xlu0 %571
        %573 = vrot.lane.b32.xlu0 %v456, 32
        %v574 = vpop.permute.xlu0 %573
        %575 = vrot.lane.b32.xlu0 %v458, 32
        %v576 = vpop.permute.xlu0 %575
        %577 = vrot.lane.b32.xlu0 %v460, 32
        %v578 = vpop.permute.xlu0 %577
        %579 = vrot.lane.b32.xlu0 %v455, 32
        %v580 = vpop.permute.xlu0 %579
        %581 = vrot.lane.b32.xlu0 %v457, 32
        %v582 = vpop.permute.xlu0 %581
        %583 = vrot.lane.b32.xlu0 %v459, 32
        %v584 = vpop.permute.xlu0 %583
        %585 = vrot.lane.b32.xlu0 %v461, 32
        %v586 = vpop.permute.xlu0 %585
        %vm587 = vcmp.lt.s32.totalorder %v479, 32
        %v588 = vsel %vm587, %v572, %v580
        %v589 = vsel %vm587, %v574, %v582
        %v590 = vsel %vm587, %v576, %v584
        %v591 = vsel %vm587, %v578, %v586
        %v592 = vsel %vm587, %v580, %v572
        %v593 = vsel %vm587, %v582, %v574
        %v594 = vsel %vm587, %v584, %v576
        %v595 = vsel %vm587, %v586, %v578
        %s596 = scalar_lea.vmem %s8, 2
        %v597 = vld [vmem:[%s596] ss:$8 sm:$0x3]
        %v599 = vlaneseq
        %v600 = vshrl.u32 %v599, 7
        %v601 = vsub.s32 0, %v600
        %v602 = vrot.slane %v597, %v601
        %v603 = vlaneseq
        %v604 = vshrl.u32 %v603, 7
        %v605 = vsub.s32 1, %v604
        %v606 = vrot.slane %v597, %v605
        %v609 = vmul.f32 %v592, %v602
        %v610 = vmul.f32 %v588, %v606
        %v611 = vmul.f32 %v593, %v602
        %v612 = vmul.f32 %v589, %v606
        %v613 = vmul.f32 %v594, %v602
        %v614 = vmul.f32 %v590, %v606
        %v615 = vmul.f32 %v595, %v602
        %v616 = vmul.f32 %v591, %v606
        %617 = vst [vmem:[#allocation2 + $0x80] sm:$0xff] %v609
        %618 = vst [vmem:[#allocation2 + $0x88] sm:$0xff] %v610
        %619 = vst [vmem:[#allocation2 + $0x90] sm:$0xff] %v611
        %620 = vst [vmem:[#allocation2 + $0x98] sm:$0xff] %v612
        %621 = vst [vmem:[#allocation2 + $0xa0] sm:$0xff] %v613
        %622 = vst [vmem:[#allocation2 + $0xa8] sm:$0xff] %v614
        %623 = vst [vmem:[#allocation2 + $0xb0] sm:$0xff] %v615
        %624 = vst [vmem:[#allocation2 + $0xb8] sm:$0xff] %v616
        %625 = vrot.lane.b32.xlu0 %v454, 31
        %v626 = vpop.permute.xlu0 %625
        %627 = vrot.lane.b32.xlu0 %v456, 31
        %v628 = vpop.permute.xlu0 %627
        %629 = vrot.lane.b32.xlu0 %v458, 31
        %v630 = vpop.permute.xlu0 %629
        %631 = vrot.lane.b32.xlu0 %v460, 31
        %v632 = vpop.permute.xlu0 %631
        %633 = vrot.lane.b32.xlu0 %v455, 31
        %v634 = vpop.permute.xlu0 %633
        %635 = vrot.lane.b32.xlu0 %v457, 31
        %v636 = vpop.permute.xlu0 %635
        %637 = vrot.lane.b32.xlu0 %v459, 31
        %v638 = vpop.permute.xlu0 %637
        %639 = vrot.lane.b32.xlu0 %v461, 31
        %v640 = vpop.permute.xlu0 %639
        %vm641 = vcmp.lt.s32.totalorder %v479, 31
        %v642 = vsel %vm641, %v626, %v634
        %v643 = vsel %vm641, %v628, %v636
        %v644 = vsel %vm641, %v630, %v638
        %v645 = vsel %vm641, %v632, %v640
        %v646 = vsel %vm641, %v634, %v626
        %v647 = vsel %vm641, %v636, %v628
        %v648 = vsel %vm641, %v638, %v630
        %v649 = vsel %vm641, %v640, %v632
        %s650 = scalar_lea.vmem %s8, 3
        %v651 = vld [vmem:[%s650] ss:$8 sm:$0x3]
        %v653 = vlaneseq
        %v654 = vshrl.u32 %v653, 7
        %v655 = vsub.s32 0, %v654
        %v656 = vrot.slane %v651, %v655
        %v657 = vlaneseq
        %v658 = vshrl.u32 %v657, 7
        %v659 = vsub.s32 1, %v658
        %v660 = vrot.slane %v651, %v659
        %v663 = vmul.f32 %v646, %v656
        %v664 = vmul.f32 %v642, %v660
        %v665 = vmul.f32 %v647, %v656
        %v666 = vmul.f32 %v643, %v660
        %v667 = vmul.f32 %v648, %v656
        %v668 = vmul.f32 %v644, %v660
        %v669 = vmul.f32 %v649, %v656
        %v670 = vmul.f32 %v645, %v660
        %671 = vst [vmem:[#allocation2 + $0xc0] sm:$0xff] %v663
        %672 = vst [vmem:[#allocation2 + $0xc8] sm:$0xff] %v664
        %673 = vst [vmem:[#allocation2 + $0xd0] sm:$0xff] %v665
        %674 = vst [vmem:[#allocation2 + $0xd8] sm:$0xff] %v666
        %675 = vst [vmem:[#allocation2 + $0xe0] sm:$0xff] %v667
        %676 = vst [vmem:[#allocation2 + $0xe8] sm:$0xff] %v668
        %677 = vst [vmem:[#allocation2 + $0xf0] sm:$0xff] %v669
        %678 = vst [vmem:[#allocation2 + $0xf8] sm:$0xff] %v670
        %679 = vrot.lane.b32.xlu0 %v454, 30
        %v680 = vpop.permute.xlu0 %679
        %681 = vrot.lane.b32.xlu0 %v456, 30
        %v682 = vpop.permute.xlu0 %681
        %683 = vrot.lane.b32.xlu0 %v458, 30
        %v684 = vpop.permute.xlu0 %683
        %685 = vrot.lane.b32.xlu0 %v460, 30
        %v686 = vpop.permute.xlu0 %685
        %687 = vrot.lane.b32.xlu0 %v455, 30
        %v688 = vpop.permute.xlu0 %687
        %689 = vrot.lane.b32.xlu0 %v457, 30
        %v690 = vpop.permute.xlu0 %689
        %691 = vrot.lane.b32.xlu0 %v459, 30
        %v692 = vpop.permute.xlu0 %691
        %693 = vrot.lane.b32.xlu0 %v461, 30
        %v694 = vpop.permute.xlu0 %693
        %vm695 = vcmp.lt.s32.totalorder %v479, 30
        %v696 = vsel %vm695, %v680, %v688
        %v697 = vsel %vm695, %v682, %v690
        %v698 = vsel %vm695, %v684, %v692
        %v699 = vsel %vm695, %v686, %v694
        %v700 = vsel %vm695, %v688, %v680
        %v701 = vsel %vm695, %v690, %v682
        %v702 = vsel %vm695, %v692, %v684
        %v703 = vsel %vm695, %v694, %v686
        %s704 = scalar_lea.vmem %s8, 4
        %v705 = vld [vmem:[%s704] ss:$8 sm:$0x3]
        %v707 = vlaneseq
        %v708 = vshrl.u32 %v707, 7
        %v709 = vsub.s32 0, %v708
        %v710 = vrot.slane %v705, %v709
        %v711 = vlaneseq
        %v712 = vshrl.u32 %v711, 7
        %v713 = vsub.s32 1, %v712
        %v714 = vrot.slane %v705, %v713
        %v717 = vmul.f32 %v700, %v710
        %v718 = vmul.f32 %v696, %v714
        %v719 = vmul.f32 %v701, %v710
        %v720 = vmul.f32 %v697, %v714
        %v721 = vmul.f32 %v702, %v710
        %v722 = vmul.f32 %v698, %v714
        %v723 = vmul.f32 %v703, %v710
        %v724 = vmul.f32 %v699, %v714
        %725 = vst [vmem:[#allocation2 + $0x100] sm:$0xff] %v717
        %726 = vst [vmem:[#allocation2 + $0x108] sm:$0xff] %v718
        %727 = vst [vmem:[#allocation2 + $0x110] sm:$0xff] %v719
        %728 = vst [vmem:[#allocation2 + $0x118] sm:$0xff] %v720
        %729 = vst [vmem:[#allocation2 + $0x120] sm:$0xff] %v721
        %730 = vst [vmem:[#allocation2 + $0x128] sm:$0xff] %v722
        %731 = vst [vmem:[#allocation2 + $0x130] sm:$0xff] %v723
        %732 = vst [vmem:[#allocation2 + $0x138] sm:$0xff] %v724
        %733 = vrot.lane.b32.xlu0 %v454, 18
        %v734 = vpop.permute.xlu0 %733
        %735 = vrot.lane.b32.xlu0 %v456, 18
        %v736 = vpop.permute.xlu0 %735
        %737 = vrot.lane.b32.xlu0 %v458, 18
        %v738 = vpop.permute.xlu0 %737
        %739 = vrot.lane.b32.xlu0 %v460, 18
        %v740 = vpop.permute.xlu0 %739
        %741 = vrot.lane.b32.xlu0 %v455, 18
        %v742 = vpop.permute.xlu0 %741
        %743 = vrot.lane.b32.xlu0 %v457, 18
        %v744 = vpop.permute.xlu0 %743
        %745 = vrot.lane.b32.xlu0 %v459, 18
        %v746 = vpop.permute.xlu0 %745
        %747 = vrot.lane.b32.xlu0 %v461, 18
        %v748 = vpop.permute.xlu0 %747
        %vm749 = vcmp.lt.s32.totalorder %v479, 18
        %v750 = vsel %vm749, %v734, %v742
        %v751 = vsel %vm749, %v736, %v744
        %v752 = vsel %vm749, %v738, %v746
        %v753 = vsel %vm749, %v740, %v748
        %v754 = vsel %vm749, %v742, %v734
        %v755 = vsel %vm749, %v744, %v736
        %v756 = vsel %vm749, %v746, %v738
        %v757 = vsel %vm749, %v748, %v740
        %s758 = scalar_lea.vmem %s8, 5
        %v759 = vld [vmem:[%s758] ss:$8 sm:$0x3]
        %v761 = vlaneseq
        %v762 = vshrl.u32 %v761, 7
        %v763 = vsub.s32 0, %v762
        %v764 = vrot.slane %v759, %v763
        %v765 = vlaneseq
        %v766 = vshrl.u32 %v765, 7
        %v767 = vsub.s32 1, %v766
        %v768 = vrot.slane %v759, %v767
        %v771 = vmul.f32 %v754, %v764
        %v772 = vmul.f32 %v750, %v768
        %v773 = vmul.f32 %v755, %v764
        %v774 = vmul.f32 %v751, %v768
        %v775 = vmul.f32 %v756, %v764
        %v776 = vmul.f32 %v752, %v768
        %v777 = vmul.f32 %v757, %v764
        %v778 = vmul.f32 %v753, %v768
        %779 = vst [vmem:[#allocation2 + $0x140] sm:$0xff] %v771
        %780 = vst [vmem:[#allocation2 + $0x148] sm:$0xff] %v772
        %781 = vst [vmem:[#allocation2 + $0x150] sm:$0xff] %v773
        %782 = vst [vmem:[#allocation2 + $0x158] sm:$0xff] %v774
        %783 = vst [vmem:[#allocation2 + $0x160] sm:$0xff] %v775
        %784 = vst [vmem:[#allocation2 + $0x168] sm:$0xff] %v776
        %785 = vst [vmem:[#allocation2 + $0x170] sm:$0xff] %v777
        %786 = vst [vmem:[#allocation2 + $0x178] sm:$0xff] %v778
        %787 = vrot.lane.b32.xlu0 %v454, 17
        %v788 = vpop.permute.xlu0 %787
        %789 = vrot.lane.b32.xlu0 %v456, 17
        %v790 = vpop.permute.xlu0 %789
        %791 = vrot.lane.b32.xlu0 %v458, 17
        %v792 = vpop.permute.xlu0 %791
        %793 = vrot.lane.b32.xlu0 %v460, 17
        %v794 = vpop.permute.xlu0 %793
        %795 = vrot.lane.b32.xlu0 %v455, 17
        %v796 = vpop.permute.xlu0 %795
        %797 = vrot.lane.b32.xlu0 %v457, 17
        %v798 = vpop.permute.xlu0 %797
        %799 = vrot.lane.b32.xlu0 %v459, 17
        %v800 = vpop.permute.xlu0 %799
        %801 = vrot.lane.b32.xlu0 %v461, 17
        %v802 = vpop.permute.xlu0 %801
        %vm803 = vcmp.lt.s32.totalorder %v479, 17
        %v804 = vsel %vm803, %v788, %v796
        %v805 = vsel %vm803, %v790, %v798
        %v806 = vsel %vm803, %v792, %v800
        %v807 = vsel %vm803, %v794, %v802
        %v808 = vsel %vm803, %v796, %v788
        %v809 = vsel %vm803, %v798, %v790
        %v810 = vsel %vm803, %v800, %v792
        %v811 = vsel %vm803, %v802, %v794
        %s812 = scalar_lea.vmem %s8, 6
        %v813 = vld [vmem:[%s812] ss:$8 sm:$0x3]
        %v815 = vlaneseq
        %v816 = vshrl.u32 %v815, 7
        %v817 = vsub.s32 0, %v816
        %v818 = vrot.slane %v813, %v817
        %v819 = vlaneseq
        %v820 = vshrl.u32 %v819, 7
        %v821 = vsub.s32 1, %v820
        %v822 = vrot.slane %v813, %v821
        %v825 = vmul.f32 %v808, %v818
        %v826 = vmul.f32 %v804, %v822
        %v827 = vmul.f32 %v809, %v818
        %v828 = vmul.f32 %v805, %v822
        %v829 = vmul.f32 %v810, %v818
        %v830 = vmul.f32 %v806, %v822
        %v831 = vmul.f32 %v811, %v818
        %v832 = vmul.f32 %v807, %v822
        %833 = vst [vmem:[#allocation2 + $0x180] sm:$0xff] %v825
        %834 = vst [vmem:[#allocation2 + $0x188] sm:$0xff] %v826
        %835 = vst [vmem:[#allocation2 + $0x190] sm:$0xff] %v827
        %836 = vst [vmem:[#allocation2 + $0x198] sm:$0xff] %v828
        %837 = vst [vmem:[#allocation2 + $0x1a0] sm:$0xff] %v829
        %838 = vst [vmem:[#allocation2 + $0x1a8] sm:$0xff] %v830
        %839 = vst [vmem:[#allocation2 + $0x1b0] sm:$0xff] %v831
        %840 = vst [vmem:[#allocation2 + $0x1b8] sm:$0xff] %v832
        %841 = vrot.lane.b32.xlu0 %v454, 16
        %v842 = vpop.permute.xlu0 %841
        %843 = vrot.lane.b32.xlu0 %v456, 16
        %v844 = vpop.permute.xlu0 %843
        %845 = vrot.lane.b32.xlu0 %v458, 16
        %v846 = vpop.permute.xlu0 %845
        %847 = vrot.lane.b32.xlu0 %v460, 16
        %v848 = vpop.permute.xlu0 %847
        %849 = vrot.lane.b32.xlu0 %v455, 16
        %v850 = vpop.permute.xlu0 %849
        %851 = vrot.lane.b32.xlu0 %v457, 16
        %v852 = vpop.permute.xlu0 %851
        %853 = vrot.lane.b32.xlu0 %v459, 16
        %v854 = vpop.permute.xlu0 %853
        %855 = vrot.lane.b32.xlu0 %v461, 16
        %v856 = vpop.permute.xlu0 %855
        %vm857 = vcmp.lt.s32.totalorder %v479, 16
        %v858 = vsel %vm857, %v842, %v850
        %v859 = vsel %vm857, %v844, %v852
        %v860 = vsel %vm857, %v846, %v854
        %v861 = vsel %vm857, %v848, %v856
        %v862 = vsel %vm857, %v850, %v842
        %v863 = vsel %vm857, %v852, %v844
        %v864 = vsel %vm857, %v854, %v846
        %v865 = vsel %vm857, %v856, %v848
        %s866 = scalar_lea.vmem %s8, 7
        %v867 = vld [vmem:[%s866] ss:$8 sm:$0x3]
        %v869 = vlaneseq
        %v870 = vshrl.u32 %v869, 7
        %v871 = vsub.s32 0, %v870
        %v872 = vrot.slane %v867, %v871
        %v873 = vlaneseq
        %v874 = vshrl.u32 %v873, 7
        %v875 = vsub.s32 1, %v874
        %v876 = vrot.slane %v867, %v875
        %v879 = vmul.f32 %v862, %v872
        %v880 = vmul.f32 %v858, %v876
        %v881 = vmul.f32 %v863, %v872
        %v882 = vmul.f32 %v859, %v876
        %v883 = vmul.f32 %v864, %v872
        %v884 = vmul.f32 %v860, %v876
        %v885 = vmul.f32 %v865, %v872
        %v886 = vmul.f32 %v861, %v876
        %887 = vst [vmem:[#allocation2 + $0x1c0] sm:$0xff] %v879
        %888 = vst [vmem:[#allocation2 + $0x1c8] sm:$0xff] %v880
        %889 = vst [vmem:[#allocation2 + $0x1d0] sm:$0xff] %v881
        %890 = vst [vmem:[#allocation2 + $0x1d8] sm:$0xff] %v882
        %891 = vst [vmem:[#allocation2 + $0x1e0] sm:$0xff] %v883
        %892 = vst [vmem:[#allocation2 + $0x1e8] sm:$0xff] %v884
        %893 = vst [vmem:[#allocation2 + $0x1f0] sm:$0xff] %v885
        %894 = vst [vmem:[#allocation2 + $0x1f8] sm:$0xff] %v886
        %895 = vrot.lane.b32.xlu0 %v454, 15
        %v896 = vpop.permute.xlu0 %895
        %897 = vrot.lane.b32.xlu0 %v456, 15
        %v898 = vpop.permute.xlu0 %897
        %899 = vrot.lane.b32.xlu0 %v458, 15
        %v900 = vpop.permute.xlu0 %899
        %901 = vrot.lane.b32.xlu0 %v460, 15
        %v902 = vpop.permute.xlu0 %901
        %903 = vrot.lane.b32.xlu0 %v455, 15
        %v904 = vpop.permute.xlu0 %903
        %905 = vrot.lane.b32.xlu0 %v457, 15
        %v906 = vpop.permute.xlu0 %905
        %907 = vrot.lane.b32.xlu0 %v459, 15
        %v908 = vpop.permute.xlu0 %907
        %909 = vrot.lane.b32.xlu0 %v461, 15
        %v910 = vpop.permute.xlu0 %909
        %vm911 = vcmp.lt.s32.totalorder %v479, 15
        %v912 = vsel %vm911, %v896, %v904
        %v913 = vsel %vm911, %v898, %v906
        %v914 = vsel %vm911, %v900, %v908
        %v915 = vsel %vm911, %v902, %v910
        %v916 = vsel %vm911, %v904, %v896
        %v917 = vsel %vm911, %v906, %v898
        %v918 = vsel %vm911, %v908, %v900
        %v919 = vsel %vm911, %v910, %v902
        %s920 = scalar_lea.vmem %s8, 16
        %v921 = vld [vmem:[%s920] ss:$8 sm:$0x3]
        %v923 = vlaneseq
        %v924 = vshrl.u32 %v923, 7
        %v925 = vsub.s32 0, %v924
        %v926 = vrot.slane %v921, %v925
        %v927 = vlaneseq
        %v928 = vshrl.u32 %v927, 7
        %v929 = vsub.s32 1, %v928
        %v930 = vrot.slane %v921, %v929
        %v933 = vmul.f32 %v916, %v926
        %v934 = vmul.f32 %v912, %v930
        %v935 = vmul.f32 %v917, %v926
        %v936 = vmul.f32 %v913, %v930
        %v937 = vmul.f32 %v918, %v926
        %v938 = vmul.f32 %v914, %v930
        %v939 = vmul.f32 %v919, %v926
        %v940 = vmul.f32 %v915, %v930
        %941 = vst [vmem:[#allocation2 + $0x200] sm:$0xff] %v933
        %942 = vst [vmem:[#allocation2 + $0x208] sm:$0xff] %v934
        %943 = vst [vmem:[#allocation2 + $0x210] sm:$0xff] %v935
        %944 = vst [vmem:[#allocation2 + $0x218] sm:$0xff] %v936
        %945 = vst [vmem:[#allocation2 + $0x220] sm:$0xff] %v937
        %946 = vst [vmem:[#allocation2 + $0x228] sm:$0xff] %v938
        %947 = vst [vmem:[#allocation2 + $0x230] sm:$0xff] %v939
        %948 = vst [vmem:[#allocation2 + $0x238] sm:$0xff] %v940
        %949 = vrot.lane.b32.xlu0 %v454, 14
        %v950 = vpop.permute.xlu0 %949
        %951 = vrot.lane.b32.xlu0 %v456, 14
        %v952 = vpop.permute.xlu0 %951
        %953 = vrot.lane.b32.xlu0 %v458, 14
        %v954 = vpop.permute.xlu0 %953
        %955 = vrot.lane.b32.xlu0 %v460, 14
        %v956 = vpop.permute.xlu0 %955
        %957 = vrot.lane.b32.xlu0 %v455, 14
        %v958 = vpop.permute.xlu0 %957
        %959 = vrot.lane.b32.xlu0 %v457, 14
        %v960 = vpop.permute.xlu0 %959
        %961 = vrot.lane.b32.xlu0 %v459, 14
        %v962 = vpop.permute.xlu0 %961
        %963 = vrot.lane.b32.xlu0 %v461, 14
        %v964 = vpop.permute.xlu0 %963
        %vm965 = vcmp.lt.s32.totalorder %v479, 14
        %v966 = vsel %vm965, %v950, %v958
        %v967 = vsel %vm965, %v952, %v960
        %v968 = vsel %vm965, %v954, %v962
        %v969 = vsel %vm965, %v956, %v964
        %v970 = vsel %vm965, %v958, %v950
        %v971 = vsel %vm965, %v960, %v952
        %v972 = vsel %vm965, %v962, %v954
        %v973 = vsel %vm965, %v964, %v956
        %s974 = scalar_lea.vmem %s8, 17
        %v975 = vld [vmem:[%s974] ss:$8 sm:$0x3]
        %v977 = vlaneseq
        %v978 = vshrl.u32 %v977, 7
        %v979 = vsub.s32 0, %v978
        %v980 = vrot.slane %v975, %v979
        %v981 = vlaneseq
        %v982 = vshrl.u32 %v981, 7
        %v983 = vsub.s32 1, %v982
        %v984 = vrot.slane %v975, %v983
        %v987 = vmul.f32 %v970, %v980
        %v988 = vmul.f32 %v966, %v984
        %v989 = vmul.f32 %v971, %v980
        %v990 = vmul.f32 %v967, %v984
        %v991 = vmul.f32 %v972, %v980
        %v992 = vmul.f32 %v968, %v984
        %v993 = vmul.f32 %v973, %v980
        %v994 = vmul.f32 %v969, %v984
        %995 = vst [vmem:[#allocation2 + $0x240] sm:$0xff] %v987
        %996 = vst [vmem:[#allocation2 + $0x248] sm:$0xff] %v988
        %997 = vst [vmem:[#allocation2 + $0x250] sm:$0xff] %v989
        %998 = vst [vmem:[#allocation2 + $0x258] sm:$0xff] %v990
        %999 = vst [vmem:[#allocation2 + $0x260] sm:$0xff] %v991
        %1000 = vst [vmem:[#allocation2 + $0x268] sm:$0xff] %v992
        %1001 = vst [vmem:[#allocation2 + $0x270] sm:$0xff] %v993
        %1002 = vst [vmem:[#allocation2 + $0x278] sm:$0xff] %v994
        %1003 = vrot.lane.b32.xlu0 %v454, 2
        %v1004 = vpop.permute.xlu0 %1003
        %1005 = vrot.lane.b32.xlu0 %v456, 2
        %v1006 = vpop.permute.xlu0 %1005
        %1007 = vrot.lane.b32.xlu0 %v458, 2
        %v1008 = vpop.permute.xlu0 %1007
        %1009 = vrot.lane.b32.xlu0 %v460, 2
        %v1010 = vpop.permute.xlu0 %1009
        %1011 = vrot.lane.b32.xlu0 %v455, 2
        %v1012 = vpop.permute.xlu0 %1011
        %1013 = vrot.lane.b32.xlu0 %v457, 2
        %v1014 = vpop.permute.xlu0 %1013
        %1015 = vrot.lane.b32.xlu0 %v459, 2
        %v1016 = vpop.permute.xlu0 %1015
        %1017 = vrot.lane.b32.xlu0 %v461, 2
        %v1018 = vpop.permute.xlu0 %1017
        %vm1019 = vcmp.lt.s32.totalorder %v479, 2
        %v1020 = vsel %vm1019, %v1004, %v1012
        %v1021 = vsel %vm1019, %v1006, %v1014
        %v1022 = vsel %vm1019, %v1008, %v1016
        %v1023 = vsel %vm1019, %v1010, %v1018
        %v1024 = vsel %vm1019, %v1012, %v1004
        %v1025 = vsel %vm1019, %v1014, %v1006
        %v1026 = vsel %vm1019, %v1016, %v1008
        %v1027 = vsel %vm1019, %v1018, %v1010
        %s1028 = scalar_lea.vmem %s8, 18
        %v1029 = vld [vmem:[%s1028] ss:$8 sm:$0x3]
        %v1031 = vlaneseq
        %v1032 = vshrl.u32 %v1031, 7
        %v1033 = vsub.s32 0, %v1032
        %v1034 = vrot.slane %v1029, %v1033
        %v1035 = vlaneseq
        %v1036 = vshrl.u32 %v1035, 7
        %v1037 = vsub.s32 1, %v1036
        %v1038 = vrot.slane %v1029, %v1037
        %v1041 = vmul.f32 %v1024, %v1034
        %v1042 = vmul.f32 %v1020, %v1038
        %v1043 = vmul.f32 %v1025, %v1034
        %v1044 = vmul.f32 %v1021, %v1038
        %v1045 = vmul.f32 %v1026, %v1034
        %v1046 = vmul.f32 %v1022, %v1038
        %v1047 = vmul.f32 %v1027, %v1034
        %v1048 = vmul.f32 %v1023, %v1038
        %1049 = vst [vmem:[#allocation2 + $0x280] sm:$0xff] %v1041
        %1050 = vst [vmem:[#allocation2 + $0x288] sm:$0xff] %v1042
        %1051 = vst [vmem:[#allocation2 + $0x290] sm:$0xff] %v1043
        %1052 = vst [vmem:[#allocation2 + $0x298] sm:$0xff] %v1044
        %1053 = vst [vmem:[#allocation2 + $0x2a0] sm:$0xff] %v1045
        %1054 = vst [vmem:[#allocation2 + $0x2a8] sm:$0xff] %v1046
        %1055 = vst [vmem:[#allocation2 + $0x2b0] sm:$0xff] %v1047
        %1056 = vst [vmem:[#allocation2 + $0x2b8] sm:$0xff] %v1048
        %1057 = vrot.lane.b32.xlu0 %v454, 1
        %v1058 = vpop.permute.xlu0 %1057
        %1059 = vrot.lane.b32.xlu0 %v456, 1
        %v1060 = vpop.permute.xlu0 %1059
        %1061 = vrot.lane.b32.xlu0 %v458, 1
        %v1062 = vpop.permute.xlu0 %1061
        %1063 = vrot.lane.b32.xlu0 %v460, 1
        %v1064 = vpop.permute.xlu0 %1063
        %1065 = vrot.lane.b32.xlu0 %v455, 1
        %v1066 = vpop.permute.xlu0 %1065
        %1067 = vrot.lane.b32.xlu0 %v457, 1
        %v1068 = vpop.permute.xlu0 %1067
        %1069 = vrot.lane.b32.xlu0 %v459, 1
        %v1070 = vpop.permute.xlu0 %1069
        %1071 = vrot.lane.b32.xlu0 %v461, 1
        %v1072 = vpop.permute.xlu0 %1071
        %vm1073 = vcmp.lt.s32.totalorder %v479, 1
        %v1074 = vsel %vm1073, %v1058, %v1066
        %v1075 = vsel %vm1073, %v1060, %v1068
        %v1076 = vsel %vm1073, %v1062, %v1070
        %v1077 = vsel %vm1073, %v1064, %v1072
        %v1078 = vsel %vm1073, %v1066, %v1058
        %v1079 = vsel %vm1073, %v1068, %v1060
        %v1080 = vsel %vm1073, %v1070, %v1062
        %v1081 = vsel %vm1073, %v1072, %v1064
        %s1082 = scalar_lea.vmem %s8, 19
        %v1083 = vld [vmem:[%s1082] ss:$8 sm:$0x3]
        %v1085 = vlaneseq
        %v1086 = vshrl.u32 %v1085, 7
        %v1087 = vsub.s32 0, %v1086
        %v1088 = vrot.slane %v1083, %v1087
        %v1089 = vlaneseq
        %v1090 = vshrl.u32 %v1089, 7
        %v1091 = vsub.s32 1, %v1090
        %v1092 = vrot.slane %v1083, %v1091
        %v1095 = vmul.f32 %v1078, %v1088
        %v1096 = vmul.f32 %v1074, %v1092
        %v1097 = vmul.f32 %v1079, %v1088
        %v1098 = vmul.f32 %v1075, %v1092
        %v1099 = vmul.f32 %v1080, %v1088
        %v1100 = vmul.f32 %v1076, %v1092
        %v1101 = vmul.f32 %v1081, %v1088
        %v1102 = vmul.f32 %v1077, %v1092
        %1103 = vst [vmem:[#allocation2 + $0x2c0] sm:$0xff] %v1095
        %1104 = vst [vmem:[#allocation2 + $0x2c8] sm:$0xff] %v1096
        %1105 = vst [vmem:[#allocation2 + $0x2d0] sm:$0xff] %v1097
        %1106 = vst [vmem:[#allocation2 + $0x2d8] sm:$0xff] %v1098
        %1107 = vst [vmem:[#allocation2 + $0x2e0] sm:$0xff] %v1099
        %1108 = vst [vmem:[#allocation2 + $0x2e8] sm:$0xff] %v1100
        %1109 = vst [vmem:[#allocation2 + $0x2f0] sm:$0xff] %v1101
        %1110 = vst [vmem:[#allocation2 + $0x2f8] sm:$0xff] %v1102
        %s1111 = scalar_lea.vmem %s8, 20
        %v1112 = vld [vmem:[%s1111] ss:$8 sm:$0x3]
        %v1114 = vlaneseq
        %v1115 = vshrl.u32 %v1114, 7
        %v1116 = vsub.s32 0, %v1115
        %v1117 = vrot.slane %v1112, %v1116
        %v1118 = vlaneseq
        %v1119 = vshrl.u32 %v1118, 7
        %v1120 = vsub.s32 1, %v1119
        %v1121 = vrot.slane %v1112, %v1120
        %v1124 = vmul.f32 %v454, %v1117
        %v1125 = vmul.f32 %v455, %v1121
        %v1126 = vmul.f32 %v456, %v1117
        %v1127 = vmul.f32 %v457, %v1121
        %v1128 = vmul.f32 %v458, %v1117
        %v1129 = vmul.f32 %v459, %v1121
        %v1130 = vmul.f32 %v460, %v1117
        %v1131 = vmul.f32 %v461, %v1121
        %1132 = vst [vmem:[#allocation2 + $0x300] sm:$0xff] %v1124
        %1133 = vst [vmem:[#allocation2 + $0x308] sm:$0xff] %v1125
        %1134 = vst [vmem:[#allocation2 + $0x310] sm:$0xff] %v1126
        %1135 = vst [vmem:[#allocation2 + $0x318] sm:$0xff] %v1127
        %1136 = vst [vmem:[#allocation2 + $0x320] sm:$0xff] %v1128
        %1137 = vst [vmem:[#allocation2 + $0x328] sm:$0xff] %v1129
        %1138 = vst [vmem:[#allocation2 + $0x330] sm:$0xff] %v1130
        %1139 = vst [vmem:[#allocation2 + $0x338] sm:$0xff] %v1131
        %1140 = vrot.lane.b32.xlu0 %v454, 127
        %v1141 = vpop.permute.xlu0 %1140
        %1142 = vrot.lane.b32.xlu0 %v456, 127
        %v1143 = vpop.permute.xlu0 %1142
        %1144 = vrot.lane.b32.xlu0 %v458, 127
        %v1145 = vpop.permute.xlu0 %1144
        %1146 = vrot.lane.b32.xlu0 %v460, 127
        %v1147 = vpop.permute.xlu0 %1146
        %1148 = vrot.lane.b32.xlu0 %v455, 127
        %v1149 = vpop.permute.xlu0 %1148
        %1150 = vrot.lane.b32.xlu0 %v457, 127
        %v1151 = vpop.permute.xlu0 %1150
        %1152 = vrot.lane.b32.xlu0 %v459, 127
        %v1153 = vpop.permute.xlu0 %1152
        %1154 = vrot.lane.b32.xlu0 %v461, 127
        %v1155 = vpop.permute.xlu0 %1154
        %vm1156 = vcmp.lt.s32.totalorder %v479, 127
        %v1157 = vsel %vm1156, %v1141, %v1149
        %v1158 = vsel %vm1156, %v1143, %v1151
        %v1159 = vsel %vm1156, %v1145, %v1153
        %v1160 = vsel %vm1156, %v1147, %v1155
        %v1161 = vsel %vm1156, %v1149, %v1141
        %v1162 = vsel %vm1156, %v1151, %v1143
        %v1163 = vsel %vm1156, %v1153, %v1145
        %v1164 = vsel %vm1156, %v1155, %v1147
        %s1165 = scalar_lea.vmem %s8, 21
        %v1166 = vld [vmem:[%s1165] ss:$8 sm:$0x3]
        %v1168 = vlaneseq
        %v1169 = vshrl.u32 %v1168, 7
        %v1170 = vsub.s32 0, %v1169
        %v1171 = vrot.slane %v1166, %v1170
        %v1172 = vlaneseq
        %v1173 = vshrl.u32 %v1172, 7
        %v1174 = vsub.s32 1, %v1173
        %v1175 = vrot.slane %v1166, %v1174
        %v1178 = vmul.f32 %v1157, %v1171
        %v1179 = vmul.f32 %v1161, %v1175
        %v1180 = vmul.f32 %v1158, %v1171
        %v1181 = vmul.f32 %v1162, %v1175
        %v1182 = vmul.f32 %v1159, %v1171
        %v1183 = vmul.f32 %v1163, %v1175
        %v1184 = vmul.f32 %v1160, %v1171
        %v1185 = vmul.f32 %v1164, %v1175
        %1186 = vst [vmem:[#allocation2 + $0x340] sm:$0xff] %v1178
        %1187 = vst [vmem:[#allocation2 + $0x348] sm:$0xff] %v1179
        %1188 = vst [vmem:[#allocation2 + $0x350] sm:$0xff] %v1180
        %1189 = vst [vmem:[#allocation2 + $0x358] sm:$0xff] %v1181
        %1190 = vst [vmem:[#allocation2 + $0x360] sm:$0xff] %v1182
        %1191 = vst [vmem:[#allocation2 + $0x368] sm:$0xff] %v1183
        %1192 = vst [vmem:[#allocation2 + $0x370] sm:$0xff] %v1184
        %1193 = vst [vmem:[#allocation2 + $0x378] sm:$0xff] %v1185
        %1194 = vrot.lane.b32.xlu0 %v454, 126
        %v1195 = vpop.permute.xlu0 %1194
        %1196 = vrot.lane.b32.xlu0 %v456, 126
        %v1197 = vpop.permute.xlu0 %1196
        %1198 = vrot.lane.b32.xlu0 %v458, 126
        %v1199 = vpop.permute.xlu0 %1198
        %1200 = vrot.lane.b32.xlu0 %v460, 126
        %v1201 = vpop.permute.xlu0 %1200
        %1202 = vrot.lane.b32.xlu0 %v455, 126
        %v1203 = vpop.permute.xlu0 %1202
        %1204 = vrot.lane.b32.xlu0 %v457, 126
        %v1205 = vpop.permute.xlu0 %1204
        %1206 = vrot.lane.b32.xlu0 %v459, 126
        %v1207 = vpop.permute.xlu0 %1206
        %1208 = vrot.lane.b32.xlu0 %v461, 126
        %v1209 = vpop.permute.xlu0 %1208
        %vm1210 = vcmp.lt.s32.totalorder %v479, 126
        %v1211 = vsel %vm1210, %v1195, %v1203
        %v1212 = vsel %vm1210, %v1197, %v1205
        %v1213 = vsel %vm1210, %v1199, %v1207
        %v1214 = vsel %vm1210, %v1201, %v1209
        %v1215 = vsel %vm1210, %v1203, %v1195
        %v1216 = vsel %vm1210, %v1205, %v1197
        %v1217 = vsel %vm1210, %v1207, %v1199
        %v1218 = vsel %vm1210, %v1209, %v1201
        %s1219 = scalar_lea.vmem %s8, 22
        %v1220 = vld [vmem:[%s1219] ss:$8 sm:$0x3]
        %v1222 = vlaneseq
        %v1223 = vshrl.u32 %v1222, 7
        %v1224 = vsub.s32 0, %v1223
        %v1225 = vrot.slane %v1220, %v1224
        %v1226 = vlaneseq
        %v1227 = vshrl.u32 %v1226, 7
        %v1228 = vsub.s32 1, %v1227
        %v1229 = vrot.slane %v1220, %v1228
        %v1232 = vmul.f32 %v1211, %v1225
        %v1233 = vmul.f32 %v1215, %v1229
        %v1234 = vmul.f32 %v1212, %v1225
        %v1235 = vmul.f32 %v1216, %v1229
        %v1236 = vmul.f32 %v1213, %v1225
        %v1237 = vmul.f32 %v1217, %v1229
        %v1238 = vmul.f32 %v1214, %v1225
        %v1239 = vmul.f32 %v1218, %v1229
        %1240 = vst [vmem:[#allocation2 + $0x380] sm:$0xff] %v1232
        %1241 = vst [vmem:[#allocation2 + $0x388] sm:$0xff] %v1233
        %1242 = vst [vmem:[#allocation2 + $0x390] sm:$0xff] %v1234
        %1243 = vst [vmem:[#allocation2 + $0x398] sm:$0xff] %v1235
        %1244 = vst [vmem:[#allocation2 + $0x3a0] sm:$0xff] %v1236
        %1245 = vst [vmem:[#allocation2 + $0x3a8] sm:$0xff] %v1237
        %1246 = vst [vmem:[#allocation2 + $0x3b0] sm:$0xff] %v1238
        %1247 = vst [vmem:[#allocation2 + $0x3b8] sm:$0xff] %v1239
        %1248 = vrot.lane.b32.xlu0 %v454, 114
        %v1249 = vpop.permute.xlu0 %1248
        %1250 = vrot.lane.b32.xlu0 %v456, 114
        %v1251 = vpop.permute.xlu0 %1250
        %1252 = vrot.lane.b32.xlu0 %v458, 114
        %v1253 = vpop.permute.xlu0 %1252
        %1254 = vrot.lane.b32.xlu0 %v460, 114
        %v1255 = vpop.permute.xlu0 %1254
        %1256 = vrot.lane.b32.xlu0 %v455, 114
        %v1257 = vpop.permute.xlu0 %1256
        %1258 = vrot.lane.b32.xlu0 %v457, 114
        %v1259 = vpop.permute.xlu0 %1258
        %1260 = vrot.lane.b32.xlu0 %v459, 114
        %v1261 = vpop.permute.xlu0 %1260
        %1262 = vrot.lane.b32.xlu0 %v461, 114
        %v1263 = vpop.permute.xlu0 %1262
        %vm1264 = vcmp.lt.s32.totalorder %v479, 114
        %v1265 = vsel %vm1264, %v1249, %v1257
        %v1266 = vsel %vm1264, %v1251, %v1259
        %v1267 = vsel %vm1264, %v1253, %v1261
        %v1268 = vsel %vm1264, %v1255, %v1263
        %v1269 = vsel %vm1264, %v1257, %v1249
        %v1270 = vsel %vm1264, %v1259, %v1251
        %v1271 = vsel %vm1264, %v1261, %v1253
        %v1272 = vsel %vm1264, %v1263, %v1255
        %s1273 = scalar_lea.vmem %s8, 23
        %v1274 = vld [vmem:[%s1273] ss:$8 sm:$0x3]
        %v1276 = vlaneseq
        %v1277 = vshrl.u32 %v1276, 7
        %v1278 = vsub.s32 0, %v1277
        %v1279 = vrot.slane %v1274, %v1278
        %v1280 = vlaneseq
        %v1281 = vshrl.u32 %v1280, 7
        %v1282 = vsub.s32 1, %v1281
        %v1283 = vrot.slane %v1274, %v1282
        %v1286 = vmul.f32 %v1265, %v1279
        %v1287 = vmul.f32 %v1269, %v1283
        %v1288 = vmul.f32 %v1266, %v1279
        %v1289 = vmul.f32 %v1270, %v1283
        %v1290 = vmul.f32 %v1267, %v1279
        %v1291 = vmul.f32 %v1271, %v1283
        %v1292 = vmul.f32 %v1268, %v1279
        %v1293 = vmul.f32 %v1272, %v1283
        %1294 = vst [vmem:[#allocation2 + $0x3c0] sm:$0xff] %v1286
        %1295 = vst [vmem:[#allocation2 + $0x3c8] sm:$0xff] %v1287
        %1296 = vst [vmem:[#allocation2 + $0x3d0] sm:$0xff] %v1288
        %1297 = vst [vmem:[#allocation2 + $0x3d8] sm:$0xff] %v1289
        %1298 = vst [vmem:[#allocation2 + $0x3e0] sm:$0xff] %v1290
        %1299 = vst [vmem:[#allocation2 + $0x3e8] sm:$0xff] %v1291
        %1300 = vst [vmem:[#allocation2 + $0x3f0] sm:$0xff] %v1292
        %1301 = vst [vmem:[#allocation2 + $0x3f8] sm:$0xff] %v1293
        %1302 = vrot.lane.b32.xlu0 %v454, 113
        %v1303 = vpop.permute.xlu0 %1302
        %1304 = vrot.lane.b32.xlu0 %v456, 113
        %v1305 = vpop.permute.xlu0 %1304
        %1306 = vrot.lane.b32.xlu0 %v458, 113
        %v1307 = vpop.permute.xlu0 %1306
        %1308 = vrot.lane.b32.xlu0 %v460, 113
        %v1309 = vpop.permute.xlu0 %1308
        %1310 = vrot.lane.b32.xlu0 %v455, 113
        %v1311 = vpop.permute.xlu0 %1310
        %1312 = vrot.lane.b32.xlu0 %v457, 113
        %v1313 = vpop.permute.xlu0 %1312
        %1314 = vrot.lane.b32.xlu0 %v459, 113
        %v1315 = vpop.permute.xlu0 %1314
        %1316 = vrot.lane.b32.xlu0 %v461, 113
        %v1317 = vpop.permute.xlu0 %1316
        %vm1318 = vcmp.lt.s32.totalorder %v479, 113
        %v1319 = vsel %vm1318, %v1303, %v1311
        %v1320 = vsel %vm1318, %v1305, %v1313
        %v1321 = vsel %vm1318, %v1307, %v1315
        %v1322 = vsel %vm1318, %v1309, %v1317
        %v1323 = vsel %vm1318, %v1311, %v1303
        %v1324 = vsel %vm1318, %v1313, %v1305
        %v1325 = vsel %vm1318, %v1315, %v1307
        %v1326 = vsel %vm1318, %v1317, %v1309
        %s1327 = scalar_lea.vmem %s8, 32
        %v1328 = vld [vmem:[%s1327] ss:$8 sm:$0x3]
        %v1330 = vlaneseq
        %v1331 = vshrl.u32 %v1330, 7
        %v1332 = vsub.s32 0, %v1331
        %v1333 = vrot.slane %v1328, %v1332
        %v1334 = vlaneseq
        %v1335 = vshrl.u32 %v1334, 7
        %v1336 = vsub.s32 1, %v1335
        %v1337 = vrot.slane %v1328, %v1336
        %v1340 = vmul.f32 %v1319, %v1333
        %v1341 = vmul.f32 %v1323, %v1337
        %v1342 = vmul.f32 %v1320, %v1333
        %v1343 = vmul.f32 %v1324, %v1337
        %v1344 = vmul.f32 %v1321, %v1333
        %v1345 = vmul.f32 %v1325, %v1337
        %v1346 = vmul.f32 %v1322, %v1333
        %v1347 = vmul.f32 %v1326, %v1337
        %1348 = vst [vmem:[#allocation2 + $0x400] sm:$0xff] %v1340
        %1349 = vst [vmem:[#allocation2 + $0x408] sm:$0xff] %v1341
        %1350 = vst [vmem:[#allocation2 + $0x410] sm:$0xff] %v1342
        %1351 = vst [vmem:[#allocation2 + $0x418] sm:$0xff] %v1343
        %1352 = vst [vmem:[#allocation2 + $0x420] sm:$0xff] %v1344
        %1353 = vst [vmem:[#allocation2 + $0x428] sm:$0xff] %v1345
        %1354 = vst [vmem:[#allocation2 + $0x430] sm:$0xff] %v1346
        %1355 = vst [vmem:[#allocation2 + $0x438] sm:$0xff] %v1347
        %1356 = vrot.lane.b32.xlu0 %v454, 112
        %v1357 = vpop.permute.xlu0 %1356
        %1358 = vrot.lane.b32.xlu0 %v456, 112
        %v1359 = vpop.permute.xlu0 %1358
        %1360 = vrot.lane.b32.xlu0 %v458, 112
        %v1361 = vpop.permute.xlu0 %1360
        %1362 = vrot.lane.b32.xlu0 %v460, 112
        %v1363 = vpop.permute.xlu0 %1362
        %1364 = vrot.lane.b32.xlu0 %v455, 112
        %v1365 = vpop.permute.xlu0 %1364
        %1366 = vrot.lane.b32.xlu0 %v457, 112
        %v1367 = vpop.permute.xlu0 %1366
        %1368 = vrot.lane.b32.xlu0 %v459, 112
        %v1369 = vpop.permute.xlu0 %1368
        %1370 = vrot.lane.b32.xlu0 %v461, 112
        %v1371 = vpop.permute.xlu0 %1370
        %vm1372 = vcmp.lt.s32.totalorder %v479, 112
        %v1373 = vsel %vm1372, %v1357, %v1365
        %v1374 = vsel %vm1372, %v1359, %v1367
        %v1375 = vsel %vm1372, %v1361, %v1369
        %v1376 = vsel %vm1372, %v1363, %v1371
        %v1377 = vsel %vm1372, %v1365, %v1357
        %v1378 = vsel %vm1372, %v1367, %v1359
        %v1379 = vsel %vm1372, %v1369, %v1361
        %v1380 = vsel %vm1372, %v1371, %v1363
        %s1381 = scalar_lea.vmem %s8, 33
        %v1382 = vld [vmem:[%s1381] ss:$8 sm:$0x3]
        %v1384 = vlaneseq
        %v1385 = vshrl.u32 %v1384, 7
        %v1386 = vsub.s32 0, %v1385
        %v1387 = vrot.slane %v1382, %v1386
        %v1388 = vlaneseq
        %v1389 = vshrl.u32 %v1388, 7
        %v1390 = vsub.s32 1, %v1389
        %v1391 = vrot.slane %v1382, %v1390
        %v1394 = vmul.f32 %v1373, %v1387
        %v1395 = vmul.f32 %v1377, %v1391
        %v1396 = vmul.f32 %v1374, %v1387
        %v1397 = vmul.f32 %v1378, %v1391
        %v1398 = vmul.f32 %v1375, %v1387
        %v1399 = vmul.f32 %v1379, %v1391
        %v1400 = vmul.f32 %v1376, %v1387
        %v1401 = vmul.f32 %v1380, %v1391
        %1402 = vst [vmem:[#allocation2 + $0x440] sm:$0xff] %v1394
        %1403 = vst [vmem:[#allocation2 + $0x448] sm:$0xff] %v1395
        %1404 = vst [vmem:[#allocation2 + $0x450] sm:$0xff] %v1396
        %1405 = vst [vmem:[#allocation2 + $0x458] sm:$0xff] %v1397
        %1406 = vst [vmem:[#allocation2 + $0x460] sm:$0xff] %v1398
        %1407 = vst [vmem:[#allocation2 + $0x468] sm:$0xff] %v1399
        %1408 = vst [vmem:[#allocation2 + $0x470] sm:$0xff] %v1400
        %1409 = vst [vmem:[#allocation2 + $0x478] sm:$0xff] %v1401
        %1410 = vrot.lane.b32.xlu0 %v454, 111
        %v1411 = vpop.permute.xlu0 %1410
        %1412 = vrot.lane.b32.xlu0 %v456, 111
        %v1413 = vpop.permute.xlu0 %1412
        %1414 = vrot.lane.b32.xlu0 %v458, 111
        %v1415 = vpop.permute.xlu0 %1414
        %1416 = vrot.lane.b32.xlu0 %v460, 111
        %v1417 = vpop.permute.xlu0 %1416
        %1418 = vrot.lane.b32.xlu0 %v455, 111
        %v1419 = vpop.permute.xlu0 %1418
        %1420 = vrot.lane.b32.xlu0 %v457, 111
        %v1421 = vpop.permute.xlu0 %1420
        %1422 = vrot.lane.b32.xlu0 %v459, 111
        %v1423 = vpop.permute.xlu0 %1422
        %1424 = vrot.lane.b32.xlu0 %v461, 111
        %v1425 = vpop.permute.xlu0 %1424
        %vm1426 = vcmp.lt.s32.totalorder %v479, 111
        %v1427 = vsel %vm1426, %v1411, %v1419
        %v1428 = vsel %vm1426, %v1413, %v1421
        %v1429 = vsel %vm1426, %v1415, %v1423
        %v1430 = vsel %vm1426, %v1417, %v1425
        %v1431 = vsel %vm1426, %v1419, %v1411
        %v1432 = vsel %vm1426, %v1421, %v1413
        %v1433 = vsel %vm1426, %v1423, %v1415
        %v1434 = vsel %vm1426, %v1425, %v1417
        %s1435 = scalar_lea.vmem %s8, 34
        %v1436 = vld [vmem:[%s1435] ss:$8 sm:$0x3]
        %v1438 = vlaneseq
        %v1439 = vshrl.u32 %v1438, 7
        %v1440 = vsub.s32 0, %v1439
        %v1441 = vrot.slane %v1436, %v1440
        %v1442 = vlaneseq
        %v1443 = vshrl.u32 %v1442, 7
        %v1444 = vsub.s32 1, %v1443
        %v1445 = vrot.slane %v1436, %v1444
        %v1448 = vmul.f32 %v1427, %v1441
        %v1449 = vmul.f32 %v1431, %v1445
        %v1450 = vmul.f32 %v1428, %v1441
        %v1451 = vmul.f32 %v1432, %v1445
        %v1452 = vmul.f32 %v1429, %v1441
        %v1453 = vmul.f32 %v1433, %v1445
        %v1454 = vmul.f32 %v1430, %v1441
        %v1455 = vmul.f32 %v1434, %v1445
        %1456 = vst [vmem:[#allocation2 + $0x480] sm:$0xff] %v1448
        %1457 = vst [vmem:[#allocation2 + $0x488] sm:$0xff] %v1449
        %1458 = vst [vmem:[#allocation2 + $0x490] sm:$0xff] %v1450
        %1459 = vst [vmem:[#allocation2 + $0x498] sm:$0xff] %v1451
        %1460 = vst [vmem:[#allocation2 + $0x4a0] sm:$0xff] %v1452
        %1461 = vst [vmem:[#allocation2 + $0x4a8] sm:$0xff] %v1453
        %1462 = vst [vmem:[#allocation2 + $0x4b0] sm:$0xff] %v1454
        %1463 = vst [vmem:[#allocation2 + $0x4b8] sm:$0xff] %v1455
        %1464 = vrot.lane.b32.xlu0 %v454, 110
        %v1465 = vpop.permute.xlu0 %1464
        %1466 = vrot.lane.b32.xlu0 %v456, 110
        %v1467 = vpop.permute.xlu0 %1466
        %1468 = vrot.lane.b32.xlu0 %v458, 110
        %v1469 = vpop.permute.xlu0 %1468
        %1470 = vrot.lane.b32.xlu0 %v460, 110
        %v1471 = vpop.permute.xlu0 %1470
        %1472 = vrot.lane.b32.xlu0 %v455, 110
        %v1473 = vpop.permute.xlu0 %1472
        %1474 = vrot.lane.b32.xlu0 %v457, 110
        %v1475 = vpop.permute.xlu0 %1474
        %1476 = vrot.lane.b32.xlu0 %v459, 110
        %v1477 = vpop.permute.xlu0 %1476
        %1478 = vrot.lane.b32.xlu0 %v461, 110
        %v1479 = vpop.permute.xlu0 %1478
        %vm1480 = vcmp.lt.s32.totalorder %v479, 110
        %v1481 = vsel %vm1480, %v1465, %v1473
        %v1482 = vsel %vm1480, %v1467, %v1475
        %v1483 = vsel %vm1480, %v1469, %v1477
        %v1484 = vsel %vm1480, %v1471, %v1479
        %v1485 = vsel %vm1480, %v1473, %v1465
        %v1486 = vsel %vm1480, %v1475, %v1467
        %v1487 = vsel %vm1480, %v1477, %v1469
        %v1488 = vsel %vm1480, %v1479, %v1471
        %s1489 = scalar_lea.vmem %s8, 35
        %v1490 = vld [vmem:[%s1489] ss:$8 sm:$0x3]
        %v1492 = vlaneseq
        %v1493 = vshrl.u32 %v1492, 7
        %v1494 = vsub.s32 0, %v1493
        %v1495 = vrot.slane %v1490, %v1494
        %v1496 = vlaneseq
        %v1497 = vshrl.u32 %v1496, 7
        %v1498 = vsub.s32 1, %v1497
        %v1499 = vrot.slane %v1490, %v1498
        %v1502 = vmul.f32 %v1481, %v1495
        %v1503 = vmul.f32 %v1485, %v1499
        %v1504 = vmul.f32 %v1482, %v1495
        %v1505 = vmul.f32 %v1486, %v1499
        %v1506 = vmul.f32 %v1483, %v1495
        %v1507 = vmul.f32 %v1487, %v1499
        %v1508 = vmul.f32 %v1484, %v1495
        %v1509 = vmul.f32 %v1488, %v1499
        %1510 = vst [vmem:[#allocation2 + $0x4c0] sm:$0xff] %v1502
        %1511 = vst [vmem:[#allocation2 + $0x4c8] sm:$0xff] %v1503
        %1512 = vst [vmem:[#allocation2 + $0x4d0] sm:$0xff] %v1504
        %1513 = vst [vmem:[#allocation2 + $0x4d8] sm:$0xff] %v1505
        %1514 = vst [vmem:[#allocation2 + $0x4e0] sm:$0xff] %v1506
        %1515 = vst [vmem:[#allocation2 + $0x4e8] sm:$0xff] %v1507
        %1516 = vst [vmem:[#allocation2 + $0x4f0] sm:$0xff] %v1508
        %1517 = vst [vmem:[#allocation2 + $0x4f8] sm:$0xff] %v1509
        %1518 = vrot.lane.b32.xlu0 %v454, 98
        %v1519 = vpop.permute.xlu0 %1518
        %1520 = vrot.lane.b32.xlu0 %v456, 98
        %v1521 = vpop.permute.xlu0 %1520
        %1522 = vrot.lane.b32.xlu0 %v458, 98
        %v1523 = vpop.permute.xlu0 %1522
        %1524 = vrot.lane.b32.xlu0 %v460, 98
        %v1525 = vpop.permute.xlu0 %1524
        %1526 = vrot.lane.b32.xlu0 %v455, 98
        %v1527 = vpop.permute.xlu0 %1526
        %1528 = vrot.lane.b32.xlu0 %v457, 98
        %v1529 = vpop.permute.xlu0 %1528
        %1530 = vrot.lane.b32.xlu0 %v459, 98
        %v1531 = vpop.permute.xlu0 %1530
        %1532 = vrot.lane.b32.xlu0 %v461, 98
        %v1533 = vpop.permute.xlu0 %1532
        %vm1534 = vcmp.lt.s32.totalorder %v479, 98
        %v1535 = vsel %vm1534, %v1519, %v1527
        %v1536 = vsel %vm1534, %v1521, %v1529
        %v1537 = vsel %vm1534, %v1523, %v1531
        %v1538 = vsel %vm1534, %v1525, %v1533
        %v1539 = vsel %vm1534, %v1527, %v1519
        %v1540 = vsel %vm1534, %v1529, %v1521
        %v1541 = vsel %vm1534, %v1531, %v1523
        %v1542 = vsel %vm1534, %v1533, %v1525
        %s1543 = scalar_lea.vmem %s8, 36
        %v1544 = vld [vmem:[%s1543] ss:$8 sm:$0x3]
        %v1546 = vlaneseq
        %v1547 = vshrl.u32 %v1546, 7
        %v1548 = vsub.s32 0, %v1547
        %v1549 = vrot.slane %v1544, %v1548
        %v1550 = vlaneseq
        %v1551 = vshrl.u32 %v1550, 7
        %v1552 = vsub.s32 1, %v1551
        %v1553 = vrot.slane %v1544, %v1552
        %v1556 = vmul.f32 %v1535, %v1549
        %v1557 = vmul.f32 %v1539, %v1553
        %v1558 = vmul.f32 %v1536, %v1549
        %v1559 = vmul.f32 %v1540, %v1553
        %v1560 = vmul.f32 %v1537, %v1549
        %v1561 = vmul.f32 %v1541, %v1553
        %v1562 = vmul.f32 %v1538, %v1549
        %v1563 = vmul.f32 %v1542, %v1553
        %1564 = vst [vmem:[#allocation2 + $0x500] sm:$0xff] %v1556
        %1565 = vst [vmem:[#allocation2 + $0x508] sm:$0xff] %v1557
        %1566 = vst [vmem:[#allocation2 + $0x510] sm:$0xff] %v1558
        %1567 = vst [vmem:[#allocation2 + $0x518] sm:$0xff] %v1559
        %1568 = vst [vmem:[#allocation2 + $0x520] sm:$0xff] %v1560
        %1569 = vst [vmem:[#allocation2 + $0x528] sm:$0xff] %v1561
        %1570 = vst [vmem:[#allocation2 + $0x530] sm:$0xff] %v1562
        %1571 = vst [vmem:[#allocation2 + $0x538] sm:$0xff] %v1563
        %1572 = vrot.lane.b32.xlu0 %v454, 97
        %v1573 = vpop.permute.xlu0 %1572
        %1574 = vrot.lane.b32.xlu0 %v456, 97
        %v1575 = vpop.permute.xlu0 %1574
        %1576 = vrot.lane.b32.xlu0 %v458, 97
        %v1577 = vpop.permute.xlu0 %1576
        %1578 = vrot.lane.b32.xlu0 %v460, 97
        %v1579 = vpop.permute.xlu0 %1578
        %1580 = vrot.lane.b32.xlu0 %v455, 97
        %v1581 = vpop.permute.xlu0 %1580
        %1582 = vrot.lane.b32.xlu0 %v457, 97
        %v1583 = vpop.permute.xlu0 %1582
        %1584 = vrot.lane.b32.xlu0 %v459, 97
        %v1585 = vpop.permute.xlu0 %1584
        %1586 = vrot.lane.b32.xlu0 %v461, 97
        %v1587 = vpop.permute.xlu0 %1586
        %vm1588 = vcmp.lt.s32.totalorder %v479, 97
        %v1589 = vsel %vm1588, %v1573, %v1581
        %v1590 = vsel %vm1588, %v1575, %v1583
        %v1591 = vsel %vm1588, %v1577, %v1585
        %v1592 = vsel %vm1588, %v1579, %v1587
        %v1593 = vsel %vm1588, %v1581, %v1573
        %v1594 = vsel %vm1588, %v1583, %v1575
        %v1595 = vsel %vm1588, %v1585, %v1577
        %v1596 = vsel %vm1588, %v1587, %v1579
        %s1597 = scalar_lea.vmem %s8, 37
        %v1598 = vld [vmem:[%s1597] ss:$8 sm:$0x3]
        %v1600 = vlaneseq
        %v1601 = vshrl.u32 %v1600, 7
        %v1602 = vsub.s32 0, %v1601
        %v1603 = vrot.slane %v1598, %v1602
        %v1604 = vlaneseq
        %v1605 = vshrl.u32 %v1604, 7
        %v1606 = vsub.s32 1, %v1605
        %v1607 = vrot.slane %v1598, %v1606
        %v1610 = vmul.f32 %v1589, %v1603
        %v1611 = vmul.f32 %v1593, %v1607
        %v1612 = vmul.f32 %v1590, %v1603
        %v1613 = vmul.f32 %v1594, %v1607
        %v1614 = vmul.f32 %v1591, %v1603
        %v1615 = vmul.f32 %v1595, %v1607
        %v1616 = vmul.f32 %v1592, %v1603
        %v1617 = vmul.f32 %v1596, %v1607
        %1618 = vst [vmem:[#allocation2 + $0x540] sm:$0xff] %v1610
        %1619 = vst [vmem:[#allocation2 + $0x548] sm:$0xff] %v1611
        %1620 = vst [vmem:[#allocation2 + $0x550] sm:$0xff] %v1612
        %1621 = vst [vmem:[#allocation2 + $0x558] sm:$0xff] %v1613
        %1622 = vst [vmem:[#allocation2 + $0x560] sm:$0xff] %v1614
        %1623 = vst [vmem:[#allocation2 + $0x568] sm:$0xff] %v1615
        %1624 = vst [vmem:[#allocation2 + $0x570] sm:$0xff] %v1616
        %1625 = vst [vmem:[#allocation2 + $0x578] sm:$0xff] %v1617
        %1626 = vrot.lane.b32.xlu0 %v454, 96
        %v1627 = vpop.permute.xlu0 %1626
        %1628 = vrot.lane.b32.xlu0 %v456, 96
        %v1629 = vpop.permute.xlu0 %1628
        %1630 = vrot.lane.b32.xlu0 %v458, 96
        %v1631 = vpop.permute.xlu0 %1630
        %1632 = vrot.lane.b32.xlu0 %v460, 96
        %v1633 = vpop.permute.xlu0 %1632
        %1634 = vrot.lane.b32.xlu0 %v455, 96
        %v1635 = vpop.permute.xlu0 %1634
        %1636 = vrot.lane.b32.xlu0 %v457, 96
        %v1637 = vpop.permute.xlu0 %1636
        %1638 = vrot.lane.b32.xlu0 %v459, 96
        %v1639 = vpop.permute.xlu0 %1638
        %1640 = vrot.lane.b32.xlu0 %v461, 96
        %v1641 = vpop.permute.xlu0 %1640
        %vm1642 = vcmp.lt.s32.totalorder %v479, 96
        %v1643 = vsel %vm1642, %v1627, %v1635
        %v1644 = vsel %vm1642, %v1629, %v1637
        %v1645 = vsel %vm1642, %v1631, %v1639
        %v1646 = vsel %vm1642, %v1633, %v1641
        %v1647 = vsel %vm1642, %v1635, %v1627
        %v1648 = vsel %vm1642, %v1637, %v1629
        %v1649 = vsel %vm1642, %v1639, %v1631
        %v1650 = vsel %vm1642, %v1641, %v1633
        %s1651 = scalar_lea.vmem %s8, 38
        %v1652 = vld [vmem:[%s1651] ss:$8 sm:$0x3]
        %v1654 = vlaneseq
        %v1655 = vshrl.u32 %v1654, 7
        %v1656 = vsub.s32 0, %v1655
        %v1657 = vrot.slane %v1652, %v1656
        %v1658 = vlaneseq
        %v1659 = vshrl.u32 %v1658, 7
        %v1660 = vsub.s32 1, %v1659
        %v1661 = vrot.slane %v1652, %v1660
        %v1664 = vmul.f32 %v1643, %v1657
        %v1665 = vmul.f32 %v1647, %v1661
        %v1666 = vmul.f32 %v1644, %v1657
        %v1667 = vmul.f32 %v1648, %v1661
        %v1668 = vmul.f32 %v1645, %v1657
        %v1669 = vmul.f32 %v1649, %v1661
        %v1670 = vmul.f32 %v1646, %v1657
        %v1671 = vmul.f32 %v1650, %v1661
        %1672 = vst [vmem:[#allocation2 + $0x580] sm:$0xff] %v1664
        %1673 = vst [vmem:[#allocation2 + $0x588] sm:$0xff] %v1665
        %1674 = vst [vmem:[#allocation2 + $0x590] sm:$0xff] %v1666
        %1675 = vst [vmem:[#allocation2 + $0x598] sm:$0xff] %v1667
        %1676 = vst [vmem:[#allocation2 + $0x5a0] sm:$0xff] %v1668
        %1677 = vst [vmem:[#allocation2 + $0x5a8] sm:$0xff] %v1669
        %1678 = vst [vmem:[#allocation2 + $0x5b0] sm:$0xff] %v1670
        %1679 = vst [vmem:[#allocation2 + $0x5b8] sm:$0xff] %v1671
        %1680 = vrot.lane.b32.xlu0 %v454, 95
        %v1681 = vpop.permute.xlu0 %1680
        %1682 = vrot.lane.b32.xlu0 %v456, 95
        %v1683 = vpop.permute.xlu0 %1682
        %1684 = vrot.lane.b32.xlu0 %v458, 95
        %v1685 = vpop.permute.xlu0 %1684
        %1686 = vrot.lane.b32.xlu0 %v460, 95
        %v1687 = vpop.permute.xlu0 %1686
        %1688 = vrot.lane.b32.xlu0 %v455, 95
        %v1689 = vpop.permute.xlu0 %1688
        %1690 = vrot.lane.b32.xlu0 %v457, 95
        %v1691 = vpop.permute.xlu0 %1690
        %1692 = vrot.lane.b32.xlu0 %v459, 95
        %v1693 = vpop.permute.xlu0 %1692
        %1694 = vrot.lane.b32.xlu0 %v461, 95
        %v1695 = vpop.permute.xlu0 %1694
        %vm1696 = vcmp.lt.s32.totalorder %v479, 95
        %v1697 = vsel %vm1696, %v1681, %v1689
        %v1698 = vsel %vm1696, %v1683, %v1691
        %v1699 = vsel %vm1696, %v1685, %v1693
        %v1700 = vsel %vm1696, %v1687, %v1695
        %v1701 = vsel %vm1696, %v1689, %v1681
        %v1702 = vsel %vm1696, %v1691, %v1683
        %v1703 = vsel %vm1696, %v1693, %v1685
        %v1704 = vsel %vm1696, %v1695, %v1687
        %s1705 = scalar_lea.vmem %s8, 39
        %v1706 = vld [vmem:[%s1705] ss:$8 sm:$0x3]
        %v1708 = vlaneseq
        %v1709 = vshrl.u32 %v1708, 7
        %v1710 = vsub.s32 0, %v1709
        %v1711 = vrot.slane %v1706, %v1710
        %v1712 = vlaneseq
        %v1713 = vshrl.u32 %v1712, 7
        %v1714 = vsub.s32 1, %v1713
        %v1715 = vrot.slane %v1706, %v1714
        %v1718 = vmul.f32 %v1697, %v1711
        %v1719 = vmul.f32 %v1701, %v1715
        %v1720 = vmul.f32 %v1698, %v1711
        %v1721 = vmul.f32 %v1702, %v1715
        %v1722 = vmul.f32 %v1699, %v1711
        %v1723 = vmul.f32 %v1703, %v1715
        %v1724 = vmul.f32 %v1700, %v1711
        %v1725 = vmul.f32 %v1704, %v1715
        %1726 = vst [vmem:[#allocation2 + $0x5c0] sm:$0xff] %v1718
        %1727 = vst [vmem:[#allocation2 + $0x5c8] sm:$0xff] %v1719
        %1728 = vst [vmem:[#allocation2 + $0x5d0] sm:$0xff] %v1720
        %1729 = vst [vmem:[#allocation2 + $0x5d8] sm:$0xff] %v1721
        %1730 = vst [vmem:[#allocation2 + $0x5e0] sm:$0xff] %v1722
        %1731 = vst [vmem:[#allocation2 + $0x5e8] sm:$0xff] %v1723
        %1732 = vst [vmem:[#allocation2 + $0x5f0] sm:$0xff] %v1724
        %1733 = vst [vmem:[#allocation2 + $0x5f8] sm:$0xff] %v1725
        %1734 = vrot.lane.b32.xlu0 %v454, 94
        %v1735 = vpop.permute.xlu0 %1734
        %1736 = vrot.lane.b32.xlu0 %v456, 94
        %v1737 = vpop.permute.xlu0 %1736
        %1738 = vrot.lane.b32.xlu0 %v458, 94
        %v1739 = vpop.permute.xlu0 %1738
        %1740 = vrot.lane.b32.xlu0 %v460, 94
        %v1741 = vpop.permute.xlu0 %1740
        %1742 = vrot.lane.b32.xlu0 %v455, 94
        %v1743 = vpop.permute.xlu0 %1742
        %1744 = vrot.lane.b32.xlu0 %v457, 94
        %v1745 = vpop.permute.xlu0 %1744
        %1746 = vrot.lane.b32.xlu0 %v459, 94
        %v1747 = vpop.permute.xlu0 %1746
        %1748 = vrot.lane.b32.xlu0 %v461, 94
        %v1749 = vpop.permute.xlu0 %1748
        %vm1750 = vcmp.lt.s32.totalorder %v479, 94
        %v1751 = vsel %vm1750, %v1735, %v1743
        %v1752 = vsel %vm1750, %v1737, %v1745
        %v1753 = vsel %vm1750, %v1739, %v1747
        %v1754 = vsel %vm1750, %v1741, %v1749
        %v1755 = vsel %vm1750, %v1743, %v1735
        %v1756 = vsel %vm1750, %v1745, %v1737
        %v1757 = vsel %vm1750, %v1747, %v1739
        %v1758 = vsel %vm1750, %v1749, %v1741
        %s1759 = scalar_lea.vmem %s8, 48
        %v1760 = vld [vmem:[%s1759] ss:$8 sm:$0x3]
        %v1762 = vlaneseq
        %v1763 = vshrl.u32 %v1762, 7
        %v1764 = vsub.s32 0, %v1763
        %v1765 = vrot.slane %v1760, %v1764
        %v1766 = vlaneseq
        %v1767 = vshrl.u32 %v1766, 7
        %v1768 = vsub.s32 1, %v1767
        %v1769 = vrot.slane %v1760, %v1768
        %v1772 = vmul.f32 %v1751, %v1765
        %v1773 = vmul.f32 %v1755, %v1769
        %v1774 = vmul.f32 %v1752, %v1765
        %v1775 = vmul.f32 %v1756, %v1769
        %v1776 = vmul.f32 %v1753, %v1765
        %v1777 = vmul.f32 %v1757, %v1769
        %v1778 = vmul.f32 %v1754, %v1765
        %v1779 = vmul.f32 %v1758, %v1769
        %1780 = vst [vmem:[#allocation2 + $0x600] sm:$0xff] %v1772
        %1781 = vst [vmem:[#allocation2 + $0x608] sm:$0xff] %v1773
        %1782 = vst [vmem:[#allocation2 + $0x610] sm:$0xff] %v1774
        %1783 = vst [vmem:[#allocation2 + $0x618] sm:$0xff] %v1775
        %1784 = vst [vmem:[#allocation2 + $0x620] sm:$0xff] %v1776
        %1785 = vst [vmem:[#allocation2 + $0x628] sm:$0xff] %v1777
        %1786 = vst [vmem:[#allocation2 + $0x630] sm:$0xff] %v1778
        %1787 = vst [vmem:[#allocation2 + $0x638] sm:$0xff] %v1779
        %v1788 = vld [vmem:[#allocation7] sm:$0xff]
        %v1789 = vld [vmem:[#allocation7 + $0x8] sm:$0xff]
        %v1790 = vld [vmem:[#allocation7 + $0x10] sm:$0xff]
        %v1791 = vld [vmem:[#allocation7 + $0x18] sm:$0xff]
        %v1792 = vld [vmem:[#allocation7 + $0x20] sm:$0xff]
        %v1793 = vld [vmem:[#allocation7 + $0x28] sm:$0xff]
        %v1794 = vld [vmem:[#allocation7 + $0x30] sm:$0xff]
        %v1795 = vld [vmem:[#allocation7 + $0x38] sm:$0xff]
        %v1796 = vld [vmem:[#allocation7 + $0x40] sm:$0xff]
        %v1797 = vld [vmem:[#allocation7 + $0x48] sm:$0xff]
        %v1798 = vld [vmem:[#allocation7 + $0x50] sm:$0xff]
        %v1799 = vld [vmem:[#allocation7 + $0x58] sm:$0xff]
        %v1800 = vld [vmem:[#allocation7 + $0x60] sm:$0xff]
        %v1801 = vld [vmem:[#allocation7 + $0x68] sm:$0xff]
        %v1802 = vld [vmem:[#allocation7 + $0x70] sm:$0xff]
        %v1803 = vld [vmem:[#allocation7 + $0x78] sm:$0xff]
        %v1804 = vld [vmem:[#allocation7 + $0x80] sm:$0xff]
        %v1805 = vld [vmem:[#allocation7 + $0x88] sm:$0xff]
        %v1806 = vld [vmem:[#allocation7 + $0x90] sm:$0xff]
        %v1807 = vld [vmem:[#allocation7 + $0x98] sm:$0xff]
        %v1808 = vld [vmem:[#allocation7 + $0xa0] sm:$0xff]
        %v1809 = vld [vmem:[#allocation7 + $0xa8] sm:$0xff]
        %v1810 = vld [vmem:[#allocation7 + $0xb0] sm:$0xff]
        %v1811 = vld [vmem:[#allocation7 + $0xb8] sm:$0xff]
        %v1812 = vld [vmem:[#allocation7 + $0xc0] sm:$0xff]
        %v1813 = vld [vmem:[#allocation7 + $0xc8] sm:$0xff]
        %v1814 = vld [vmem:[#allocation7 + $0xd0] sm:$0xff]
        %v1815 = vld [vmem:[#allocation7 + $0xd8] sm:$0xff]
        %v1816 = vld [vmem:[#allocation2] sm:$0xff]
        %v1817 = vld [vmem:[#allocation2 + $0x8] sm:$0xff]
        %v1818 = vld [vmem:[#allocation2 + $0x10] sm:$0xff]
        %v1819 = vld [vmem:[#allocation2 + $0x18] sm:$0xff]
        %v1820 = vld [vmem:[#allocation2 + $0x20] sm:$0xff]
        %v1821 = vld [vmem:[#allocation2 + $0x28] sm:$0xff]
        %v1822 = vld [vmem:[#allocation2 + $0x30] sm:$0xff]
        %v1823 = vld [vmem:[#allocation2 + $0x38] sm:$0xff]
        %v1824 = vld [vmem:[#allocation2 + $0x40] sm:$0xff]
        %v1825 = vld [vmem:[#allocation2 + $0x48] sm:$0xff]
        %v1826 = vld [vmem:[#allocation2 + $0x50] sm:$0xff]
        %v1827 = vld [vmem:[#allocation2 + $0x58] sm:$0xff]
        %v1828 = vld [vmem:[#allocation2 + $0x60] sm:$0xff]
        %v1829 = vld [vmem:[#allocation2 + $0x68] sm:$0xff]
        %v1830 = vld [vmem:[#allocation2 + $0x70] sm:$0xff]
        %v1831 = vld [vmem:[#allocation2 + $0x78] sm:$0xff]
        %v1832 = vld [vmem:[#allocation2 + $0x80] sm:$0xff]
        %v1833 = vld [vmem:[#allocation2 + $0x88] sm:$0xff]
        %v1834 = vld [vmem:[#allocation2 + $0x90] sm:$0xff]
        %v1835 = vld [vmem:[#allocation2 + $0x98] sm:$0xff]
        %v1836 = vld [vmem:[#allocation2 + $0xa0] sm:$0xff]
        %v1837 = vld [vmem:[#allocation2 + $0xa8] sm:$0xff]
        %v1838 = vld [vmem:[#allocation2 + $0xb0] sm:$0xff]
        %v1839 = vld [vmem:[#allocation2 + $0xb8] sm:$0xff]
        %v1840 = vld [vmem:[#allocation2 + $0xc0] sm:$0xff]
        %v1841 = vld [vmem:[#allocation2 + $0xc8] sm:$0xff]
        %v1842 = vld [vmem:[#allocation2 + $0xd0] sm:$0xff]
        %v1843 = vld [vmem:[#allocation2 + $0xd8] sm:$0xff]
        %v1844 = vld [vmem:[#allocation2 + $0xe0] sm:$0xff]
        %v1845 = vld [vmem:[#allocation2 + $0xe8] sm:$0xff]
        %v1846 = vld [vmem:[#allocation2 + $0xf0] sm:$0xff]
        %v1847 = vld [vmem:[#allocation2 + $0xf8] sm:$0xff]
        %v1848 = vld [vmem:[#allocation2 + $0x100] sm:$0xff]
        %v1849 = vld [vmem:[#allocation2 + $0x108] sm:$0xff]
        %v1850 = vld [vmem:[#allocation2 + $0x110] sm:$0xff]
        %v1851 = vld [vmem:[#allocation2 + $0x118] sm:$0xff]
        %v1852 = vld [vmem:[#allocation2 + $0x120] sm:$0xff]
        %v1853 = vld [vmem:[#allocation2 + $0x128] sm:$0xff]
        %v1854 = vld [vmem:[#allocation2 + $0x130] sm:$0xff]
        %v1855 = vld [vmem:[#allocation2 + $0x138] sm:$0xff]
        %v1856 = vld [vmem:[#allocation2 + $0x140] sm:$0xff]
        %v1857 = vld [vmem:[#allocation2 + $0x148] sm:$0xff]
        %v1858 = vld [vmem:[#allocation2 + $0x150] sm:$0xff]
        %v1859 = vld [vmem:[#allocation2 + $0x158] sm:$0xff]
        %v1860 = vld [vmem:[#allocation2 + $0x160] sm:$0xff]
        %v1861 = vld [vmem:[#allocation2 + $0x168] sm:$0xff]
        %v1862 = vld [vmem:[#allocation2 + $0x170] sm:$0xff]
        %v1863 = vld [vmem:[#allocation2 + $0x178] sm:$0xff]
        %v1864 = vld [vmem:[#allocation2 + $0x180] sm:$0xff]
        %v1865 = vld [vmem:[#allocation2 + $0x188] sm:$0xff]
        %v1866 = vld [vmem:[#allocation2 + $0x190] sm:$0xff]
        %v1867 = vld [vmem:[#allocation2 + $0x198] sm:$0xff]
        %v1868 = vld [vmem:[#allocation2 + $0x1a0] sm:$0xff]
        %v1869 = vld [vmem:[#allocation2 + $0x1a8] sm:$0xff]
        %v1870 = vld [vmem:[#allocation2 + $0x1b0] sm:$0xff]
        %v1871 = vld [vmem:[#allocation2 + $0x1b8] sm:$0xff]
        %v1872 = vld [vmem:[#allocation2 + $0x1c0] sm:$0xff]
        %v1873 = vld [vmem:[#allocation2 + $0x1c8] sm:$0xff]
        %v1874 = vld [vmem:[#allocation2 + $0x1d0] sm:$0xff]
        %v1875 = vld [vmem:[#allocation2 + $0x1d8] sm:$0xff]
        %v1876 = vld [vmem:[#allocation2 + $0x1e0] sm:$0xff]
        %v1877 = vld [vmem:[#allocation2 + $0x1e8] sm:$0xff]
        %v1878 = vld [vmem:[#allocation2 + $0x1f0] sm:$0xff]
        %v1879 = vld [vmem:[#allocation2 + $0x1f8] sm:$0xff]
        %v1880 = vld [vmem:[#allocation2 + $0x200] sm:$0xff]
        %v1881 = vld [vmem:[#allocation2 + $0x208] sm:$0xff]
        %v1882 = vld [vmem:[#allocation2 + $0x210] sm:$0xff]
        %v1883 = vld [vmem:[#allocation2 + $0x218] sm:$0xff]
        %v1884 = vld [vmem:[#allocation2 + $0x220] sm:$0xff]
        %v1885 = vld [vmem:[#allocation2 + $0x228] sm:$0xff]
        %v1886 = vld [vmem:[#allocation2 + $0x230] sm:$0xff]
        %v1887 = vld [vmem:[#allocation2 + $0x238] sm:$0xff]
        %v1888 = vld [vmem:[#allocation2 + $0x240] sm:$0xff]
        %v1889 = vld [vmem:[#allocation2 + $0x248] sm:$0xff]
        %v1890 = vld [vmem:[#allocation2 + $0x250] sm:$0xff]
        %v1891 = vld [vmem:[#allocation2 + $0x258] sm:$0xff]
        %v1892 = vld [vmem:[#allocation2 + $0x260] sm:$0xff]
        %v1893 = vld [vmem:[#allocation2 + $0x268] sm:$0xff]
        %v1894 = vld [vmem:[#allocation2 + $0x270] sm:$0xff]
        %v1895 = vld [vmem:[#allocation2 + $0x278] sm:$0xff]
        %v1896 = vld [vmem:[#allocation2 + $0x280] sm:$0xff]
        %v1897 = vld [vmem:[#allocation2 + $0x288] sm:$0xff]
        %v1898 = vld [vmem:[#allocation2 + $0x290] sm:$0xff]
        %v1899 = vld [vmem:[#allocation2 + $0x298] sm:$0xff]
        %v1900 = vld [vmem:[#allocation2 + $0x2a0] sm:$0xff]
        %v1901 = vld [vmem:[#allocation2 + $0x2a8] sm:$0xff]
        %v1902 = vld [vmem:[#allocation2 + $0x2b0] sm:$0xff]
        %v1903 = vld [vmem:[#allocation2 + $0x2b8] sm:$0xff]
        %v1904 = vld [vmem:[#allocation2 + $0x2c0] sm:$0xff]
        %v1905 = vld [vmem:[#allocation2 + $0x2c8] sm:$0xff]
        %v1906 = vld [vmem:[#allocation2 + $0x2d0] sm:$0xff]
        %v1907 = vld [vmem:[#allocation2 + $0x2d8] sm:$0xff]
        %v1908 = vld [vmem:[#allocation2 + $0x2e0] sm:$0xff]
        %v1909 = vld [vmem:[#allocation2 + $0x2e8] sm:$0xff]
        %v1910 = vld [vmem:[#allocation2 + $0x2f0] sm:$0xff]
        %v1911 = vld [vmem:[#allocation2 + $0x2f8] sm:$0xff]
        %v1912 = vld [vmem:[#allocation2 + $0x300] sm:$0xff]
        %v1913 = vld [vmem:[#allocation2 + $0x308] sm:$0xff]
        %v1914 = vld [vmem:[#allocation2 + $0x310] sm:$0xff]
        %v1915 = vld [vmem:[#allocation2 + $0x318] sm:$0xff]
        %v1916 = vld [vmem:[#allocation2 + $0x320] sm:$0xff]
        %v1917 = vld [vmem:[#allocation2 + $0x328] sm:$0xff]
        %v1918 = vld [vmem:[#allocation2 + $0x330] sm:$0xff]
        %v1919 = vld [vmem:[#allocation2 + $0x338] sm:$0xff]
        %v1920 = vld [vmem:[#allocation2 + $0x340] sm:$0xff]
        %v1921 = vld [vmem:[#allocation2 + $0x348] sm:$0xff]
        %v1922 = vld [vmem:[#allocation2 + $0x350] sm:$0xff]
        %v1923 = vld [vmem:[#allocation2 + $0x358] sm:$0xff]
        %v1924 = vld [vmem:[#allocation2 + $0x360] sm:$0xff]
        %v1925 = vld [vmem:[#allocation2 + $0x368] sm:$0xff]
        %v1926 = vld [vmem:[#allocation2 + $0x370] sm:$0xff]
        %v1927 = vld [vmem:[#allocation2 + $0x378] sm:$0xff]
        %v1928 = vld [vmem:[#allocation2 + $0x380] sm:$0xff]
        %v1929 = vld [vmem:[#allocation2 + $0x388] sm:$0xff]
        %v1930 = vld [vmem:[#allocation2 + $0x390] sm:$0xff]
        %v1931 = vld [vmem:[#allocation2 + $0x398] sm:$0xff]
        %v1932 = vld [vmem:[#allocation2 + $0x3a0] sm:$0xff]
        %v1933 = vld [vmem:[#allocation2 + $0x3a8] sm:$0xff]
        %v1934 = vld [vmem:[#allocation2 + $0x3b0] sm:$0xff]
        %v1935 = vld [vmem:[#allocation2 + $0x3b8] sm:$0xff]
        %v1936 = vld [vmem:[#allocation2 + $0x3c0] sm:$0xff]
        %v1937 = vld [vmem:[#allocation2 + $0x3c8] sm:$0xff]
        %v1938 = vld [vmem:[#allocation2 + $0x3d0] sm:$0xff]
        %v1939 = vld [vmem:[#allocation2 + $0x3d8] sm:$0xff]
        %v1940 = vld [vmem:[#allocation2 + $0x3e0] sm:$0xff]
        %v1941 = vld [vmem:[#allocation2 + $0x3e8] sm:$0xff]
        %v1942 = vld [vmem:[#allocation2 + $0x3f0] sm:$0xff]
        %v1943 = vld [vmem:[#allocation2 + $0x3f8] sm:$0xff]
        %v1944 = vld [vmem:[#allocation2 + $0x400] sm:$0xff]
        %v1945 = vld [vmem:[#allocation2 + $0x408] sm:$0xff]
        %v1946 = vld [vmem:[#allocation2 + $0x410] sm:$0xff]
        %v1947 = vld [vmem:[#allocation2 + $0x418] sm:$0xff]
        %v1948 = vld [vmem:[#allocation2 + $0x420] sm:$0xff]
        %v1949 = vld [vmem:[#allocation2 + $0x428] sm:$0xff]
        %v1950 = vld [vmem:[#allocation2 + $0x430] sm:$0xff]
        %v1951 = vld [vmem:[#allocation2 + $0x438] sm:$0xff]
        %v1952 = vld [vmem:[#allocation2 + $0x440] sm:$0xff]
        %v1953 = vld [vmem:[#allocation2 + $0x448] sm:$0xff]
        %v1954 = vld [vmem:[#allocation2 + $0x450] sm:$0xff]
        %v1955 = vld [vmem:[#allocation2 + $0x458] sm:$0xff]
        %v1956 = vld [vmem:[#allocation2 + $0x460] sm:$0xff]
        %v1957 = vld [vmem:[#allocation2 + $0x468] sm:$0xff]
        %v1958 = vld [vmem:[#allocation2 + $0x470] sm:$0xff]
        %v1959 = vld [vmem:[#allocation2 + $0x478] sm:$0xff]
        %v1960 = vld [vmem:[#allocation2 + $0x480] sm:$0xff]
        %v1961 = vld [vmem:[#allocation2 + $0x488] sm:$0xff]
        %v1962 = vld [vmem:[#allocation2 + $0x490] sm:$0xff]
        %v1963 = vld [vmem:[#allocation2 + $0x498] sm:$0xff]
        %v1964 = vld [vmem:[#allocation2 + $0x4a0] sm:$0xff]
        %v1965 = vld [vmem:[#allocation2 + $0x4a8] sm:$0xff]
        %v1966 = vld [vmem:[#allocation2 + $0x4b0] sm:$0xff]
        %v1967 = vld [vmem:[#allocation2 + $0x4b8] sm:$0xff]
        %v1968 = vld [vmem:[#allocation2 + $0x4c0] sm:$0xff]
        %v1969 = vld [vmem:[#allocation2 + $0x4c8] sm:$0xff]
        %v1970 = vld [vmem:[#allocation2 + $0x4d0] sm:$0xff]
        %v1971 = vld [vmem:[#allocation2 + $0x4d8] sm:$0xff]
        %v1972 = vld [vmem:[#allocation2 + $0x4e0] sm:$0xff]
        %v1973 = vld [vmem:[#allocation2 + $0x4e8] sm:$0xff]
        %v1974 = vld [vmem:[#allocation2 + $0x4f0] sm:$0xff]
        %v1975 = vld [vmem:[#allocation2 + $0x4f8] sm:$0xff]
        %v1976 = vld [vmem:[#allocation2 + $0x500] sm:$0xff]
        %v1977 = vld [vmem:[#allocation2 + $0x508] sm:$0xff]
        %v1978 = vld [vmem:[#allocation2 + $0x510] sm:$0xff]
        %v1979 = vld [vmem:[#allocation2 + $0x518] sm:$0xff]
        %v1980 = vld [vmem:[#allocation2 + $0x520] sm:$0xff]
        %v1981 = vld [vmem:[#allocation2 + $0x528] sm:$0xff]
        %v1982 = vld [vmem:[#allocation2 + $0x530] sm:$0xff]
        %v1983 = vld [vmem:[#allocation2 + $0x538] sm:$0xff]
        %v1984 = vld [vmem:[#allocation2 + $0x540] sm:$0xff]
        %v1985 = vld [vmem:[#allocation2 + $0x548] sm:$0xff]
        %v1986 = vld [vmem:[#allocation2 + $0x550] sm:$0xff]
        %v1987 = vld [vmem:[#allocation2 + $0x558] sm:$0xff]
        %v1988 = vld [vmem:[#allocation2 + $0x560] sm:$0xff]
        %v1989 = vld [vmem:[#allocation2 + $0x568] sm:$0xff]
        %v1990 = vld [vmem:[#allocation2 + $0x570] sm:$0xff]
        %v1991 = vld [vmem:[#allocation2 + $0x578] sm:$0xff]
        %v1992 = vld [vmem:[#allocation2 + $0x580] sm:$0xff]
        %v1993 = vld [vmem:[#allocation2 + $0x588] sm:$0xff]
        %v1994 = vld [vmem:[#allocation2 + $0x590] sm:$0xff]
        %v1995 = vld [vmem:[#allocation2 + $0x598] sm:$0xff]
        %v1996 = vld [vmem:[#allocation2 + $0x5a0] sm:$0xff]
        %v1997 = vld [vmem:[#allocation2 + $0x5a8] sm:$0xff]
        %v1998 = vld [vmem:[#allocation2 + $0x5b0] sm:$0xff]
        %v1999 = vld [vmem:[#allocation2 + $0x5b8] sm:$0xff]
        %v2000 = vld [vmem:[#allocation2 + $0x5c0] sm:$0xff]
        %v2001 = vld [vmem:[#allocation2 + $0x5c8] sm:$0xff]
        %v2002 = vld [vmem:[#allocation2 + $0x5d0] sm:$0xff]
        %v2003 = vld [vmem:[#allocation2 + $0x5d8] sm:$0xff]
        %v2004 = vld [vmem:[#allocation2 + $0x5e0] sm:$0xff]
        %v2005 = vld [vmem:[#allocation2 + $0x5e8] sm:$0xff]
        %v2006 = vld [vmem:[#allocation2 + $0x5f0] sm:$0xff]
        %v2007 = vld [vmem:[#allocation2 + $0x5f8] sm:$0xff]
        %v2008 = vld [vmem:[#allocation2 + $0x600] sm:$0xff]
        %v2009 = vld [vmem:[#allocation2 + $0x608] sm:$0xff]
        %v2010 = vld [vmem:[#allocation2 + $0x610] sm:$0xff]
        %v2011 = vld [vmem:[#allocation2 + $0x618] sm:$0xff]
        %v2012 = vld [vmem:[#allocation2 + $0x620] sm:$0xff]
        %v2013 = vld [vmem:[#allocation2 + $0x628] sm:$0xff]
        %v2014 = vld [vmem:[#allocation2 + $0x630] sm:$0xff]
        %v2015 = vld [vmem:[#allocation2 + $0x638] sm:$0xff]
        %v2016 = vld [vmem:[%s3] sm:$0xff]
        %v2017 = vld [vmem:[%s3 + $0x8] sm:$0xff]
        %v2018 = vld [vmem:[%s3 + $0x10] sm:$0xff]
        %v2019 = vld [vmem:[%s3 + $0x18] sm:$0xff]
        %2021 = vset.pattern.permute.xlu0 0
        %2022 = vperm.xlu0 %2021, %v2016
        %v2023 = vpop.permute.xlu0 %2022
        %2026 = vset.pattern.permute.xlu0 0
        %2027 = vperm.xlu0 %2026, %v2017
        %v2028 = vpop.permute.xlu0 %2027
        %2031 = vset.pattern.permute.xlu0 0
        %2032 = vperm.xlu0 %2031, %v2018
        %v2033 = vpop.permute.xlu0 %2032
        %2036 = vset.pattern.permute.xlu0 0
        %2037 = vperm.xlu0 %2036, %v2019
        %v2038 = vpop.permute.xlu0 %2037
        %vm2040 = vcmask 261120
        %v2042 = vsel %vm2040, %v1794, 0
        %v2045 = vsel %vm2040, %v1801, 0
        %v2048 = vsel %vm2040, %v1808, 0
        %v2051 = vsel %vm2040, %v1815, 0
        %2053 = vmatprep.subr.mxu0 %v1847
        %2054 = vmatpush1.msra.mxu0 %v1846
        %2055 = vmatprep.subr.mxu0 %v1845
        %2056 = vmatpush1.msra.mxu0 %v1844
        %2057 = vmatprep.subr.mxu0 %v1843
        %2058 = vmatpush1.msra.mxu0 %v1842
        %2059 = vmatprep.subr.mxu0 %v1841
        %2060 = vmatpush1.msra.mxu0 %v1840
        %2061 = vmatprep.subr.mxu0 %v1839
        %2062 = vmatpush1.msra.mxu0 %v1838
        %2063 = vmatprep.subr.mxu0 %v1837
        %2064 = vmatpush1.msra.mxu0 %v1836
        %2065 = vmatprep.subr.mxu0 %v1835
        %2066 = vmatpush1.msra.mxu0 %v1834
        %2067 = vmatprep.subr.mxu0 %v1833
        %2068 = vmatpush1.msra.mxu0 %v1832
        %2069 = vmatprep.subr.mxu0 %v1831
        %2070 = vmatpush1.msra.mxu0 %v1830
        %2071 = vmatprep.subr.mxu0 %v1829
        %2072 = vmatpush1.msra.mxu0 %v1828
        %2073 = vmatprep.subr.mxu0 %v1827
        %2074 = vmatpush1.msra.mxu0 %v1826
        %2075 = vmatprep.subr.mxu0 %v1825
        %2076 = vmatpush1.msra.mxu0 %v1824
        %2077 = vmatprep.subr.mxu0 %v1823
        %2078 = vmatpush1.msra.mxu0 %v1822
        %2079 = vmatprep.subr.mxu0 %v1821
        %2080 = vmatpush1.msra.mxu0 %v1820
        %2081 = vmatprep.subr.mxu0 %v1819
        %2082 = vmatpush1.msra.mxu0 %v1818
        %2083 = vmatprep.subr.mxu0 %v1817
        %2084 = vmatpush1.msra.mxu0 %v1816
        %2085 = vmatprep.subr.mxu0 %v1879
        %2086 = vmatpush2.msra.mxu0 %v1878
        %2087 = vmatprep.subr.mxu0 %v1877
        %2088 = vmatpush2.msra.mxu0 %v1876
        %2089 = vmatprep.subr.mxu0 %v1875
        %2090 = vmatpush2.msra.mxu0 %v1874
        %2091 = vmatprep.subr.mxu0 %v1873
        %2092 = vmatpush2.msra.mxu0 %v1872
        %2093 = vmatprep.subr.mxu0 %v1871
        %2094 = vmatpush2.msra.mxu0 %v1870
        %2095 = vmatprep.subr.mxu0 %v1869
        %2096 = vmatpush2.msra.mxu0 %v1868
        %2097 = vmatprep.subr.mxu0 %v1867
        %2098 = vmatpush2.msra.mxu0 %v1866
        %2099 = vmatprep.subr.mxu0 %v1865
        %2100 = vmatpush2.msra.mxu0 %v1864
        %2101 = vmatprep.subr.mxu0 %v1863
        %2102 = vmatpush2.msra.mxu0 %v1862
        %2103 = vmatprep.subr.mxu0 %v1861
        %2104 = vmatpush2.msra.mxu0 %v1860
        %2105 = vmatprep.subr.mxu0 %v1859
        %2106 = vmatpush2.msra.mxu0 %v1858
        %2107 = vmatprep.subr.mxu0 %v1857
        %2108 = vmatpush2.msra.mxu0 %v1856
        %2109 = vmatprep.subr.mxu0 %v1855
        %2110 = vmatpush2.msra.mxu0 %v1854
        %2111 = vmatprep.subr.mxu0 %v1853
        %2112 = vmatpush2.msra.mxu0 %v1852
        %2113 = vmatprep.subr.mxu0 %v1851
        %2114 = vmatpush2.msra.mxu0 %v1850
        %2115 = vmatprep.subr.mxu0 %v1849
        %2116 = vmatpush2.msra.mxu0 %v1848
        %2117 = vmatprep.mubr.f32.mxu0 %v1789
        %2118 = vmatmul.mubr.f32.gmra.mxu0 %v1788
        %v2119 = vpop.f32.mrf.mxu0
        %v2120 = vadd.f32 %v2023, %v2119
        %v2121 = vpop.f32.mrf.mxu0
        %v2122 = vadd.f32 %v2023, %v2121
        %2123 = vmatprep.mubr.f32.mxu0 %v1796
        %2124 = vmatmul.mubr.f32.gmra.mxu0 %v1795
        %v2125 = vpop.f32.mrf.mxu0
        %v2126 = vadd.f32 %v2028, %v2125
        %v2127 = vpop.f32.mrf.mxu0
        %v2128 = vadd.f32 %v2028, %v2127
        %2129 = vmatprep.mubr.f32.mxu0 %v1803
        %2130 = vmatmul.mubr.f32.gmra.mxu0 %v1802
        %v2131 = vpop.f32.mrf.mxu0
        %v2132 = vadd.f32 %v2033, %v2131
        %v2133 = vpop.f32.mrf.mxu0
        %v2134 = vadd.f32 %v2033, %v2133
        %2135 = vmatprep.mubr.f32.mxu0 %v1810
        %2136 = vmatmul.mubr.f32.gmra.mxu0 %v1809
        %v2137 = vpop.f32.mrf.mxu0
        %v2138 = vadd.f32 %v2038, %v2137
        %v2139 = vpop.f32.mrf.mxu0
        %v2140 = vadd.f32 %v2038, %v2139
        %2141 = vdwg.mxu0
        %2142 = vmatprep.subr.mxu0 %v1911
        %2143 = vmatpush1.msra.mxu0 %v1910
        %2144 = vmatprep.subr.mxu0 %v1909
        %2145 = vmatpush1.msra.mxu0 %v1908
        %2146 = vmatprep.subr.mxu0 %v1907
        %2147 = vmatpush1.msra.mxu0 %v1906
        %2148 = vmatprep.subr.mxu0 %v1905
        %2149 = vmatpush1.msra.mxu0 %v1904
        %2150 = vmatprep.subr.mxu0 %v1903
        %2151 = vmatpush1.msra.mxu0 %v1902
        %2152 = vmatprep.subr.mxu0 %v1901
        %2153 = vmatpush1.msra.mxu0 %v1900
        %2154 = vmatprep.subr.mxu0 %v1899
        %2155 = vmatpush1.msra.mxu0 %v1898
        %2156 = vmatprep.subr.mxu0 %v1897
        %2157 = vmatpush1.msra.mxu0 %v1896
        %2158 = vmatprep.subr.mxu0 %v1895
        %2159 = vmatpush1.msra.mxu0 %v1894
        %2160 = vmatprep.subr.mxu0 %v1893
        %2161 = vmatpush1.msra.mxu0 %v1892
        %2162 = vmatprep.subr.mxu0 %v1891
        %2163 = vmatpush1.msra.mxu0 %v1890
        %2164 = vmatprep.subr.mxu0 %v1889
        %2165 = vmatpush1.msra.mxu0 %v1888
        %2166 = vmatprep.subr.mxu0 %v1887
        %2167 = vmatpush1.msra.mxu0 %v1886
        %2168 = vmatprep.subr.mxu0 %v1885
        %2169 = vmatpush1.msra.mxu0 %v1884
        %2170 = vmatprep.subr.mxu0 %v1883
        %2171 = vmatpush1.msra.mxu0 %v1882
        %2172 = vmatprep.subr.mxu0 %v1881
        %2173 = vmatpush1.msra.mxu0 %v1880
        %2174 = vmatprep.subr.mxu0 %v1943
        %2175 = vmatpush2.msra.mxu0 %v1942
        %2176 = vmatprep.subr.mxu0 %v1941
        %2177 = vmatpush2.msra.mxu0 %v1940
        %2178 = vmatprep.subr.mxu0 %v1939
        %2179 = vmatpush2.msra.mxu0 %v1938
        %2180 = vmatprep.subr.mxu0 %v1937
        %2181 = vmatpush2.msra.mxu0 %v1936
        %2182 = vmatprep.subr.mxu0 %v1935
        %2183 = vmatpush2.msra.mxu0 %v1934
        %2184 = vmatprep.subr.mxu0 %v1933
        %2185 = vmatpush2.msra.mxu0 %v1932
        %2186 = vmatprep.subr.mxu0 %v1931
        %2187 = vmatpush2.msra.mxu0 %v1930
        %2188 = vmatprep.subr.mxu0 %v1929
        %2189 = vmatpush2.msra.mxu0 %v1928
        %2190 = vmatprep.subr.mxu0 %v1927
        %2191 = vmatpush2.msra.mxu0 %v1926
        %2192 = vmatprep.subr.mxu0 %v1925
        %2193 = vmatpush2.msra.mxu0 %v1924
        %2194 = vmatprep.subr.mxu0 %v1923
        %2195 = vmatpush2.msra.mxu0 %v1922
        %2196 = vmatprep.subr.mxu0 %v1921
        %2197 = vmatpush2.msra.mxu0 %v1920
        %2198 = vmatprep.subr.mxu0 %v1919
        %2199 = vmatpush2.msra.mxu0 %v1918
        %2200 = vmatprep.subr.mxu0 %v1917
        %2201 = vmatpush2.msra.mxu0 %v1916
        %2202 = vmatprep.subr.mxu0 %v1915
        %2203 = vmatpush2.msra.mxu0 %v1914
        %2204 = vmatprep.subr.mxu0 %v1913
        %2205 = vmatpush2.msra.mxu0 %v1912
        %2206 = vmatprep.mubr.f32.mxu0 %v1791
        %2207 = vmatmul.mubr.f32.gmra.mxu0 %v1790
        %v2208 = vpop.f32.mrf.mxu0
        %v2209 = vadd.f32 %v2120, %v2208
        %v2210 = vpop.f32.mrf.mxu0
        %v2211 = vadd.f32 %v2122, %v2210
        %2212 = vmatprep.mubr.f32.mxu0 %v1798
        %2213 = vmatmul.mubr.f32.gmra.mxu0 %v1797
        %v2214 = vpop.f32.mrf.mxu0
        %v2215 = vadd.f32 %v2126, %v2214
        %v2216 = vpop.f32.mrf.mxu0
        %v2217 = vadd.f32 %v2128, %v2216
        %2218 = vmatprep.mubr.f32.mxu0 %v1805
        %2219 = vmatmul.mubr.f32.gmra.mxu0 %v1804
        %v2220 = vpop.f32.mrf.mxu0
        %v2221 = vadd.f32 %v2132, %v2220
        %v2222 = vpop.f32.mrf.mxu0
        %v2223 = vadd.f32 %v2134, %v2222
        %2224 = vmatprep.mubr.f32.mxu0 %v1812
        %2225 = vmatmul.mubr.f32.gmra.mxu0 %v1811
        %v2226 = vpop.f32.mrf.mxu0
        %v2227 = vadd.f32 %v2138, %v2226
        %v2228 = vpop.f32.mrf.mxu0
        %v2229 = vadd.f32 %v2140, %v2228
        %2230 = vdwg.mxu0
        %2231 = vmatprep.subr.mxu0 %v1975
        %2232 = vmatpush1.msra.mxu0 %v1974
        %2233 = vmatprep.subr.mxu0 %v1973
        %2234 = vmatpush1.msra.mxu0 %v1972
        %2235 = vmatprep.subr.mxu0 %v1971
        %2236 = vmatpush1.msra.mxu0 %v1970
        %2237 = vmatprep.subr.mxu0 %v1969
        %2238 = vmatpush1.msra.mxu0 %v1968
        %2239 = vmatprep.subr.mxu0 %v1967
        %2240 = vmatpush1.msra.mxu0 %v1966
        %2241 = vmatprep.subr.mxu0 %v1965
        %2242 = vmatpush1.msra.mxu0 %v1964
        %2243 = vmatprep.subr.mxu0 %v1963
        %2244 = vmatpush1.msra.mxu0 %v1962
        %2245 = vmatprep.subr.mxu0 %v1961
        %2246 = vmatpush1.msra.mxu0 %v1960
        %2247 = vmatprep.subr.mxu0 %v1959
        %2248 = vmatpush1.msra.mxu0 %v1958
        %2249 = vmatprep.subr.mxu0 %v1957
        %2250 = vmatpush1.msra.mxu0 %v1956
        %2251 = vmatprep.subr.mxu0 %v1955
        %2252 = vmatpush1.msra.mxu0 %v1954
        %2253 = vmatprep.subr.mxu0 %v1953
        %2254 = vmatpush1.msra.mxu0 %v1952
        %2255 = vmatprep.subr.mxu0 %v1951
        %2256 = vmatpush1.msra.mxu0 %v1950
        %2257 = vmatprep.subr.mxu0 %v1949
        %2258 = vmatpush1.msra.mxu0 %v1948
        %2259 = vmatprep.subr.mxu0 %v1947
        %2260 = vmatpush1.msra.mxu0 %v1946
        %2261 = vmatprep.subr.mxu0 %v1945
        %2262 = vmatpush1.msra.mxu0 %v1944
        %2263 = vmatprep.subr.mxu0 %v2007
        %2264 = vmatpush2.msra.mxu0 %v2006
        %2265 = vmatprep.subr.mxu0 %v2005
        %2266 = vmatpush2.msra.mxu0 %v2004
        %2267 = vmatprep.subr.mxu0 %v2003
        %2268 = vmatpush2.msra.mxu0 %v2002
        %2269 = vmatprep.subr.mxu0 %v2001
        %2270 = vmatpush2.msra.mxu0 %v2000
        %2271 = vmatprep.subr.mxu0 %v1999
        %2272 = vmatpush2.msra.mxu0 %v1998
        %2273 = vmatprep.subr.mxu0 %v1997
        %2274 = vmatpush2.msra.mxu0 %v1996
        %2275 = vmatprep.subr.mxu0 %v1995
        %2276 = vmatpush2.msra.mxu0 %v1994
        %2277 = vmatprep.subr.mxu0 %v1993
        %2278 = vmatpush2.msra.mxu0 %v1992
        %2279 = vmatprep.subr.mxu0 %v1991
        %2280 = vmatpush2.msra.mxu0 %v1990
        %2281 = vmatprep.subr.mxu0 %v1989
        %2282 = vmatpush2.msra.mxu0 %v1988
        %2283 = vmatprep.subr.mxu0 %v1987
        %2284 = vmatpush2.msra.mxu0 %v1986
        %2285 = vmatprep.subr.mxu0 %v1985
        %2286 = vmatpush2.msra.mxu0 %v1984
        %2287 = vmatprep.subr.mxu0 %v1983
        %2288 = vmatpush2.msra.mxu0 %v1982
        %2289 = vmatprep.subr.mxu0 %v1981
        %2290 = vmatpush2.msra.mxu0 %v1980
        %2291 = vmatprep.subr.mxu0 %v1979
        %2292 = vmatpush2.msra.mxu0 %v1978
        %2293 = vmatprep.subr.mxu0 %v1977
        %2294 = vmatpush2.msra.mxu0 %v1976
        %2295 = vmatprep.mubr.f32.mxu0 %v1793
        %2296 = vmatmul.mubr.f32.gmra.mxu0 %v1792
        %v2297 = vpop.f32.mrf.mxu0
        %v2298 = vadd.f32 %v2209, %v2297
        %v2299 = vpop.f32.mrf.mxu0
        %v2300 = vadd.f32 %v2211, %v2299
        %2301 = vmatprep.mubr.f32.mxu0 %v1800
        %2302 = vmatmul.mubr.f32.gmra.mxu0 %v1799
        %v2303 = vpop.f32.mrf.mxu0
        %v2304 = vadd.f32 %v2215, %v2303
        %v2305 = vpop.f32.mrf.mxu0
        %v2306 = vadd.f32 %v2217, %v2305
        %2307 = vmatprep.mubr.f32.mxu0 %v1807
        %2308 = vmatmul.mubr.f32.gmra.mxu0 %v1806
        %v2309 = vpop.f32.mrf.mxu0
        %v2310 = vadd.f32 %v2221, %v2309
        %v2311 = vpop.f32.mrf.mxu0
        %v2312 = vadd.f32 %v2223, %v2311
        %2313 = vmatprep.mubr.f32.mxu0 %v1814
        %2314 = vmatmul.mubr.f32.gmra.mxu0 %v1813
        %v2315 = vpop.f32.mrf.mxu0
        %v2316 = vadd.f32 %v2227, %v2315
        %v2317 = vpop.f32.mrf.mxu0
        %v2318 = vadd.f32 %v2229, %v2317
        %2319 = vdwg.mxu0
        %2320 = vmatprep.subr.mxu0 0.0
        %2321 = vmatpush1.msra.mxu0 0.0
        %2322 = vmatprep.subr.mxu0 0.0
        %2323 = vmatpush1.msra.mxu0 0.0
        %2324 = vmatprep.subr.mxu0 0.0
        %2325 = vmatpush1.msra.mxu0 0.0
        %2326 = vmatprep.subr.mxu0 0.0
        %2327 = vmatpush1.msra.mxu0 0.0
        %2328 = vmatprep.subr.mxu0 0.0
        %2329 = vmatpush1.msra.mxu0 0.0
        %2330 = vmatprep.subr.mxu0 0.0
        %2331 = vmatpush1.msra.mxu0 0.0
        %2332 = vmatprep.subr.mxu0 0.0
        %2333 = vmatpush1.msra.mxu0 0.0
        %2334 = vmatprep.subr.mxu0 0.0
        %2335 = vmatpush1.msra.mxu0 0.0
        %2336 = vmatprep.subr.mxu0 0.0
        %2337 = vmatpush1.msra.mxu0 0.0
        %2338 = vmatprep.subr.mxu0 0.0
        %2339 = vmatpush1.msra.mxu0 0.0
        %2340 = vmatprep.subr.mxu0 0.0
        %2341 = vmatpush1.msra.mxu0 0.0
        %2342 = vmatprep.subr.mxu0 0.0
        %2343 = vmatpush1.msra.mxu0 0.0
        %2344 = vmatprep.subr.mxu0 %v2015
        %2345 = vmatpush1.msra.mxu0 %v2014
        %2346 = vmatprep.subr.mxu0 %v2013
        %2347 = vmatpush1.msra.mxu0 %v2012
        %2348 = vmatprep.subr.mxu0 %v2011
        %2349 = vmatpush1.msra.mxu0 %v2010
        %2350 = vmatprep.subr.mxu0 %v2009
        %2351 = vmatpush1.msra.mxu0 %v2008
        %2352 = vmatprep.subr.mxu0 0.0
        %2353 = vmatpush2.msra.mxu0 0.0
        %2354 = vmatprep.subr.mxu0 0.0
        %2355 = vmatpush2.msra.mxu0 0.0
        %2356 = vmatprep.subr.mxu0 0.0
        %2357 = vmatpush2.msra.mxu0 0.0
        %2358 = vmatprep.subr.mxu0 0.0
        %2359 = vmatpush2.msra.mxu0 0.0
        %2360 = vmatprep.subr.mxu0 0.0
        %2361 = vmatpush2.msra.mxu0 0.0
        %2362 = vmatprep.subr.mxu0 0.0
        %2363 = vmatpush2.msra.mxu0 0.0
        %2364 = vmatprep.subr.mxu0 0.0
        %2365 = vmatpush2.msra.mxu0 0.0
        %2366 = vmatprep.subr.mxu0 0.0
        %2367 = vmatpush2.msra.mxu0 0.0
        %2368 = vmatprep.subr.mxu0 0.0
        %2369 = vmatpush2.msra.mxu0 0.0
        %2370 = vmatprep.subr.mxu0 0.0
        %2371 = vmatpush2.msra.mxu0 0.0
        %2372 = vmatprep.subr.mxu0 0.0
        %2373 = vmatpush2.msra.mxu0 0.0
        %2374 = vmatprep.subr.mxu0 0.0
        %2375 = vmatpush2.msra.mxu0 0.0
        %2376 = vmatprep.subr.mxu0 0.0
        %2377 = vmatpush2.msra.mxu0 0.0
        %2378 = vmatprep.subr.mxu0 0.0
        %2379 = vmatpush2.msra.mxu0 0.0
        %2380 = vmatprep.subr.mxu0 0.0
        %2381 = vmatpush2.msra.mxu0 0.0
        %2382 = vmatprep.subr.mxu0 0.0
        %2383 = vmatpush2.msra.mxu0 0.0
        %2384 = vmatprep.mubr.f32.mxu0 0.0
        %2385 = vmatmul.mubr.f32.gmra.mxu0 %v2042
        %v2386 = vpop.f32.mrf.mxu0
        %v2387 = vadd.f32 %v2298, %v2386
        %v2388 = vpop.f32.mrf.mxu0
        %v2389 = vadd.f32 %v2300, %v2388
        %2390 = vmatprep.mubr.f32.mxu0 0.0
        %2391 = vmatmul.mubr.f32.gmra.mxu0 %v2045
        %v2392 = vpop.f32.mrf.mxu0
        %v2393 = vadd.f32 %v2304, %v2392
        %v2394 = vpop.f32.mrf.mxu0
        %v2395 = vadd.f32 %v2306, %v2394
        %2396 = vmatprep.mubr.f32.mxu0 0.0
        %2397 = vmatmul.mubr.f32.gmra.mxu0 %v2048
        %v2398 = vpop.f32.mrf.mxu0
        %v2399 = vadd.f32 %v2310, %v2398
        %v2400 = vpop.f32.mrf.mxu0
        %v2401 = vadd.f32 %v2312, %v2400
        %2402 = vmatprep.mubr.f32.mxu0 0.0
        %2403 = vmatmul.mubr.f32.gmra.mxu0 %v2051
        %v2404 = vpop.f32.mrf.mxu0
        %v2405 = vadd.f32 %v2316, %v2404
        %v2406 = vpop.f32.mrf.mxu0
        %v2407 = vadd.f32 %v2318, %v2406
        %2408 = vdwg.mxu0
        %vm2409 = vcmp.gt.f32.partialorder %v2387, 0.0
        %vm2410 = vcmp.gt.f32.partialorder %v2389, 0.0
        %vm2411 = vcmp.gt.f32.partialorder %v2393, 0.0
        %vm2412 = vcmp.gt.f32.partialorder %v2395, 0.0
        %vm2413 = vcmp.gt.f32.partialorder %v2399, 0.0
        %vm2414 = vcmp.gt.f32.partialorder %v2401, 0.0
        %vm2415 = vcmp.gt.f32.partialorder %v2405, 0.0
        %vm2416 = vcmp.gt.f32.partialorder %v2407, 0.0
        %s2417 = sld [smem:[#allocation12]]
        %v2418 = vstv %s2417
        %v2419 = vmul.f32 %v2418, %v2387
        %v2420 = vmul.f32 %v2418, %v2389
        %v2421 = vmul.f32 %v2418, %v2393
        %v2422 = vmul.f32 %v2418, %v2395
        %v2423 = vmul.f32 %v2418, %v2399
        %v2424 = vmul.f32 %v2418, %v2401
        %v2425 = vmul.f32 %v2418, %v2405
        %v2426 = vmul.f32 %v2418, %v2407
        %v2427 = vsel %vm2409, %v2387, %v2419
        %v2428 = vsel %vm2410, %v2389, %v2420
        %v2429 = vsel %vm2411, %v2393, %v2421
        %v2430 = vsel %vm2412, %v2395, %v2422
        %v2431 = vsel %vm2413, %v2399, %v2423
        %v2432 = vsel %vm2414, %v2401, %v2424
        %v2433 = vsel %vm2415, %v2405, %v2425
        %v2434 = vsel %vm2416, %v2407, %v2426
        %2435 = vrot.lane.b32.xlu0 %v2427, 34
        %v2436 = vpop.permute.xlu0 %2435
        %2437 = vrot.lane.b32.xlu0 %v2429, 34
        %v2438 = vpop.permute.xlu0 %2437
        %2439 = vrot.lane.b32.xlu0 %v2431, 34
        %v2440 = vpop.permute.xlu0 %2439
        %2441 = vrot.lane.b32.xlu0 %v2433, 34
        %v2442 = vpop.permute.xlu0 %2441
        %2443 = vrot.lane.b32.xlu0 %v2428, 34
        %v2444 = vpop.permute.xlu0 %2443
        %2445 = vrot.lane.b32.xlu0 %v2430, 34
        %v2446 = vpop.permute.xlu0 %2445
        %2447 = vrot.lane.b32.xlu0 %v2432, 34
        %v2448 = vpop.permute.xlu0 %2447
        %2449 = vrot.lane.b32.xlu0 %v2434, 34
        %v2450 = vpop.permute.xlu0 %2449
        %v2451 = vsel %vm480, %v2436, %v2444
        %v2452 = vsel %vm480, %v2438, %v2446
        %v2453 = vsel %vm480, %v2440, %v2448
        %v2454 = vsel %vm480, %v2442, %v2450
        %v2455 = vsel %vm480, %v2444, %v2436
        %v2456 = vsel %vm480, %v2446, %v2438
        %v2457 = vsel %vm480, %v2448, %v2440
        %v2458 = vsel %vm480, %v2450, %v2442
        %v2459 = vld [vmem:[%s8] ss:$8 sm:$0x3]
        %v2461 = vlaneseq
        %v2462 = vshrl.u32 %v2461, 7
        %v2463 = vsub.s32 0, %v2462
        %v2464 = vrot.slane %v2459, %v2463
        %v2465 = vlaneseq
        %v2466 = vshrl.u32 %v2465, 7
        %v2467 = vsub.s32 1, %v2466
        %v2468 = vrot.slane %v2459, %v2467
        %v2471 = vmul.f32 %v2455, %v2464
        %v2472 = vmul.f32 %v2451, %v2468
        %v2473 = vmul.f32 %v2456, %v2464
        %v2474 = vmul.f32 %v2452, %v2468
        %v2475 = vmul.f32 %v2457, %v2464
        %v2476 = vmul.f32 %v2453, %v2468
        %v2477 = vmul.f32 %v2458, %v2464
        %v2478 = vmul.f32 %v2454, %v2468
        %2479 = vst [vmem:[#allocation2] sm:$0xff] %v2471
        %2480 = vst [vmem:[#allocation2 + $0x8] sm:$0xff] %v2472
        %2481 = vst [vmem:[#allocation2 + $0x10] sm:$0xff] %v2473
        %2482 = vst [vmem:[#allocation2 + $0x18] sm:$0xff] %v2474
        %2483 = vst [vmem:[#allocation2 + $0x20] sm:$0xff] %v2475
        %2484 = vst [vmem:[#allocation2 + $0x28] sm:$0xff] %v2476
        %2485 = vst [vmem:[#allocation2 + $0x30] sm:$0xff] %v2477
        %2486 = vst [vmem:[#allocation2 + $0x38] sm:$0xff] %v2478
        %2487 = vrot.lane.b32.xlu0 %v2427, 33
        %v2488 = vpop.permute.xlu0 %2487
        %2489 = vrot.lane.b32.xlu0 %v2429, 33
        %v2490 = vpop.permute.xlu0 %2489
        %2491 = vrot.lane.b32.xlu0 %v2431, 33
        %v2492 = vpop.permute.xlu0 %2491
        %2493 = vrot.lane.b32.xlu0 %v2433, 33
        %v2494 = vpop.permute.xlu0 %2493
        %2495 = vrot.lane.b32.xlu0 %v2428, 33
        %v2496 = vpop.permute.xlu0 %2495
        %2497 = vrot.lane.b32.xlu0 %v2430, 33
        %v2498 = vpop.permute.xlu0 %2497
        %2499 = vrot.lane.b32.xlu0 %v2432, 33
        %v2500 = vpop.permute.xlu0 %2499
        %2501 = vrot.lane.b32.xlu0 %v2434, 33
        %v2502 = vpop.permute.xlu0 %2501
        %v2503 = vsel %vm533, %v2488, %v2496
        %v2504 = vsel %vm533, %v2490, %v2498
        %v2505 = vsel %vm533, %v2492, %v2500
        %v2506 = vsel %vm533, %v2494, %v2502
        %v2507 = vsel %vm533, %v2496, %v2488
        %v2508 = vsel %vm533, %v2498, %v2490
        %v2509 = vsel %vm533, %v2500, %v2492
        %v2510 = vsel %vm533, %v2502, %v2494
        %v2511 = vld [vmem:[%s542] ss:$8 sm:$0x3]
        %v2513 = vlaneseq
        %v2514 = vshrl.u32 %v2513, 7
        %v2515 = vsub.s32 0, %v2514
        %v2516 = vrot.slane %v2511, %v2515
        %v2517 = vlaneseq
        %v2518 = vshrl.u32 %v2517, 7
        %v2519 = vsub.s32 1, %v2518
        %v2520 = vrot.slane %v2511, %v2519
        %v2523 = vmul.f32 %v2507, %v2516
        %v2524 = vmul.f32 %v2503, %v2520
        %v2525 = vmul.f32 %v2508, %v2516
        %v2526 = vmul.f32 %v2504, %v2520
        %v2527 = vmul.f32 %v2509, %v2516
        %v2528 = vmul.f32 %v2505, %v2520
        %v2529 = vmul.f32 %v2510, %v2516
        %v2530 = vmul.f32 %v2506, %v2520
        %2531 = vst [vmem:[#allocation2 + $0x40] sm:$0xff] %v2523
        %2532 = vst [vmem:[#allocation2 + $0x48] sm:$0xff] %v2524
        %2533 = vst [vmem:[#allocation2 + $0x50] sm:$0xff] %v2525
        %2534 = vst [vmem:[#allocation2 + $0x58] sm:$0xff] %v2526
        %2535 = vst [vmem:[#allocation2 + $0x60] sm:$0xff] %v2527
        %2536 = vst [vmem:[#allocation2 + $0x68] sm:$0xff] %v2528
        %2537 = vst [vmem:[#allocation2 + $0x70] sm:$0xff] %v2529
        %2538 = vst [vmem:[#allocation2 + $0x78] sm:$0xff] %v2530
        %2539 = vrot.lane.b32.xlu0 %v2427, 32
        %v2540 = vpop.permute.xlu0 %2539
        %2541 = vrot.lane.b32.xlu0 %v2429, 32
        %v2542 = vpop.permute.xlu0 %2541
        %2543 = vrot.lane.b32.xlu0 %v2431, 32
        %v2544 = vpop.permute.xlu0 %2543
        %2545 = vrot.lane.b32.xlu0 %v2433, 32
        %v2546 = vpop.permute.xlu0 %2545
        %2547 = vrot.lane.b32.xlu0 %v2428, 32
        %v2548 = vpop.permute.xlu0 %2547
        %2549 = vrot.lane.b32.xlu0 %v2430, 32
        %v2550 = vpop.permute.xlu0 %2549
        %2551 = vrot.lane.b32.xlu0 %v2432, 32
        %v2552 = vpop.permute.xlu0 %2551
        %2553 = vrot.lane.b32.xlu0 %v2434, 32
        %v2554 = vpop.permute.xlu0 %2553
        %v2555 = vsel %vm587, %v2540, %v2548
        %v2556 = vsel %vm587, %v2542, %v2550
        %v2557 = vsel %vm587, %v2544, %v2552
        %v2558 = vsel %vm587, %v2546, %v2554
        %v2559 = vsel %vm587, %v2548, %v2540
        %v2560 = vsel %vm587, %v2550, %v2542
        %v2561 = vsel %vm587, %v2552, %v2544
        %v2562 = vsel %vm587, %v2554, %v2546
        %v2563 = vld [vmem:[%s596] ss:$8 sm:$0x3]
        %v2565 = vlaneseq
        %v2566 = vshrl.u32 %v2565, 7
        %v2567 = vsub.s32 0, %v2566
        %v2568 = vrot.slane %v2563, %v2567
        %v2569 = vlaneseq
        %v2570 = vshrl.u32 %v2569, 7
        %v2571 = vsub.s32 1, %v2570
        %v2572 = vrot.slane %v2563, %v2571
        %v2575 = vmul.f32 %v2559, %v2568
        %v2576 = vmul.f32 %v2555, %v2572
        %v2577 = vmul.f32 %v2560, %v2568
        %v2578 = vmul.f32 %v2556, %v2572
        %v2579 = vmul.f32 %v2561, %v2568
        %v2580 = vmul.f32 %v2557, %v2572
        %v2581 = vmul.f32 %v2562, %v2568
        %v2582 = vmul.f32 %v2558, %v2572
        %2583 = vst [vmem:[#allocation2 + $0x80] sm:$0xff] %v2575
        %2584 = vst [vmem:[#allocation2 + $0x88] sm:$0xff] %v2576
        %2585 = vst [vmem:[#allocation2 + $0x90] sm:$0xff] %v2577
        %2586 = vst [vmem:[#allocation2 + $0x98] sm:$0xff] %v2578
        %2587 = vst [vmem:[#allocation2 + $0xa0] sm:$0xff] %v2579
        %2588 = vst [vmem:[#allocation2 + $0xa8] sm:$0xff] %v2580
        %2589 = vst [vmem:[#allocation2 + $0xb0] sm:$0xff] %v2581
        %2590 = vst [vmem:[#allocation2 + $0xb8] sm:$0xff] %v2582
        %2591 = vrot.lane.b32.xlu0 %v2427, 31
        %v2592 = vpop.permute.xlu0 %2591
        %2593 = vrot.lane.b32.xlu0 %v2429, 31
        %v2594 = vpop.permute.xlu0 %2593
        %2595 = vrot.lane.b32.xlu0 %v2431, 31
        %v2596 = vpop.permute.xlu0 %2595
        %2597 = vrot.lane.b32.xlu0 %v2433, 31
        %v2598 = vpop.permute.xlu0 %2597
        %2599 = vrot.lane.b32.xlu0 %v2428, 31
        %v2600 = vpop.permute.xlu0 %2599
        %2601 = vrot.lane.b32.xlu0 %v2430, 31
        %v2602 = vpop.permute.xlu0 %2601
        %2603 = vrot.lane.b32.xlu0 %v2432, 31
        %v2604 = vpop.permute.xlu0 %2603
        %2605 = vrot.lane.b32.xlu0 %v2434, 31
        %v2606 = vpop.permute.xlu0 %2605
        %v2607 = vsel %vm641, %v2592, %v2600
        %v2608 = vsel %vm641, %v2594, %v2602
        %v2609 = vsel %vm641, %v2596, %v2604
        %v2610 = vsel %vm641, %v2598, %v2606
        %v2611 = vsel %vm641, %v2600, %v2592
        %v2612 = vsel %vm641, %v2602, %v2594
        %v2613 = vsel %vm641, %v2604, %v2596
        %v2614 = vsel %vm641, %v2606, %v2598
        %v2615 = vld [vmem:[%s650] ss:$8 sm:$0x3]
        %v2617 = vlaneseq
        %v2618 = vshrl.u32 %v2617, 7
        %v2619 = vsub.s32 0, %v2618
        %v2620 = vrot.slane %v2615, %v2619
        %v2621 = vlaneseq
        %v2622 = vshrl.u32 %v2621, 7
        %v2623 = vsub.s32 1, %v2622
        %v2624 = vrot.slane %v2615, %v2623
        %v2627 = vmul.f32 %v2611, %v2620
        %v2628 = vmul.f32 %v2607, %v2624
        %v2629 = vmul.f32 %v2612, %v2620
        %v2630 = vmul.f32 %v2608, %v2624
        %v2631 = vmul.f32 %v2613, %v2620
        %v2632 = vmul.f32 %v2609, %v2624
        %v2633 = vmul.f32 %v2614, %v2620
        %v2634 = vmul.f32 %v2610, %v2624
        %2635 = vst [vmem:[#allocation2 + $0xc0] sm:$0xff] %v2627
        %2636 = vst [vmem:[#allocation2 + $0xc8] sm:$0xff] %v2628
        %2637 = vst [vmem:[#allocation2 + $0xd0] sm:$0xff] %v2629
        %2638 = vst [vmem:[#allocation2 + $0xd8] sm:$0xff] %v2630
        %2639 = vst [vmem:[#allocation2 + $0xe0] sm:$0xff] %v2631
        %2640 = vst [vmem:[#allocation2 + $0xe8] sm:$0xff] %v2632
        %2641 = vst [vmem:[#allocation2 + $0xf0] sm:$0xff] %v2633
        %2642 = vst [vmem:[#allocation2 + $0xf8] sm:$0xff] %v2634
        %2643 = vrot.lane.b32.xlu0 %v2427, 30
        %v2644 = vpop.permute.xlu0 %2643
        %2645 = vrot.lane.b32.xlu0 %v2429, 30
        %v2646 = vpop.permute.xlu0 %2645
        %2647 = vrot.lane.b32.xlu0 %v2431, 30
        %v2648 = vpop.permute.xlu0 %2647
        %2649 = vrot.lane.b32.xlu0 %v2433, 30
        %v2650 = vpop.permute.xlu0 %2649
        %2651 = vrot.lane.b32.xlu0 %v2428, 30
        %v2652 = vpop.permute.xlu0 %2651
        %2653 = vrot.lane.b32.xlu0 %v2430, 30
        %v2654 = vpop.permute.xlu0 %2653
        %2655 = vrot.lane.b32.xlu0 %v2432, 30
        %v2656 = vpop.permute.xlu0 %2655
        %2657 = vrot.lane.b32.xlu0 %v2434, 30
        %v2658 = vpop.permute.xlu0 %2657
        %v2659 = vsel %vm695, %v2644, %v2652
        %v2660 = vsel %vm695, %v2646, %v2654
        %v2661 = vsel %vm695, %v2648, %v2656
        %v2662 = vsel %vm695, %v2650, %v2658
        %v2663 = vsel %vm695, %v2652, %v2644
        %v2664 = vsel %vm695, %v2654, %v2646
        %v2665 = vsel %vm695, %v2656, %v2648
        %v2666 = vsel %vm695, %v2658, %v2650
        %v2667 = vld [vmem:[%s704] ss:$8 sm:$0x3]
        %v2669 = vlaneseq
        %v2670 = vshrl.u32 %v2669, 7
        %v2671 = vsub.s32 0, %v2670
        %v2672 = vrot.slane %v2667, %v2671
        %v2673 = vlaneseq
        %v2674 = vshrl.u32 %v2673, 7
        %v2675 = vsub.s32 1, %v2674
        %v2676 = vrot.slane %v2667, %v2675
        %v2679 = vmul.f32 %v2663, %v2672
        %v2680 = vmul.f32 %v2659, %v2676
        %v2681 = vmul.f32 %v2664, %v2672
        %v2682 = vmul.f32 %v2660, %v2676
        %v2683 = vmul.f32 %v2665, %v2672
        %v2684 = vmul.f32 %v2661, %v2676
        %v2685 = vmul.f32 %v2666, %v2672
        %v2686 = vmul.f32 %v2662, %v2676
        %2687 = vst [vmem:[#allocation2 + $0x100] sm:$0xff] %v2679
        %2688 = vst [vmem:[#allocation2 + $0x108] sm:$0xff] %v2680
        %2689 = vst [vmem:[#allocation2 + $0x110] sm:$0xff] %v2681
        %2690 = vst [vmem:[#allocation2 + $0x118] sm:$0xff] %v2682
        %2691 = vst [vmem:[#allocation2 + $0x120] sm:$0xff] %v2683
        %2692 = vst [vmem:[#allocation2 + $0x128] sm:$0xff] %v2684
        %2693 = vst [vmem:[#allocation2 + $0x130] sm:$0xff] %v2685
        %2694 = vst [vmem:[#allocation2 + $0x138] sm:$0xff] %v2686
        %2695 = vrot.lane.b32.xlu0 %v2427, 18
        %v2696 = vpop.permute.xlu0 %2695
        %2697 = vrot.lane.b32.xlu0 %v2429, 18
        %v2698 = vpop.permute.xlu0 %2697
        %2699 = vrot.lane.b32.xlu0 %v2431, 18
        %v2700 = vpop.permute.xlu0 %2699
        %2701 = vrot.lane.b32.xlu0 %v2433, 18
        %v2702 = vpop.permute.xlu0 %2701
        %2703 = vrot.lane.b32.xlu0 %v2428, 18
        %v2704 = vpop.permute.xlu0 %2703
        %2705 = vrot.lane.b32.xlu0 %v2430, 18
        %v2706 = vpop.permute.xlu0 %2705
        %2707 = vrot.lane.b32.xlu0 %v2432, 18
        %v2708 = vpop.permute.xlu0 %2707
        %2709 = vrot.lane.b32.xlu0 %v2434, 18
        %v2710 = vpop.permute.xlu0 %2709
        %v2711 = vsel %vm749, %v2696, %v2704
        %v2712 = vsel %vm749, %v2698, %v2706
        %v2713 = vsel %vm749, %v2700, %v2708
        %v2714 = vsel %vm749, %v2702, %v2710
        %v2715 = vsel %vm749, %v2704, %v2696
        %v2716 = vsel %vm749, %v2706, %v2698
        %v2717 = vsel %vm749, %v2708, %v2700
        %v2718 = vsel %vm749, %v2710, %v2702
        %v2719 = vld [vmem:[%s758] ss:$8 sm:$0x3]
        %v2721 = vlaneseq
        %v2722 = vshrl.u32 %v2721, 7
        %v2723 = vsub.s32 0, %v2722
        %v2724 = vrot.slane %v2719, %v2723
        %v2725 = vlaneseq
        %v2726 = vshrl.u32 %v2725, 7
        %v2727 = vsub.s32 1, %v2726
        %v2728 = vrot.slane %v2719, %v2727
        %v2731 = vmul.f32 %v2715, %v2724
        %v2732 = vmul.f32 %v2711, %v2728
        %v2733 = vmul.f32 %v2716, %v2724
        %v2734 = vmul.f32 %v2712, %v2728
        %v2735 = vmul.f32 %v2717, %v2724
        %v2736 = vmul.f32 %v2713, %v2728
        %v2737 = vmul.f32 %v2718, %v2724
        %v2738 = vmul.f32 %v2714, %v2728
        %2739 = vst [vmem:[#allocation2 + $0x140] sm:$0xff] %v2731
        %2740 = vst [vmem:[#allocation2 + $0x148] sm:$0xff] %v2732
        %2741 = vst [vmem:[#allocation2 + $0x150] sm:$0xff] %v2733
        %2742 = vst [vmem:[#allocation2 + $0x158] sm:$0xff] %v2734
        %2743 = vst [vmem:[#allocation2 + $0x160] sm:$0xff] %v2735
        %2744 = vst [vmem:[#allocation2 + $0x168] sm:$0xff] %v2736
        %2745 = vst [vmem:[#allocation2 + $0x170] sm:$0xff] %v2737
        %2746 = vst [vmem:[#allocation2 + $0x178] sm:$0xff] %v2738
        %2747 = vrot.lane.b32.xlu0 %v2427, 17
        %v2748 = vpop.permute.xlu0 %2747
        %2749 = vrot.lane.b32.xlu0 %v2429, 17
        %v2750 = vpop.permute.xlu0 %2749
        %2751 = vrot.lane.b32.xlu0 %v2431, 17
        %v2752 = vpop.permute.xlu0 %2751
        %2753 = vrot.lane.b32.xlu0 %v2433, 17
        %v2754 = vpop.permute.xlu0 %2753
        %2755 = vrot.lane.b32.xlu0 %v2428, 17
        %v2756 = vpop.permute.xlu0 %2755
        %2757 = vrot.lane.b32.xlu0 %v2430, 17
        %v2758 = vpop.permute.xlu0 %2757
        %2759 = vrot.lane.b32.xlu0 %v2432, 17
        %v2760 = vpop.permute.xlu0 %2759
        %2761 = vrot.lane.b32.xlu0 %v2434, 17
        %v2762 = vpop.permute.xlu0 %2761
        %v2763 = vsel %vm803, %v2748, %v2756
        %v2764 = vsel %vm803, %v2750, %v2758
        %v2765 = vsel %vm803, %v2752, %v2760
        %v2766 = vsel %vm803, %v2754, %v2762
        %v2767 = vsel %vm803, %v2756, %v2748
        %v2768 = vsel %vm803, %v2758, %v2750
        %v2769 = vsel %vm803, %v2760, %v2752
        %v2770 = vsel %vm803, %v2762, %v2754
        %v2771 = vld [vmem:[%s812] ss:$8 sm:$0x3]
        %v2773 = vlaneseq
        %v2774 = vshrl.u32 %v2773, 7
        %v2775 = vsub.s32 0, %v2774
        %v2776 = vrot.slane %v2771, %v2775
        %v2777 = vlaneseq
        %v2778 = vshrl.u32 %v2777, 7
        %v2779 = vsub.s32 1, %v2778
        %v2780 = vrot.slane %v2771, %v2779
        %v2783 = vmul.f32 %v2767, %v2776
        %v2784 = vmul.f32 %v2763, %v2780
        %v2785 = vmul.f32 %v2768, %v2776
        %v2786 = vmul.f32 %v2764, %v2780
        %v2787 = vmul.f32 %v2769, %v2776
        %v2788 = vmul.f32 %v2765, %v2780
        %v2789 = vmul.f32 %v2770, %v2776
        %v2790 = vmul.f32 %v2766, %v2780
        %2791 = vst [vmem:[#allocation2 + $0x180] sm:$0xff] %v2783
        %2792 = vst [vmem:[#allocation2 + $0x188] sm:$0xff] %v2784
        %2793 = vst [vmem:[#allocation2 + $0x190] sm:$0xff] %v2785
        %2794 = vst [vmem:[#allocation2 + $0x198] sm:$0xff] %v2786
        %2795 = vst [vmem:[#allocation2 + $0x1a0] sm:$0xff] %v2787
        %2796 = vst [vmem:[#allocation2 + $0x1a8] sm:$0xff] %v2788
        %2797 = vst [vmem:[#allocation2 + $0x1b0] sm:$0xff] %v2789
        %2798 = vst [vmem:[#allocation2 + $0x1b8] sm:$0xff] %v2790
        %2799 = vrot.lane.b32.xlu0 %v2427, 16
        %v2800 = vpop.permute.xlu0 %2799
        %2801 = vrot.lane.b32.xlu0 %v2429, 16
        %v2802 = vpop.permute.xlu0 %2801
        %2803 = vrot.lane.b32.xlu0 %v2431, 16
        %v2804 = vpop.permute.xlu0 %2803
        %2805 = vrot.lane.b32.xlu0 %v2433, 16
        %v2806 = vpop.permute.xlu0 %2805
        %2807 = vrot.lane.b32.xlu0 %v2428, 16
        %v2808 = vpop.permute.xlu0 %2807
        %2809 = vrot.lane.b32.xlu0 %v2430, 16
        %v2810 = vpop.permute.xlu0 %2809
        %2811 = vrot.lane.b32.xlu0 %v2432, 16
        %v2812 = vpop.permute.xlu0 %2811
        %2813 = vrot.lane.b32.xlu0 %v2434, 16
        %v2814 = vpop.permute.xlu0 %2813
        %v2815 = vsel %vm857, %v2800, %v2808
        %v2816 = vsel %vm857, %v2802, %v2810
        %v2817 = vsel %vm857, %v2804, %v2812
        %v2818 = vsel %vm857, %v2806, %v2814
        %v2819 = vsel %vm857, %v2808, %v2800
        %v2820 = vsel %vm857, %v2810, %v2802
        %v2821 = vsel %vm857, %v2812, %v2804
        %v2822 = vsel %vm857, %v2814, %v2806
        %v2823 = vld [vmem:[%s866] ss:$8 sm:$0x3]
        %v2825 = vlaneseq
        %v2826 = vshrl.u32 %v2825, 7
        %v2827 = vsub.s32 0, %v2826
        %v2828 = vrot.slane %v2823, %v2827
        %v2829 = vlaneseq
        %v2830 = vshrl.u32 %v2829, 7
        %v2831 = vsub.s32 1, %v2830
        %v2832 = vrot.slane %v2823, %v2831
        %v2835 = vmul.f32 %v2819, %v2828
        %v2836 = vmul.f32 %v2815, %v2832
        %v2837 = vmul.f32 %v2820, %v2828
        %v2838 = vmul.f32 %v2816, %v2832
        %v2839 = vmul.f32 %v2821, %v2828
        %v2840 = vmul.f32 %v2817, %v2832
        %v2841 = vmul.f32 %v2822, %v2828
        %v2842 = vmul.f32 %v2818, %v2832
        %2843 = vst [vmem:[#allocation2 + $0x1c0] sm:$0xff] %v2835
        %2844 = vst [vmem:[#allocation2 + $0x1c8] sm:$0xff] %v2836
        %2845 = vst [vmem:[#allocation2 + $0x1d0] sm:$0xff] %v2837
        %2846 = vst [vmem:[#allocation2 + $0x1d8] sm:$0xff] %v2838
        %2847 = vst [vmem:[#allocation2 + $0x1e0] sm:$0xff] %v2839
        %2848 = vst [vmem:[#allocation2 + $0x1e8] sm:$0xff] %v2840
        %2849 = vst [vmem:[#allocation2 + $0x1f0] sm:$0xff] %v2841
        %2850 = vst [vmem:[#allocation2 + $0x1f8] sm:$0xff] %v2842
        %2851 = vrot.lane.b32.xlu0 %v2427, 15
        %v2852 = vpop.permute.xlu0 %2851
        %2853 = vrot.lane.b32.xlu0 %v2429, 15
        %v2854 = vpop.permute.xlu0 %2853
        %2855 = vrot.lane.b32.xlu0 %v2431, 15
        %v2856 = vpop.permute.xlu0 %2855
        %2857 = vrot.lane.b32.xlu0 %v2433, 15
        %v2858 = vpop.permute.xlu0 %2857
        %2859 = vrot.lane.b32.xlu0 %v2428, 15
        %v2860 = vpop.permute.xlu0 %2859
        %2861 = vrot.lane.b32.xlu0 %v2430, 15
        %v2862 = vpop.permute.xlu0 %2861
        %2863 = vrot.lane.b32.xlu0 %v2432, 15
        %v2864 = vpop.permute.xlu0 %2863
        %2865 = vrot.lane.b32.xlu0 %v2434, 15
        %v2866 = vpop.permute.xlu0 %2865
        %v2867 = vsel %vm911, %v2852, %v2860
        %v2868 = vsel %vm911, %v2854, %v2862
        %v2869 = vsel %vm911, %v2856, %v2864
        %v2870 = vsel %vm911, %v2858, %v2866
        %v2871 = vsel %vm911, %v2860, %v2852
        %v2872 = vsel %vm911, %v2862, %v2854
        %v2873 = vsel %vm911, %v2864, %v2856
        %v2874 = vsel %vm911, %v2866, %v2858
        %v2875 = vld [vmem:[%s920] ss:$8 sm:$0x3]
        %v2877 = vlaneseq
        %v2878 = vshrl.u32 %v2877, 7
        %v2879 = vsub.s32 0, %v2878
        %v2880 = vrot.slane %v2875, %v2879
        %v2881 = vlaneseq
        %v2882 = vshrl.u32 %v2881, 7
        %v2883 = vsub.s32 1, %v2882
        %v2884 = vrot.slane %v2875, %v2883
        %v2887 = vmul.f32 %v2871, %v2880
        %v2888 = vmul.f32 %v2867, %v2884
        %v2889 = vmul.f32 %v2872, %v2880
        %v2890 = vmul.f32 %v2868, %v2884
        %v2891 = vmul.f32 %v2873, %v2880
        %v2892 = vmul.f32 %v2869, %v2884
        %v2893 = vmul.f32 %v2874, %v2880
        %v2894 = vmul.f32 %v2870, %v2884
        %2895 = vst [vmem:[#allocation2 + $0x200] sm:$0xff] %v2887
        %2896 = vst [vmem:[#allocation2 + $0x208] sm:$0xff] %v2888
        %2897 = vst [vmem:[#allocation2 + $0x210] sm:$0xff] %v2889
        %2898 = vst [vmem:[#allocation2 + $0x218] sm:$0xff] %v2890
        %2899 = vst [vmem:[#allocation2 + $0x220] sm:$0xff] %v2891
        %2900 = vst [vmem:[#allocation2 + $0x228] sm:$0xff] %v2892
        %2901 = vst [vmem:[#allocation2 + $0x230] sm:$0xff] %v2893
        %2902 = vst [vmem:[#allocation2 + $0x238] sm:$0xff] %v2894
        %2903 = vrot.lane.b32.xlu0 %v2427, 14
        %v2904 = vpop.permute.xlu0 %2903
        %2905 = vrot.lane.b32.xlu0 %v2429, 14
        %v2906 = vpop.permute.xlu0 %2905
        %2907 = vrot.lane.b32.xlu0 %v2431, 14
        %v2908 = vpop.permute.xlu0 %2907
        %2909 = vrot.lane.b32.xlu0 %v2433, 14
        %v2910 = vpop.permute.xlu0 %2909
        %2911 = vrot.lane.b32.xlu0 %v2428, 14
        %v2912 = vpop.permute.xlu0 %2911
        %2913 = vrot.lane.b32.xlu0 %v2430, 14
        %v2914 = vpop.permute.xlu0 %2913
        %2915 = vrot.lane.b32.xlu0 %v2432, 14
        %v2916 = vpop.permute.xlu0 %2915
        %2917 = vrot.lane.b32.xlu0 %v2434, 14
        %v2918 = vpop.permute.xlu0 %2917
        %v2919 = vsel %vm965, %v2904, %v2912
        %v2920 = vsel %vm965, %v2906, %v2914
        %v2921 = vsel %vm965, %v2908, %v2916
        %v2922 = vsel %vm965, %v2910, %v2918
        %v2923 = vsel %vm965, %v2912, %v2904
        %v2924 = vsel %vm965, %v2914, %v2906
        %v2925 = vsel %vm965, %v2916, %v2908
        %v2926 = vsel %vm965, %v2918, %v2910
        %v2927 = vld [vmem:[%s974] ss:$8 sm:$0x3]
        %v2929 = vlaneseq
        %v2930 = vshrl.u32 %v2929, 7
        %v2931 = vsub.s32 0, %v2930
        %v2932 = vrot.slane %v2927, %v2931
        %v2933 = vlaneseq
        %v2934 = vshrl.u32 %v2933, 7
        %v2935 = vsub.s32 1, %v2934
        %v2936 = vrot.slane %v2927, %v2935
        %v2939 = vmul.f32 %v2923, %v2932
        %v2940 = vmul.f32 %v2919, %v2936
        %v2941 = vmul.f32 %v2924, %v2932
        %v2942 = vmul.f32 %v2920, %v2936
        %v2943 = vmul.f32 %v2925, %v2932
        %v2944 = vmul.f32 %v2921, %v2936
        %v2945 = vmul.f32 %v2926, %v2932
        %v2946 = vmul.f32 %v2922, %v2936
        %2947 = vst [vmem:[#allocation2 + $0x240] sm:$0xff] %v2939
        %2948 = vst [vmem:[#allocation2 + $0x248] sm:$0xff] %v2940
        %2949 = vst [vmem:[#allocation2 + $0x250] sm:$0xff] %v2941
        %2950 = vst [vmem:[#allocation2 + $0x258] sm:$0xff] %v2942
        %2951 = vst [vmem:[#allocation2 + $0x260] sm:$0xff] %v2943
        %2952 = vst [vmem:[#allocation2 + $0x268] sm:$0xff] %v2944
        %2953 = vst [vmem:[#allocation2 + $0x270] sm:$0xff] %v2945
        %2954 = vst [vmem:[#allocation2 + $0x278] sm:$0xff] %v2946
        %2955 = vrot.lane.b32.xlu0 %v2427, 2
        %v2956 = vpop.permute.xlu0 %2955
        %2957 = vrot.lane.b32.xlu0 %v2429, 2
        %v2958 = vpop.permute.xlu0 %2957
        %2959 = vrot.lane.b32.xlu0 %v2431, 2
        %v2960 = vpop.permute.xlu0 %2959
        %2961 = vrot.lane.b32.xlu0 %v2433, 2
        %v2962 = vpop.permute.xlu0 %2961
        %2963 = vrot.lane.b32.xlu0 %v2428, 2
        %v2964 = vpop.permute.xlu0 %2963
        %2965 = vrot.lane.b32.xlu0 %v2430, 2
        %v2966 = vpop.permute.xlu0 %2965
        %2967 = vrot.lane.b32.xlu0 %v2432, 2
        %v2968 = vpop.permute.xlu0 %2967
        %2969 = vrot.lane.b32.xlu0 %v2434, 2
        %v2970 = vpop.permute.xlu0 %2969
        %v2971 = vsel %vm1019, %v2956, %v2964
        %v2972 = vsel %vm1019, %v2958, %v2966
        %v2973 = vsel %vm1019, %v2960, %v2968
        %v2974 = vsel %vm1019, %v2962, %v2970
        %v2975 = vsel %vm1019, %v2964, %v2956
        %v2976 = vsel %vm1019, %v2966, %v2958
        %v2977 = vsel %vm1019, %v2968, %v2960
        %v2978 = vsel %vm1019, %v2970, %v2962
        %v2979 = vld [vmem:[%s1028] ss:$8 sm:$0x3]
        %v2981 = vlaneseq
        %v2982 = vshrl.u32 %v2981, 7
        %v2983 = vsub.s32 0, %v2982
        %v2984 = vrot.slane %v2979, %v2983
        %v2985 = vlaneseq
        %v2986 = vshrl.u32 %v2985, 7
        %v2987 = vsub.s32 1, %v2986
        %v2988 = vrot.slane %v2979, %v2987
        %v2991 = vmul.f32 %v2975, %v2984
        %v2992 = vmul.f32 %v2971, %v2988
        %v2993 = vmul.f32 %v2976, %v2984
        %v2994 = vmul.f32 %v2972, %v2988
        %v2995 = vmul.f32 %v2977, %v2984
        %v2996 = vmul.f32 %v2973, %v2988
        %v2997 = vmul.f32 %v2978, %v2984
        %v2998 = vmul.f32 %v2974, %v2988
        %2999 = vst [vmem:[#allocation2 + $0x280] sm:$0xff] %v2991
        %3000 = vst [vmem:[#allocation2 + $0x288] sm:$0xff] %v2992
        %3001 = vst [vmem:[#allocation2 + $0x290] sm:$0xff] %v2993
        %3002 = vst [vmem:[#allocation2 + $0x298] sm:$0xff] %v2994
        %3003 = vst [vmem:[#allocation2 + $0x2a0] sm:$0xff] %v2995
        %3004 = vst [vmem:[#allocation2 + $0x2a8] sm:$0xff] %v2996
        %3005 = vst [vmem:[#allocation2 + $0x2b0] sm:$0xff] %v2997
        %3006 = vst [vmem:[#allocation2 + $0x2b8] sm:$0xff] %v2998
        %3007 = vrot.lane.b32.xlu0 %v2427, 1
        %v3008 = vpop.permute.xlu0 %3007
        %3009 = vrot.lane.b32.xlu0 %v2429, 1
        %v3010 = vpop.permute.xlu0 %3009
        %3011 = vrot.lane.b32.xlu0 %v2431, 1
        %v3012 = vpop.permute.xlu0 %3011
        %3013 = vrot.lane.b32.xlu0 %v2433, 1
        %v3014 = vpop.permute.xlu0 %3013
        %3015 = vrot.lane.b32.xlu0 %v2428, 1
        %v3016 = vpop.permute.xlu0 %3015
        %3017 = vrot.lane.b32.xlu0 %v2430, 1
        %v3018 = vpop.permute.xlu0 %3017
        %3019 = vrot.lane.b32.xlu0 %v2432, 1
        %v3020 = vpop.permute.xlu0 %3019
        %3021 = vrot.lane.b32.xlu0 %v2434, 1
        %v3022 = vpop.permute.xlu0 %3021
        %v3023 = vsel %vm1073, %v3008, %v3016
        %v3024 = vsel %vm1073, %v3010, %v3018
        %v3025 = vsel %vm1073, %v3012, %v3020
        %v3026 = vsel %vm1073, %v3014, %v3022
        %v3027 = vsel %vm1073, %v3016, %v3008
        %v3028 = vsel %vm1073, %v3018, %v3010
        %v3029 = vsel %vm1073, %v3020, %v3012
        %v3030 = vsel %vm1073, %v3022, %v3014
        %v3031 = vld [vmem:[%s1082] ss:$8 sm:$0x3]
        %v3033 = vlaneseq
        %v3034 = vshrl.u32 %v3033, 7
        %v3035 = vsub.s32 0, %v3034
        %v3036 = vrot.slane %v3031, %v3035
        %v3037 = vlaneseq
        %v3038 = vshrl.u32 %v3037, 7
        %v3039 = vsub.s32 1, %v3038
        %v3040 = vrot.slane %v3031, %v3039
        %v3043 = vmul.f32 %v3027, %v3036
        %v3044 = vmul.f32 %v3023, %v3040
        %v3045 = vmul.f32 %v3028, %v3036
        %v3046 = vmul.f32 %v3024, %v3040
        %v3047 = vmul.f32 %v3029, %v3036
        %v3048 = vmul.f32 %v3025, %v3040
        %v3049 = vmul.f32 %v3030, %v3036
        %v3050 = vmul.f32 %v3026, %v3040
        %3051 = vst [vmem:[#allocation2 + $0x2c0] sm:$0xff] %v3043
        %3052 = vst [vmem:[#allocation2 + $0x2c8] sm:$0xff] %v3044
        %3053 = vst [vmem:[#allocation2 + $0x2d0] sm:$0xff] %v3045
        %3054 = vst [vmem:[#allocation2 + $0x2d8] sm:$0xff] %v3046
        %3055 = vst [vmem:[#allocation2 + $0x2e0] sm:$0xff] %v3047
        %3056 = vst [vmem:[#allocation2 + $0x2e8] sm:$0xff] %v3048
        %3057 = vst [vmem:[#allocation2 + $0x2f0] sm:$0xff] %v3049
        %3058 = vst [vmem:[#allocation2 + $0x2f8] sm:$0xff] %v3050
        %v3059 = vld [vmem:[%s1111] ss:$8 sm:$0x3]
        %v3061 = vlaneseq
        %v3062 = vshrl.u32 %v3061, 7
        %v3063 = vsub.s32 0, %v3062
        %v3064 = vrot.slane %v3059, %v3063
        %v3065 = vlaneseq
        %v3066 = vshrl.u32 %v3065, 7
        %v3067 = vsub.s32 1, %v3066
        %v3068 = vrot.slane %v3059, %v3067
        %v3071 = vmul.f32 %v2427, %v3064
        %v3072 = vmul.f32 %v2428, %v3068
        %v3073 = vmul.f32 %v2429, %v3064
        %v3074 = vmul.f32 %v2430, %v3068
        %v3075 = vmul.f32 %v2431, %v3064
        %v3076 = vmul.f32 %v2432, %v3068
        %v3077 = vmul.f32 %v2433, %v3064
        %v3078 = vmul.f32 %v2434, %v3068
        %3079 = vst [vmem:[#allocation2 + $0x300] sm:$0xff] %v3071
        %3080 = vst [vmem:[#allocation2 + $0x308] sm:$0xff] %v3072
        %3081 = vst [vmem:[#allocation2 + $0x310] sm:$0xff] %v3073
        %3082 = vst [vmem:[#allocation2 + $0x318] sm:$0xff] %v3074
        %3083 = vst [vmem:[#allocation2 + $0x320] sm:$0xff] %v3075
        %3084 = vst [vmem:[#allocation2 + $0x328] sm:$0xff] %v3076
        %3085 = vst [vmem:[#allocation2 + $0x330] sm:$0xff] %v3077
        %3086 = vst [vmem:[#allocation2 + $0x338] sm:$0xff] %v3078
        %3087 = vrot.lane.b32.xlu0 %v2427, 127
        %v3088 = vpop.permute.xlu0 %3087
        %3089 = vrot.lane.b32.xlu0 %v2429, 127
        %v3090 = vpop.permute.xlu0 %3089
        %3091 = vrot.lane.b32.xlu0 %v2431, 127
        %v3092 = vpop.permute.xlu0 %3091
        %3093 = vrot.lane.b32.xlu0 %v2433, 127
        %v3094 = vpop.permute.xlu0 %3093
        %3095 = vrot.lane.b32.xlu0 %v2428, 127
        %v3096 = vpop.permute.xlu0 %3095
        %3097 = vrot.lane.b32.xlu0 %v2430, 127
        %v3098 = vpop.permute.xlu0 %3097
        %3099 = vrot.lane.b32.xlu0 %v2432, 127
        %v3100 = vpop.permute.xlu0 %3099
        %3101 = vrot.lane.b32.xlu0 %v2434, 127
        %v3102 = vpop.permute.xlu0 %3101
        %v3103 = vsel %vm1156, %v3088, %v3096
        %v3104 = vsel %vm1156, %v3090, %v3098
        %v3105 = vsel %vm1156, %v3092, %v3100
        %v3106 = vsel %vm1156, %v3094, %v3102
        %v3107 = vsel %vm1156, %v3096, %v3088
        %v3108 = vsel %vm1156, %v3098, %v3090
        %v3109 = vsel %vm1156, %v3100, %v3092
        %v3110 = vsel %vm1156, %v3102, %v3094
        %v3111 = vld [vmem:[%s1165] ss:$8 sm:$0x3]
        %v3113 = vlaneseq
        %v3114 = vshrl.u32 %v3113, 7
        %v3115 = vsub.s32 0, %v3114
        %v3116 = vrot.slane %v3111, %v3115
        %v3117 = vlaneseq
        %v3118 = vshrl.u32 %v3117, 7
        %v3119 = vsub.s32 1, %v3118
        %v3120 = vrot.slane %v3111, %v3119
        %v3123 = vmul.f32 %v3103, %v3116
        %v3124 = vmul.f32 %v3107, %v3120
        %v3125 = vmul.f32 %v3104, %v3116
        %v3126 = vmul.f32 %v3108, %v3120
        %v3127 = vmul.f32 %v3105, %v3116
        %v3128 = vmul.f32 %v3109, %v3120
        %v3129 = vmul.f32 %v3106, %v3116
        %v3130 = vmul.f32 %v3110, %v3120
        %3131 = vst [vmem:[#allocation2 + $0x340] sm:$0xff] %v3123
        %3132 = vst [vmem:[#allocation2 + $0x348] sm:$0xff] %v3124
        %3133 = vst [vmem:[#allocation2 + $0x350] sm:$0xff] %v3125
        %3134 = vst [vmem:[#allocation2 + $0x358] sm:$0xff] %v3126
        %3135 = vst [vmem:[#allocation2 + $0x360] sm:$0xff] %v3127
        %3136 = vst [vmem:[#allocation2 + $0x368] sm:$0xff] %v3128
        %3137 = vst [vmem:[#allocation2 + $0x370] sm:$0xff] %v3129
        %3138 = vst [vmem:[#allocation2 + $0x378] sm:$0xff] %v3130
        %3139 = vrot.lane.b32.xlu0 %v2427, 126
        %v3140 = vpop.permute.xlu0 %3139
        %3141 = vrot.lane.b32.xlu0 %v2429, 126
        %v3142 = vpop.permute.xlu0 %3141
        %3143 = vrot.lane.b32.xlu0 %v2431, 126
        %v3144 = vpop.permute.xlu0 %3143
        %3145 = vrot.lane.b32.xlu0 %v2433, 126
        %v3146 = vpop.permute.xlu0 %3145
        %3147 = vrot.lane.b32.xlu0 %v2428, 126
        %v3148 = vpop.permute.xlu0 %3147
        %3149 = vrot.lane.b32.xlu0 %v2430, 126
        %v3150 = vpop.permute.xlu0 %3149
        %3151 = vrot.lane.b32.xlu0 %v2432, 126
        %v3152 = vpop.permute.xlu0 %3151
        %3153 = vrot.lane.b32.xlu0 %v2434, 126
        %v3154 = vpop.permute.xlu0 %3153
        %v3155 = vsel %vm1210, %v3140, %v3148
        %v3156 = vsel %vm1210, %v3142, %v3150
        %v3157 = vsel %vm1210, %v3144, %v3152
        %v3158 = vsel %vm1210, %v3146, %v3154
        %v3159 = vsel %vm1210, %v3148, %v3140
        %v3160 = vsel %vm1210, %v3150, %v3142
        %v3161 = vsel %vm1210, %v3152, %v3144
        %v3162 = vsel %vm1210, %v3154, %v3146
        %v3163 = vld [vmem:[%s1219] ss:$8 sm:$0x3]
        %v3165 = vlaneseq
        %v3166 = vshrl.u32 %v3165, 7
        %v3167 = vsub.s32 0, %v3166
        %v3168 = vrot.slane %v3163, %v3167
        %v3169 = vlaneseq
        %v3170 = vshrl.u32 %v3169, 7
        %v3171 = vsub.s32 1, %v3170
        %v3172 = vrot.slane %v3163, %v3171
        %v3175 = vmul.f32 %v3155, %v3168
        %v3176 = vmul.f32 %v3159, %v3172
        %v3177 = vmul.f32 %v3156, %v3168
        %v3178 = vmul.f32 %v3160, %v3172
        %v3179 = vmul.f32 %v3157, %v3168
        %v3180 = vmul.f32 %v3161, %v3172
        %v3181 = vmul.f32 %v3158, %v3168
        %v3182 = vmul.f32 %v3162, %v3172
        %3183 = vst [vmem:[#allocation2 + $0x380] sm:$0xff] %v3175
        %3184 = vst [vmem:[#allocation2 + $0x388] sm:$0xff] %v3176
        %3185 = vst [vmem:[#allocation2 + $0x390] sm:$0xff] %v3177
        %3186 = vst [vmem:[#allocation2 + $0x398] sm:$0xff] %v3178
        %3187 = vst [vmem:[#allocation2 + $0x3a0] sm:$0xff] %v3179
        %3188 = vst [vmem:[#allocation2 + $0x3a8] sm:$0xff] %v3180
        %3189 = vst [vmem:[#allocation2 + $0x3b0] sm:$0xff] %v3181
        %3190 = vst [vmem:[#allocation2 + $0x3b8] sm:$0xff] %v3182
        %3191 = vrot.lane.b32.xlu0 %v2427, 114
        %v3192 = vpop.permute.xlu0 %3191
        %3193 = vrot.lane.b32.xlu0 %v2429, 114
        %v3194 = vpop.permute.xlu0 %3193
        %3195 = vrot.lane.b32.xlu0 %v2431, 114
        %v3196 = vpop.permute.xlu0 %3195
        %3197 = vrot.lane.b32.xlu0 %v2433, 114
        %v3198 = vpop.permute.xlu0 %3197
        %3199 = vrot.lane.b32.xlu0 %v2428, 114
        %v3200 = vpop.permute.xlu0 %3199
        %3201 = vrot.lane.b32.xlu0 %v2430, 114
        %v3202 = vpop.permute.xlu0 %3201
        %3203 = vrot.lane.b32.xlu0 %v2432, 114
        %v3204 = vpop.permute.xlu0 %3203
        %3205 = vrot.lane.b32.xlu0 %v2434, 114
        %v3206 = vpop.permute.xlu0 %3205
        %v3207 = vsel %vm1264, %v3192, %v3200
        %v3208 = vsel %vm1264, %v3194, %v3202
        %v3209 = vsel %vm1264, %v3196, %v3204
        %v3210 = vsel %vm1264, %v3198, %v3206
        %v3211 = vsel %vm1264, %v3200, %v3192
        %v3212 = vsel %vm1264, %v3202, %v3194
        %v3213 = vsel %vm1264, %v3204, %v3196
        %v3214 = vsel %vm1264, %v3206, %v3198
        %v3215 = vld [vmem:[%s1273] ss:$8 sm:$0x3]
        %v3217 = vlaneseq
        %v3218 = vshrl.u32 %v3217, 7
        %v3219 = vsub.s32 0, %v3218
        %v3220 = vrot.slane %v3215, %v3219
        %v3221 = vlaneseq
        %v3222 = vshrl.u32 %v3221, 7
        %v3223 = vsub.s32 1, %v3222
        %v3224 = vrot.slane %v3215, %v3223
        %v3227 = vmul.f32 %v3207, %v3220
        %v3228 = vmul.f32 %v3211, %v3224
        %v3229 = vmul.f32 %v3208, %v3220
        %v3230 = vmul.f32 %v3212, %v3224
        %v3231 = vmul.f32 %v3209, %v3220
        %v3232 = vmul.f32 %v3213, %v3224
        %v3233 = vmul.f32 %v3210, %v3220
        %v3234 = vmul.f32 %v3214, %v3224
        %3235 = vst [vmem:[#allocation2 + $0x3c0] sm:$0xff] %v3227
        %3236 = vst [vmem:[#allocation2 + $0x3c8] sm:$0xff] %v3228
        %3237 = vst [vmem:[#allocation2 + $0x3d0] sm:$0xff] %v3229
        %3238 = vst [vmem:[#allocation2 + $0x3d8] sm:$0xff] %v3230
        %3239 = vst [vmem:[#allocation2 + $0x3e0] sm:$0xff] %v3231
        %3240 = vst [vmem:[#allocation2 + $0x3e8] sm:$0xff] %v3232
        %3241 = vst [vmem:[#allocation2 + $0x3f0] sm:$0xff] %v3233
        %3242 = vst [vmem:[#allocation2 + $0x3f8] sm:$0xff] %v3234
        %3243 = vrot.lane.b32.xlu0 %v2427, 113
        %v3244 = vpop.permute.xlu0 %3243
        %3245 = vrot.lane.b32.xlu0 %v2429, 113
        %v3246 = vpop.permute.xlu0 %3245
        %3247 = vrot.lane.b32.xlu0 %v2431, 113
        %v3248 = vpop.permute.xlu0 %3247
        %3249 = vrot.lane.b32.xlu0 %v2433, 113
        %v3250 = vpop.permute.xlu0 %3249
        %3251 = vrot.lane.b32.xlu0 %v2428, 113
        %v3252 = vpop.permute.xlu0 %3251
        %3253 = vrot.lane.b32.xlu0 %v2430, 113
        %v3254 = vpop.permute.xlu0 %3253
        %3255 = vrot.lane.b32.xlu0 %v2432, 113
        %v3256 = vpop.permute.xlu0 %3255
        %3257 = vrot.lane.b32.xlu0 %v2434, 113
        %v3258 = vpop.permute.xlu0 %3257
        %v3259 = vsel %vm1318, %v3244, %v3252
        %v3260 = vsel %vm1318, %v3246, %v3254
        %v3261 = vsel %vm1318, %v3248, %v3256
        %v3262 = vsel %vm1318, %v3250, %v3258
        %v3263 = vsel %vm1318, %v3252, %v3244
        %v3264 = vsel %vm1318, %v3254, %v3246
        %v3265 = vsel %vm1318, %v3256, %v3248
        %v3266 = vsel %vm1318, %v3258, %v3250
        %v3267 = vld [vmem:[%s1327] ss:$8 sm:$0x3]
        %v3269 = vlaneseq
        %v3270 = vshrl.u32 %v3269, 7
        %v3271 = vsub.s32 0, %v3270
        %v3272 = vrot.slane %v3267, %v3271
        %v3273 = vlaneseq
        %v3274 = vshrl.u32 %v3273, 7
        %v3275 = vsub.s32 1, %v3274
        %v3276 = vrot.slane %v3267, %v3275
        %v3279 = vmul.f32 %v3259, %v3272
        %v3280 = vmul.f32 %v3263, %v3276
        %v3281 = vmul.f32 %v3260, %v3272
        %v3282 = vmul.f32 %v3264, %v3276
        %v3283 = vmul.f32 %v3261, %v3272
        %v3284 = vmul.f32 %v3265, %v3276
        %v3285 = vmul.f32 %v3262, %v3272
        %v3286 = vmul.f32 %v3266, %v3276
        %3287 = vst [vmem:[#allocation2 + $0x400] sm:$0xff] %v3279
        %3288 = vst [vmem:[#allocation2 + $0x408] sm:$0xff] %v3280
        %3289 = vst [vmem:[#allocation2 + $0x410] sm:$0xff] %v3281
        %3290 = vst [vmem:[#allocation2 + $0x418] sm:$0xff] %v3282
        %3291 = vst [vmem:[#allocation2 + $0x420] sm:$0xff] %v3283
        %3292 = vst [vmem:[#allocation2 + $0x428] sm:$0xff] %v3284
        %3293 = vst [vmem:[#allocation2 + $0x430] sm:$0xff] %v3285
        %3294 = vst [vmem:[#allocation2 + $0x438] sm:$0xff] %v3286
        %3295 = vrot.lane.b32.xlu0 %v2427, 112
        %v3296 = vpop.permute.xlu0 %3295
        %3297 = vrot.lane.b32.xlu0 %v2429, 112
        %v3298 = vpop.permute.xlu0 %3297
        %3299 = vrot.lane.b32.xlu0 %v2431, 112
        %v3300 = vpop.permute.xlu0 %3299
        %3301 = vrot.lane.b32.xlu0 %v2433, 112
        %v3302 = vpop.permute.xlu0 %3301
        %3303 = vrot.lane.b32.xlu0 %v2428, 112
        %v3304 = vpop.permute.xlu0 %3303
        %3305 = vrot.lane.b32.xlu0 %v2430, 112
        %v3306 = vpop.permute.xlu0 %3305
        %3307 = vrot.lane.b32.xlu0 %v2432, 112
        %v3308 = vpop.permute.xlu0 %3307
        %3309 = vrot.lane.b32.xlu0 %v2434, 112
        %v3310 = vpop.permute.xlu0 %3309
        %v3311 = vsel %vm1372, %v3296, %v3304
        %v3312 = vsel %vm1372, %v3298, %v3306
        %v3313 = vsel %vm1372, %v3300, %v3308
        %v3314 = vsel %vm1372, %v3302, %v3310
        %v3315 = vsel %vm1372, %v3304, %v3296
        %v3316 = vsel %vm1372, %v3306, %v3298
        %v3317 = vsel %vm1372, %v3308, %v3300
        %v3318 = vsel %vm1372, %v3310, %v3302
        %v3319 = vld [vmem:[%s1381] ss:$8 sm:$0x3]
        %v3321 = vlaneseq
        %v3322 = vshrl.u32 %v3321, 7
        %v3323 = vsub.s32 0, %v3322
        %v3324 = vrot.slane %v3319, %v3323
        %v3325 = vlaneseq
        %v3326 = vshrl.u32 %v3325, 7
        %v3327 = vsub.s32 1, %v3326
        %v3328 = vrot.slane %v3319, %v3327
        %v3331 = vmul.f32 %v3311, %v3324
        %v3332 = vmul.f32 %v3315, %v3328
        %v3333 = vmul.f32 %v3312, %v3324
        %v3334 = vmul.f32 %v3316, %v3328
        %v3335 = vmul.f32 %v3313, %v3324
        %v3336 = vmul.f32 %v3317, %v3328
        %v3337 = vmul.f32 %v3314, %v3324
        %v3338 = vmul.f32 %v3318, %v3328
        %3339 = vst [vmem:[#allocation2 + $0x440] sm:$0xff] %v3331
        %3340 = vst [vmem:[#allocation2 + $0x448] sm:$0xff] %v3332
        %3341 = vst [vmem:[#allocation2 + $0x450] sm:$0xff] %v3333
        %3342 = vst [vmem:[#allocation2 + $0x458] sm:$0xff] %v3334
        %3343 = vst [vmem:[#allocation2 + $0x460] sm:$0xff] %v3335
        %3344 = vst [vmem:[#allocation2 + $0x468] sm:$0xff] %v3336
        %3345 = vst [vmem:[#allocation2 + $0x470] sm:$0xff] %v3337
        %3346 = vst [vmem:[#allocation2 + $0x478] sm:$0xff] %v3338
        %3347 = vrot.lane.b32.xlu0 %v2427, 111
        %v3348 = vpop.permute.xlu0 %3347
        %3349 = vrot.lane.b32.xlu0 %v2429, 111
        %v3350 = vpop.permute.xlu0 %3349
        %3351 = vrot.lane.b32.xlu0 %v2431, 111
        %v3352 = vpop.permute.xlu0 %3351
        %3353 = vrot.lane.b32.xlu0 %v2433, 111
        %v3354 = vpop.permute.xlu0 %3353
        %3355 = vrot.lane.b32.xlu0 %v2428, 111
        %v3356 = vpop.permute.xlu0 %3355
        %3357 = vrot.lane.b32.xlu0 %v2430, 111
        %v3358 = vpop.permute.xlu0 %3357
        %3359 = vrot.lane.b32.xlu0 %v2432, 111
        %v3360 = vpop.permute.xlu0 %3359
        %3361 = vrot.lane.b32.xlu0 %v2434, 111
        %v3362 = vpop.permute.xlu0 %3361
        %v3363 = vsel %vm1426, %v3348, %v3356
        %v3364 = vsel %vm1426, %v3350, %v3358
        %v3365 = vsel %vm1426, %v3352, %v3360
        %v3366 = vsel %vm1426, %v3354, %v3362
        %v3367 = vsel %vm1426, %v3356, %v3348
        %v3368 = vsel %vm1426, %v3358, %v3350
        %v3369 = vsel %vm1426, %v3360, %v3352
        %v3370 = vsel %vm1426, %v3362, %v3354
        %v3371 = vld [vmem:[%s1435] ss:$8 sm:$0x3]
        %v3373 = vlaneseq
        %v3374 = vshrl.u32 %v3373, 7
        %v3375 = vsub.s32 0, %v3374
        %v3376 = vrot.slane %v3371, %v3375
        %v3377 = vlaneseq
        %v3378 = vshrl.u32 %v3377, 7
        %v3379 = vsub.s32 1, %v3378
        %v3380 = vrot.slane %v3371, %v3379
        %v3383 = vmul.f32 %v3363, %v3376
        %v3384 = vmul.f32 %v3367, %v3380
        %v3385 = vmul.f32 %v3364, %v3376
        %v3386 = vmul.f32 %v3368, %v3380
        %v3387 = vmul.f32 %v3365, %v3376
        %v3388 = vmul.f32 %v3369, %v3380
        %v3389 = vmul.f32 %v3366, %v3376
        %v3390 = vmul.f32 %v3370, %v3380
        %3391 = vst [vmem:[#allocation2 + $0x480] sm:$0xff] %v3383
        %3392 = vst [vmem:[#allocation2 + $0x488] sm:$0xff] %v3384
        %3393 = vst [vmem:[#allocation2 + $0x490] sm:$0xff] %v3385
        %3394 = vst [vmem:[#allocation2 + $0x498] sm:$0xff] %v3386
        %3395 = vst [vmem:[#allocation2 + $0x4a0] sm:$0xff] %v3387
        %3396 = vst [vmem:[#allocation2 + $0x4a8] sm:$0xff] %v3388
        %3397 = vst [vmem:[#allocation2 + $0x4b0] sm:$0xff] %v3389
        %3398 = vst [vmem:[#allocation2 + $0x4b8] sm:$0xff] %v3390
        %3399 = vrot.lane.b32.xlu0 %v2427, 110
        %v3400 = vpop.permute.xlu0 %3399
        %3401 = vrot.lane.b32.xlu0 %v2429, 110
        %v3402 = vpop.permute.xlu0 %3401
        %3403 = vrot.lane.b32.xlu0 %v2431, 110
        %v3404 = vpop.permute.xlu0 %3403
        %3405 = vrot.lane.b32.xlu0 %v2433, 110
        %v3406 = vpop.permute.xlu0 %3405
        %3407 = vrot.lane.b32.xlu0 %v2428, 110
        %v3408 = vpop.permute.xlu0 %3407
        %3409 = vrot.lane.b32.xlu0 %v2430, 110
        %v3410 = vpop.permute.xlu0 %3409
        %3411 = vrot.lane.b32.xlu0 %v2432, 110
        %v3412 = vpop.permute.xlu0 %3411
        %3413 = vrot.lane.b32.xlu0 %v2434, 110
        %v3414 = vpop.permute.xlu0 %3413
        %v3415 = vsel %vm1480, %v3400, %v3408
        %v3416 = vsel %vm1480, %v3402, %v3410
        %v3417 = vsel %vm1480, %v3404, %v3412
        %v3418 = vsel %vm1480, %v3406, %v3414
        %v3419 = vsel %vm1480, %v3408, %v3400
        %v3420 = vsel %vm1480, %v3410, %v3402
        %v3421 = vsel %vm1480, %v3412, %v3404
        %v3422 = vsel %vm1480, %v3414, %v3406
        %v3423 = vld [vmem:[%s1489] ss:$8 sm:$0x3]
        %v3425 = vlaneseq
        %v3426 = vshrl.u32 %v3425, 7
        %v3427 = vsub.s32 0, %v3426
        %v3428 = vrot.slane %v3423, %v3427
        %v3429 = vlaneseq
        %v3430 = vshrl.u32 %v3429, 7
        %v3431 = vsub.s32 1, %v3430
        %v3432 = vrot.slane %v3423, %v3431
        %v3435 = vmul.f32 %v3415, %v3428
        %v3436 = vmul.f32 %v3419, %v3432
        %v3437 = vmul.f32 %v3416, %v3428
        %v3438 = vmul.f32 %v3420, %v3432
        %v3439 = vmul.f32 %v3417, %v3428
        %v3440 = vmul.f32 %v3421, %v3432
        %v3441 = vmul.f32 %v3418, %v3428
        %v3442 = vmul.f32 %v3422, %v3432
        %3443 = vst [vmem:[#allocation2 + $0x4c0] sm:$0xff] %v3435
        %3444 = vst [vmem:[#allocation2 + $0x4c8] sm:$0xff] %v3436
        %3445 = vst [vmem:[#allocation2 + $0x4d0] sm:$0xff] %v3437
        %3446 = vst [vmem:[#allocation2 + $0x4d8] sm:$0xff] %v3438
        %3447 = vst [vmem:[#allocation2 + $0x4e0] sm:$0xff] %v3439
        %3448 = vst [vmem:[#allocation2 + $0x4e8] sm:$0xff] %v3440
        %3449 = vst [vmem:[#allocation2 + $0x4f0] sm:$0xff] %v3441
        %3450 = vst [vmem:[#allocation2 + $0x4f8] sm:$0xff] %v3442
        %3451 = vrot.lane.b32.xlu0 %v2427, 98
        %v3452 = vpop.permute.xlu0 %3451
        %3453 = vrot.lane.b32.xlu0 %v2429, 98
        %v3454 = vpop.permute.xlu0 %3453
        %3455 = vrot.lane.b32.xlu0 %v2431, 98
        %v3456 = vpop.permute.xlu0 %3455
        %3457 = vrot.lane.b32.xlu0 %v2433, 98
        %v3458 = vpop.permute.xlu0 %3457
        %3459 = vrot.lane.b32.xlu0 %v2428, 98
        %v3460 = vpop.permute.xlu0 %3459
        %3461 = vrot.lane.b32.xlu0 %v2430, 98
        %v3462 = vpop.permute.xlu0 %3461
        %3463 = vrot.lane.b32.xlu0 %v2432, 98
        %v3464 = vpop.permute.xlu0 %3463
        %3465 = vrot.lane.b32.xlu0 %v2434, 98
        %v3466 = vpop.permute.xlu0 %3465
        %v3467 = vsel %vm1534, %v3452, %v3460
        %v3468 = vsel %vm1534, %v3454, %v3462
        %v3469 = vsel %vm1534, %v3456, %v3464
        %v3470 = vsel %vm1534, %v3458, %v3466
        %v3471 = vsel %vm1534, %v3460, %v3452
        %v3472 = vsel %vm1534, %v3462, %v3454
        %v3473 = vsel %vm1534, %v3464, %v3456
        %v3474 = vsel %vm1534, %v3466, %v3458
        %v3475 = vld [vmem:[%s1543] ss:$8 sm:$0x3]
        %v3477 = vlaneseq
        %v3478 = vshrl.u32 %v3477, 7
        %v3479 = vsub.s32 0, %v3478
        %v3480 = vrot.slane %v3475, %v3479
        %v3481 = vlaneseq
        %v3482 = vshrl.u32 %v3481, 7
        %v3483 = vsub.s32 1, %v3482
        %v3484 = vrot.slane %v3475, %v3483
        %v3487 = vmul.f32 %v3467, %v3480
        %v3488 = vmul.f32 %v3471, %v3484
        %v3489 = vmul.f32 %v3468, %v3480
        %v3490 = vmul.f32 %v3472, %v3484
        %v3491 = vmul.f32 %v3469, %v3480
        %v3492 = vmul.f32 %v3473, %v3484
        %v3493 = vmul.f32 %v3470, %v3480
        %v3494 = vmul.f32 %v3474, %v3484
        %3495 = vst [vmem:[#allocation2 + $0x500] sm:$0xff] %v3487
        %3496 = vst [vmem:[#allocation2 + $0x508] sm:$0xff] %v3488
        %3497 = vst [vmem:[#allocation2 + $0x510] sm:$0xff] %v3489
        %3498 = vst [vmem:[#allocation2 + $0x518] sm:$0xff] %v3490
        %3499 = vst [vmem:[#allocation2 + $0x520] sm:$0xff] %v3491
        %3500 = vst [vmem:[#allocation2 + $0x528] sm:$0xff] %v3492
        %3501 = vst [vmem:[#allocation2 + $0x530] sm:$0xff] %v3493
        %3502 = vst [vmem:[#allocation2 + $0x538] sm:$0xff] %v3494
        %3503 = vrot.lane.b32.xlu0 %v2427, 97
        %v3504 = vpop.permute.xlu0 %3503
        %3505 = vrot.lane.b32.xlu0 %v2429, 97
        %v3506 = vpop.permute.xlu0 %3505
        %3507 = vrot.lane.b32.xlu0 %v2431, 97
        %v3508 = vpop.permute.xlu0 %3507
        %3509 = vrot.lane.b32.xlu0 %v2433, 97
        %v3510 = vpop.permute.xlu0 %3509
        %3511 = vrot.lane.b32.xlu0 %v2428, 97
        %v3512 = vpop.permute.xlu0 %3511
        %3513 = vrot.lane.b32.xlu0 %v2430, 97
        %v3514 = vpop.permute.xlu0 %3513
        %3515 = vrot.lane.b32.xlu0 %v2432, 97
        %v3516 = vpop.permute.xlu0 %3515
        %3517 = vrot.lane.b32.xlu0 %v2434, 97
        %v3518 = vpop.permute.xlu0 %3517
        %v3519 = vsel %vm1588, %v3504, %v3512
        %v3520 = vsel %vm1588, %v3506, %v3514
        %v3521 = vsel %vm1588, %v3508, %v3516
        %v3522 = vsel %vm1588, %v3510, %v3518
        %v3523 = vsel %vm1588, %v3512, %v3504
        %v3524 = vsel %vm1588, %v3514, %v3506
        %v3525 = vsel %vm1588, %v3516, %v3508
        %v3526 = vsel %vm1588, %v3518, %v3510
        %v3527 = vld [vmem:[%s1597] ss:$8 sm:$0x3]
        %v3529 = vlaneseq
        %v3530 = vshrl.u32 %v3529, 7
        %v3531 = vsub.s32 0, %v3530
        %v3532 = vrot.slane %v3527, %v3531
        %v3533 = vlaneseq
        %v3534 = vshrl.u32 %v3533, 7
        %v3535 = vsub.s32 1, %v3534
        %v3536 = vrot.slane %v3527, %v3535
        %v3539 = vmul.f32 %v3519, %v3532
        %v3540 = vmul.f32 %v3523, %v3536
        %v3541 = vmul.f32 %v3520, %v3532
        %v3542 = vmul.f32 %v3524, %v3536
        %v3543 = vmul.f32 %v3521, %v3532
        %v3544 = vmul.f32 %v3525, %v3536
        %v3545 = vmul.f32 %v3522, %v3532
        %v3546 = vmul.f32 %v3526, %v3536
        %3547 = vst [vmem:[#allocation2 + $0x540] sm:$0xff] %v3539
        %3548 = vst [vmem:[#allocation2 + $0x548] sm:$0xff] %v3540
        %3549 = vst [vmem:[#allocation2 + $0x550] sm:$0xff] %v3541
        %3550 = vst [vmem:[#allocation2 + $0x558] sm:$0xff] %v3542
        %3551 = vst [vmem:[#allocation2 + $0x560] sm:$0xff] %v3543
        %3552 = vst [vmem:[#allocation2 + $0x568] sm:$0xff] %v3544
        %3553 = vst [vmem:[#allocation2 + $0x570] sm:$0xff] %v3545
        %3554 = vst [vmem:[#allocation2 + $0x578] sm:$0xff] %v3546
        %3555 = vrot.lane.b32.xlu0 %v2427, 96
        %v3556 = vpop.permute.xlu0 %3555
        %3557 = vrot.lane.b32.xlu0 %v2429, 96
        %v3558 = vpop.permute.xlu0 %3557
        %3559 = vrot.lane.b32.xlu0 %v2431, 96
        %v3560 = vpop.permute.xlu0 %3559
        %3561 = vrot.lane.b32.xlu0 %v2433, 96
        %v3562 = vpop.permute.xlu0 %3561
        %3563 = vrot.lane.b32.xlu0 %v2428, 96
        %v3564 = vpop.permute.xlu0 %3563
        %3565 = vrot.lane.b32.xlu0 %v2430, 96
        %v3566 = vpop.permute.xlu0 %3565
        %3567 = vrot.lane.b32.xlu0 %v2432, 96
        %v3568 = vpop.permute.xlu0 %3567
        %3569 = vrot.lane.b32.xlu0 %v2434, 96
        %v3570 = vpop.permute.xlu0 %3569
        %v3571 = vsel %vm1642, %v3556, %v3564
        %v3572 = vsel %vm1642, %v3558, %v3566
        %v3573 = vsel %vm1642, %v3560, %v3568
        %v3574 = vsel %vm1642, %v3562, %v3570
        %v3575 = vsel %vm1642, %v3564, %v3556
        %v3576 = vsel %vm1642, %v3566, %v3558
        %v3577 = vsel %vm1642, %v3568, %v3560
        %v3578 = vsel %vm1642, %v3570, %v3562
        %v3579 = vld [vmem:[%s1651] ss:$8 sm:$0x3]
        %v3581 = vlaneseq
        %v3582 = vshrl.u32 %v3581, 7
        %v3583 = vsub.s32 0, %v3582
        %v3584 = vrot.slane %v3579, %v3583
        %v3585 = vlaneseq
        %v3586 = vshrl.u32 %v3585, 7
        %v3587 = vsub.s32 1, %v3586
        %v3588 = vrot.slane %v3579, %v3587
        %v3591 = vmul.f32 %v3571, %v3584
        %v3592 = vmul.f32 %v3575, %v3588
        %v3593 = vmul.f32 %v3572, %v3584
        %v3594 = vmul.f32 %v3576, %v3588
        %v3595 = vmul.f32 %v3573, %v3584
        %v3596 = vmul.f32 %v3577, %v3588
        %v3597 = vmul.f32 %v3574, %v3584
        %v3598 = vmul.f32 %v3578, %v3588
        %3599 = vst [vmem:[#allocation2 + $0x580] sm:$0xff] %v3591
        %3600 = vst [vmem:[#allocation2 + $0x588] sm:$0xff] %v3592
        %3601 = vst [vmem:[#allocation2 + $0x590] sm:$0xff] %v3593
        %3602 = vst [vmem:[#allocation2 + $0x598] sm:$0xff] %v3594
        %3603 = vst [vmem:[#allocation2 + $0x5a0] sm:$0xff] %v3595
        %3604 = vst [vmem:[#allocation2 + $0x5a8] sm:$0xff] %v3596
        %3605 = vst [vmem:[#allocation2 + $0x5b0] sm:$0xff] %v3597
        %3606 = vst [vmem:[#allocation2 + $0x5b8] sm:$0xff] %v3598
        %3607 = vrot.lane.b32.xlu0 %v2427, 95
        %v3608 = vpop.permute.xlu0 %3607
        %3609 = vrot.lane.b32.xlu0 %v2429, 95
        %v3610 = vpop.permute.xlu0 %3609
        %3611 = vrot.lane.b32.xlu0 %v2431, 95
        %v3612 = vpop.permute.xlu0 %3611
        %3613 = vrot.lane.b32.xlu0 %v2433, 95
        %v3614 = vpop.permute.xlu0 %3613
        %3615 = vrot.lane.b32.xlu0 %v2428, 95
        %v3616 = vpop.permute.xlu0 %3615
        %3617 = vrot.lane.b32.xlu0 %v2430, 95
        %v3618 = vpop.permute.xlu0 %3617
        %3619 = vrot.lane.b32.xlu0 %v2432, 95
        %v3620 = vpop.permute.xlu0 %3619
        %3621 = vrot.lane.b32.xlu0 %v2434, 95
        %v3622 = vpop.permute.xlu0 %3621
        %v3623 = vsel %vm1696, %v3608, %v3616
        %v3624 = vsel %vm1696, %v3610, %v3618
        %v3625 = vsel %vm1696, %v3612, %v3620
        %v3626 = vsel %vm1696, %v3614, %v3622
        %v3627 = vsel %vm1696, %v3616, %v3608
        %v3628 = vsel %vm1696, %v3618, %v3610
        %v3629 = vsel %vm1696, %v3620, %v3612
        %v3630 = vsel %vm1696, %v3622, %v3614
        %v3631 = vld [vmem:[%s1705] ss:$8 sm:$0x3]
        %v3633 = vlaneseq
        %v3634 = vshrl.u32 %v3633, 7
        %v3635 = vsub.s32 0, %v3634
        %v3636 = vrot.slane %v3631, %v3635
        %v3637 = vlaneseq
        %v3638 = vshrl.u32 %v3637, 7
        %v3639 = vsub.s32 1, %v3638
        %v3640 = vrot.slane %v3631, %v3639
        %v3643 = vmul.f32 %v3623, %v3636
        %v3644 = vmul.f32 %v3627, %v3640
        %v3645 = vmul.f32 %v3624, %v3636
        %v3646 = vmul.f32 %v3628, %v3640
        %v3647 = vmul.f32 %v3625, %v3636
        %v3648 = vmul.f32 %v3629, %v3640
        %v3649 = vmul.f32 %v3626, %v3636
        %v3650 = vmul.f32 %v3630, %v3640
        %3651 = vst [vmem:[#allocation2 + $0x5c0] sm:$0xff] %v3643
        %3652 = vst [vmem:[#allocation2 + $0x5c8] sm:$0xff] %v3644
        %3653 = vst [vmem:[#allocation2 + $0x5d0] sm:$0xff] %v3645
        %3654 = vst [vmem:[#allocation2 + $0x5d8] sm:$0xff] %v3646
        %3655 = vst [vmem:[#allocation2 + $0x5e0] sm:$0xff] %v3647
        %3656 = vst [vmem:[#allocation2 + $0x5e8] sm:$0xff] %v3648
        %3657 = vst [vmem:[#allocation2 + $0x5f0] sm:$0xff] %v3649
        %3658 = vst [vmem:[#allocation2 + $0x5f8] sm:$0xff] %v3650
        %3659 = vrot.lane.b32.xlu0 %v2427, 94
        %v3660 = vpop.permute.xlu0 %3659
        %3661 = vrot.lane.b32.xlu0 %v2429, 94
        %v3662 = vpop.permute.xlu0 %3661
        %3663 = vrot.lane.b32.xlu0 %v2431, 94
        %v3664 = vpop.permute.xlu0 %3663
        %3665 = vrot.lane.b32.xlu0 %v2433, 94
        %v3666 = vpop.permute.xlu0 %3665
        %3667 = vrot.lane.b32.xlu0 %v2428, 94
        %v3668 = vpop.permute.xlu0 %3667
        %3669 = vrot.lane.b32.xlu0 %v2430, 94
        %v3670 = vpop.permute.xlu0 %3669
        %3671 = vrot.lane.b32.xlu0 %v2432, 94
        %v3672 = vpop.permute.xlu0 %3671
        %3673 = vrot.lane.b32.xlu0 %v2434, 94
        %v3674 = vpop.permute.xlu0 %3673
        %v3675 = vsel %vm1750, %v3660, %v3668
        %v3676 = vsel %vm1750, %v3662, %v3670
        %v3677 = vsel %vm1750, %v3664, %v3672
        %v3678 = vsel %vm1750, %v3666, %v3674
        %v3679 = vsel %vm1750, %v3668, %v3660
        %v3680 = vsel %vm1750, %v3670, %v3662
        %v3681 = vsel %vm1750, %v3672, %v3664
        %v3682 = vsel %vm1750, %v3674, %v3666
        %v3683 = vld [vmem:[%s1759] ss:$8 sm:$0x3]
        %v3685 = vlaneseq
        %v3686 = vshrl.u32 %v3685, 7
        %v3687 = vsub.s32 0, %v3686
        %v3688 = vrot.slane %v3683, %v3687
        %v3689 = vlaneseq
        %v3690 = vshrl.u32 %v3689, 7
        %v3691 = vsub.s32 1, %v3690
        %v3692 = vrot.slane %v3683, %v3691
        %v3695 = vmul.f32 %v3675, %v3688
        %v3696 = vmul.f32 %v3679, %v3692
        %v3697 = vmul.f32 %v3676, %v3688
        %v3698 = vmul.f32 %v3680, %v3692
        %v3699 = vmul.f32 %v3677, %v3688
        %v3700 = vmul.f32 %v3681, %v3692
        %v3701 = vmul.f32 %v3678, %v3688
        %v3702 = vmul.f32 %v3682, %v3692
        %3703 = vst [vmem:[#allocation2 + $0x600] sm:$0xff] %v3695
        %3704 = vst [vmem:[#allocation2 + $0x608] sm:$0xff] %v3696
        %3705 = vst [vmem:[#allocation2 + $0x610] sm:$0xff] %v3697
        %3706 = vst [vmem:[#allocation2 + $0x618] sm:$0xff] %v3698
        %3707 = vst [vmem:[#allocation2 + $0x620] sm:$0xff] %v3699
        %3708 = vst [vmem:[#allocation2 + $0x628] sm:$0xff] %v3700
        %3709 = vst [vmem:[#allocation2 + $0x630] sm:$0xff] %v3701
        %3710 = vst [vmem:[#allocation2 + $0x638] sm:$0xff] %v3702
        %v3711 = vld [vmem:[#allocation9] sm:$0xff]
        %v3712 = vld [vmem:[#allocation9 + $0x8] sm:$0xff]
        %v3713 = vld [vmem:[#allocation9 + $0x10] sm:$0xff]
        %v3714 = vld [vmem:[#allocation9 + $0x18] sm:$0xff]
        %v3715 = vld [vmem:[#allocation9 + $0x20] sm:$0xff]
        %v3716 = vld [vmem:[#allocation9 + $0x28] sm:$0xff]
        %v3717 = vld [vmem:[#allocation9 + $0x30] sm:$0xff]
        %v3718 = vld [vmem:[#allocation9 + $0x38] sm:$0xff]
        %v3719 = vld [vmem:[#allocation9 + $0x40] sm:$0xff]
        %v3720 = vld [vmem:[#allocation9 + $0x48] sm:$0xff]
        %v3721 = vld [vmem:[#allocation9 + $0x50] sm:$0xff]
        %v3722 = vld [vmem:[#allocation9 + $0x58] sm:$0xff]
        %v3723 = vld [vmem:[#allocation9 + $0x60] sm:$0xff]
        %v3724 = vld [vmem:[#allocation9 + $0x68] sm:$0xff]
        %v3725 = vld [vmem:[#allocation9 + $0x70] sm:$0xff]
        %v3726 = vld [vmem:[#allocation9 + $0x78] sm:$0xff]
        %v3727 = vld [vmem:[#allocation9 + $0x80] sm:$0xff]
        %v3728 = vld [vmem:[#allocation9 + $0x88] sm:$0xff]
        %v3729 = vld [vmem:[#allocation9 + $0x90] sm:$0xff]
        %v3730 = vld [vmem:[#allocation9 + $0x98] sm:$0xff]
        %v3731 = vld [vmem:[#allocation9 + $0xa0] sm:$0xff]
        %v3732 = vld [vmem:[#allocation9 + $0xa8] sm:$0xff]
        %v3733 = vld [vmem:[#allocation9 + $0xb0] sm:$0xff]
        %v3734 = vld [vmem:[#allocation9 + $0xb8] sm:$0xff]
        %v3735 = vld [vmem:[#allocation9 + $0xc0] sm:$0xff]
        %v3736 = vld [vmem:[#allocation9 + $0xc8] sm:$0xff]
        %v3737 = vld [vmem:[#allocation9 + $0xd0] sm:$0xff]
        %v3738 = vld [vmem:[#allocation9 + $0xd8] sm:$0xff]
        %v3739 = vld [vmem:[#allocation2] sm:$0xff]
        %v3740 = vld [vmem:[#allocation2 + $0x8] sm:$0xff]
        %v3741 = vld [vmem:[#allocation2 + $0x10] sm:$0xff]
        %v3742 = vld [vmem:[#allocation2 + $0x18] sm:$0xff]
        %v3743 = vld [vmem:[#allocation2 + $0x20] sm:$0xff]
        %v3744 = vld [vmem:[#allocation2 + $0x28] sm:$0xff]
        %v3745 = vld [vmem:[#allocation2 + $0x30] sm:$0xff]
        %v3746 = vld [vmem:[#allocation2 + $0x38] sm:$0xff]
        %v3747 = vld [vmem:[#allocation2 + $0x40] sm:$0xff]
        %v3748 = vld [vmem:[#allocation2 + $0x48] sm:$0xff]
        %v3749 = vld [vmem:[#allocation2 + $0x50] sm:$0xff]
        %v3750 = vld [vmem:[#allocation2 + $0x58] sm:$0xff]
        %v3751 = vld [vmem:[#allocation2 + $0x60] sm:$0xff]
        %v3752 = vld [vmem:[#allocation2 + $0x68] sm:$0xff]
        %v3753 = vld [vmem:[#allocation2 + $0x70] sm:$0xff]
        %v3754 = vld [vmem:[#allocation2 + $0x78] sm:$0xff]
        %v3755 = vld [vmem:[#allocation2 + $0x80] sm:$0xff]
        %v3756 = vld [vmem:[#allocation2 + $0x88] sm:$0xff]
        %v3757 = vld [vmem:[#allocation2 + $0x90] sm:$0xff]
        %v3758 = vld [vmem:[#allocation2 + $0x98] sm:$0xff]
        %v3759 = vld [vmem:[#allocation2 + $0xa0] sm:$0xff]
        %v3760 = vld [vmem:[#allocation2 + $0xa8] sm:$0xff]
        %v3761 = vld [vmem:[#allocation2 + $0xb0] sm:$0xff]
        %v3762 = vld [vmem:[#allocation2 + $0xb8] sm:$0xff]
        %v3763 = vld [vmem:[#allocation2 + $0xc0] sm:$0xff]
        %v3764 = vld [vmem:[#allocation2 + $0xc8] sm:$0xff]
        %v3765 = vld [vmem:[#allocation2 + $0xd0] sm:$0xff]
        %v3766 = vld [vmem:[#allocation2 + $0xd8] sm:$0xff]
        %v3767 = vld [vmem:[#allocation2 + $0xe0] sm:$0xff]
        %v3768 = vld [vmem:[#allocation2 + $0xe8] sm:$0xff]
        %v3769 = vld [vmem:[#allocation2 + $0xf0] sm:$0xff]
        %v3770 = vld [vmem:[#allocation2 + $0xf8] sm:$0xff]
        %v3771 = vld [vmem:[#allocation2 + $0x100] sm:$0xff]
        %v3772 = vld [vmem:[#allocation2 + $0x108] sm:$0xff]
        %v3773 = vld [vmem:[#allocation2 + $0x110] sm:$0xff]
        %v3774 = vld [vmem:[#allocation2 + $0x118] sm:$0xff]
        %v3775 = vld [vmem:[#allocation2 + $0x120] sm:$0xff]
        %v3776 = vld [vmem:[#allocation2 + $0x128] sm:$0xff]
        %v3777 = vld [vmem:[#allocation2 + $0x130] sm:$0xff]
        %v3778 = vld [vmem:[#allocation2 + $0x138] sm:$0xff]
        %v3779 = vld [vmem:[#allocation2 + $0x140] sm:$0xff]
        %v3780 = vld [vmem:[#allocation2 + $0x148] sm:$0xff]
        %v3781 = vld [vmem:[#allocation2 + $0x150] sm:$0xff]
        %v3782 = vld [vmem:[#allocation2 + $0x158] sm:$0xff]
        %v3783 = vld [vmem:[#allocation2 + $0x160] sm:$0xff]
        %v3784 = vld [vmem:[#allocation2 + $0x168] sm:$0xff]
        %v3785 = vld [vmem:[#allocation2 + $0x170] sm:$0xff]
        %v3786 = vld [vmem:[#allocation2 + $0x178] sm:$0xff]
        %v3787 = vld [vmem:[#allocation2 + $0x180] sm:$0xff]
        %v3788 = vld [vmem:[#allocation2 + $0x188] sm:$0xff]
        %v3789 = vld [vmem:[#allocation2 + $0x190] sm:$0xff]
        %v3790 = vld [vmem:[#allocation2 + $0x198] sm:$0xff]
        %v3791 = vld [vmem:[#allocation2 + $0x1a0] sm:$0xff]
        %v3792 = vld [vmem:[#allocation2 + $0x1a8] sm:$0xff]
        %v3793 = vld [vmem:[#allocation2 + $0x1b0] sm:$0xff]
        %v3794 = vld [vmem:[#allocation2 + $0x1b8] sm:$0xff]
        %v3795 = vld [vmem:[#allocation2 + $0x1c0] sm:$0xff]
        %v3796 = vld [vmem:[#allocation2 + $0x1c8] sm:$0xff]
        %v3797 = vld [vmem:[#allocation2 + $0x1d0] sm:$0xff]
        %v3798 = vld [vmem:[#allocation2 + $0x1d8] sm:$0xff]
        %v3799 = vld [vmem:[#allocation2 + $0x1e0] sm:$0xff]
        %v3800 = vld [vmem:[#allocation2 + $0x1e8] sm:$0xff]
        %v3801 = vld [vmem:[#allocation2 + $0x1f0] sm:$0xff]
        %v3802 = vld [vmem:[#allocation2 + $0x1f8] sm:$0xff]
        %v3803 = vld [vmem:[#allocation2 + $0x200] sm:$0xff]
        %v3804 = vld [vmem:[#allocation2 + $0x208] sm:$0xff]
        %v3805 = vld [vmem:[#allocation2 + $0x210] sm:$0xff]
        %v3806 = vld [vmem:[#allocation2 + $0x218] sm:$0xff]
        %v3807 = vld [vmem:[#allocation2 + $0x220] sm:$0xff]
        %v3808 = vld [vmem:[#allocation2 + $0x228] sm:$0xff]
        %v3809 = vld [vmem:[#allocation2 + $0x230] sm:$0xff]
        %v3810 = vld [vmem:[#allocation2 + $0x238] sm:$0xff]
        %v3811 = vld [vmem:[#allocation2 + $0x240] sm:$0xff]
        %v3812 = vld [vmem:[#allocation2 + $0x248] sm:$0xff]
        %v3813 = vld [vmem:[#allocation2 + $0x250] sm:$0xff]
        %v3814 = vld [vmem:[#allocation2 + $0x258] sm:$0xff]
        %v3815 = vld [vmem:[#allocation2 + $0x260] sm:$0xff]
        %v3816 = vld [vmem:[#allocation2 + $0x268] sm:$0xff]
        %v3817 = vld [vmem:[#allocation2 + $0x270] sm:$0xff]
        %v3818 = vld [vmem:[#allocation2 + $0x278] sm:$0xff]
        %v3819 = vld [vmem:[#allocation2 + $0x280] sm:$0xff]
        %v3820 = vld [vmem:[#allocation2 + $0x288] sm:$0xff]
        %v3821 = vld [vmem:[#allocation2 + $0x290] sm:$0xff]
        %v3822 = vld [vmem:[#allocation2 + $0x298] sm:$0xff]
        %v3823 = vld [vmem:[#allocation2 + $0x2a0] sm:$0xff]
        %v3824 = vld [vmem:[#allocation2 + $0x2a8] sm:$0xff]
        %v3825 = vld [vmem:[#allocation2 + $0x2b0] sm:$0xff]
        %v3826 = vld [vmem:[#allocation2 + $0x2b8] sm:$0xff]
        %v3827 = vld [vmem:[#allocation2 + $0x2c0] sm:$0xff]
        %v3828 = vld [vmem:[#allocation2 + $0x2c8] sm:$0xff]
        %v3829 = vld [vmem:[#allocation2 + $0x2d0] sm:$0xff]
        %v3830 = vld [vmem:[#allocation2 + $0x2d8] sm:$0xff]
        %v3831 = vld [vmem:[#allocation2 + $0x2e0] sm:$0xff]
        %v3832 = vld [vmem:[#allocation2 + $0x2e8] sm:$0xff]
        %v3833 = vld [vmem:[#allocation2 + $0x2f0] sm:$0xff]
        %v3834 = vld [vmem:[#allocation2 + $0x2f8] sm:$0xff]
        %v3835 = vld [vmem:[#allocation2 + $0x300] sm:$0xff]
        %v3836 = vld [vmem:[#allocation2 + $0x308] sm:$0xff]
        %v3837 = vld [vmem:[#allocation2 + $0x310] sm:$0xff]
        %v3838 = vld [vmem:[#allocation2 + $0x318] sm:$0xff]
        %v3839 = vld [vmem:[#allocation2 + $0x320] sm:$0xff]
        %v3840 = vld [vmem:[#allocation2 + $0x328] sm:$0xff]
        %v3841 = vld [vmem:[#allocation2 + $0x330] sm:$0xff]
        %v3842 = vld [vmem:[#allocation2 + $0x338] sm:$0xff]
        %v3843 = vld [vmem:[#allocation2 + $0x340] sm:$0xff]
        %v3844 = vld [vmem:[#allocation2 + $0x348] sm:$0xff]
        %v3845 = vld [vmem:[#allocation2 + $0x350] sm:$0xff]
        %v3846 = vld [vmem:[#allocation2 + $0x358] sm:$0xff]
        %v3847 = vld [vmem:[#allocation2 + $0x360] sm:$0xff]
        %v3848 = vld [vmem:[#allocation2 + $0x368] sm:$0xff]
        %v3849 = vld [vmem:[#allocation2 + $0x370] sm:$0xff]
        %v3850 = vld [vmem:[#allocation2 + $0x378] sm:$0xff]
        %v3851 = vld [vmem:[#allocation2 + $0x380] sm:$0xff]
        %v3852 = vld [vmem:[#allocation2 + $0x388] sm:$0xff]
        %v3853 = vld [vmem:[#allocation2 + $0x390] sm:$0xff]
        %v3854 = vld [vmem:[#allocation2 + $0x398] sm:$0xff]
        %v3855 = vld [vmem:[#allocation2 + $0x3a0] sm:$0xff]
        %v3856 = vld [vmem:[#allocation2 + $0x3a8] sm:$0xff]
        %v3857 = vld [vmem:[#allocation2 + $0x3b0] sm:$0xff]
        %v3858 = vld [vmem:[#allocation2 + $0x3b8] sm:$0xff]
        %v3859 = vld [vmem:[#allocation2 + $0x3c0] sm:$0xff]
        %v3860 = vld [vmem:[#allocation2 + $0x3c8] sm:$0xff]
        %v3861 = vld [vmem:[#allocation2 + $0x3d0] sm:$0xff]
        %v3862 = vld [vmem:[#allocation2 + $0x3d8] sm:$0xff]
        %v3863 = vld [vmem:[#allocation2 + $0x3e0] sm:$0xff]
        %v3864 = vld [vmem:[#allocation2 + $0x3e8] sm:$0xff]
        %v3865 = vld [vmem:[#allocation2 + $0x3f0] sm:$0xff]
        %v3866 = vld [vmem:[#allocation2 + $0x3f8] sm:$0xff]
        %v3867 = vld [vmem:[#allocation2 + $0x400] sm:$0xff]
        %v3868 = vld [vmem:[#allocation2 + $0x408] sm:$0xff]
        %v3869 = vld [vmem:[#allocation2 + $0x410] sm:$0xff]
        %v3870 = vld [vmem:[#allocation2 + $0x418] sm:$0xff]
        %v3871 = vld [vmem:[#allocation2 + $0x420] sm:$0xff]
        %v3872 = vld [vmem:[#allocation2 + $0x428] sm:$0xff]
        %v3873 = vld [vmem:[#allocation2 + $0x430] sm:$0xff]
        %v3874 = vld [vmem:[#allocation2 + $0x438] sm:$0xff]
        %v3875 = vld [vmem:[#allocation2 + $0x440] sm:$0xff]
        %v3876 = vld [vmem:[#allocation2 + $0x448] sm:$0xff]
        %v3877 = vld [vmem:[#allocation2 + $0x450] sm:$0xff]
        %v3878 = vld [vmem:[#allocation2 + $0x458] sm:$0xff]
        %v3879 = vld [vmem:[#allocation2 + $0x460] sm:$0xff]
        %v3880 = vld [vmem:[#allocation2 + $0x468] sm:$0xff]
        %v3881 = vld [vmem:[#allocation2 + $0x470] sm:$0xff]
        %v3882 = vld [vmem:[#allocation2 + $0x478] sm:$0xff]
        %v3883 = vld [vmem:[#allocation2 + $0x480] sm:$0xff]
        %v3884 = vld [vmem:[#allocation2 + $0x488] sm:$0xff]
        %v3885 = vld [vmem:[#allocation2 + $0x490] sm:$0xff]
        %v3886 = vld [vmem:[#allocation2 + $0x498] sm:$0xff]
        %v3887 = vld [vmem:[#allocation2 + $0x4a0] sm:$0xff]
        %v3888 = vld [vmem:[#allocation2 + $0x4a8] sm:$0xff]
        %v3889 = vld [vmem:[#allocation2 + $0x4b0] sm:$0xff]
        %v3890 = vld [vmem:[#allocation2 + $0x4b8] sm:$0xff]
        %v3891 = vld [vmem:[#allocation2 + $0x4c0] sm:$0xff]
        %v3892 = vld [vmem:[#allocation2 + $0x4c8] sm:$0xff]
        %v3893 = vld [vmem:[#allocation2 + $0x4d0] sm:$0xff]
        %v3894 = vld [vmem:[#allocation2 + $0x4d8] sm:$0xff]
        %v3895 = vld [vmem:[#allocation2 + $0x4e0] sm:$0xff]
        %v3896 = vld [vmem:[#allocation2 + $0x4e8] sm:$0xff]
        %v3897 = vld [vmem:[#allocation2 + $0x4f0] sm:$0xff]
        %v3898 = vld [vmem:[#allocation2 + $0x4f8] sm:$0xff]
        %v3899 = vld [vmem:[#allocation2 + $0x500] sm:$0xff]
        %v3900 = vld [vmem:[#allocation2 + $0x508] sm:$0xff]
        %v3901 = vld [vmem:[#allocation2 + $0x510] sm:$0xff]
        %v3902 = vld [vmem:[#allocation2 + $0x518] sm:$0xff]
        %v3903 = vld [vmem:[#allocation2 + $0x520] sm:$0xff]
        %v3904 = vld [vmem:[#allocation2 + $0x528] sm:$0xff]
        %v3905 = vld [vmem:[#allocation2 + $0x530] sm:$0xff]
        %v3906 = vld [vmem:[#allocation2 + $0x538] sm:$0xff]
        %v3907 = vld [vmem:[#allocation2 + $0x540] sm:$0xff]
        %v3908 = vld [vmem:[#allocation2 + $0x548] sm:$0xff]
        %v3909 = vld [vmem:[#allocation2 + $0x550] sm:$0xff]
        %v3910 = vld [vmem:[#allocation2 + $0x558] sm:$0xff]
        %v3911 = vld [vmem:[#allocation2 + $0x560] sm:$0xff]
        %v3912 = vld [vmem:[#allocation2 + $0x568] sm:$0xff]
        %v3913 = vld [vmem:[#allocation2 + $0x570] sm:$0xff]
        %v3914 = vld [vmem:[#allocation2 + $0x578] sm:$0xff]
        %v3915 = vld [vmem:[#allocation2 + $0x580] sm:$0xff]
        %v3916 = vld [vmem:[#allocation2 + $0x588] sm:$0xff]
        %v3917 = vld [vmem:[#allocation2 + $0x590] sm:$0xff]
        %v3918 = vld [vmem:[#allocation2 + $0x598] sm:$0xff]
        %v3919 = vld [vmem:[#allocation2 + $0x5a0] sm:$0xff]
        %v3920 = vld [vmem:[#allocation2 + $0x5a8] sm:$0xff]
        %v3921 = vld [vmem:[#allocation2 + $0x5b0] sm:$0xff]
        %v3922 = vld [vmem:[#allocation2 + $0x5b8] sm:$0xff]
        %v3923 = vld [vmem:[#allocation2 + $0x5c0] sm:$0xff]
        %v3924 = vld [vmem:[#allocation2 + $0x5c8] sm:$0xff]
        %v3925 = vld [vmem:[#allocation2 + $0x5d0] sm:$0xff]
        %v3926 = vld [vmem:[#allocation2 + $0x5d8] sm:$0xff]
        %v3927 = vld [vmem:[#allocation2 + $0x5e0] sm:$0xff]
        %v3928 = vld [vmem:[#allocation2 + $0x5e8] sm:$0xff]
        %v3929 = vld [vmem:[#allocation2 + $0x5f0] sm:$0xff]
        %v3930 = vld [vmem:[#allocation2 + $0x5f8] sm:$0xff]
        %v3931 = vld [vmem:[#allocation2 + $0x600] sm:$0xff]
        %v3932 = vld [vmem:[#allocation2 + $0x608] sm:$0xff]
        %v3933 = vld [vmem:[#allocation2 + $0x610] sm:$0xff]
        %v3934 = vld [vmem:[#allocation2 + $0x618] sm:$0xff]
        %v3935 = vld [vmem:[#allocation2 + $0x620] sm:$0xff]
        %v3936 = vld [vmem:[#allocation2 + $0x628] sm:$0xff]
        %v3937 = vld [vmem:[#allocation2 + $0x630] sm:$0xff]
        %v3938 = vld [vmem:[#allocation2 + $0x638] sm:$0xff]
        %v3939 = vld [vmem:[%s5] sm:$0xff]
        %v3940 = vld [vmem:[%s5 + $0x8] sm:$0xff]
        %v3941 = vld [vmem:[%s5 + $0x10] sm:$0xff]
        %v3942 = vld [vmem:[%s5 + $0x18] sm:$0xff]
        %3944 = vset.pattern.permute.xlu0 0
        %3945 = vperm.xlu0 %3944, %v3939
        %v3946 = vpop.permute.xlu0 %3945
        %3949 = vset.pattern.permute.xlu0 0
        %3950 = vperm.xlu0 %3949, %v3940
        %v3951 = vpop.permute.xlu0 %3950
        %3954 = vset.pattern.permute.xlu0 0
        %3955 = vperm.xlu0 %3954, %v3941
        %v3956 = vpop.permute.xlu0 %3955
        %3959 = vset.pattern.permute.xlu0 0
        %3960 = vperm.xlu0 %3959, %v3942
        %v3961 = vpop.permute.xlu0 %3960
        %v3964 = vsel %vm2040, %v3717, 0
        %v3967 = vsel %vm2040, %v3724, 0
        %v3970 = vsel %vm2040, %v3731, 0
        %v3973 = vsel %vm2040, %v3738, 0
        %3975 = vmatprep.subr.mxu0 %v3770
        %3976 = vmatpush1.msra.mxu0 %v3769
        %3977 = vmatprep.subr.mxu0 %v3768
        %3978 = vmatpush1.msra.mxu0 %v3767
        %3979 = vmatprep.subr.mxu0 %v3766
        %3980 = vmatpush1.msra.mxu0 %v3765
        %3981 = vmatprep.subr.mxu0 %v3764
        %3982 = vmatpush1.msra.mxu0 %v3763
        %3983 = vmatprep.subr.mxu0 %v3762
        %3984 = vmatpush1.msra.mxu0 %v3761
        %3985 = vmatprep.subr.mxu0 %v3760
        %3986 = vmatpush1.msra.mxu0 %v3759
        %3987 = vmatprep.subr.mxu0 %v3758
        %3988 = vmatpush1.msra.mxu0 %v3757
        %3989 = vmatprep.subr.mxu0 %v3756
        %3990 = vmatpush1.msra.mxu0 %v3755
        %3991 = vmatprep.subr.mxu0 %v3754
        %3992 = vmatpush1.msra.mxu0 %v3753
        %3993 = vmatprep.subr.mxu0 %v3752
        %3994 = vmatpush1.msra.mxu0 %v3751
        %3995 = vmatprep.subr.mxu0 %v3750
        %3996 = vmatpush1.msra.mxu0 %v3749
        %3997 = vmatprep.subr.mxu0 %v3748
        %3998 = vmatpush1.msra.mxu0 %v3747
        %3999 = vmatprep.subr.mxu0 %v3746
        %4000 = vmatpush1.msra.mxu0 %v3745
        %4001 = vmatprep.subr.mxu0 %v3744
        %4002 = vmatpush1.msra.mxu0 %v3743
        %4003 = vmatprep.subr.mxu0 %v3742
        %4004 = vmatpush1.msra.mxu0 %v3741
        %4005 = vmatprep.subr.mxu0 %v3740
        %4006 = vmatpush1.msra.mxu0 %v3739
        %4007 = vmatprep.subr.mxu0 %v3802
        %4008 = vmatpush2.msra.mxu0 %v3801
        %4009 = vmatprep.subr.mxu0 %v3800
        %4010 = vmatpush2.msra.mxu0 %v3799
        %4011 = vmatprep.subr.mxu0 %v3798
        %4012 = vmatpush2.msra.mxu0 %v3797
        %4013 = vmatprep.subr.mxu0 %v3796
        %4014 = vmatpush2.msra.mxu0 %v3795
        %4015 = vmatprep.subr.mxu0 %v3794
        %4016 = vmatpush2.msra.mxu0 %v3793
        %4017 = vmatprep.subr.mxu0 %v3792
        %4018 = vmatpush2.msra.mxu0 %v3791
        %4019 = vmatprep.subr.mxu0 %v3790
        %4020 = vmatpush2.msra.mxu0 %v3789
        %4021 = vmatprep.subr.mxu0 %v3788
        %4022 = vmatpush2.msra.mxu0 %v3787
        %4023 = vmatprep.subr.mxu0 %v3786
        %4024 = vmatpush2.msra.mxu0 %v3785
        %4025 = vmatprep.subr.mxu0 %v3784
        %4026 = vmatpush2.msra.mxu0 %v3783
        %4027 = vmatprep.subr.mxu0 %v3782
        %4028 = vmatpush2.msra.mxu0 %v3781
        %4029 = vmatprep.subr.mxu0 %v3780
        %4030 = vmatpush2.msra.mxu0 %v3779
        %4031 = vmatprep.subr.mxu0 %v3778
        %4032 = vmatpush2.msra.mxu0 %v3777
        %4033 = vmatprep.subr.mxu0 %v3776
        %4034 = vmatpush2.msra.mxu0 %v3775
        %4035 = vmatprep.subr.mxu0 %v3774
        %4036 = vmatpush2.msra.mxu0 %v3773
        %4037 = vmatprep.subr.mxu0 %v3772
        %4038 = vmatpush2.msra.mxu0 %v3771
        %4039 = vmatprep.mubr.f32.mxu0 %v3712
        %4040 = vmatmul.mubr.f32.gmra.mxu0 %v3711
        %v4041 = vpop.f32.mrf.mxu0
        %v4042 = vadd.f32 %v3946, %v4041
        %v4043 = vpop.f32.mrf.mxu0
        %v4044 = vadd.f32 %v3946, %v4043
        %4045 = vmatprep.mubr.f32.mxu0 %v3719
        %4046 = vmatmul.mubr.f32.gmra.mxu0 %v3718
        %v4047 = vpop.f32.mrf.mxu0
        %v4048 = vadd.f32 %v3951, %v4047
        %v4049 = vpop.f32.mrf.mxu0
        %v4050 = vadd.f32 %v3951, %v4049
        %4051 = vmatprep.mubr.f32.mxu0 %v3726
        %4052 = vmatmul.mubr.f32.gmra.mxu0 %v3725
        %v4053 = vpop.f32.mrf.mxu0
        %v4054 = vadd.f32 %v3956, %v4053
        %v4055 = vpop.f32.mrf.mxu0
        %v4056 = vadd.f32 %v3956, %v4055
        %4057 = vmatprep.mubr.f32.mxu0 %v3733
        %4058 = vmatmul.mubr.f32.gmra.mxu0 %v3732
        %v4059 = vpop.f32.mrf.mxu0
        %v4060 = vadd.f32 %v3961, %v4059
        %v4061 = vpop.f32.mrf.mxu0
        %v4062 = vadd.f32 %v3961, %v4061
        %4063 = vdwg.mxu0
        %4064 = vmatprep.subr.mxu0 %v3834
        %4065 = vmatpush1.msra.mxu0 %v3833
        %4066 = vmatprep.subr.mxu0 %v3832
        %4067 = vmatpush1.msra.mxu0 %v3831
        %4068 = vmatprep.subr.mxu0 %v3830
        %4069 = vmatpush1.msra.mxu0 %v3829
        %4070 = vmatprep.subr.mxu0 %v3828
        %4071 = vmatpush1.msra.mxu0 %v3827
        %4072 = vmatprep.subr.mxu0 %v3826
        %4073 = vmatpush1.msra.mxu0 %v3825
        %4074 = vmatprep.subr.mxu0 %v3824
        %4075 = vmatpush1.msra.mxu0 %v3823
        %4076 = vmatprep.subr.mxu0 %v3822
        %4077 = vmatpush1.msra.mxu0 %v3821
        %4078 = vmatprep.subr.mxu0 %v3820
        %4079 = vmatpush1.msra.mxu0 %v3819
        %4080 = vmatprep.subr.mxu0 %v3818
        %4081 = vmatpush1.msra.mxu0 %v3817
        %4082 = vmatprep.subr.mxu0 %v3816
        %4083 = vmatpush1.msra.mxu0 %v3815
        %4084 = vmatprep.subr.mxu0 %v3814
        %4085 = vmatpush1.msra.mxu0 %v3813
        %4086 = vmatprep.subr.mxu0 %v3812
        %4087 = vmatpush1.msra.mxu0 %v3811
        %4088 = vmatprep.subr.mxu0 %v3810
        %4089 = vmatpush1.msra.mxu0 %v3809
        %4090 = vmatprep.subr.mxu0 %v3808
        %4091 = vmatpush1.msra.mxu0 %v3807
        %4092 = vmatprep.subr.mxu0 %v3806
        %4093 = vmatpush1.msra.mxu0 %v3805
        %4094 = vmatprep.subr.mxu0 %v3804
        %4095 = vmatpush1.msra.mxu0 %v3803
        %4096 = vmatprep.subr.mxu0 %v3866
        %4097 = vmatpush2.msra.mxu0 %v3865
        %4098 = vmatprep.subr.mxu0 %v3864
        %4099 = vmatpush2.msra.mxu0 %v3863
        %4100 = vmatprep.subr.mxu0 %v3862
        %4101 = vmatpush2.msra.mxu0 %v3861
        %4102 = vmatprep.subr.mxu0 %v3860
        %4103 = vmatpush2.msra.mxu0 %v3859
        %4104 = vmatprep.subr.mxu0 %v3858
        %4105 = vmatpush2.msra.mxu0 %v3857
        %4106 = vmatprep.subr.mxu0 %v3856
        %4107 = vmatpush2.msra.mxu0 %v3855
        %4108 = vmatprep.subr.mxu0 %v3854
        %4109 = vmatpush2.msra.mxu0 %v3853
        %4110 = vmatprep.subr.mxu0 %v3852
        %4111 = vmatpush2.msra.mxu0 %v3851
        %4112 = vmatprep.subr.mxu0 %v3850
        %4113 = vmatpush2.msra.mxu0 %v3849
        %4114 = vmatprep.subr.mxu0 %v3848
        %4115 = vmatpush2.msra.mxu0 %v3847
        %4116 = vmatprep.subr.mxu0 %v3846
        %4117 = vmatpush2.msra.mxu0 %v3845
        %4118 = vmatprep.subr.mxu0 %v3844
        %4119 = vmatpush2.msra.mxu0 %v3843
        %4120 = vmatprep.subr.mxu0 %v3842
        %4121 = vmatpush2.msra.mxu0 %v3841
        %4122 = vmatprep.subr.mxu0 %v3840
        %4123 = vmatpush2.msra.mxu0 %v3839
        %4124 = vmatprep.subr.mxu0 %v3838
        %4125 = vmatpush2.msra.mxu0 %v3837
        %4126 = vmatprep.subr.mxu0 %v3836
        %4127 = vmatpush2.msra.mxu0 %v3835
        %4128 = vmatprep.mubr.f32.mxu0 %v3714
        %4129 = vmatmul.mubr.f32.gmra.mxu0 %v3713
        %v4130 = vpop.f32.mrf.mxu0
        %v4131 = vadd.f32 %v4042, %v4130
        %v4132 = vpop.f32.mrf.mxu0
        %v4133 = vadd.f32 %v4044, %v4132
        %4134 = vmatprep.mubr.f32.mxu0 %v3721
        %4135 = vmatmul.mubr.f32.gmra.mxu0 %v3720
        %v4136 = vpop.f32.mrf.mxu0
        %v4137 = vadd.f32 %v4048, %v4136
        %v4138 = vpop.f32.mrf.mxu0
        %v4139 = vadd.f32 %v4050, %v4138
        %4140 = vmatprep.mubr.f32.mxu0 %v3728
        %4141 = vmatmul.mubr.f32.gmra.mxu0 %v3727
        %v4142 = vpop.f32.mrf.mxu0
        %v4143 = vadd.f32 %v4054, %v4142
        %v4144 = vpop.f32.mrf.mxu0
        %v4145 = vadd.f32 %v4056, %v4144
        %4146 = vmatprep.mubr.f32.mxu0 %v3735
        %4147 = vmatmul.mubr.f32.gmra.mxu0 %v3734
        %v4148 = vpop.f32.mrf.mxu0
        %v4149 = vadd.f32 %v4060, %v4148
        %v4150 = vpop.f32.mrf.mxu0
        %v4151 = vadd.f32 %v4062, %v4150
        %4152 = vdwg.mxu0
        %4153 = vmatprep.subr.mxu0 %v3898
        %4154 = vmatpush1.msra.mxu0 %v3897
        %4155 = vmatprep.subr.mxu0 %v3896
        %4156 = vmatpush1.msra.mxu0 %v3895
        %4157 = vmatprep.subr.mxu0 %v3894
        %4158 = vmatpush1.msra.mxu0 %v3893
        %4159 = vmatprep.subr.mxu0 %v3892
        %4160 = vmatpush1.msra.mxu0 %v3891
        %4161 = vmatprep.subr.mxu0 %v3890
        %4162 = vmatpush1.msra.mxu0 %v3889
        %4163 = vmatprep.subr.mxu0 %v3888
        %4164 = vmatpush1.msra.mxu0 %v3887
        %4165 = vmatprep.subr.mxu0 %v3886
        %4166 = vmatpush1.msra.mxu0 %v3885
        %4167 = vmatprep.subr.mxu0 %v3884
        %4168 = vmatpush1.msra.mxu0 %v3883
        %4169 = vmatprep.subr.mxu0 %v3882
        %4170 = vmatpush1.msra.mxu0 %v3881
        %4171 = vmatprep.subr.mxu0 %v3880
        %4172 = vmatpush1.msra.mxu0 %v3879
        %4173 = vmatprep.subr.mxu0 %v3878
        %4174 = vmatpush1.msra.mxu0 %v3877
        %4175 = vmatprep.subr.mxu0 %v3876
        %4176 = vmatpush1.msra.mxu0 %v3875
        %4177 = vmatprep.subr.mxu0 %v3874
        %4178 = vmatpush1.msra.mxu0 %v3873
        %4179 = vmatprep.subr.mxu0 %v3872
        %4180 = vmatpush1.msra.mxu0 %v3871
        %4181 = vmatprep.subr.mxu0 %v3870
        %4182 = vmatpush1.msra.mxu0 %v3869
        %4183 = vmatprep.subr.mxu0 %v3868
        %4184 = vmatpush1.msra.mxu0 %v3867
        %4185 = vmatprep.subr.mxu0 %v3930
        %4186 = vmatpush2.msra.mxu0 %v3929
        %4187 = vmatprep.subr.mxu0 %v3928
        %4188 = vmatpush2.msra.mxu0 %v3927
        %4189 = vmatprep.subr.mxu0 %v3926
        %4190 = vmatpush2.msra.mxu0 %v3925
        %4191 = vmatprep.subr.mxu0 %v3924
        %4192 = vmatpush2.msra.mxu0 %v3923
        %4193 = vmatprep.subr.mxu0 %v3922
        %4194 = vmatpush2.msra.mxu0 %v3921
        %4195 = vmatprep.subr.mxu0 %v3920
        %4196 = vmatpush2.msra.mxu0 %v3919
        %4197 = vmatprep.subr.mxu0 %v3918
        %4198 = vmatpush2.msra.mxu0 %v3917
        %4199 = vmatprep.subr.mxu0 %v3916
        %4200 = vmatpush2.msra.mxu0 %v3915
        %4201 = vmatprep.subr.mxu0 %v3914
        %4202 = vmatpush2.msra.mxu0 %v3913
        %4203 = vmatprep.subr.mxu0 %v3912
        %4204 = vmatpush2.msra.mxu0 %v3911
        %4205 = vmatprep.subr.mxu0 %v3910
        %4206 = vmatpush2.msra.mxu0 %v3909
        %4207 = vmatprep.subr.mxu0 %v3908
        %4208 = vmatpush2.msra.mxu0 %v3907
        %4209 = vmatprep.subr.mxu0 %v3906
        %4210 = vmatpush2.msra.mxu0 %v3905
        %4211 = vmatprep.subr.mxu0 %v3904
        %4212 = vmatpush2.msra.mxu0 %v3903
        %4213 = vmatprep.subr.mxu0 %v3902
        %4214 = vmatpush2.msra.mxu0 %v3901
        %4215 = vmatprep.subr.mxu0 %v3900
        %4216 = vmatpush2.msra.mxu0 %v3899
        %4217 = vmatprep.mubr.f32.mxu0 %v3716
        %4218 = vmatmul.mubr.f32.gmra.mxu0 %v3715
        %v4219 = vpop.f32.mrf.mxu0
        %v4220 = vadd.f32 %v4131, %v4219
        %v4221 = vpop.f32.mrf.mxu0
        %v4222 = vadd.f32 %v4133, %v4221
        %4223 = vmatprep.mubr.f32.mxu0 %v3723
        %4224 = vmatmul.mubr.f32.gmra.mxu0 %v3722
        %v4225 = vpop.f32.mrf.mxu0
        %v4226 = vadd.f32 %v4137, %v4225
        %v4227 = vpop.f32.mrf.mxu0
        %v4228 = vadd.f32 %v4139, %v4227
        %4229 = vmatprep.mubr.f32.mxu0 %v3730
        %4230 = vmatmul.mubr.f32.gmra.mxu0 %v3729
        %v4231 = vpop.f32.mrf.mxu0
        %v4232 = vadd.f32 %v4143, %v4231
        %v4233 = vpop.f32.mrf.mxu0
        %v4234 = vadd.f32 %v4145, %v4233
        %4235 = vmatprep.mubr.f32.mxu0 %v3737
        %4236 = vmatmul.mubr.f32.gmra.mxu0 %v3736
        %v4237 = vpop.f32.mrf.mxu0
        %v4238 = vadd.f32 %v4149, %v4237
        %v4239 = vpop.f32.mrf.mxu0
        %v4240 = vadd.f32 %v4151, %v4239
        %4241 = vdwg.mxu0
        %4242 = vmatprep.subr.mxu0 0.0
        %4243 = vmatpush1.msra.mxu0 0.0
        %4244 = vmatprep.subr.mxu0 0.0
        %4245 = vmatpush1.msra.mxu0 0.0
        %4246 = vmatprep.subr.mxu0 0.0
        %4247 = vmatpush1.msra.mxu0 0.0
        %4248 = vmatprep.subr.mxu0 0.0
        %4249 = vmatpush1.msra.mxu0 0.0
        %4250 = vmatprep.subr.mxu0 0.0
        %4251 = vmatpush1.msra.mxu0 0.0
        %4252 = vmatprep.subr.mxu0 0.0
        %4253 = vmatpush1.msra.mxu0 0.0
        %4254 = vmatprep.subr.mxu0 0.0
        %4255 = vmatpush1.msra.mxu0 0.0
        %4256 = vmatprep.subr.mxu0 0.0
        %4257 = vmatpush1.msra.mxu0 0.0
        %4258 = vmatprep.subr.mxu0 0.0
        %4259 = vmatpush1.msra.mxu0 0.0
        %4260 = vmatprep.subr.mxu0 0.0
        %4261 = vmatpush1.msra.mxu0 0.0
        %4262 = vmatprep.subr.mxu0 0.0
        %4263 = vmatpush1.msra.mxu0 0.0
        %4264 = vmatprep.subr.mxu0 0.0
        %4265 = vmatpush1.msra.mxu0 0.0
        %4266 = vmatprep.subr.mxu0 %v3938
        %4267 = vmatpush1.msra.mxu0 %v3937
        %4268 = vmatprep.subr.mxu0 %v3936
        %4269 = vmatpush1.msra.mxu0 %v3935
        %4270 = vmatprep.subr.mxu0 %v3934
        %4271 = vmatpush1.msra.mxu0 %v3933
        %4272 = vmatprep.subr.mxu0 %v3932
        %4273 = vmatpush1.msra.mxu0 %v3931
        %4274 = vmatprep.subr.mxu0 0.0
        %4275 = vmatpush2.msra.mxu0 0.0
        %4276 = vmatprep.subr.mxu0 0.0
        %4277 = vmatpush2.msra.mxu0 0.0
        %4278 = vmatprep.subr.mxu0 0.0
        %4279 = vmatpush2.msra.mxu0 0.0
        %4280 = vmatprep.subr.mxu0 0.0
        %4281 = vmatpush2.msra.mxu0 0.0
        %4282 = vmatprep.subr.mxu0 0.0
        %4283 = vmatpush2.msra.mxu0 0.0
        %4284 = vmatprep.subr.mxu0 0.0
        %4285 = vmatpush2.msra.mxu0 0.0
        %4286 = vmatprep.subr.mxu0 0.0
        %4287 = vmatpush2.msra.mxu0 0.0
        %4288 = vmatprep.subr.mxu0 0.0
        %4289 = vmatpush2.msra.mxu0 0.0
        %4290 = vmatprep.subr.mxu0 0.0
        %4291 = vmatpush2.msra.mxu0 0.0
        %4292 = vmatprep.subr.mxu0 0.0
        %4293 = vmatpush2.msra.mxu0 0.0
        %4294 = vmatprep.subr.mxu0 0.0
        %4295 = vmatpush2.msra.mxu0 0.0
        %4296 = vmatprep.subr.mxu0 0.0
        %4297 = vmatpush2.msra.mxu0 0.0
        %4298 = vmatprep.subr.mxu0 0.0
        %4299 = vmatpush2.msra.mxu0 0.0
        %4300 = vmatprep.subr.mxu0 0.0
        %4301 = vmatpush2.msra.mxu0 0.0
        %4302 = vmatprep.subr.mxu0 0.0
        %4303 = vmatpush2.msra.mxu0 0.0
        %4304 = vmatprep.subr.mxu0 0.0
        %4305 = vmatpush2.msra.mxu0 0.0
        %4306 = vmatprep.mubr.f32.mxu0 0.0
        %4307 = vmatmul.mubr.f32.gmra.mxu0 %v3964
        %v4308 = vpop.f32.mrf.mxu0
        %v4309 = vadd.f32 %v4220, %v4308
        %v4310 = vpop.f32.mrf.mxu0
        %v4311 = vadd.f32 %v4222, %v4310
        %4312 = vmatprep.mubr.f32.mxu0 0.0
        %4313 = vmatmul.mubr.f32.gmra.mxu0 %v3967
        %v4314 = vpop.f32.mrf.mxu0
        %v4315 = vadd.f32 %v4226, %v4314
        %v4316 = vpop.f32.mrf.mxu0
        %v4317 = vadd.f32 %v4228, %v4316
        %4318 = vmatprep.mubr.f32.mxu0 0.0
        %4319 = vmatmul.mubr.f32.gmra.mxu0 %v3970
        %v4320 = vpop.f32.mrf.mxu0
        %v4321 = vadd.f32 %v4232, %v4320
        %v4322 = vpop.f32.mrf.mxu0
        %v4323 = vadd.f32 %v4234, %v4322
        %4324 = vmatprep.mubr.f32.mxu0 0.0
        %4325 = vmatmul.mubr.f32.gmra.mxu0 %v3973
        %v4326 = vpop.f32.mrf.mxu0
        %v4327 = vadd.f32 %v4238, %v4326
        %v4328 = vpop.f32.mrf.mxu0
        %v4329 = vadd.f32 %v4240, %v4328
        %4330 = vdwg.mxu0
        %vm4331 = vcmp.gt.f32.partialorder %v4309, 0.0
        %vm4332 = vcmp.gt.f32.partialorder %v4311, 0.0
        %vm4333 = vcmp.gt.f32.partialorder %v4315, 0.0
        %vm4334 = vcmp.gt.f32.partialorder %v4317, 0.0
        %vm4335 = vcmp.gt.f32.partialorder %v4321, 0.0
        %vm4336 = vcmp.gt.f32.partialorder %v4323, 0.0
        %vm4337 = vcmp.gt.f32.partialorder %v4327, 0.0
        %vm4338 = vcmp.gt.f32.partialorder %v4329, 0.0
        %s4339 = sld [smem:[#allocation12 + $0x1]]
        %v4340 = vstv %s4339
        %v4341 = vmul.f32 %v4340, %v4309
        %v4342 = vmul.f32 %v4340, %v4311
        %v4343 = vmul.f32 %v4340, %v4315
        %v4344 = vmul.f32 %v4340, %v4317
        %v4345 = vmul.f32 %v4340, %v4321
        %v4346 = vmul.f32 %v4340, %v4323
        %v4347 = vmul.f32 %v4340, %v4327
        %v4348 = vmul.f32 %v4340, %v4329
        %v4349 = vsel %vm4331, %v4309, %v4341
        %v4350 = vsel %vm4332, %v4311, %v4342
        %v4351 = vsel %vm4333, %v4315, %v4343
        %v4352 = vsel %vm4334, %v4317, %v4344
        %v4353 = vsel %vm4335, %v4321, %v4345
        %v4354 = vsel %vm4336, %v4323, %v4346
        %v4355 = vsel %vm4337, %v4327, %v4347
        %v4356 = vsel %vm4338, %v4329, %v4348
        %4357 = vrot.lane.b32.xlu0 %v4349, 34
        %v4358 = vpop.permute.xlu0 %4357
        %4359 = vrot.lane.b32.xlu0 %v4351, 34
        %v4360 = vpop.permute.xlu0 %4359
        %4361 = vrot.lane.b32.xlu0 %v4353, 34
        %v4362 = vpop.permute.xlu0 %4361
        %4363 = vrot.lane.b32.xlu0 %v4355, 34
        %v4364 = vpop.permute.xlu0 %4363
        %4365 = vrot.lane.b32.xlu0 %v4350, 34
        %v4366 = vpop.permute.xlu0 %4365
        %4367 = vrot.lane.b32.xlu0 %v4352, 34
        %v4368 = vpop.permute.xlu0 %4367
        %4369 = vrot.lane.b32.xlu0 %v4354, 34
        %v4370 = vpop.permute.xlu0 %4369
        %4371 = vrot.lane.b32.xlu0 %v4356, 34
        %v4372 = vpop.permute.xlu0 %4371
        %v4373 = vsel %vm480, %v4358, %v4366
        %v4374 = vsel %vm480, %v4360, %v4368
        %v4375 = vsel %vm480, %v4362, %v4370
        %v4376 = vsel %vm480, %v4364, %v4372
        %v4377 = vsel %vm480, %v4366, %v4358
        %v4378 = vsel %vm480, %v4368, %v4360
        %v4379 = vsel %vm480, %v4370, %v4362
        %v4380 = vsel %vm480, %v4372, %v4364
        %v4381 = vld [vmem:[%s8] ss:$8 sm:$0x3]
        %v4383 = vlaneseq
        %v4384 = vshrl.u32 %v4383, 7
        %v4385 = vsub.s32 0, %v4384
        %v4386 = vrot.slane %v4381, %v4385
        %v4387 = vlaneseq
        %v4388 = vshrl.u32 %v4387, 7
        %v4389 = vsub.s32 1, %v4388
        %v4390 = vrot.slane %v4381, %v4389
        %v4393 = vmul.f32 %v4377, %v4386
        %v4394 = vmul.f32 %v4373, %v4390
        %v4395 = vmul.f32 %v4378, %v4386
        %v4396 = vmul.f32 %v4374, %v4390
        %v4397 = vmul.f32 %v4379, %v4386
        %v4398 = vmul.f32 %v4375, %v4390
        %v4399 = vmul.f32 %v4380, %v4386
        %v4400 = vmul.f32 %v4376, %v4390
        %4401 = vst [vmem:[#allocation2] sm:$0xff] %v4393
        %4402 = vst [vmem:[#allocation2 + $0x8] sm:$0xff] %v4394
        %4403 = vst [vmem:[#allocation2 + $0x10] sm:$0xff] %v4395
        %4404 = vst [vmem:[#allocation2 + $0x18] sm:$0xff] %v4396
        %4405 = vst [vmem:[#allocation2 + $0x20] sm:$0xff] %v4397
        %4406 = vst [vmem:[#allocation2 + $0x28] sm:$0xff] %v4398
        %4407 = vst [vmem:[#allocation2 + $0x30] sm:$0xff] %v4399
        %4408 = vst [vmem:[#allocation2 + $0x38] sm:$0xff] %v4400
        %4409 = vrot.lane.b32.xlu0 %v4349, 33
        %v4410 = vpop.permute.xlu0 %4409
        %4411 = vrot.lane.b32.xlu0 %v4351, 33
        %v4412 = vpop.permute.xlu0 %4411
        %4413 = vrot.lane.b32.xlu0 %v4353, 33
        %v4414 = vpop.permute.xlu0 %4413
        %4415 = vrot.lane.b32.xlu0 %v4355, 33
        %v4416 = vpop.permute.xlu0 %4415
        %4417 = vrot.lane.b32.xlu0 %v4350, 33
        %v4418 = vpop.permute.xlu0 %4417
        %4419 = vrot.lane.b32.xlu0 %v4352, 33
        %v4420 = vpop.permute.xlu0 %4419
        %4421 = vrot.lane.b32.xlu0 %v4354, 33
        %v4422 = vpop.permute.xlu0 %4421
        %4423 = vrot.lane.b32.xlu0 %v4356, 33
        %v4424 = vpop.permute.xlu0 %4423
        %v4425 = vsel %vm533, %v4410, %v4418
        %v4426 = vsel %vm533, %v4412, %v4420
        %v4427 = vsel %vm533, %v4414, %v4422
        %v4428 = vsel %vm533, %v4416, %v4424
        %v4429 = vsel %vm533, %v4418, %v4410
        %v4430 = vsel %vm533, %v4420, %v4412
        %v4431 = vsel %vm533, %v4422, %v4414
        %v4432 = vsel %vm533, %v4424, %v4416
        %v4433 = vld [vmem:[%s542] ss:$8 sm:$0x3]
        %v4435 = vlaneseq
        %v4436 = vshrl.u32 %v4435, 7
        %v4437 = vsub.s32 0, %v4436
        %v4438 = vrot.slane %v4433, %v4437
        %v4439 = vlaneseq
        %v4440 = vshrl.u32 %v4439, 7
        %v4441 = vsub.s32 1, %v4440
        %v4442 = vrot.slane %v4433, %v4441
        %v4445 = vmul.f32 %v4429, %v4438
        %v4446 = vmul.f32 %v4425, %v4442
        %v4447 = vmul.f32 %v4430, %v4438
        %v4448 = vmul.f32 %v4426, %v4442
        %v4449 = vmul.f32 %v4431, %v4438
        %v4450 = vmul.f32 %v4427, %v4442
        %v4451 = vmul.f32 %v4432, %v4438
        %v4452 = vmul.f32 %v4428, %v4442
        %4453 = vst [vmem:[#allocation2 + $0x40] sm:$0xff] %v4445
        %4454 = vst [vmem:[#allocation2 + $0x48] sm:$0xff] %v4446
        %4455 = vst [vmem:[#allocation2 + $0x50] sm:$0xff] %v4447
        %4456 = vst [vmem:[#allocation2 + $0x58] sm:$0xff] %v4448
        %4457 = vst [vmem:[#allocation2 + $0x60] sm:$0xff] %v4449
        %4458 = vst [vmem:[#allocation2 + $0x68] sm:$0xff] %v4450
        %4459 = vst [vmem:[#allocation2 + $0x70] sm:$0xff] %v4451
        %4460 = vst [vmem:[#allocation2 + $0x78] sm:$0xff] %v4452
        %4461 = vrot.lane.b32.xlu0 %v4349, 32
        %v4462 = vpop.permute.xlu0 %4461
        %4463 = vrot.lane.b32.xlu0 %v4351, 32
        %v4464 = vpop.permute.xlu0 %4463
        %4465 = vrot.lane.b32.xlu0 %v4353, 32
        %v4466 = vpop.permute.xlu0 %4465
        %4467 = vrot.lane.b32.xlu0 %v4355, 32
        %v4468 = vpop.permute.xlu0 %4467
        %4469 = vrot.lane.b32.xlu0 %v4350, 32
        %v4470 = vpop.permute.xlu0 %4469
        %4471 = vrot.lane.b32.xlu0 %v4352, 32
        %v4472 = vpop.permute.xlu0 %4471
        %4473 = vrot.lane.b32.xlu0 %v4354, 32
        %v4474 = vpop.permute.xlu0 %4473
        %4475 = vrot.lane.b32.xlu0 %v4356, 32
        %v4476 = vpop.permute.xlu0 %4475
        %v4477 = vsel %vm587, %v4462, %v4470
        %v4478 = vsel %vm587, %v4464, %v4472
        %v4479 = vsel %vm587, %v4466, %v4474
        %v4480 = vsel %vm587, %v4468, %v4476
        %v4481 = vsel %vm587, %v4470, %v4462
        %v4482 = vsel %vm587, %v4472, %v4464
        %v4483 = vsel %vm587, %v4474, %v4466
        %v4484 = vsel %vm587, %v4476, %v4468
        %v4485 = vld [vmem:[%s596] ss:$8 sm:$0x3]
        %v4487 = vlaneseq
        %v4488 = vshrl.u32 %v4487, 7
        %v4489 = vsub.s32 0, %v4488
        %v4490 = vrot.slane %v4485, %v4489
        %v4491 = vlaneseq
        %v4492 = vshrl.u32 %v4491, 7
        %v4493 = vsub.s32 1, %v4492
        %v4494 = vrot.slane %v4485, %v4493
        %v4497 = vmul.f32 %v4481, %v4490
        %v4498 = vmul.f32 %v4477, %v4494
        %v4499 = vmul.f32 %v4482, %v4490
        %v4500 = vmul.f32 %v4478, %v4494
        %v4501 = vmul.f32 %v4483, %v4490
        %v4502 = vmul.f32 %v4479, %v4494
        %v4503 = vmul.f32 %v4484, %v4490
        %v4504 = vmul.f32 %v4480, %v4494
        %4505 = vst [vmem:[#allocation2 + $0x80] sm:$0xff] %v4497
        %4506 = vst [vmem:[#allocation2 + $0x88] sm:$0xff] %v4498
        %4507 = vst [vmem:[#allocation2 + $0x90] sm:$0xff] %v4499
        %4508 = vst [vmem:[#allocation2 + $0x98] sm:$0xff] %v4500
        %4509 = vst [vmem:[#allocation2 + $0xa0] sm:$0xff] %v4501
        %4510 = vst [vmem:[#allocation2 + $0xa8] sm:$0xff] %v4502
        %4511 = vst [vmem:[#allocation2 + $0xb0] sm:$0xff] %v4503
        %4512 = vst [vmem:[#allocation2 + $0xb8] sm:$0xff] %v4504
        %4513 = vrot.lane.b32.xlu0 %v4349, 31
        %v4514 = vpop.permute.xlu0 %4513
        %4515 = vrot.lane.b32.xlu0 %v4351, 31
        %v4516 = vpop.permute.xlu0 %4515
        %4517 = vrot.lane.b32.xlu0 %v4353, 31
        %v4518 = vpop.permute.xlu0 %4517
        %4519 = vrot.lane.b32.xlu0 %v4355, 31
        %v4520 = vpop.permute.xlu0 %4519
        %4521 = vrot.lane.b32.xlu0 %v4350, 31
        %v4522 = vpop.permute.xlu0 %4521
        %4523 = vrot.lane.b32.xlu0 %v4352, 31
        %v4524 = vpop.permute.xlu0 %4523
        %4525 = vrot.lane.b32.xlu0 %v4354, 31
        %v4526 = vpop.permute.xlu0 %4525
        %4527 = vrot.lane.b32.xlu0 %v4356, 31
        %v4528 = vpop.permute.xlu0 %4527
        %v4529 = vsel %vm641, %v4514, %v4522
        %v4530 = vsel %vm641, %v4516, %v4524
        %v4531 = vsel %vm641, %v4518, %v4526
        %v4532 = vsel %vm641, %v4520, %v4528
        %v4533 = vsel %vm641, %v4522, %v4514
        %v4534 = vsel %vm641, %v4524, %v4516
        %v4535 = vsel %vm641, %v4526, %v4518
        %v4536 = vsel %vm641, %v4528, %v4520
        %v4537 = vld [vmem:[%s650] ss:$8 sm:$0x3]
        %v4539 = vlaneseq
        %v4540 = vshrl.u32 %v4539, 7
        %v4541 = vsub.s32 0, %v4540
        %v4542 = vrot.slane %v4537, %v4541
        %v4543 = vlaneseq
        %v4544 = vshrl.u32 %v4543, 7
        %v4545 = vsub.s32 1, %v4544
        %v4546 = vrot.slane %v4537, %v4545
        %v4549 = vmul.f32 %v4533, %v4542
        %v4550 = vmul.f32 %v4529, %v4546
        %v4551 = vmul.f32 %v4534, %v4542
        %v4552 = vmul.f32 %v4530, %v4546
        %v4553 = vmul.f32 %v4535, %v4542
        %v4554 = vmul.f32 %v4531, %v4546
        %v4555 = vmul.f32 %v4536, %v4542
        %v4556 = vmul.f32 %v4532, %v4546
        %4557 = vst [vmem:[#allocation2 + $0xc0] sm:$0xff] %v4549
        %4558 = vst [vmem:[#allocation2 + $0xc8] sm:$0xff] %v4550
        %4559 = vst [vmem:[#allocation2 + $0xd0] sm:$0xff] %v4551
        %4560 = vst [vmem:[#allocation2 + $0xd8] sm:$0xff] %v4552
        %4561 = vst [vmem:[#allocation2 + $0xe0] sm:$0xff] %v4553
        %4562 = vst [vmem:[#allocation2 + $0xe8] sm:$0xff] %v4554
        %4563 = vst [vmem:[#allocation2 + $0xf0] sm:$0xff] %v4555
        %4564 = vst [vmem:[#allocation2 + $0xf8] sm:$0xff] %v4556
        %4565 = vrot.lane.b32.xlu0 %v4349, 30
        %v4566 = vpop.permute.xlu0 %4565
        %4567 = vrot.lane.b32.xlu0 %v4351, 30
        %v4568 = vpop.permute.xlu0 %4567
        %4569 = vrot.lane.b32.xlu0 %v4353, 30
        %v4570 = vpop.permute.xlu0 %4569
        %4571 = vrot.lane.b32.xlu0 %v4355, 30
        %v4572 = vpop.permute.xlu0 %4571
        %4573 = vrot.lane.b32.xlu0 %v4350, 30
        %v4574 = vpop.permute.xlu0 %4573
        %4575 = vrot.lane.b32.xlu0 %v4352, 30
        %v4576 = vpop.permute.xlu0 %4575
        %4577 = vrot.lane.b32.xlu0 %v4354, 30
        %v4578 = vpop.permute.xlu0 %4577
        %4579 = vrot.lane.b32.xlu0 %v4356, 30
        %v4580 = vpop.permute.xlu0 %4579
        %v4581 = vsel %vm695, %v4566, %v4574
        %v4582 = vsel %vm695, %v4568, %v4576
        %v4583 = vsel %vm695, %v4570, %v4578
        %v4584 = vsel %vm695, %v4572, %v4580
        %v4585 = vsel %vm695, %v4574, %v4566
        %v4586 = vsel %vm695, %v4576, %v4568
        %v4587 = vsel %vm695, %v4578, %v4570
        %v4588 = vsel %vm695, %v4580, %v4572
        %v4589 = vld [vmem:[%s704] ss:$8 sm:$0x3]
        %v4591 = vlaneseq
        %v4592 = vshrl.u32 %v4591, 7
        %v4593 = vsub.s32 0, %v4592
        %v4594 = vrot.slane %v4589, %v4593
        %v4595 = vlaneseq
        %v4596 = vshrl.u32 %v4595, 7
        %v4597 = vsub.s32 1, %v4596
        %v4598 = vrot.slane %v4589, %v4597
        %v4601 = vmul.f32 %v4585, %v4594
        %v4602 = vmul.f32 %v4581, %v4598
        %v4603 = vmul.f32 %v4586, %v4594
        %v4604 = vmul.f32 %v4582, %v4598
        %v4605 = vmul.f32 %v4587, %v4594
        %v4606 = vmul.f32 %v4583, %v4598
        %v4607 = vmul.f32 %v4588, %v4594
        %v4608 = vmul.f32 %v4584, %v4598
        %4609 = vst [vmem:[#allocation2 + $0x100] sm:$0xff] %v4601
        %4610 = vst [vmem:[#allocation2 + $0x108] sm:$0xff] %v4602
        %4611 = vst [vmem:[#allocation2 + $0x110] sm:$0xff] %v4603
        %4612 = vst [vmem:[#allocation2 + $0x118] sm:$0xff] %v4604
        %4613 = vst [vmem:[#allocation2 + $0x120] sm:$0xff] %v4605
        %4614 = vst [vmem:[#allocation2 + $0x128] sm:$0xff] %v4606
        %4615 = vst [vmem:[#allocation2 + $0x130] sm:$0xff] %v4607
        %4616 = vst [vmem:[#allocation2 + $0x138] sm:$0xff] %v4608
        %4617 = vrot.lane.b32.xlu0 %v4349, 18
        %v4618 = vpop.permute.xlu0 %4617
        %4619 = vrot.lane.b32.xlu0 %v4351, 18
        %v4620 = vpop.permute.xlu0 %4619
        %4621 = vrot.lane.b32.xlu0 %v4353, 18
        %v4622 = vpop.permute.xlu0 %4621
        %4623 = vrot.lane.b32.xlu0 %v4355, 18
        %v4624 = vpop.permute.xlu0 %4623
        %4625 = vrot.lane.b32.xlu0 %v4350, 18
        %v4626 = vpop.permute.xlu0 %4625
        %4627 = vrot.lane.b32.xlu0 %v4352, 18
        %v4628 = vpop.permute.xlu0 %4627
        %4629 = vrot.lane.b32.xlu0 %v4354, 18
        %v4630 = vpop.permute.xlu0 %4629
        %4631 = vrot.lane.b32.xlu0 %v4356, 18
        %v4632 = vpop.permute.xlu0 %4631
        %v4633 = vsel %vm749, %v4618, %v4626
        %v4634 = vsel %vm749, %v4620, %v4628
        %v4635 = vsel %vm749, %v4622, %v4630
        %v4636 = vsel %vm749, %v4624, %v4632
        %v4637 = vsel %vm749, %v4626, %v4618
        %v4638 = vsel %vm749, %v4628, %v4620
        %v4639 = vsel %vm749, %v4630, %v4622
        %v4640 = vsel %vm749, %v4632, %v4624
        %v4641 = vld [vmem:[%s758] ss:$8 sm:$0x3]
        %v4643 = vlaneseq
        %v4644 = vshrl.u32 %v4643, 7
        %v4645 = vsub.s32 0, %v4644
        %v4646 = vrot.slane %v4641, %v4645
        %v4647 = vlaneseq
        %v4648 = vshrl.u32 %v4647, 7
        %v4649 = vsub.s32 1, %v4648
        %v4650 = vrot.slane %v4641, %v4649
        %v4653 = vmul.f32 %v4637, %v4646
        %v4654 = vmul.f32 %v4633, %v4650
        %v4655 = vmul.f32 %v4638, %v4646
        %v4656 = vmul.f32 %v4634, %v4650
        %v4657 = vmul.f32 %v4639, %v4646
        %v4658 = vmul.f32 %v4635, %v4650
        %v4659 = vmul.f32 %v4640, %v4646
        %v4660 = vmul.f32 %v4636, %v4650
        %4661 = vst [vmem:[#allocation2 + $0x140] sm:$0xff] %v4653
        %4662 = vst [vmem:[#allocation2 + $0x148] sm:$0xff] %v4654
        %4663 = vst [vmem:[#allocation2 + $0x150] sm:$0xff] %v4655
        %4664 = vst [vmem:[#allocation2 + $0x158] sm:$0xff] %v4656
        %4665 = vst [vmem:[#allocation2 + $0x160] sm:$0xff] %v4657
        %4666 = vst [vmem:[#allocation2 + $0x168] sm:$0xff] %v4658
        %4667 = vst [vmem:[#allocation2 + $0x170] sm:$0xff] %v4659
        %4668 = vst [vmem:[#allocation2 + $0x178] sm:$0xff] %v4660
        %4669 = vrot.lane.b32.xlu0 %v4349, 17
        %v4670 = vpop.permute.xlu0 %4669
        %4671 = vrot.lane.b32.xlu0 %v4351, 17
        %v4672 = vpop.permute.xlu0 %4671
        %4673 = vrot.lane.b32.xlu0 %v4353, 17
        %v4674 = vpop.permute.xlu0 %4673
        %4675 = vrot.lane.b32.xlu0 %v4355, 17
        %v4676 = vpop.permute.xlu0 %4675
        %4677 = vrot.lane.b32.xlu0 %v4350, 17
        %v4678 = vpop.permute.xlu0 %4677
        %4679 = vrot.lane.b32.xlu0 %v4352, 17
        %v4680 = vpop.permute.xlu0 %4679
        %4681 = vrot.lane.b32.xlu0 %v4354, 17
        %v4682 = vpop.permute.xlu0 %4681
        %4683 = vrot.lane.b32.xlu0 %v4356, 17
        %v4684 = vpop.permute.xlu0 %4683
        %v4685 = vsel %vm803, %v4670, %v4678
        %v4686 = vsel %vm803, %v4672, %v4680
        %v4687 = vsel %vm803, %v4674, %v4682
        %v4688 = vsel %vm803, %v4676, %v4684
        %v4689 = vsel %vm803, %v4678, %v4670
        %v4690 = vsel %vm803, %v4680, %v4672
        %v4691 = vsel %vm803, %v4682, %v4674
        %v4692 = vsel %vm803, %v4684, %v4676
        %v4693 = vld [vmem:[%s812] ss:$8 sm:$0x3]
        %v4695 = vlaneseq
        %v4696 = vshrl.u32 %v4695, 7
        %v4697 = vsub.s32 0, %v4696
        %v4698 = vrot.slane %v4693, %v4697
        %v4699 = vlaneseq
        %v4700 = vshrl.u32 %v4699, 7
        %v4701 = vsub.s32 1, %v4700
        %v4702 = vrot.slane %v4693, %v4701
        %v4705 = vmul.f32 %v4689, %v4698
        %v4706 = vmul.f32 %v4685, %v4702
        %v4707 = vmul.f32 %v4690, %v4698
        %v4708 = vmul.f32 %v4686, %v4702
        %v4709 = vmul.f32 %v4691, %v4698
        %v4710 = vmul.f32 %v4687, %v4702
        %v4711 = vmul.f32 %v4692, %v4698
        %v4712 = vmul.f32 %v4688, %v4702
        %4713 = vst [vmem:[#allocation2 + $0x180] sm:$0xff] %v4705
        %4714 = vst [vmem:[#allocation2 + $0x188] sm:$0xff] %v4706
        %4715 = vst [vmem:[#allocation2 + $0x190] sm:$0xff] %v4707
        %4716 = vst [vmem:[#allocation2 + $0x198] sm:$0xff] %v4708
        %4717 = vst [vmem:[#allocation2 + $0x1a0] sm:$0xff] %v4709
        %4718 = vst [vmem:[#allocation2 + $0x1a8] sm:$0xff] %v4710
        %4719 = vst [vmem:[#allocation2 + $0x1b0] sm:$0xff] %v4711
        %4720 = vst [vmem:[#allocation2 + $0x1b8] sm:$0xff] %v4712
        %4721 = vrot.lane.b32.xlu0 %v4349, 16
        %v4722 = vpop.permute.xlu0 %4721
        %4723 = vrot.lane.b32.xlu0 %v4351, 16
        %v4724 = vpop.permute.xlu0 %4723
        %4725 = vrot.lane.b32.xlu0 %v4353, 16
        %v4726 = vpop.permute.xlu0 %4725
        %4727 = vrot.lane.b32.xlu0 %v4355, 16
        %v4728 = vpop.permute.xlu0 %4727
        %4729 = vrot.lane.b32.xlu0 %v4350, 16
        %v4730 = vpop.permute.xlu0 %4729
        %4731 = vrot.lane.b32.xlu0 %v4352, 16
        %v4732 = vpop.permute.xlu0 %4731
        %4733 = vrot.lane.b32.xlu0 %v4354, 16
        %v4734 = vpop.permute.xlu0 %4733
        %4735 = vrot.lane.b32.xlu0 %v4356, 16
        %v4736 = vpop.permute.xlu0 %4735
        %v4737 = vsel %vm857, %v4722, %v4730
        %v4738 = vsel %vm857, %v4724, %v4732
        %v4739 = vsel %vm857, %v4726, %v4734
        %v4740 = vsel %vm857, %v4728, %v4736
        %v4741 = vsel %vm857, %v4730, %v4722
        %v4742 = vsel %vm857, %v4732, %v4724
        %v4743 = vsel %vm857, %v4734, %v4726
        %v4744 = vsel %vm857, %v4736, %v4728
        %v4745 = vld [vmem:[%s866] ss:$8 sm:$0x3]
        %v4747 = vlaneseq
        %v4748 = vshrl.u32 %v4747, 7
        %v4749 = vsub.s32 0, %v4748
        %v4750 = vrot.slane %v4745, %v4749
        %v4751 = vlaneseq
        %v4752 = vshrl.u32 %v4751, 7
        %v4753 = vsub.s32 1, %v4752
        %v4754 = vrot.slane %v4745, %v4753
        %v4757 = vmul.f32 %v4741, %v4750
        %v4758 = vmul.f32 %v4737, %v4754
        %v4759 = vmul.f32 %v4742, %v4750
        %v4760 = vmul.f32 %v4738, %v4754
        %v4761 = vmul.f32 %v4743, %v4750
        %v4762 = vmul.f32 %v4739, %v4754
        %v4763 = vmul.f32 %v4744, %v4750
        %v4764 = vmul.f32 %v4740, %v4754
        %4765 = vst [vmem:[#allocation2 + $0x1c0] sm:$0xff] %v4757
        %4766 = vst [vmem:[#allocation2 + $0x1c8] sm:$0xff] %v4758
        %4767 = vst [vmem:[#allocation2 + $0x1d0] sm:$0xff] %v4759
        %4768 = vst [vmem:[#allocation2 + $0x1d8] sm:$0xff] %v4760
        %4769 = vst [vmem:[#allocation2 + $0x1e0] sm:$0xff] %v4761
        %4770 = vst [vmem:[#allocation2 + $0x1e8] sm:$0xff] %v4762
        %4771 = vst [vmem:[#allocation2 + $0x1f0] sm:$0xff] %v4763
        %4772 = vst [vmem:[#allocation2 + $0x1f8] sm:$0xff] %v4764
        %4773 = vrot.lane.b32.xlu0 %v4349, 15
        %v4774 = vpop.permute.xlu0 %4773
        %4775 = vrot.lane.b32.xlu0 %v4351, 15
        %v4776 = vpop.permute.xlu0 %4775
        %4777 = vrot.lane.b32.xlu0 %v4353, 15
        %v4778 = vpop.permute.xlu0 %4777
        %4779 = vrot.lane.b32.xlu0 %v4355, 15
        %v4780 = vpop.permute.xlu0 %4779
        %4781 = vrot.lane.b32.xlu0 %v4350, 15
        %v4782 = vpop.permute.xlu0 %4781
        %4783 = vrot.lane.b32.xlu0 %v4352, 15
        %v4784 = vpop.permute.xlu0 %4783
        %4785 = vrot.lane.b32.xlu0 %v4354, 15
        %v4786 = vpop.permute.xlu0 %4785
        %4787 = vrot.lane.b32.xlu0 %v4356, 15
        %v4788 = vpop.permute.xlu0 %4787
        %v4789 = vsel %vm911, %v4774, %v4782
        %v4790 = vsel %vm911, %v4776, %v4784
        %v4791 = vsel %vm911, %v4778, %v4786
        %v4792 = vsel %vm911, %v4780, %v4788
        %v4793 = vsel %vm911, %v4782, %v4774
        %v4794 = vsel %vm911, %v4784, %v4776
        %v4795 = vsel %vm911, %v4786, %v4778
        %v4796 = vsel %vm911, %v4788, %v4780
        %v4797 = vld [vmem:[%s920] ss:$8 sm:$0x3]
        %v4799 = vlaneseq
        %v4800 = vshrl.u32 %v4799, 7
        %v4801 = vsub.s32 0, %v4800
        %v4802 = vrot.slane %v4797, %v4801
        %v4803 = vlaneseq
        %v4804 = vshrl.u32 %v4803, 7
        %v4805 = vsub.s32 1, %v4804
        %v4806 = vrot.slane %v4797, %v4805
        %v4809 = vmul.f32 %v4793, %v4802
        %v4810 = vmul.f32 %v4789, %v4806
        %v4811 = vmul.f32 %v4794, %v4802
        %v4812 = vmul.f32 %v4790, %v4806
        %v4813 = vmul.f32 %v4795, %v4802
        %v4814 = vmul.f32 %v4791, %v4806
        %v4815 = vmul.f32 %v4796, %v4802
        %v4816 = vmul.f32 %v4792, %v4806
        %4817 = vst [vmem:[#allocation2 + $0x200] sm:$0xff] %v4809
        %4818 = vst [vmem:[#allocation2 + $0x208] sm:$0xff] %v4810
        %4819 = vst [vmem:[#allocation2 + $0x210] sm:$0xff] %v4811
        %4820 = vst [vmem:[#allocation2 + $0x218] sm:$0xff] %v4812
        %4821 = vst [vmem:[#allocation2 + $0x220] sm:$0xff] %v4813
        %4822 = vst [vmem:[#allocation2 + $0x228] sm:$0xff] %v4814
        %4823 = vst [vmem:[#allocation2 + $0x230] sm:$0xff] %v4815
        %4824 = vst [vmem:[#allocation2 + $0x238] sm:$0xff] %v4816
        %4825 = vrot.lane.b32.xlu0 %v4349, 14
        %v4826 = vpop.permute.xlu0 %4825
        %4827 = vrot.lane.b32.xlu0 %v4351, 14
        %v4828 = vpop.permute.xlu0 %4827
        %4829 = vrot.lane.b32.xlu0 %v4353, 14
        %v4830 = vpop.permute.xlu0 %4829
        %4831 = vrot.lane.b32.xlu0 %v4355, 14
        %v4832 = vpop.permute.xlu0 %4831
        %4833 = vrot.lane.b32.xlu0 %v4350, 14
        %v4834 = vpop.permute.xlu0 %4833
        %4835 = vrot.lane.b32.xlu0 %v4352, 14
        %v4836 = vpop.permute.xlu0 %4835
        %4837 = vrot.lane.b32.xlu0 %v4354, 14
        %v4838 = vpop.permute.xlu0 %4837
        %4839 = vrot.lane.b32.xlu0 %v4356, 14
        %v4840 = vpop.permute.xlu0 %4839
        %v4841 = vsel %vm965, %v4826, %v4834
        %v4842 = vsel %vm965, %v4828, %v4836
        %v4843 = vsel %vm965, %v4830, %v4838
        %v4844 = vsel %vm965, %v4832, %v4840
        %v4845 = vsel %vm965, %v4834, %v4826
        %v4846 = vsel %vm965, %v4836, %v4828
        %v4847 = vsel %vm965, %v4838, %v4830
        %v4848 = vsel %vm965, %v4840, %v4832
        %v4849 = vld [vmem:[%s974] ss:$8 sm:$0x3]
        %v4851 = vlaneseq
        %v4852 = vshrl.u32 %v4851, 7
        %v4853 = vsub.s32 0, %v4852
        %v4854 = vrot.slane %v4849, %v4853
        %v4855 = vlaneseq
        %v4856 = vshrl.u32 %v4855, 7
        %v4857 = vsub.s32 1, %v4856
        %v4858 = vrot.slane %v4849, %v4857
        %v4861 = vmul.f32 %v4845, %v4854
        %v4862 = vmul.f32 %v4841, %v4858
        %v4863 = vmul.f32 %v4846, %v4854
        %v4864 = vmul.f32 %v4842, %v4858
        %v4865 = vmul.f32 %v4847, %v4854
        %v4866 = vmul.f32 %v4843, %v4858
        %v4867 = vmul.f32 %v4848, %v4854
        %v4868 = vmul.f32 %v4844, %v4858
        %4869 = vst [vmem:[#allocation2 + $0x240] sm:$0xff] %v4861
        %4870 = vst [vmem:[#allocation2 + $0x248] sm:$0xff] %v4862
        %4871 = vst [vmem:[#allocation2 + $0x250] sm:$0xff] %v4863
        %4872 = vst [vmem:[#allocation2 + $0x258] sm:$0xff] %v4864
        %4873 = vst [vmem:[#allocation2 + $0x260] sm:$0xff] %v4865
        %4874 = vst [vmem:[#allocation2 + $0x268] sm:$0xff] %v4866
        %4875 = vst [vmem:[#allocation2 + $0x270] sm:$0xff] %v4867
        %4876 = vst [vmem:[#allocation2 + $0x278] sm:$0xff] %v4868
        %4877 = vrot.lane.b32.xlu0 %v4349, 2
        %v4878 = vpop.permute.xlu0 %4877
        %4879 = vrot.lane.b32.xlu0 %v4351, 2
        %v4880 = vpop.permute.xlu0 %4879
        %4881 = vrot.lane.b32.xlu0 %v4353, 2
        %v4882 = vpop.permute.xlu0 %4881
        %4883 = vrot.lane.b32.xlu0 %v4355, 2
        %v4884 = vpop.permute.xlu0 %4883
        %4885 = vrot.lane.b32.xlu0 %v4350, 2
        %v4886 = vpop.permute.xlu0 %4885
        %4887 = vrot.lane.b32.xlu0 %v4352, 2
        %v4888 = vpop.permute.xlu0 %4887
        %4889 = vrot.lane.b32.xlu0 %v4354, 2
        %v4890 = vpop.permute.xlu0 %4889
        %4891 = vrot.lane.b32.xlu0 %v4356, 2
        %v4892 = vpop.permute.xlu0 %4891
        %v4893 = vsel %vm1019, %v4878, %v4886
        %v4894 = vsel %vm1019, %v4880, %v4888
        %v4895 = vsel %vm1019, %v4882, %v4890
        %v4896 = vsel %vm1019, %v4884, %v4892
        %v4897 = vsel %vm1019, %v4886, %v4878
        %v4898 = vsel %vm1019, %v4888, %v4880
        %v4899 = vsel %vm1019, %v4890, %v4882
        %v4900 = vsel %vm1019, %v4892, %v4884
        %v4901 = vld [vmem:[%s1028] ss:$8 sm:$0x3]
        %v4903 = vlaneseq
        %v4904 = vshrl.u32 %v4903, 7
        %v4905 = vsub.s32 0, %v4904
        %v4906 = vrot.slane %v4901, %v4905
        %v4907 = vlaneseq
        %v4908 = vshrl.u32 %v4907, 7
        %v4909 = vsub.s32 1, %v4908
        %v4910 = vrot.slane %v4901, %v4909
        %v4913 = vmul.f32 %v4897, %v4906
        %v4914 = vmul.f32 %v4893, %v4910
        %v4915 = vmul.f32 %v4898, %v4906
        %v4916 = vmul.f32 %v4894, %v4910
        %v4917 = vmul.f32 %v4899, %v4906
        %v4918 = vmul.f32 %v4895, %v4910
        %v4919 = vmul.f32 %v4900, %v4906
        %v4920 = vmul.f32 %v4896, %v4910
        %4921 = vst [vmem:[#allocation2 + $0x280] sm:$0xff] %v4913
        %4922 = vst [vmem:[#allocation2 + $0x288] sm:$0xff] %v4914
        %4923 = vst [vmem:[#allocation2 + $0x290] sm:$0xff] %v4915
        %4924 = vst [vmem:[#allocation2 + $0x298] sm:$0xff] %v4916
        %4925 = vst [vmem:[#allocation2 + $0x2a0] sm:$0xff] %v4917
        %4926 = vst [vmem:[#allocation2 + $0x2a8] sm:$0xff] %v4918
        %4927 = vst [vmem:[#allocation2 + $0x2b0] sm:$0xff] %v4919
        %4928 = vst [vmem:[#allocation2 + $0x2b8] sm:$0xff] %v4920
        %4929 = vrot.lane.b32.xlu0 %v4349, 1
        %v4930 = vpop.permute.xlu0 %4929
        %4931 = vrot.lane.b32.xlu0 %v4351, 1
        %v4932 = vpop.permute.xlu0 %4931
        %4933 = vrot.lane.b32.xlu0 %v4353, 1
        %v4934 = vpop.permute.xlu0 %4933
        %4935 = vrot.lane.b32.xlu0 %v4355, 1
        %v4936 = vpop.permute.xlu0 %4935
        %4937 = vrot.lane.b32.xlu0 %v4350, 1
        %v4938 = vpop.permute.xlu0 %4937
        %4939 = vrot.lane.b32.xlu0 %v4352, 1
        %v4940 = vpop.permute.xlu0 %4939
        %4941 = vrot.lane.b32.xlu0 %v4354, 1
        %v4942 = vpop.permute.xlu0 %4941
        %4943 = vrot.lane.b32.xlu0 %v4356, 1
        %v4944 = vpop.permute.xlu0 %4943
        %v4945 = vsel %vm1073, %v4930, %v4938
        %v4946 = vsel %vm1073, %v4932, %v4940
        %v4947 = vsel %vm1073, %v4934, %v4942
        %v4948 = vsel %vm1073, %v4936, %v4944
        %v4949 = vsel %vm1073, %v4938, %v4930
        %v4950 = vsel %vm1073, %v4940, %v4932
        %v4951 = vsel %vm1073, %v4942, %v4934
        %v4952 = vsel %vm1073, %v4944, %v4936
        %v4953 = vld [vmem:[%s1082] ss:$8 sm:$0x3]
        %v4955 = vlaneseq
        %v4956 = vshrl.u32 %v4955, 7
        %v4957 = vsub.s32 0, %v4956
        %v4958 = vrot.slane %v4953, %v4957
        %v4959 = vlaneseq
        %v4960 = vshrl.u32 %v4959, 7
        %v4961 = vsub.s32 1, %v4960
        %v4962 = vrot.slane %v4953, %v4961
        %v4965 = vmul.f32 %v4949, %v4958
        %v4966 = vmul.f32 %v4945, %v4962
        %v4967 = vmul.f32 %v4950, %v4958
        %v4968 = vmul.f32 %v4946, %v4962
        %v4969 = vmul.f32 %v4951, %v4958
        %v4970 = vmul.f32 %v4947, %v4962
        %v4971 = vmul.f32 %v4952, %v4958
        %v4972 = vmul.f32 %v4948, %v4962
        %4973 = vst [vmem:[#allocation2 + $0x2c0] sm:$0xff] %v4965
        %4974 = vst [vmem:[#allocation2 + $0x2c8] sm:$0xff] %v4966
        %4975 = vst [vmem:[#allocation2 + $0x2d0] sm:$0xff] %v4967
        %4976 = vst [vmem:[#allocation2 + $0x2d8] sm:$0xff] %v4968
        %4977 = vst [vmem:[#allocation2 + $0x2e0] sm:$0xff] %v4969
        %4978 = vst [vmem:[#allocation2 + $0x2e8] sm:$0xff] %v4970
        %4979 = vst [vmem:[#allocation2 + $0x2f0] sm:$0xff] %v4971
        %4980 = vst [vmem:[#allocation2 + $0x2f8] sm:$0xff] %v4972
        %v4981 = vld [vmem:[%s1111] ss:$8 sm:$0x3]
        %v4983 = vlaneseq
        %v4984 = vshrl.u32 %v4983, 7
        %v4985 = vsub.s32 0, %v4984
        %v4986 = vrot.slane %v4981, %v4985
        %v4987 = vlaneseq
        %v4988 = vshrl.u32 %v4987, 7
        %v4989 = vsub.s32 1, %v4988
        %v4990 = vrot.slane %v4981, %v4989
        %v4993 = vmul.f32 %v4349, %v4986
        %v4994 = vmul.f32 %v4350, %v4990
        %v4995 = vmul.f32 %v4351, %v4986
        %v4996 = vmul.f32 %v4352, %v4990
        %v4997 = vmul.f32 %v4353, %v4986
        %v4998 = vmul.f32 %v4354, %v4990
        %v4999 = vmul.f32 %v4355, %v4986
        %v5000 = vmul.f32 %v4356, %v4990
        %5001 = vst [vmem:[#allocation2 + $0x300] sm:$0xff] %v4993
        %5002 = vst [vmem:[#allocation2 + $0x308] sm:$0xff] %v4994
        %5003 = vst [vmem:[#allocation2 + $0x310] sm:$0xff] %v4995
        %5004 = vst [vmem:[#allocation2 + $0x318] sm:$0xff] %v4996
        %5005 = vst [vmem:[#allocation2 + $0x320] sm:$0xff] %v4997
        %5006 = vst [vmem:[#allocation2 + $0x328] sm:$0xff] %v4998
        %5007 = vst [vmem:[#allocation2 + $0x330] sm:$0xff] %v4999
        %5008 = vst [vmem:[#allocation2 + $0x338] sm:$0xff] %v5000
        %5009 = vrot.lane.b32.xlu0 %v4349, 127
        %v5010 = vpop.permute.xlu0 %5009
        %5011 = vrot.lane.b32.xlu0 %v4351, 127
        %v5012 = vpop.permute.xlu0 %5011
        %5013 = vrot.lane.b32.xlu0 %v4353, 127
        %v5014 = vpop.permute.xlu0 %5013
        %5015 = vrot.lane.b32.xlu0 %v4355, 127
        %v5016 = vpop.permute.xlu0 %5015
        %5017 = vrot.lane.b32.xlu0 %v4350, 127
        %v5018 = vpop.permute.xlu0 %5017
        %5019 = vrot.lane.b32.xlu0 %v4352, 127
        %v5020 = vpop.permute.xlu0 %5019
        %5021 = vrot.lane.b32.xlu0 %v4354, 127
        %v5022 = vpop.permute.xlu0 %5021
        %5023 = vrot.lane.b32.xlu0 %v4356, 127
        %v5024 = vpop.permute.xlu0 %5023
        %v5025 = vsel %vm1156, %v5010, %v5018
        %v5026 = vsel %vm1156, %v5012, %v5020
        %v5027 = vsel %vm1156, %v5014, %v5022
        %v5028 = vsel %vm1156, %v5016, %v5024
        %v5029 = vsel %vm1156, %v5018, %v5010
        %v5030 = vsel %vm1156, %v5020, %v5012
        %v5031 = vsel %vm1156, %v5022, %v5014
        %v5032 = vsel %vm1156, %v5024, %v5016
        %v5033 = vld [vmem:[%s1165] ss:$8 sm:$0x3]
        %v5035 = vlaneseq
        %v5036 = vshrl.u32 %v5035, 7
        %v5037 = vsub.s32 0, %v5036
        %v5038 = vrot.slane %v5033, %v5037
        %v5039 = vlaneseq
        %v5040 = vshrl.u32 %v5039, 7
        %v5041 = vsub.s32 1, %v5040
        %v5042 = vrot.slane %v5033, %v5041
        %v5045 = vmul.f32 %v5025, %v5038
        %v5046 = vmul.f32 %v5029, %v5042
        %v5047 = vmul.f32 %v5026, %v5038
        %v5048 = vmul.f32 %v5030, %v5042
        %v5049 = vmul.f32 %v5027, %v5038
        %v5050 = vmul.f32 %v5031, %v5042
        %v5051 = vmul.f32 %v5028, %v5038
        %v5052 = vmul.f32 %v5032, %v5042
        %5053 = vst [vmem:[#allocation2 + $0x340] sm:$0xff] %v5045
        %5054 = vst [vmem:[#allocation2 + $0x348] sm:$0xff] %v5046
        %5055 = vst [vmem:[#allocation2 + $0x350] sm:$0xff] %v5047
        %5056 = vst [vmem:[#allocation2 + $0x358] sm:$0xff] %v5048
        %5057 = vst [vmem:[#allocation2 + $0x360] sm:$0xff] %v5049
        %5058 = vst [vmem:[#allocation2 + $0x368] sm:$0xff] %v5050
        %5059 = vst [vmem:[#allocation2 + $0x370] sm:$0xff] %v5051
        %5060 = vst [vmem:[#allocation2 + $0x378] sm:$0xff] %v5052
        %5061 = vrot.lane.b32.xlu0 %v4349, 126
        %v5062 = vpop.permute.xlu0 %5061
        %5063 = vrot.lane.b32.xlu0 %v4351, 126
        %v5064 = vpop.permute.xlu0 %5063
        %5065 = vrot.lane.b32.xlu0 %v4353, 126
        %v5066 = vpop.permute.xlu0 %5065
        %5067 = vrot.lane.b32.xlu0 %v4355, 126
        %v5068 = vpop.permute.xlu0 %5067
        %5069 = vrot.lane.b32.xlu0 %v4350, 126
        %v5070 = vpop.permute.xlu0 %5069
        %5071 = vrot.lane.b32.xlu0 %v4352, 126
        %v5072 = vpop.permute.xlu0 %5071
        %5073 = vrot.lane.b32.xlu0 %v4354, 126
        %v5074 = vpop.permute.xlu0 %5073
        %5075 = vrot.lane.b32.xlu0 %v4356, 126
        %v5076 = vpop.permute.xlu0 %5075
        %v5077 = vsel %vm1210, %v5062, %v5070
        %v5078 = vsel %vm1210, %v5064, %v5072
        %v5079 = vsel %vm1210, %v5066, %v5074
        %v5080 = vsel %vm1210, %v5068, %v5076
        %v5081 = vsel %vm1210, %v5070, %v5062
        %v5082 = vsel %vm1210, %v5072, %v5064
        %v5083 = vsel %vm1210, %v5074, %v5066
        %v5084 = vsel %vm1210, %v5076, %v5068
        %v5085 = vld [vmem:[%s1219] ss:$8 sm:$0x3]
        %v5087 = vlaneseq
        %v5088 = vshrl.u32 %v5087, 7
        %v5089 = vsub.s32 0, %v5088
        %v5090 = vrot.slane %v5085, %v5089
        %v5091 = vlaneseq
        %v5092 = vshrl.u32 %v5091, 7
        %v5093 = vsub.s32 1, %v5092
        %v5094 = vrot.slane %v5085, %v5093
        %v5097 = vmul.f32 %v5077, %v5090
        %v5098 = vmul.f32 %v5081, %v5094
        %v5099 = vmul.f32 %v5078, %v5090
        %v5100 = vmul.f32 %v5082, %v5094
        %v5101 = vmul.f32 %v5079, %v5090
        %v5102 = vmul.f32 %v5083, %v5094
        %v5103 = vmul.f32 %v5080, %v5090
        %v5104 = vmul.f32 %v5084, %v5094
        %5105 = vst [vmem:[#allocation2 + $0x380] sm:$0xff] %v5097
        %5106 = vst [vmem:[#allocation2 + $0x388] sm:$0xff] %v5098
        %5107 = vst [vmem:[#allocation2 + $0x390] sm:$0xff] %v5099
        %5108 = vst [vmem:[#allocation2 + $0x398] sm:$0xff] %v5100
        %5109 = vst [vmem:[#allocation2 + $0x3a0] sm:$0xff] %v5101
        %5110 = vst [vmem:[#allocation2 + $0x3a8] sm:$0xff] %v5102
        %5111 = vst [vmem:[#allocation2 + $0x3b0] sm:$0xff] %v5103
        %5112 = vst [vmem:[#allocation2 + $0x3b8] sm:$0xff] %v5104
        %5113 = vrot.lane.b32.xlu0 %v4349, 114
        %v5114 = vpop.permute.xlu0 %5113
        %5115 = vrot.lane.b32.xlu0 %v4351, 114
        %v5116 = vpop.permute.xlu0 %5115
        %5117 = vrot.lane.b32.xlu0 %v4353, 114
        %v5118 = vpop.permute.xlu0 %5117
        %5119 = vrot.lane.b32.xlu0 %v4355, 114
        %v5120 = vpop.permute.xlu0 %5119
        %5121 = vrot.lane.b32.xlu0 %v4350, 114
        %v5122 = vpop.permute.xlu0 %5121
        %5123 = vrot.lane.b32.xlu0 %v4352, 114
        %v5124 = vpop.permute.xlu0 %5123
        %5125 = vrot.lane.b32.xlu0 %v4354, 114
        %v5126 = vpop.permute.xlu0 %5125
        %5127 = vrot.lane.b32.xlu0 %v4356, 114
        %v5128 = vpop.permute.xlu0 %5127
        %v5129 = vsel %vm1264, %v5114, %v5122
        %v5130 = vsel %vm1264, %v5116, %v5124
        %v5131 = vsel %vm1264, %v5118, %v5126
        %v5132 = vsel %vm1264, %v5120, %v5128
        %v5133 = vsel %vm1264, %v5122, %v5114
        %v5134 = vsel %vm1264, %v5124, %v5116
        %v5135 = vsel %vm1264, %v5126, %v5118
        %v5136 = vsel %vm1264, %v5128, %v5120
        %v5137 = vld [vmem:[%s1273] ss:$8 sm:$0x3]
        %v5139 = vlaneseq
        %v5140 = vshrl.u32 %v5139, 7
        %v5141 = vsub.s32 0, %v5140
        %v5142 = vrot.slane %v5137, %v5141
        %v5143 = vlaneseq
        %v5144 = vshrl.u32 %v5143, 7
        %v5145 = vsub.s32 1, %v5144
        %v5146 = vrot.slane %v5137, %v5145
        %v5149 = vmul.f32 %v5129, %v5142
        %v5150 = vmul.f32 %v5133, %v5146
        %v5151 = vmul.f32 %v5130, %v5142
        %v5152 = vmul.f32 %v5134, %v5146
        %v5153 = vmul.f32 %v5131, %v5142
        %v5154 = vmul.f32 %v5135, %v5146
        %v5155 = vmul.f32 %v5132, %v5142
        %v5156 = vmul.f32 %v5136, %v5146
        %5157 = vst [vmem:[#allocation2 + $0x3c0] sm:$0xff] %v5149
        %5158 = vst [vmem:[#allocation2 + $0x3c8] sm:$0xff] %v5150
        %5159 = vst [vmem:[#allocation2 + $0x3d0] sm:$0xff] %v5151
        %5160 = vst [vmem:[#allocation2 + $0x3d8] sm:$0xff] %v5152
        %5161 = vst [vmem:[#allocation2 + $0x3e0] sm:$0xff] %v5153
        %5162 = vst [vmem:[#allocation2 + $0x3e8] sm:$0xff] %v5154
        %5163 = vst [vmem:[#allocation2 + $0x3f0] sm:$0xff] %v5155
        %5164 = vst [vmem:[#allocation2 + $0x3f8] sm:$0xff] %v5156
        %5165 = vrot.lane.b32.xlu0 %v4349, 113
        %v5166 = vpop.permute.xlu0 %5165
        %5167 = vrot.lane.b32.xlu0 %v4351, 113
        %v5168 = vpop.permute.xlu0 %5167
        %5169 = vrot.lane.b32.xlu0 %v4353, 113
        %v5170 = vpop.permute.xlu0 %5169
        %5171 = vrot.lane.b32.xlu0 %v4355, 113
        %v5172 = vpop.permute.xlu0 %5171
        %5173 = vrot.lane.b32.xlu0 %v4350, 113
        %v5174 = vpop.permute.xlu0 %5173
        %5175 = vrot.lane.b32.xlu0 %v4352, 113
        %v5176 = vpop.permute.xlu0 %5175
        %5177 = vrot.lane.b32.xlu0 %v4354, 113
        %v5178 = vpop.permute.xlu0 %5177
        %5179 = vrot.lane.b32.xlu0 %v4356, 113
        %v5180 = vpop.permute.xlu0 %5179
        %v5181 = vsel %vm1318, %v5166, %v5174
        %v5182 = vsel %vm1318, %v5168, %v5176
        %v5183 = vsel %vm1318, %v5170, %v5178
        %v5184 = vsel %vm1318, %v5172, %v5180
        %v5185 = vsel %vm1318, %v5174, %v5166
        %v5186 = vsel %vm1318, %v5176, %v5168
        %v5187 = vsel %vm1318, %v5178, %v5170
        %v5188 = vsel %vm1318, %v5180, %v5172
        %v5189 = vld [vmem:[%s1327] ss:$8 sm:$0x3]
        %v5191 = vlaneseq
        %v5192 = vshrl.u32 %v5191, 7
        %v5193 = vsub.s32 0, %v5192
        %v5194 = vrot.slane %v5189, %v5193
        %v5195 = vlaneseq
        %v5196 = vshrl.u32 %v5195, 7
        %v5197 = vsub.s32 1, %v5196
        %v5198 = vrot.slane %v5189, %v5197
        %v5201 = vmul.f32 %v5181, %v5194
        %v5202 = vmul.f32 %v5185, %v5198
        %v5203 = vmul.f32 %v5182, %v5194
        %v5204 = vmul.f32 %v5186, %v5198
        %v5205 = vmul.f32 %v5183, %v5194
        %v5206 = vmul.f32 %v5187, %v5198
        %v5207 = vmul.f32 %v5184, %v5194
        %v5208 = vmul.f32 %v5188, %v5198
        %5209 = vst [vmem:[#allocation2 + $0x400] sm:$0xff] %v5201
        %5210 = vst [vmem:[#allocation2 + $0x408] sm:$0xff] %v5202
        %5211 = vst [vmem:[#allocation2 + $0x410] sm:$0xff] %v5203
        %5212 = vst [vmem:[#allocation2 + $0x418] sm:$0xff] %v5204
        %5213 = vst [vmem:[#allocation2 + $0x420] sm:$0xff] %v5205
        %5214 = vst [vmem:[#allocation2 + $0x428] sm:$0xff] %v5206
        %5215 = vst [vmem:[#allocation2 + $0x430] sm:$0xff] %v5207
        %5216 = vst [vmem:[#allocation2 + $0x438] sm:$0xff] %v5208
        %5217 = vrot.lane.b32.xlu0 %v4349, 112
        %v5218 = vpop.permute.xlu0 %5217
        %5219 = vrot.lane.b32.xlu0 %v4351, 112
        %v5220 = vpop.permute.xlu0 %5219
        %5221 = vrot.lane.b32.xlu0 %v4353, 112
        %v5222 = vpop.permute.xlu0 %5221
        %5223 = vrot.lane.b32.xlu0 %v4355, 112
        %v5224 = vpop.permute.xlu0 %5223
        %5225 = vrot.lane.b32.xlu0 %v4350, 112
        %v5226 = vpop.permute.xlu0 %5225
        %5227 = vrot.lane.b32.xlu0 %v4352, 112
        %v5228 = vpop.permute.xlu0 %5227
        %5229 = vrot.lane.b32.xlu0 %v4354, 112
        %v5230 = vpop.permute.xlu0 %5229
        %5231 = vrot.lane.b32.xlu0 %v4356, 112
        %v5232 = vpop.permute.xlu0 %5231
        %v5233 = vsel %vm1372, %v5218, %v5226
        %v5234 = vsel %vm1372, %v5220, %v5228
        %v5235 = vsel %vm1372, %v5222, %v5230
        %v5236 = vsel %vm1372, %v5224, %v5232
        %v5237 = vsel %vm1372, %v5226, %v5218
        %v5238 = vsel %vm1372, %v5228, %v5220
        %v5239 = vsel %vm1372, %v5230, %v5222
        %v5240 = vsel %vm1372, %v5232, %v5224
        %v5241 = vld [vmem:[%s1381] ss:$8 sm:$0x3]
        %v5243 = vlaneseq
        %v5244 = vshrl.u32 %v5243, 7
        %v5245 = vsub.s32 0, %v5244
        %v5246 = vrot.slane %v5241, %v5245
        %v5247 = vlaneseq
        %v5248 = vshrl.u32 %v5247, 7
        %v5249 = vsub.s32 1, %v5248
        %v5250 = vrot.slane %v5241, %v5249
        %v5253 = vmul.f32 %v5233, %v5246
        %v5254 = vmul.f32 %v5237, %v5250
        %v5255 = vmul.f32 %v5234, %v5246
        %v5256 = vmul.f32 %v5238, %v5250
        %v5257 = vmul.f32 %v5235, %v5246
        %v5258 = vmul.f32 %v5239, %v5250
        %v5259 = vmul.f32 %v5236, %v5246
        %v5260 = vmul.f32 %v5240, %v5250
        %5261 = vst [vmem:[#allocation2 + $0x440] sm:$0xff] %v5253
        %5262 = vst [vmem:[#allocation2 + $0x448] sm:$0xff] %v5254
        %5263 = vst [vmem:[#allocation2 + $0x450] sm:$0xff] %v5255
        %5264 = vst [vmem:[#allocation2 + $0x458] sm:$0xff] %v5256
        %5265 = vst [vmem:[#allocation2 + $0x460] sm:$0xff] %v5257
        %5266 = vst [vmem:[#allocation2 + $0x468] sm:$0xff] %v5258
        %5267 = vst [vmem:[#allocation2 + $0x470] sm:$0xff] %v5259
        %5268 = vst [vmem:[#allocation2 + $0x478] sm:$0xff] %v5260
        %5269 = vrot.lane.b32.xlu0 %v4349, 111
        %v5270 = vpop.permute.xlu0 %5269
        %5271 = vrot.lane.b32.xlu0 %v4351, 111
        %v5272 = vpop.permute.xlu0 %5271
        %5273 = vrot.lane.b32.xlu0 %v4353, 111
        %v5274 = vpop.permute.xlu0 %5273
        %5275 = vrot.lane.b32.xlu0 %v4355, 111
        %v5276 = vpop.permute.xlu0 %5275
        %5277 = vrot.lane.b32.xlu0 %v4350, 111
        %v5278 = vpop.permute.xlu0 %5277
        %5279 = vrot.lane.b32.xlu0 %v4352, 111
        %v5280 = vpop.permute.xlu0 %5279
        %5281 = vrot.lane.b32.xlu0 %v4354, 111
        %v5282 = vpop.permute.xlu0 %5281
        %5283 = vrot.lane.b32.xlu0 %v4356, 111
        %v5284 = vpop.permute.xlu0 %5283
        %v5285 = vsel %vm1426, %v5270, %v5278
        %v5286 = vsel %vm1426, %v5272, %v5280
        %v5287 = vsel %vm1426, %v5274, %v5282
        %v5288 = vsel %vm1426, %v5276, %v5284
        %v5289 = vsel %vm1426, %v5278, %v5270
        %v5290 = vsel %vm1426, %v5280, %v5272
        %v5291 = vsel %vm1426, %v5282, %v5274
        %v5292 = vsel %vm1426, %v5284, %v5276
        %v5293 = vld [vmem:[%s1435] ss:$8 sm:$0x3]
        %v5295 = vlaneseq
        %v5296 = vshrl.u32 %v5295, 7
        %v5297 = vsub.s32 0, %v5296
        %v5298 = vrot.slane %v5293, %v5297
        %v5299 = vlaneseq
        %v5300 = vshrl.u32 %v5299, 7
        %v5301 = vsub.s32 1, %v5300
        %v5302 = vrot.slane %v5293, %v5301
        %v5305 = vmul.f32 %v5285, %v5298
        %v5306 = vmul.f32 %v5289, %v5302
        %v5307 = vmul.f32 %v5286, %v5298
        %v5308 = vmul.f32 %v5290, %v5302
        %v5309 = vmul.f32 %v5287, %v5298
        %v5310 = vmul.f32 %v5291, %v5302
        %v5311 = vmul.f32 %v5288, %v5298
        %v5312 = vmul.f32 %v5292, %v5302
        %5313 = vst [vmem:[#allocation2 + $0x480] sm:$0xff] %v5305
        %5314 = vst [vmem:[#allocation2 + $0x488] sm:$0xff] %v5306
        %5315 = vst [vmem:[#allocation2 + $0x490] sm:$0xff] %v5307
        %5316 = vst [vmem:[#allocation2 + $0x498] sm:$0xff] %v5308
        %5317 = vst [vmem:[#allocation2 + $0x4a0] sm:$0xff] %v5309
        %5318 = vst [vmem:[#allocation2 + $0x4a8] sm:$0xff] %v5310
        %5319 = vst [vmem:[#allocation2 + $0x4b0] sm:$0xff] %v5311
        %5320 = vst [vmem:[#allocation2 + $0x4b8] sm:$0xff] %v5312
        %5321 = vrot.lane.b32.xlu0 %v4349, 110
        %v5322 = vpop.permute.xlu0 %5321
        %5323 = vrot.lane.b32.xlu0 %v4351, 110
        %v5324 = vpop.permute.xlu0 %5323
        %5325 = vrot.lane.b32.xlu0 %v4353, 110
        %v5326 = vpop.permute.xlu0 %5325
        %5327 = vrot.lane.b32.xlu0 %v4355, 110
        %v5328 = vpop.permute.xlu0 %5327
        %5329 = vrot.lane.b32.xlu0 %v4350, 110
        %v5330 = vpop.permute.xlu0 %5329
        %5331 = vrot.lane.b32.xlu0 %v4352, 110
        %v5332 = vpop.permute.xlu0 %5331
        %5333 = vrot.lane.b32.xlu0 %v4354, 110
        %v5334 = vpop.permute.xlu0 %5333
        %5335 = vrot.lane.b32.xlu0 %v4356, 110
        %v5336 = vpop.permute.xlu0 %5335
        %v5337 = vsel %vm1480, %v5322, %v5330
        %v5338 = vsel %vm1480, %v5324, %v5332
        %v5339 = vsel %vm1480, %v5326, %v5334
        %v5340 = vsel %vm1480, %v5328, %v5336
        %v5341 = vsel %vm1480, %v5330, %v5322
        %v5342 = vsel %vm1480, %v5332, %v5324
        %v5343 = vsel %vm1480, %v5334, %v5326
        %v5344 = vsel %vm1480, %v5336, %v5328
        %v5345 = vld [vmem:[%s1489] ss:$8 sm:$0x3]
        %v5347 = vlaneseq
        %v5348 = vshrl.u32 %v5347, 7
        %v5349 = vsub.s32 0, %v5348
        %v5350 = vrot.slane %v5345, %v5349
        %v5351 = vlaneseq
        %v5352 = vshrl.u32 %v5351, 7
        %v5353 = vsub.s32 1, %v5352
        %v5354 = vrot.slane %v5345, %v5353
        %v5357 = vmul.f32 %v5337, %v5350
        %v5358 = vmul.f32 %v5341, %v5354
        %v5359 = vmul.f32 %v5338, %v5350
        %v5360 = vmul.f32 %v5342, %v5354
        %v5361 = vmul.f32 %v5339, %v5350
        %v5362 = vmul.f32 %v5343, %v5354
        %v5363 = vmul.f32 %v5340, %v5350
        %v5364 = vmul.f32 %v5344, %v5354
        %5365 = vst [vmem:[#allocation2 + $0x4c0] sm:$0xff] %v5357
        %5366 = vst [vmem:[#allocation2 + $0x4c8] sm:$0xff] %v5358
        %5367 = vst [vmem:[#allocation2 + $0x4d0] sm:$0xff] %v5359
        %5368 = vst [vmem:[#allocation2 + $0x4d8] sm:$0xff] %v5360
        %5369 = vst [vmem:[#allocation2 + $0x4e0] sm:$0xff] %v5361
        %5370 = vst [vmem:[#allocation2 + $0x4e8] sm:$0xff] %v5362
        %5371 = vst [vmem:[#allocation2 + $0x4f0] sm:$0xff] %v5363
        %5372 = vst [vmem:[#allocation2 + $0x4f8] sm:$0xff] %v5364
        %5373 = vrot.lane.b32.xlu0 %v4349, 98
        %v5374 = vpop.permute.xlu0 %5373
        %5375 = vrot.lane.b32.xlu0 %v4351, 98
        %v5376 = vpop.permute.xlu0 %5375
        %5377 = vrot.lane.b32.xlu0 %v4353, 98
        %v5378 = vpop.permute.xlu0 %5377
        %5379 = vrot.lane.b32.xlu0 %v4355, 98
        %v5380 = vpop.permute.xlu0 %5379
        %5381 = vrot.lane.b32.xlu0 %v4350, 98
        %v5382 = vpop.permute.xlu0 %5381
        %5383 = vrot.lane.b32.xlu0 %v4352, 98
        %v5384 = vpop.permute.xlu0 %5383
        %5385 = vrot.lane.b32.xlu0 %v4354, 98
        %v5386 = vpop.permute.xlu0 %5385
        %5387 = vrot.lane.b32.xlu0 %v4356, 98
        %v5388 = vpop.permute.xlu0 %5387
        %v5389 = vsel %vm1534, %v5374, %v5382
        %v5390 = vsel %vm1534, %v5376, %v5384
        %v5391 = vsel %vm1534, %v5378, %v5386
        %v5392 = vsel %vm1534, %v5380, %v5388
        %v5393 = vsel %vm1534, %v5382, %v5374
        %v5394 = vsel %vm1534, %v5384, %v5376
        %v5395 = vsel %vm1534, %v5386, %v5378
        %v5396 = vsel %vm1534, %v5388, %v5380
        %v5397 = vld [vmem:[%s1543] ss:$8 sm:$0x3]
        %v5399 = vlaneseq
        %v5400 = vshrl.u32 %v5399, 7
        %v5401 = vsub.s32 0, %v5400
        %v5402 = vrot.slane %v5397, %v5401
        %v5403 = vlaneseq
        %v5404 = vshrl.u32 %v5403, 7
        %v5405 = vsub.s32 1, %v5404
        %v5406 = vrot.slane %v5397, %v5405
        %v5409 = vmul.f32 %v5389, %v5402
        %v5410 = vmul.f32 %v5393, %v5406
        %v5411 = vmul.f32 %v5390, %v5402
        %v5412 = vmul.f32 %v5394, %v5406
        %v5413 = vmul.f32 %v5391, %v5402
        %v5414 = vmul.f32 %v5395, %v5406
        %v5415 = vmul.f32 %v5392, %v5402
        %v5416 = vmul.f32 %v5396, %v5406
        %5417 = vst [vmem:[#allocation2 + $0x500] sm:$0xff] %v5409
        %5418 = vst [vmem:[#allocation2 + $0x508] sm:$0xff] %v5410
        %5419 = vst [vmem:[#allocation2 + $0x510] sm:$0xff] %v5411
        %5420 = vst [vmem:[#allocation2 + $0x518] sm:$0xff] %v5412
        %5421 = vst [vmem:[#allocation2 + $0x520] sm:$0xff] %v5413
        %5422 = vst [vmem:[#allocation2 + $0x528] sm:$0xff] %v5414
        %5423 = vst [vmem:[#allocation2 + $0x530] sm:$0xff] %v5415
        %5424 = vst [vmem:[#allocation2 + $0x538] sm:$0xff] %v5416
        %5425 = vrot.lane.b32.xlu0 %v4349, 97
        %v5426 = vpop.permute.xlu0 %5425
        %5427 = vrot.lane.b32.xlu0 %v4351, 97
        %v5428 = vpop.permute.xlu0 %5427
        %5429 = vrot.lane.b32.xlu0 %v4353, 97
        %v5430 = vpop.permute.xlu0 %5429
        %5431 = vrot.lane.b32.xlu0 %v4355, 97
        %v5432 = vpop.permute.xlu0 %5431
        %5433 = vrot.lane.b32.xlu0 %v4350, 97
        %v5434 = vpop.permute.xlu0 %5433
        %5435 = vrot.lane.b32.xlu0 %v4352, 97
        %v5436 = vpop.permute.xlu0 %5435
        %5437 = vrot.lane.b32.xlu0 %v4354, 97
        %v5438 = vpop.permute.xlu0 %5437
        %5439 = vrot.lane.b32.xlu0 %v4356, 97
        %v5440 = vpop.permute.xlu0 %5439
        %v5441 = vsel %vm1588, %v5426, %v5434
        %v5442 = vsel %vm1588, %v5428, %v5436
        %v5443 = vsel %vm1588, %v5430, %v5438
        %v5444 = vsel %vm1588, %v5432, %v5440
        %v5445 = vsel %vm1588, %v5434, %v5426
        %v5446 = vsel %vm1588, %v5436, %v5428
        %v5447 = vsel %vm1588, %v5438, %v5430
        %v5448 = vsel %vm1588, %v5440, %v5432
        %v5449 = vld [vmem:[%s1597] ss:$8 sm:$0x3]
        %v5451 = vlaneseq
        %v5452 = vshrl.u32 %v5451, 7
        %v5453 = vsub.s32 0, %v5452
        %v5454 = vrot.slane %v5449, %v5453
        %v5455 = vlaneseq
        %v5456 = vshrl.u32 %v5455, 7
        %v5457 = vsub.s32 1, %v5456
        %v5458 = vrot.slane %v5449, %v5457
        %v5461 = vmul.f32 %v5441, %v5454
        %v5462 = vmul.f32 %v5445, %v5458
        %v5463 = vmul.f32 %v5442, %v5454
        %v5464 = vmul.f32 %v5446, %v5458
        %v5465 = vmul.f32 %v5443, %v5454
        %v5466 = vmul.f32 %v5447, %v5458
        %v5467 = vmul.f32 %v5444, %v5454
        %v5468 = vmul.f32 %v5448, %v5458
        %5469 = vst [vmem:[#allocation2 + $0x540] sm:$0xff] %v5461
        %5470 = vst [vmem:[#allocation2 + $0x548] sm:$0xff] %v5462
        %5471 = vst [vmem:[#allocation2 + $0x550] sm:$0xff] %v5463
        %5472 = vst [vmem:[#allocation2 + $0x558] sm:$0xff] %v5464
        %5473 = vst [vmem:[#allocation2 + $0x560] sm:$0xff] %v5465
        %5474 = vst [vmem:[#allocation2 + $0x568] sm:$0xff] %v5466
        %5475 = vst [vmem:[#allocation2 + $0x570] sm:$0xff] %v5467
        %5476 = vst [vmem:[#allocation2 + $0x578] sm:$0xff] %v5468
        %5477 = vrot.lane.b32.xlu0 %v4349, 96
        %v5478 = vpop.permute.xlu0 %5477
        %5479 = vrot.lane.b32.xlu0 %v4351, 96
        %v5480 = vpop.permute.xlu0 %5479
        %5481 = vrot.lane.b32.xlu0 %v4353, 96
        %v5482 = vpop.permute.xlu0 %5481
        %5483 = vrot.lane.b32.xlu0 %v4355, 96
        %v5484 = vpop.permute.xlu0 %5483
        %5485 = vrot.lane.b32.xlu0 %v4350, 96
        %v5486 = vpop.permute.xlu0 %5485
        %5487 = vrot.lane.b32.xlu0 %v4352, 96
        %v5488 = vpop.permute.xlu0 %5487
        %5489 = vrot.lane.b32.xlu0 %v4354, 96
        %v5490 = vpop.permute.xlu0 %5489
        %5491 = vrot.lane.b32.xlu0 %v4356, 96
        %v5492 = vpop.permute.xlu0 %5491
        %v5493 = vsel %vm1642, %v5478, %v5486
        %v5494 = vsel %vm1642, %v5480, %v5488
        %v5495 = vsel %vm1642, %v5482, %v5490
        %v5496 = vsel %vm1642, %v5484, %v5492
        %v5497 = vsel %vm1642, %v5486, %v5478
        %v5498 = vsel %vm1642, %v5488, %v5480
        %v5499 = vsel %vm1642, %v5490, %v5482
        %v5500 = vsel %vm1642, %v5492, %v5484
        %v5501 = vld [vmem:[%s1651] ss:$8 sm:$0x3]
        %v5503 = vlaneseq
        %v5504 = vshrl.u32 %v5503, 7
        %v5505 = vsub.s32 0, %v5504
        %v5506 = vrot.slane %v5501, %v5505
        %v5507 = vlaneseq
        %v5508 = vshrl.u32 %v5507, 7
        %v5509 = vsub.s32 1, %v5508
        %v5510 = vrot.slane %v5501, %v5509
        %v5513 = vmul.f32 %v5493, %v5506
        %v5514 = vmul.f32 %v5497, %v5510
        %v5515 = vmul.f32 %v5494, %v5506
        %v5516 = vmul.f32 %v5498, %v5510
        %v5517 = vmul.f32 %v5495, %v5506
        %v5518 = vmul.f32 %v5499, %v5510
        %v5519 = vmul.f32 %v5496, %v5506
        %v5520 = vmul.f32 %v5500, %v5510
        %5521 = vst [vmem:[#allocation2 + $0x580] sm:$0xff] %v5513
        %5522 = vst [vmem:[#allocation2 + $0x588] sm:$0xff] %v5514
        %5523 = vst [vmem:[#allocation2 + $0x590] sm:$0xff] %v5515
        %5524 = vst [vmem:[#allocation2 + $0x598] sm:$0xff] %v5516
        %5525 = vst [vmem:[#allocation2 + $0x5a0] sm:$0xff] %v5517
        %5526 = vst [vmem:[#allocation2 + $0x5a8] sm:$0xff] %v5518
        %5527 = vst [vmem:[#allocation2 + $0x5b0] sm:$0xff] %v5519
        %5528 = vst [vmem:[#allocation2 + $0x5b8] sm:$0xff] %v5520
        %5529 = vrot.lane.b32.xlu0 %v4349, 95
        %v5530 = vpop.permute.xlu0 %5529
        %5531 = vrot.lane.b32.xlu0 %v4351, 95
        %v5532 = vpop.permute.xlu0 %5531
        %5533 = vrot.lane.b32.xlu0 %v4353, 95
        %v5534 = vpop.permute.xlu0 %5533
        %5535 = vrot.lane.b32.xlu0 %v4355, 95
        %v5536 = vpop.permute.xlu0 %5535
        %5537 = vrot.lane.b32.xlu0 %v4350, 95
        %v5538 = vpop.permute.xlu0 %5537
        %5539 = vrot.lane.b32.xlu0 %v4352, 95
        %v5540 = vpop.permute.xlu0 %5539
        %5541 = vrot.lane.b32.xlu0 %v4354, 95
        %v5542 = vpop.permute.xlu0 %5541
        %5543 = vrot.lane.b32.xlu0 %v4356, 95
        %v5544 = vpop.permute.xlu0 %5543
        %v5545 = vsel %vm1696, %v5530, %v5538
        %v5546 = vsel %vm1696, %v5532, %v5540
        %v5547 = vsel %vm1696, %v5534, %v5542
        %v5548 = vsel %vm1696, %v5536, %v5544
        %v5549 = vsel %vm1696, %v5538, %v5530
        %v5550 = vsel %vm1696, %v5540, %v5532
        %v5551 = vsel %vm1696, %v5542, %v5534
        %v5552 = vsel %vm1696, %v5544, %v5536
        %v5553 = vld [vmem:[%s1705] ss:$8 sm:$0x3]
        %v5555 = vlaneseq
        %v5556 = vshrl.u32 %v5555, 7
        %v5557 = vsub.s32 0, %v5556
        %v5558 = vrot.slane %v5553, %v5557
        %v5559 = vlaneseq
        %v5560 = vshrl.u32 %v5559, 7
        %v5561 = vsub.s32 1, %v5560
        %v5562 = vrot.slane %v5553, %v5561
        %v5565 = vmul.f32 %v5545, %v5558
        %v5566 = vmul.f32 %v5549, %v5562
        %v5567 = vmul.f32 %v5546, %v5558
        %v5568 = vmul.f32 %v5550, %v5562
        %v5569 = vmul.f32 %v5547, %v5558
        %v5570 = vmul.f32 %v5551, %v5562
        %v5571 = vmul.f32 %v5548, %v5558
        %v5572 = vmul.f32 %v5552, %v5562
        %5573 = vst [vmem:[#allocation2 + $0x5c0] sm:$0xff] %v5565
        %5574 = vst [vmem:[#allocation2 + $0x5c8] sm:$0xff] %v5566
        %5575 = vst [vmem:[#allocation2 + $0x5d0] sm:$0xff] %v5567
        %5576 = vst [vmem:[#allocation2 + $0x5d8] sm:$0xff] %v5568
        %5577 = vst [vmem:[#allocation2 + $0x5e0] sm:$0xff] %v5569
        %5578 = vst [vmem:[#allocation2 + $0x5e8] sm:$0xff] %v5570
        %5579 = vst [vmem:[#allocation2 + $0x5f0] sm:$0xff] %v5571
        %5580 = vst [vmem:[#allocation2 + $0x5f8] sm:$0xff] %v5572
        %5581 = vrot.lane.b32.xlu0 %v4349, 94
        %v5582 = vpop.permute.xlu0 %5581
        %5583 = vrot.lane.b32.xlu0 %v4351, 94
        %v5584 = vpop.permute.xlu0 %5583
        %5585 = vrot.lane.b32.xlu0 %v4353, 94
        %v5586 = vpop.permute.xlu0 %5585
        %5587 = vrot.lane.b32.xlu0 %v4355, 94
        %v5588 = vpop.permute.xlu0 %5587
        %5589 = vrot.lane.b32.xlu0 %v4350, 94
        %v5590 = vpop.permute.xlu0 %5589
        %5591 = vrot.lane.b32.xlu0 %v4352, 94
        %v5592 = vpop.permute.xlu0 %5591
        %5593 = vrot.lane.b32.xlu0 %v4354, 94
        %v5594 = vpop.permute.xlu0 %5593
        %5595 = vrot.lane.b32.xlu0 %v4356, 94
        %v5596 = vpop.permute.xlu0 %5595
        %v5597 = vsel %vm1750, %v5582, %v5590
        %v5598 = vsel %vm1750, %v5584, %v5592
        %v5599 = vsel %vm1750, %v5586, %v5594
        %v5600 = vsel %vm1750, %v5588, %v5596
        %v5601 = vsel %vm1750, %v5590, %v5582
        %v5602 = vsel %vm1750, %v5592, %v5584
        %v5603 = vsel %vm1750, %v5594, %v5586
        %v5604 = vsel %vm1750, %v5596, %v5588
        %v5605 = vld [vmem:[%s1759] ss:$8 sm:$0x3]
        %v5607 = vlaneseq
        %v5608 = vshrl.u32 %v5607, 7
        %v5609 = vsub.s32 0, %v5608
        %v5610 = vrot.slane %v5605, %v5609
        %v5611 = vlaneseq
        %v5612 = vshrl.u32 %v5611, 7
        %v5613 = vsub.s32 1, %v5612
        %v5614 = vrot.slane %v5605, %v5613
        %v5617 = vmul.f32 %v5597, %v5610
        %v5618 = vmul.f32 %v5601, %v5614
        %v5619 = vmul.f32 %v5598, %v5610
        %v5620 = vmul.f32 %v5602, %v5614
        %v5621 = vmul.f32 %v5599, %v5610
        %v5622 = vmul.f32 %v5603, %v5614
        %v5623 = vmul.f32 %v5600, %v5610
        %v5624 = vmul.f32 %v5604, %v5614
        %5625 = vst [vmem:[#allocation2 + $0x600] sm:$0xff] %v5617
        %5626 = vst [vmem:[#allocation2 + $0x608] sm:$0xff] %v5618
        %5627 = vst [vmem:[#allocation2 + $0x610] sm:$0xff] %v5619
        %5628 = vst [vmem:[#allocation2 + $0x618] sm:$0xff] %v5620
        %5629 = vst [vmem:[#allocation2 + $0x620] sm:$0xff] %v5621
        %5630 = vst [vmem:[#allocation2 + $0x628] sm:$0xff] %v5622
        %5631 = vst [vmem:[#allocation2 + $0x630] sm:$0xff] %v5623
        %5632 = vst [vmem:[#allocation2 + $0x638] sm:$0xff] %v5624
        %v5633 = vld [vmem:[#allocation10] sm:$0xff]
        %v5634 = vld [vmem:[#allocation10 + $0x8] sm:$0xff]
        %v5635 = vld [vmem:[#allocation10 + $0x10] sm:$0xff]
        %v5636 = vld [vmem:[#allocation10 + $0x18] sm:$0xf]
        %v5637 = vld [vmem:[#allocation2] sm:$0xff]
        %v5638 = vld [vmem:[#allocation2 + $0x8] sm:$0xff]
        %v5639 = vld [vmem:[#allocation2 + $0x10] sm:$0xff]
        %v5640 = vld [vmem:[#allocation2 + $0x18] sm:$0xff]
        %v5641 = vld [vmem:[#allocation2 + $0x20] sm:$0xff]
        %v5642 = vld [vmem:[#allocation2 + $0x28] sm:$0xff]
        %v5643 = vld [vmem:[#allocation2 + $0x30] sm:$0xff]
        %v5644 = vld [vmem:[#allocation2 + $0x38] sm:$0xff]
        %v5645 = vld [vmem:[#allocation2 + $0x40] sm:$0xff]
        %v5646 = vld [vmem:[#allocation2 + $0x48] sm:$0xff]
        %v5647 = vld [vmem:[#allocation2 + $0x50] sm:$0xff]
        %v5648 = vld [vmem:[#allocation2 + $0x58] sm:$0xff]
        %v5649 = vld [vmem:[#allocation2 + $0x60] sm:$0xff]
        %v5650 = vld [vmem:[#allocation2 + $0x68] sm:$0xff]
        %v5651 = vld [vmem:[#allocation2 + $0x70] sm:$0xff]
        %v5652 = vld [vmem:[#allocation2 + $0x78] sm:$0xff]
        %v5653 = vld [vmem:[#allocation2 + $0x80] sm:$0xff]
        %v5654 = vld [vmem:[#allocation2 + $0x88] sm:$0xff]
        %v5655 = vld [vmem:[#allocation2 + $0x90] sm:$0xff]
        %v5656 = vld [vmem:[#allocation2 + $0x98] sm:$0xff]
        %v5657 = vld [vmem:[#allocation2 + $0xa0] sm:$0xff]
        %v5658 = vld [vmem:[#allocation2 + $0xa8] sm:$0xff]
        %v5659 = vld [vmem:[#allocation2 + $0xb0] sm:$0xff]
        %v5660 = vld [vmem:[#allocation2 + $0xb8] sm:$0xff]
        %v5661 = vld [vmem:[#allocation2 + $0xc0] sm:$0xff]
        %v5662 = vld [vmem:[#allocation2 + $0xc8] sm:$0xff]
        %v5663 = vld [vmem:[#allocation2 + $0xd0] sm:$0xff]
        %v5664 = vld [vmem:[#allocation2 + $0xd8] sm:$0xff]
        %v5665 = vld [vmem:[#allocation2 + $0xe0] sm:$0xff]
        %v5666 = vld [vmem:[#allocation2 + $0xe8] sm:$0xff]
        %v5667 = vld [vmem:[#allocation2 + $0xf0] sm:$0xff]
        %v5668 = vld [vmem:[#allocation2 + $0xf8] sm:$0xff]
        %v5669 = vld [vmem:[#allocation2 + $0x100] sm:$0xff]
        %v5670 = vld [vmem:[#allocation2 + $0x108] sm:$0xff]
        %v5671 = vld [vmem:[#allocation2 + $0x110] sm:$0xff]
        %v5672 = vld [vmem:[#allocation2 + $0x118] sm:$0xff]
        %v5673 = vld [vmem:[#allocation2 + $0x120] sm:$0xff]
        %v5674 = vld [vmem:[#allocation2 + $0x128] sm:$0xff]
        %v5675 = vld [vmem:[#allocation2 + $0x130] sm:$0xff]
        %v5676 = vld [vmem:[#allocation2 + $0x138] sm:$0xff]
        %v5677 = vld [vmem:[#allocation2 + $0x140] sm:$0xff]
        %v5678 = vld [vmem:[#allocation2 + $0x148] sm:$0xff]
        %v5679 = vld [vmem:[#allocation2 + $0x150] sm:$0xff]
        %v5680 = vld [vmem:[#allocation2 + $0x158] sm:$0xff]
        %v5681 = vld [vmem:[#allocation2 + $0x160] sm:$0xff]
        %v5682 = vld [vmem:[#allocation2 + $0x168] sm:$0xff]
        %v5683 = vld [vmem:[#allocation2 + $0x170] sm:$0xff]
        %v5684 = vld [vmem:[#allocation2 + $0x178] sm:$0xff]
        %v5685 = vld [vmem:[#allocation2 + $0x180] sm:$0xff]
        %v5686 = vld [vmem:[#allocation2 + $0x188] sm:$0xff]
        %v5687 = vld [vmem:[#allocation2 + $0x190] sm:$0xff]
        %v5688 = vld [vmem:[#allocation2 + $0x198] sm:$0xff]
        %v5689 = vld [vmem:[#allocation2 + $0x1a0] sm:$0xff]
        %v5690 = vld [vmem:[#allocation2 + $0x1a8] sm:$0xff]
        %v5691 = vld [vmem:[#allocation2 + $0x1b0] sm:$0xff]
        %v5692 = vld [vmem:[#allocation2 + $0x1b8] sm:$0xff]
        %v5693 = vld [vmem:[#allocation2 + $0x1c0] sm:$0xff]
        %v5694 = vld [vmem:[#allocation2 + $0x1c8] sm:$0xff]
        %v5695 = vld [vmem:[#allocation2 + $0x1d0] sm:$0xff]
        %v5696 = vld [vmem:[#allocation2 + $0x1d8] sm:$0xff]
        %v5697 = vld [vmem:[#allocation2 + $0x1e0] sm:$0xff]
        %v5698 = vld [vmem:[#allocation2 + $0x1e8] sm:$0xff]
        %v5699 = vld [vmem:[#allocation2 + $0x1f0] sm:$0xff]
        %v5700 = vld [vmem:[#allocation2 + $0x1f8] sm:$0xff]
        %v5701 = vld [vmem:[#allocation2 + $0x200] sm:$0xff]
        %v5702 = vld [vmem:[#allocation2 + $0x208] sm:$0xff]
        %v5703 = vld [vmem:[#allocation2 + $0x210] sm:$0xff]
        %v5704 = vld [vmem:[#allocation2 + $0x218] sm:$0xff]
        %v5705 = vld [vmem:[#allocation2 + $0x220] sm:$0xff]
        %v5706 = vld [vmem:[#allocation2 + $0x228] sm:$0xff]
        %v5707 = vld [vmem:[#allocation2 + $0x230] sm:$0xff]
        %v5708 = vld [vmem:[#allocation2 + $0x238] sm:$0xff]
        %v5709 = vld [vmem:[#allocation2 + $0x240] sm:$0xff]
        %v5710 = vld [vmem:[#allocation2 + $0x248] sm:$0xff]
        %v5711 = vld [vmem:[#allocation2 + $0x250] sm:$0xff]
        %v5712 = vld [vmem:[#allocation2 + $0x258] sm:$0xff]
        %v5713 = vld [vmem:[#allocation2 + $0x260] sm:$0xff]
        %v5714 = vld [vmem:[#allocation2 + $0x268] sm:$0xff]
        %v5715 = vld [vmem:[#allocation2 + $0x270] sm:$0xff]
        %v5716 = vld [vmem:[#allocation2 + $0x278] sm:$0xff]
        %v5717 = vld [vmem:[#allocation2 + $0x280] sm:$0xff]
        %v5718 = vld [vmem:[#allocation2 + $0x288] sm:$0xff]
        %v5719 = vld [vmem:[#allocation2 + $0x290] sm:$0xff]
        %v5720 = vld [vmem:[#allocation2 + $0x298] sm:$0xff]
        %v5721 = vld [vmem:[#allocation2 + $0x2a0] sm:$0xff]
        %v5722 = vld [vmem:[#allocation2 + $0x2a8] sm:$0xff]
        %v5723 = vld [vmem:[#allocation2 + $0x2b0] sm:$0xff]
        %v5724 = vld [vmem:[#allocation2 + $0x2b8] sm:$0xff]
        %v5725 = vld [vmem:[#allocation2 + $0x2c0] sm:$0xff]
        %v5726 = vld [vmem:[#allocation2 + $0x2c8] sm:$0xff]
        %v5727 = vld [vmem:[#allocation2 + $0x2d0] sm:$0xff]
        %v5728 = vld [vmem:[#allocation2 + $0x2d8] sm:$0xff]
        %v5729 = vld [vmem:[#allocation2 + $0x2e0] sm:$0xff]
        %v5730 = vld [vmem:[#allocation2 + $0x2e8] sm:$0xff]
        %v5731 = vld [vmem:[#allocation2 + $0x2f0] sm:$0xff]
        %v5732 = vld [vmem:[#allocation2 + $0x2f8] sm:$0xff]
        %v5733 = vld [vmem:[#allocation2 + $0x300] sm:$0xff]
        %v5734 = vld [vmem:[#allocation2 + $0x308] sm:$0xff]
        %v5735 = vld [vmem:[#allocation2 + $0x310] sm:$0xff]
        %v5736 = vld [vmem:[#allocation2 + $0x318] sm:$0xff]
        %v5737 = vld [vmem:[#allocation2 + $0x320] sm:$0xff]
        %v5738 = vld [vmem:[#allocation2 + $0x328] sm:$0xff]
        %v5739 = vld [vmem:[#allocation2 + $0x330] sm:$0xff]
        %v5740 = vld [vmem:[#allocation2 + $0x338] sm:$0xff]
        %v5741 = vld [vmem:[#allocation2 + $0x340] sm:$0xff]
        %v5742 = vld [vmem:[#allocation2 + $0x348] sm:$0xff]
        %v5743 = vld [vmem:[#allocation2 + $0x350] sm:$0xff]
        %v5744 = vld [vmem:[#allocation2 + $0x358] sm:$0xff]
        %v5745 = vld [vmem:[#allocation2 + $0x360] sm:$0xff]
        %v5746 = vld [vmem:[#allocation2 + $0x368] sm:$0xff]
        %v5747 = vld [vmem:[#allocation2 + $0x370] sm:$0xff]
        %v5748 = vld [vmem:[#allocation2 + $0x378] sm:$0xff]
        %v5749 = vld [vmem:[#allocation2 + $0x380] sm:$0xff]
        %v5750 = vld [vmem:[#allocation2 + $0x388] sm:$0xff]
        %v5751 = vld [vmem:[#allocation2 + $0x390] sm:$0xff]
        %v5752 = vld [vmem:[#allocation2 + $0x398] sm:$0xff]
        %v5753 = vld [vmem:[#allocation2 + $0x3a0] sm:$0xff]
        %v5754 = vld [vmem:[#allocation2 + $0x3a8] sm:$0xff]
        %v5755 = vld [vmem:[#allocation2 + $0x3b0] sm:$0xff]
        %v5756 = vld [vmem:[#allocation2 + $0x3b8] sm:$0xff]
        %v5757 = vld [vmem:[#allocation2 + $0x3c0] sm:$0xff]
        %v5758 = vld [vmem:[#allocation2 + $0x3c8] sm:$0xff]
        %v5759 = vld [vmem:[#allocation2 + $0x3d0] sm:$0xff]
        %v5760 = vld [vmem:[#allocation2 + $0x3d8] sm:$0xff]
        %v5761 = vld [vmem:[#allocation2 + $0x3e0] sm:$0xff]
        %v5762 = vld [vmem:[#allocation2 + $0x3e8] sm:$0xff]
        %v5763 = vld [vmem:[#allocation2 + $0x3f0] sm:$0xff]
        %v5764 = vld [vmem:[#allocation2 + $0x3f8] sm:$0xff]
        %v5765 = vld [vmem:[#allocation2 + $0x400] sm:$0xff]
        %v5766 = vld [vmem:[#allocation2 + $0x408] sm:$0xff]
        %v5767 = vld [vmem:[#allocation2 + $0x410] sm:$0xff]
        %v5768 = vld [vmem:[#allocation2 + $0x418] sm:$0xff]
        %v5769 = vld [vmem:[#allocation2 + $0x420] sm:$0xff]
        %v5770 = vld [vmem:[#allocation2 + $0x428] sm:$0xff]
        %v5771 = vld [vmem:[#allocation2 + $0x430] sm:$0xff]
        %v5772 = vld [vmem:[#allocation2 + $0x438] sm:$0xff]
        %v5773 = vld [vmem:[#allocation2 + $0x440] sm:$0xff]
        %v5774 = vld [vmem:[#allocation2 + $0x448] sm:$0xff]
        %v5775 = vld [vmem:[#allocation2 + $0x450] sm:$0xff]
        %v5776 = vld [vmem:[#allocation2 + $0x458] sm:$0xff]
        %v5777 = vld [vmem:[#allocation2 + $0x460] sm:$0xff]
        %v5778 = vld [vmem:[#allocation2 + $0x468] sm:$0xff]
        %v5779 = vld [vmem:[#allocation2 + $0x470] sm:$0xff]
        %v5780 = vld [vmem:[#allocation2 + $0x478] sm:$0xff]
        %v5781 = vld [vmem:[#allocation2 + $0x480] sm:$0xff]
        %v5782 = vld [vmem:[#allocation2 + $0x488] sm:$0xff]
        %v5783 = vld [vmem:[#allocation2 + $0x490] sm:$0xff]
        %v5784 = vld [vmem:[#allocation2 + $0x498] sm:$0xff]
        %v5785 = vld [vmem:[#allocation2 + $0x4a0] sm:$0xff]
        %v5786 = vld [vmem:[#allocation2 + $0x4a8] sm:$0xff]
        %v5787 = vld [vmem:[#allocation2 + $0x4b0] sm:$0xff]
        %v5788 = vld [vmem:[#allocation2 + $0x4b8] sm:$0xff]
        %v5789 = vld [vmem:[#allocation2 + $0x4c0] sm:$0xff]
        %v5790 = vld [vmem:[#allocation2 + $0x4c8] sm:$0xff]
        %v5791 = vld [vmem:[#allocation2 + $0x4d0] sm:$0xff]
        %v5792 = vld [vmem:[#allocation2 + $0x4d8] sm:$0xff]
        %v5793 = vld [vmem:[#allocation2 + $0x4e0] sm:$0xff]
        %v5794 = vld [vmem:[#allocation2 + $0x4e8] sm:$0xff]
        %v5795 = vld [vmem:[#allocation2 + $0x4f0] sm:$0xff]
        %v5796 = vld [vmem:[#allocation2 + $0x4f8] sm:$0xff]
        %v5797 = vld [vmem:[#allocation2 + $0x500] sm:$0xff]
        %v5798 = vld [vmem:[#allocation2 + $0x508] sm:$0xff]
        %v5799 = vld [vmem:[#allocation2 + $0x510] sm:$0xff]
        %v5800 = vld [vmem:[#allocation2 + $0x518] sm:$0xff]
        %v5801 = vld [vmem:[#allocation2 + $0x520] sm:$0xff]
        %v5802 = vld [vmem:[#allocation2 + $0x528] sm:$0xff]
        %v5803 = vld [vmem:[#allocation2 + $0x530] sm:$0xff]
        %v5804 = vld [vmem:[#allocation2 + $0x538] sm:$0xff]
        %v5805 = vld [vmem:[#allocation2 + $0x540] sm:$0xff]
        %v5806 = vld [vmem:[#allocation2 + $0x548] sm:$0xff]
        %v5807 = vld [vmem:[#allocation2 + $0x550] sm:$0xff]
        %v5808 = vld [vmem:[#allocation2 + $0x558] sm:$0xff]
        %v5809 = vld [vmem:[#allocation2 + $0x560] sm:$0xff]
        %v5810 = vld [vmem:[#allocation2 + $0x568] sm:$0xff]
        %v5811 = vld [vmem:[#allocation2 + $0x570] sm:$0xff]
        %v5812 = vld [vmem:[#allocation2 + $0x578] sm:$0xff]
        %v5813 = vld [vmem:[#allocation2 + $0x580] sm:$0xff]
        %v5814 = vld [vmem:[#allocation2 + $0x588] sm:$0xff]
        %v5815 = vld [vmem:[#allocation2 + $0x590] sm:$0xff]
        %v5816 = vld [vmem:[#allocation2 + $0x598] sm:$0xff]
        %v5817 = vld [vmem:[#allocation2 + $0x5a0] sm:$0xff]
        %v5818 = vld [vmem:[#allocation2 + $0x5a8] sm:$0xff]
        %v5819 = vld [vmem:[#allocation2 + $0x5b0] sm:$0xff]
        %v5820 = vld [vmem:[#allocation2 + $0x5b8] sm:$0xff]
        %v5821 = vld [vmem:[#allocation2 + $0x5c0] sm:$0xff]
        %v5822 = vld [vmem:[#allocation2 + $0x5c8] sm:$0xff]
        %v5823 = vld [vmem:[#allocation2 + $0x5d0] sm:$0xff]
        %v5824 = vld [vmem:[#allocation2 + $0x5d8] sm:$0xff]
        %v5825 = vld [vmem:[#allocation2 + $0x5e0] sm:$0xff]
        %v5826 = vld [vmem:[#allocation2 + $0x5e8] sm:$0xff]
        %v5827 = vld [vmem:[#allocation2 + $0x5f0] sm:$0xff]
        %v5828 = vld [vmem:[#allocation2 + $0x5f8] sm:$0xff]
        %v5829 = vld [vmem:[#allocation2 + $0x600] sm:$0xff]
        %v5830 = vld [vmem:[#allocation2 + $0x608] sm:$0xff]
        %v5831 = vld [vmem:[#allocation2 + $0x610] sm:$0xff]
        %v5832 = vld [vmem:[#allocation2 + $0x618] sm:$0xff]
        %v5833 = vld [vmem:[#allocation2 + $0x620] sm:$0xff]
        %v5834 = vld [vmem:[#allocation2 + $0x628] sm:$0xff]
        %v5835 = vld [vmem:[#allocation2 + $0x630] sm:$0xff]
        %v5836 = vld [vmem:[#allocation2 + $0x638] sm:$0xff]
        %v5837 = vld [vmem:[%s7] sm:$0xf]
        %5839 = vset.pattern.permute.xlu0 0
        %5840 = vperm.xlu0 %5839, %v5837
        %v5841 = vpop.permute.xlu0 %5840
        %v5847 = vcombine.high %v5633, %v5633
        %v5848 = vcombine.high %v5634, %v5634
        %v5849 = vcombine.high %v5635, %v5635
        %v5853 = vsel %vm2040, %v5636, 0
        %5855 = vmatprep.subr.mxu0 %v5668
        %5856 = vmatpush1.msra.mxu0 %v5667
        %5857 = vmatprep.subr.mxu0 %v5666
        %5858 = vmatpush1.msra.mxu0 %v5665
        %5859 = vmatprep.subr.mxu0 %v5664
        %5860 = vmatpush1.msra.mxu0 %v5663
        %5861 = vmatprep.subr.mxu0 %v5662
        %5862 = vmatpush1.msra.mxu0 %v5661
        %5863 = vmatprep.subr.mxu0 %v5660
        %5864 = vmatpush1.msra.mxu0 %v5659
        %5865 = vmatprep.subr.mxu0 %v5658
        %5866 = vmatpush1.msra.mxu0 %v5657
        %5867 = vmatprep.subr.mxu0 %v5656
        %5868 = vmatpush1.msra.mxu0 %v5655
        %5869 = vmatprep.subr.mxu0 %v5654
        %5870 = vmatpush1.msra.mxu0 %v5653
        %5871 = vmatprep.subr.mxu0 %v5652
        %5872 = vmatpush1.msra.mxu0 %v5651
        %5873 = vmatprep.subr.mxu0 %v5650
        %5874 = vmatpush1.msra.mxu0 %v5649
        %5875 = vmatprep.subr.mxu0 %v5648
        %5876 = vmatpush1.msra.mxu0 %v5647
        %5877 = vmatprep.subr.mxu0 %v5646
        %5878 = vmatpush1.msra.mxu0 %v5645
        %5879 = vmatprep.subr.mxu0 %v5644
        %5880 = vmatpush1.msra.mxu0 %v5643
        %5881 = vmatprep.subr.mxu0 %v5642
        %5882 = vmatpush1.msra.mxu0 %v5641
        %5883 = vmatprep.subr.mxu0 %v5640
        %5884 = vmatpush1.msra.mxu0 %v5639
        %5885 = vmatprep.subr.mxu0 %v5638
        %5886 = vmatpush1.msra.mxu0 %v5637
        %5887 = vmatprep.subr.mxu0 %v5700
        %5888 = vmatpush2.msra.mxu0 %v5699
        %5889 = vmatprep.subr.mxu0 %v5698
        %5890 = vmatpush2.msra.mxu0 %v5697
        %5891 = vmatprep.subr.mxu0 %v5696
        %5892 = vmatpush2.msra.mxu0 %v5695
        %5893 = vmatprep.subr.mxu0 %v5694
        %5894 = vmatpush2.msra.mxu0 %v5693
        %5895 = vmatprep.subr.mxu0 %v5692
        %5896 = vmatpush2.msra.mxu0 %v5691
        %5897 = vmatprep.subr.mxu0 %v5690
        %5898 = vmatpush2.msra.mxu0 %v5689
        %5899 = vmatprep.subr.mxu0 %v5688
        %5900 = vmatpush2.msra.mxu0 %v5687
        %5901 = vmatprep.subr.mxu0 %v5686
        %5902 = vmatpush2.msra.mxu0 %v5685
        %5903 = vmatprep.subr.mxu0 %v5684
        %5904 = vmatpush2.msra.mxu0 %v5683
        %5905 = vmatprep.subr.mxu0 %v5682
        %5906 = vmatpush2.msra.mxu0 %v5681
        %5907 = vmatprep.subr.mxu0 %v5680
        %5908 = vmatpush2.msra.mxu0 %v5679
        %5909 = vmatprep.subr.mxu0 %v5678
        %5910 = vmatpush2.msra.mxu0 %v5677
        %5911 = vmatprep.subr.mxu0 %v5676
        %5912 = vmatpush2.msra.mxu0 %v5675
        %5913 = vmatprep.subr.mxu0 %v5674
        %5914 = vmatpush2.msra.mxu0 %v5673
        %5915 = vmatprep.subr.mxu0 %v5672
        %5916 = vmatpush2.msra.mxu0 %v5671
        %5917 = vmatprep.subr.mxu0 %v5670
        %5918 = vmatpush2.msra.mxu0 %v5669
        %5919 = vmatprep.mubr.f32.mxu0 %v5847
        %5920 = vmatmul.mubr.f32.gmra.mxu0 %v5633
        %v5921 = vpop.f32.mrf.mxu0
        %v5922 = vadd.f32 %v5841, %v5921
        %v5923 = vpop.f32.mrf.mxu0
        %v5924 = vadd.f32 %v5841, %v5923
        %5925 = vdwg.mxu0
        %5926 = vmatprep.subr.mxu0 %v5732
        %5927 = vmatpush1.msra.mxu0 %v5731
        %5928 = vmatprep.subr.mxu0 %v5730
        %5929 = vmatpush1.msra.mxu0 %v5729
        %5930 = vmatprep.subr.mxu0 %v5728
        %5931 = vmatpush1.msra.mxu0 %v5727
        %5932 = vmatprep.subr.mxu0 %v5726
        %5933 = vmatpush1.msra.mxu0 %v5725
        %5934 = vmatprep.subr.mxu0 %v5724
        %5935 = vmatpush1.msra.mxu0 %v5723
        %5936 = vmatprep.subr.mxu0 %v5722
        %5937 = vmatpush1.msra.mxu0 %v5721
        %5938 = vmatprep.subr.mxu0 %v5720
        %5939 = vmatpush1.msra.mxu0 %v5719
        %5940 = vmatprep.subr.mxu0 %v5718
        %5941 = vmatpush1.msra.mxu0 %v5717
        %5942 = vmatprep.subr.mxu0 %v5716
        %5943 = vmatpush1.msra.mxu0 %v5715
        %5944 = vmatprep.subr.mxu0 %v5714
        %5945 = vmatpush1.msra.mxu0 %v5713
        %5946 = vmatprep.subr.mxu0 %v5712
        %5947 = vmatpush1.msra.mxu0 %v5711
        %5948 = vmatprep.subr.mxu0 %v5710
        %5949 = vmatpush1.msra.mxu0 %v5709
        %5950 = vmatprep.subr.mxu0 %v5708
        %5951 = vmatpush1.msra.mxu0 %v5707
        %5952 = vmatprep.subr.mxu0 %v5706
        %5953 = vmatpush1.msra.mxu0 %v5705
        %5954 = vmatprep.subr.mxu0 %v5704
        %5955 = vmatpush1.msra.mxu0 %v5703
        %5956 = vmatprep.subr.mxu0 %v5702
        %5957 = vmatpush1.msra.mxu0 %v5701
        %5958 = vmatprep.subr.mxu0 %v5764
        %5959 = vmatpush2.msra.mxu0 %v5763
        %5960 = vmatprep.subr.mxu0 %v5762
        %5961 = vmatpush2.msra.mxu0 %v5761
        %5962 = vmatprep.subr.mxu0 %v5760
        %5963 = vmatpush2.msra.mxu0 %v5759
        %5964 = vmatprep.subr.mxu0 %v5758
        %5965 = vmatpush2.msra.mxu0 %v5757
        %5966 = vmatprep.subr.mxu0 %v5756
        %5967 = vmatpush2.msra.mxu0 %v5755
        %5968 = vmatprep.subr.mxu0 %v5754
        %5969 = vmatpush2.msra.mxu0 %v5753
        %5970 = vmatprep.subr.mxu0 %v5752
        %5971 = vmatpush2.msra.mxu0 %v5751
        %5972 = vmatprep.subr.mxu0 %v5750
        %5973 = vmatpush2.msra.mxu0 %v5749
        %5974 = vmatprep.subr.mxu0 %v5748
        %5975 = vmatpush2.msra.mxu0 %v5747
        %5976 = vmatprep.subr.mxu0 %v5746
        %5977 = vmatpush2.msra.mxu0 %v5745
        %5978 = vmatprep.subr.mxu0 %v5744
        %5979 = vmatpush2.msra.mxu0 %v5743
        %5980 = vmatprep.subr.mxu0 %v5742
        %5981 = vmatpush2.msra.mxu0 %v5741
        %5982 = vmatprep.subr.mxu0 %v5740
        %5983 = vmatpush2.msra.mxu0 %v5739
        %5984 = vmatprep.subr.mxu0 %v5738
        %5985 = vmatpush2.msra.mxu0 %v5737
        %5986 = vmatprep.subr.mxu0 %v5736
        %5987 = vmatpush2.msra.mxu0 %v5735
        %5988 = vmatprep.subr.mxu0 %v5734
        %5989 = vmatpush2.msra.mxu0 %v5733
        %5990 = vmatprep.mubr.f32.mxu0 %v5848
        %5991 = vmatmul.mubr.f32.gmra.mxu0 %v5634
        %v5992 = vpop.f32.mrf.mxu0
        %v5993 = vadd.f32 %v5922, %v5992
        %v5994 = vpop.f32.mrf.mxu0
        %v5995 = vadd.f32 %v5924, %v5994
        %5996 = vdwg.mxu0
        %5997 = vmatprep.subr.mxu0 %v5796
        %5998 = vmatpush1.msra.mxu0 %v5795
        %5999 = vmatprep.subr.mxu0 %v5794
        %6000 = vmatpush1.msra.mxu0 %v5793
        %6001 = vmatprep.subr.mxu0 %v5792
        %6002 = vmatpush1.msra.mxu0 %v5791
        %6003 = vmatprep.subr.mxu0 %v5790
        %6004 = vmatpush1.msra.mxu0 %v5789
        %6005 = vmatprep.subr.mxu0 %v5788
        %6006 = vmatpush1.msra.mxu0 %v5787
        %6007 = vmatprep.subr.mxu0 %v5786
        %6008 = vmatpush1.msra.mxu0 %v5785
        %6009 = vmatprep.subr.mxu0 %v5784
        %6010 = vmatpush1.msra.mxu0 %v5783
        %6011 = vmatprep.subr.mxu0 %v5782
        %6012 = vmatpush1.msra.mxu0 %v5781
        %6013 = vmatprep.subr.mxu0 %v5780
        %6014 = vmatpush1.msra.mxu0 %v5779
        %6015 = vmatprep.subr.mxu0 %v5778
        %6016 = vmatpush1.msra.mxu0 %v5777
        %6017 = vmatprep.subr.mxu0 %v5776
        %6018 = vmatpush1.msra.mxu0 %v5775
        %6019 = vmatprep.subr.mxu0 %v5774
        %6020 = vmatpush1.msra.mxu0 %v5773
        %6021 = vmatprep.subr.mxu0 %v5772
        %6022 = vmatpush1.msra.mxu0 %v5771
        %6023 = vmatprep.subr.mxu0 %v5770
        %6024 = vmatpush1.msra.mxu0 %v5769
        %6025 = vmatprep.subr.mxu0 %v5768
        %6026 = vmatpush1.msra.mxu0 %v5767
        %6027 = vmatprep.subr.mxu0 %v5766
        %6028 = vmatpush1.msra.mxu0 %v5765
        %6029 = vmatprep.subr.mxu0 %v5828
        %6030 = vmatpush2.msra.mxu0 %v5827
        %6031 = vmatprep.subr.mxu0 %v5826
        %6032 = vmatpush2.msra.mxu0 %v5825
        %6033 = vmatprep.subr.mxu0 %v5824
        %6034 = vmatpush2.msra.mxu0 %v5823
        %6035 = vmatprep.subr.mxu0 %v5822
        %6036 = vmatpush2.msra.mxu0 %v5821
        %6037 = vmatprep.subr.mxu0 %v5820
        %6038 = vmatpush2.msra.mxu0 %v5819
        %6039 = vmatprep.subr.mxu0 %v5818
        %6040 = vmatpush2.msra.mxu0 %v5817
        %6041 = vmatprep.subr.mxu0 %v5816
        %6042 = vmatpush2.msra.mxu0 %v5815
        %6043 = vmatprep.subr.mxu0 %v5814
        %6044 = vmatpush2.msra.mxu0 %v5813
        %6045 = vmatprep.subr.mxu0 %v5812
        %6046 = vmatpush2.msra.mxu0 %v5811
        %6047 = vmatprep.subr.mxu0 %v5810
        %6048 = vmatpush2.msra.mxu0 %v5809
        %6049 = vmatprep.subr.mxu0 %v5808
        %6050 = vmatpush2.msra.mxu0 %v5807
        %6051 = vmatprep.subr.mxu0 %v5806
        %6052 = vmatpush2.msra.mxu0 %v5805
        %6053 = vmatprep.subr.mxu0 %v5804
        %6054 = vmatpush2.msra.mxu0 %v5803
        %6055 = vmatprep.subr.mxu0 %v5802
        %6056 = vmatpush2.msra.mxu0 %v5801
        %6057 = vmatprep.subr.mxu0 %v5800
        %6058 = vmatpush2.msra.mxu0 %v5799
        %6059 = vmatprep.subr.mxu0 %v5798
        %6060 = vmatpush2.msra.mxu0 %v5797
        %6061 = vmatprep.mubr.f32.mxu0 %v5849
        %6062 = vmatmul.mubr.f32.gmra.mxu0 %v5635
        %v6063 = vpop.f32.mrf.mxu0
        %v6064 = vadd.f32 %v5993, %v6063
        %v6065 = vpop.f32.mrf.mxu0
        %v6066 = vadd.f32 %v5995, %v6065
        %6067 = vdwg.mxu0
        %6068 = vmatprep.subr.mxu0 0.0
        %6069 = vmatpush1.msra.mxu0 0.0
        %6070 = vmatprep.subr.mxu0 0.0
        %6071 = vmatpush1.msra.mxu0 0.0
        %6072 = vmatprep.subr.mxu0 0.0
        %6073 = vmatpush1.msra.mxu0 0.0
        %6074 = vmatprep.subr.mxu0 0.0
        %6075 = vmatpush1.msra.mxu0 0.0
        %6076 = vmatprep.subr.mxu0 0.0
        %6077 = vmatpush1.msra.mxu0 0.0
        %6078 = vmatprep.subr.mxu0 0.0
        %6079 = vmatpush1.msra.mxu0 0.0
        %6080 = vmatprep.subr.mxu0 0.0
        %6081 = vmatpush1.msra.mxu0 0.0
        %6082 = vmatprep.subr.mxu0 0.0
        %6083 = vmatpush1.msra.mxu0 0.0
        %6084 = vmatprep.subr.mxu0 0.0
        %6085 = vmatpush1.msra.mxu0 0.0
        %6086 = vmatprep.subr.mxu0 0.0
        %6087 = vmatpush1.msra.mxu0 0.0
        %6088 = vmatprep.subr.mxu0 0.0
        %6089 = vmatpush1.msra.mxu0 0.0
        %6090 = vmatprep.subr.mxu0 0.0
        %6091 = vmatpush1.msra.mxu0 0.0
        %6092 = vmatprep.subr.mxu0 %v5836
        %6093 = vmatpush1.msra.mxu0 %v5835
        %6094 = vmatprep.subr.mxu0 %v5834
        %6095 = vmatpush1.msra.mxu0 %v5833
        %6096 = vmatprep.subr.mxu0 %v5832
        %6097 = vmatpush1.msra.mxu0 %v5831
        %6098 = vmatprep.subr.mxu0 %v5830
        %6099 = vmatpush1.msra.mxu0 %v5829
        %6100 = vmatprep.subr.mxu0 0.0
        %6101 = vmatpush2.msra.mxu0 0.0
        %6102 = vmatprep.subr.mxu0 0.0
        %6103 = vmatpush2.msra.mxu0 0.0
        %6104 = vmatprep.subr.mxu0 0.0
        %6105 = vmatpush2.msra.mxu0 0.0
        %6106 = vmatprep.subr.mxu0 0.0
        %6107 = vmatpush2.msra.mxu0 0.0
        %6108 = vmatprep.subr.mxu0 0.0
        %6109 = vmatpush2.msra.mxu0 0.0
        %6110 = vmatprep.subr.mxu0 0.0
        %6111 = vmatpush2.msra.mxu0 0.0
        %6112 = vmatprep.subr.mxu0 0.0
        %6113 = vmatpush2.msra.mxu0 0.0
        %6114 = vmatprep.subr.mxu0 0.0
        %6115 = vmatpush2.msra.mxu0 0.0
        %6116 = vmatprep.subr.mxu0 0.0
        %6117 = vmatpush2.msra.mxu0 0.0
        %6118 = vmatprep.subr.mxu0 0.0
        %6119 = vmatpush2.msra.mxu0 0.0
        %6120 = vmatprep.subr.mxu0 0.0
        %6121 = vmatpush2.msra.mxu0 0.0
        %6122 = vmatprep.subr.mxu0 0.0
        %6123 = vmatpush2.msra.mxu0 0.0
        %6124 = vmatprep.subr.mxu0 0.0
        %6125 = vmatpush2.msra.mxu0 0.0
        %6126 = vmatprep.subr.mxu0 0.0
        %6127 = vmatpush2.msra.mxu0 0.0
        %6128 = vmatprep.subr.mxu0 0.0
        %6129 = vmatpush2.msra.mxu0 0.0
        %6130 = vmatprep.subr.mxu0 0.0
        %6131 = vmatpush2.msra.mxu0 0.0
        %6132 = vmatprep.mubr.f32.mxu0 0.0
        %6133 = vmatmul.mubr.f32.gmra.mxu0 %v5853
        %v6134 = vpop.f32.mrf.mxu0
        %v6135 = vadd.f32 %v6064, %v6134
        %v6136 = vpop.f32.mrf.mxu0
        %v6137 = vadd.f32 %v6066, %v6136
        %6138 = vdwg.mxu0
        %v6139 = vld [vmem:[%s453] sm:$0xff]
        %v6142 = vcombine.low %v6135, %v6137
        %v6144 = vadd.f32 %v6139, %v6142
        %6145 = vst [vmem:[%s448] sm:$0xff] %v6144
        %s6146 = sand.u32 %s258, 1
        %s6147 = scalar_lea.sflag [#allocation5], %s6146
        %s6148 = sand.u32 %s258, 1
        %s6149 = smul.addr %s6148, 8
        %s6150 = scalar_lea.vmem [#allocation13], %s6149
        // Predicated region
        $region81: #{tpu_custom_call.1} parent=59 // pred_check
          %p6151 = pneg %p268
        $region82: #{tpu_custom_call.1} parent=59 // pred_check_branch
          %6153 = sbr.rel (%p6151) target = $region84
        $region83: #{tpu_custom_call.1} parent=59 // pred_region
          %s6155 = ssub.s32 128, 128
          %6156 = vsyncadd %s6147, %s6155
          %s6157 = smul.addr %s30, 2
          %s6158 = smul.addr %s6157, 64
          %s6159 = scalar_lea.hbm %s10, %s6158
          %s6161 = sshll.u32 %s6150, 4
          %s6162 = int_to_ptr.vmem [resolvable:$true] %s6161
          %6164 = dma.vmem_to_hbm [thread:$0]  %s6162, 128, %s6159, %s6147
        $region84: #{tpu_custom_call.1} parent=59 // pred_fallthru
          _
      $region60: #{tpu_custom_call.1} parent=5 // pred_fallthru
        _
      %p6165 = scmp.le.s32.totalorder 2, %s25
      // Predicated region
      $region85: #{tpu_custom_call.1} parent=5 // pred_check
        %p6166 = pneg %p6165
      $region86: #{tpu_custom_call.1} parent=5 // pred_check_branch
        %6168 = sbr.rel (%p6166) target = $region88
      $region87: #{tpu_custom_call.1} parent=5 // pred_region
        %s6169 = ssub.s32 %s25, 2
        // Predicated region
        $region89: #{tpu_custom_call.1} parent=87 // pred_check
          %p6170 = pneg %p274
        $region90: #{tpu_custom_call.1} parent=87 // pred_check_branch
          %6172 = sbr.rel (%p6170) target = $region92
        $region91: #{tpu_custom_call.1} parent=87 // pred_region
          %s6173 = sand.u32 %s259, 1
          %s6174 = scalar_lea.sflag [#allocation5], %s6173
          %s6175 = sand.u32 %s259, 1
          %s6176 = smul.addr %s6175, 8
          %s6177 = scalar_lea.vmem [#allocation13], %s6176
          %6178 = dma.done %s6174, 128
        $region92: #{tpu_custom_call.1} parent=87 // pred_fallthru
          _
      $region88: #{tpu_custom_call.1} parent=5 // pred_fallthru
        _
    $region6: #{tpu_custom_call.1} parent=1 // loop_footer
      %s29 = sadd.s32 1, %s25
    $region7: #{tpu_custom_call.1} parent=1 // loop_footer_branch
      %24 = sbr.rel target = $region3
    $region8: #{tpu_custom_call.1} parent=1 // loop_exit
      _
    %6179 = vsyncpa [#allocation4], 1
    %s6180 = scalar_lea.sflag [#allocation4], 1
    %6181 = vsyncpa %s6180, 1
    %6182 = vsyncpa [#allocation8], 1
    %6183 = vsyncpa [#allocation11], 1
    %6184 = vsyncpa [#allocation5], 1
    %s6185 = scalar_lea.sflag [#allocation5], 1
    %6186 = vsyncpa %s6185, 1
    %6187 = vsyncpa [#allocation6], 1
    %s6188 = scalar_lea.sflag [#allocation6], 1
    %6189 = vsyncpa %s6188, 1

</llo_original>
